<compile_context>
chip_gen: v7x
topology: tpu7x:2x2x1
jax: 0.10.0
libtpu: 0.0.40
codegen_flags: <defaults>
</compile_context>

<pallas_src>
import numpy as np
import jax
import jax.numpy as jnp
from jax.experimental import pallas as pl
from jax.experimental.pallas import tpu as pltpu


# ----------------------------- static layout constants ------------------------
BN = 8                  # images per grid step (block); 8-32 keeps v7x VMEM happy
R1 = 32                 # rows/image in the conv1 input slab (30 padded rows + 2 align rows)
R2 = 16                 # rows/image in the conv2 / conv3 input slabs (14+2 and 7+2, padded)
H1 = BN * R1            # 256   conv1 accumulator rows per block
H2 = BN * R2            # 128   conv2 / conv3 accumulator rows per block
SLAB = H2 + 8           # 136   intermediate-slab rows (8 trailing zero rows for row shifts)
X_ROWS = H1 + 8         # 264   conv1 input-slab rows per block


# ----------------------------- fused Pallas kernel ----------------------------

def _fused_net_kernel(x_ref, wb1_ref, bb1_ref, s1_ref, m2_ref,
                      wb2_ref, bb2_ref, s2_ref, m3_ref,
                      wb3_ref, bb3_ref, ffc_ref, w4_ref, b4_ref,
                      w5_ref, b5_ref, o_ref, slab2_ref, slab3_ref):
    f32 = jnp.float32

    # ---- conv1 (banded GEMM, 3 row-shifted block-wide matmuls) + ReLU + 2x2 pool
    acc1 = jnp.zeros((H1, 256), f32)
    for kh in range(3):
        acc1 = acc1 + jnp.dot(x_ref[pl.ds(kh, H1), :], wb1_ref[kh],
                              preferred_element_type=f32)
    hsel = jnp.dot(s1_ref[...], acc1, preferred_element_type=f32)     # (2*SLAB, 256)
    hmax = jnp.maximum(hsel[:SLAB, :], hsel[SLAB:, :])                # h-direction pool
    wmax = jnp.maximum(hmax[:, :128], hmax[:, 128:])                  # w-direction pool
    # bias (zero on pad cols) + ReLU, then kill bias on pad/garbage rows.
    slab2_ref[...] = m2_ref[...] * jnp.maximum(wmax + bb1_ref[...], 0.0)

    # ---- conv2 + ReLU + 2x2 pool ------------------------------------------------
    acc2 = jnp.zeros((H2, 288), f32)
    for kh in range(3):
        acc2 = acc2 + jnp.dot(slab2_ref[pl.ds(kh, H2), :], wb2_ref[kh],
                              preferred_element_type=f32)
    hsel = jnp.dot(s2_ref[...], acc2, preferred_element_type=f32)     # (2*SLAB, 288)
    hmax = jnp.maximum(hsel[:SLAB, :], hsel[SLAB:, :])
    wmax = jnp.maximum(hmax[:, :144], hmax[:, 144:])
    slab3_ref[...] = m3_ref[...] * jnp.maximum(wmax + bb2_ref[...], 0.0)

    # ---- conv3 + ReLU -----------------------------------------------------------
    acc3 = jnp.zeros((H2, 224), f32)
    for kh in range(3):
        acc3 = acc3 + jnp.dot(slab3_ref[pl.ds(kh, H2), :], wb3_ref[kh],
                              preferred_element_type=f32)
    y3 = jnp.maximum(acc3 + bb3_ref[...], 0.0)                        # (H2, 224)

    # ---- flatten (row-selection matmul) + FC1 + ReLU + dropout(id) + FC2 --------
    # g row (h*BN + n) = y3 row (n*R2 + h)  ->  torch's (c,h,w) flatten order is
    # already folded into the W4 permutation done at init.
    g = jnp.dot(ffc_ref[...], y3, preferred_element_type=f32)         # (7*BN, 224)
    q4 = jnp.zeros((BN, 200), f32)
    for h in range(7):
        q4 = q4 + jnp.dot(g[h * BN:(h + 1) * BN, :], w4_ref[h],
                          preferred_element_type=f32)
    q4 = jnp.maximum(q4 + b4_ref[...], 0.0)
    # TODO(synk): nn.Dropout(p=0.25) -> eval-mode identity (no train-mode masking).
    z = jnp.dot(q4, w5_ref[...], preferred_element_type=f32) + b5_ref[...]
    o_ref[...] = z


# ------------------------------- forward wrapper -------------------------------

_WEIGHT_KEYS = ("Wb1", "bb1", "S1", "M2", "Wb2", "bb2", "S2", "M3",
                "Wb3", "bb3", "Ffc", "W4p3", "b4r", "W5p", "b5r")


def _const_spec(a):
    nd = a.ndim
    return pl.BlockSpec(a.shape, lambda i, _nd=nd: (0,) * _nd)   # resident weights


def net_forward(x_nchw, Q):
    n = x_nchw.shape[0]
    nb = -(-n // BN)                       # blocks of BN images
    n_pad = nb * BN

    # conv1 input slab: rows = (image, padded h), cols = (padded w * Cin), Cin = 1.
    img = x_nchw[:, 0, :, :]                                           # (n, 28, 28)
    img = jnp.pad(img, ((0, n_pad - n), (1, 1), (1, 1)))               # (n_pad, 30, 30)
    img = jnp.pad(img, ((0, 0), (0, R1 - 30), (0, 0)))                 # (n_pad, 32, 30)
    xblk = img.reshape(nb, BN * R1, 30)
    xblk = jnp.pad(xblk, ((0, 0), (0, X_ROWS - BN * R1), (0, 0)))      # (nb, 264, 30)
    x2 = xblk.reshape(nb * X_ROWS, 30)

    weights = [Q[k] for k in _WEIGHT_KEYS]

    out = pl.pallas_call(
        _fused_net_kernel,
        out_shape=jax.ShapeDtypeStruct((n_pad, 128), jnp.float32),
        grid=(nb,),
        in_specs=[pl.BlockSpec((X_ROWS, 30), lambda i: (i, 0))]
                 + [_const_spec(a) for a in weights],
        out_specs=pl.BlockSpec((BN, 128), lambda i: (i, 0)),
        scratch_shapes=[pltpu.VMEM((SLAB, 128), jnp.float32),   # conv2 input slab
                        pltpu.VMEM((SLAB, 144), jnp.float32)],  # conv3 input slab
        compiler_params=pltpu.CompilerParams(
            dimension_semantics=("parallel",)),
    )(x2, *weights)
    return out[:n, :10]


# ------------------- one-time weight folding (done at init) -------------------

def _band_select(width_out, kw, parity=None):
    """0/1 placement matrix mapping padded-input column w_p to output column.

    parity=None : plain conv, output cols w in [0, width_out):         w_p = w + kw
    parity=0/1  : w-pooled + re-padded cols wq in [1, width_out//2+1): w_p = 2*(wq-1)+parity+kw
                  (zero on the pad columns wq=0 and wq=Wh+1)
    """
    wp = width_out + 2
    if parity is None:
        m = np.zeros((wp, width_out), np.float32)
        for w in range(width_out):
            m[w + kw, w] = 1.0
    else:
        wh = width_out // 2
        m = np.zeros((wp, wh + 2), np.float32)
        for wq in range(1, wh + 1):
            m[2 * (wq - 1) + parity + kw, wq] = 1.0
    return m


def banded_conv_weights(wt, width, *, pooled):
    """torch-layout (Cout, Cin, 3, 3) -> banded GEMM weights (3, (width+2)*Cin, cols)."""
    cout, cin, kh_n, kw_n = wt.shape
    per_kh = []
    for kh in range(kh_n):
        blocks = []
        parities = (0, 1) if pooled else (None,)
        for parity in parities:
            acc = None
            for kw in range(kw_n):
                sel = jnp.asarray(_band_select(width, kw, parity))
                piece = jnp.kron(sel, wt[:, :, kh, kw].T)   # rows (w_p, cin), cols (w, cout)
                acc = piece if acc is None else acc + piece
            blocks.append(acc)
        per_kh.append(jnp.concatenate(blocks, axis=1) if pooled else blocks[0])
    return jnp.stack(per_kh, axis=0)


def conv_bias_row(b, width, *, pooled):
    cout = b.shape[0]
    if pooled:
        wh = width // 2
        mask = np.zeros((wh + 2, 1), np.float32)
        mask[1:wh + 1, 0] = 1.0
        row = jnp.asarray(mask) * b[None, :]          # (wh+2, cout), zero on pad cols
        return row.reshape(1, (wh + 2) * cout)
    return jnp.tile(b, (width,)).reshape(1, width * cout)


def block_pool_select(r_in, h_out):
    """(2*SLAB, BN*r_in) 0/1: top half picks even conv-output rows, bottom half odd
    rows, scattered directly into the padded rows of the next layer's slab."""
    h_half = h_out // 2
    m = np.zeros((2 * SLAB, BN * r_in), np.float32)
    for n in range(BN):
        for hq in range(h_half):
            dst = n * R2 + hq + 1
            m[dst, n * r_in + 2 * hq] = 1.0
            m[SLAB + dst, n * r_in + 2 * hq + 1] = 1.0
    return jnp.asarray(m)


def block_row_mask(n_valid):
    """(SLAB, 1) 0/1 mask: 1 on the valid (non-pad) rows of each image's 16-row chunk."""
    m = np.zeros((SLAB, 1), np.float32)
    for n in range(BN):
        m[n * R2 + 1:n * R2 + 1 + n_valid, 0] = 1.0
    return jnp.asarray(m)


def block_fc_select():
    """(7*BN, H2) 0/1: row h*BN + n selects conv3-output row (n*R2 + h)."""
    m = np.zeros((7 * BN, H2), np.float32)
    for h in range(7):
        for n in range(BN):
            m[h * BN + n, n * R2 + h] = 1.0
    return jnp.asarray(m)


def init_params(key):
    U1, U2, U3, U3flat, U4 = 8, 16, 32, 1568, 200
    ks = jax.random.split(key, 5)
    return {
        "W1": 0.1 * jax.random.normal(ks[0], (U1, 1, 3, 3), jnp.float32),
        "b1": jnp.ones((U1,), jnp.float32) / 10,
        "W2": 0.1 * jax.random.normal(ks[1], (U2, U1, 3, 3), jnp.float32),
        "b2": jnp.ones((U2,), jnp.float32) / 10,
        "W3": 0.1 * jax.random.normal(ks[2], (U3, U2, 3, 3), jnp.float32),
        "b3": jnp.ones((U3,), jnp.float32) / 10,
        "W4": 0.1 * jax.random.normal(ks[3], (U3flat, U4), jnp.float32),
        "b4": jnp.ones((U4,), jnp.float32) / 10,
        "W5": 0.1 * jax.random.normal(ks[4], (U4, 10), jnp.float32),
        "b5": jnp.ones((10,), jnp.float32) / 10,
    }


def preprocess_params(P):
    """Fold conv kernels / pooling / flatten order into block-level GEMM operands."""
    Q = {}
    Q["Wb1"] = banded_conv_weights(P["W1"], 28, pooled=True)    # (3, 30, 256)
    Q["bb1"] = conv_bias_row(P["b1"], 28, pooled=True)          # (1, 128)
    Q["Wb2"] = banded_conv_weights(P["W2"], 14, pooled=True)    # (3, 128, 288)
    Q["bb2"] = conv_bias_row(P["b2"], 14, pooled=True)          # (1, 144)
    Q["Wb3"] = banded_conv_weights(P["W3"], 7, pooled=False)    # (3, 144, 224)
    Q["bb3"] = conv_bias_row(P["b3"], 7, pooled=False)          # (1, 224)
    Q["S1"] = block_pool_select(R1, 28)                         # (272, 256)
    Q["S2"] = block_pool_select(R2, 14)                         # (272, 128)
    Q["M2"] = block_row_mask(14)                                # (136, 1)
    Q["M3"] = block_row_mask(7)                                 # (136, 1)
    Q["Ffc"] = block_fc_select()                                # (56, 128)
    # torch flattens Q3 as (c, h, w); our conv3 slab rows are (h) with cols (w, c).
    Q["W4p3"] = (P["W4"].reshape(32, 7, 7, 200)
                 .transpose(1, 2, 0, 3).reshape(7, 224, 200))   # (7, 224, 200)
    Q["b4r"] = P["b4"].reshape(1, 200)
    Q["W5p"] = jnp.pad(P["W5"], ((0, 0), (0, 118)))             # (200, 128) lane-dense out
    Q["b5r"] = jnp.pad(P["b5"], (0, 118)).reshape(1, 128)
    return Q


# ------------------------ pure-JAX reference (check) ---------------------------

def reference_forward(x_nchw, P):
    prec = jax.lax.Precision.HIGHEST          # ground-truth reference

    def conv(x, W, b):
        y = jax.lax.conv_general_dilated(
            x, W, window_strides=(1, 1), padding=((1, 1), (1, 1)),
            dimension_numbers=("NCHW", "OIHW", "NCHW"), precision=prec)
        return jax.nn.relu(y + b[None, :, None, None])

    def pool(x):
        return jax.lax.reduce_window(x, -jnp.inf, jax.lax.max,
                                     (1, 1, 2, 2), (1, 1, 2, 2), "VALID")

    m1 = pool(conv(x_nchw, P["W1"], P["b1"]))
    m2 = pool(conv(m1, P["W2"], P["b2"]))
    q3 = conv(m2, P["W3"], P["b3"])
    q3f = q3.reshape(x_nchw.shape[0], -1)
    q4 = jax.nn.relu(jnp.dot(q3f, P["W4"], precision=prec) + P["b4"])
    return jnp.dot(q4, P["W5"], precision=prec) + P["b5"]


# ----------------------------------- main --------------------------------------

if __name__ == "__main__":
    key = jax.random.PRNGKey(0)
    kx, kp = jax.random.split(key)
    # Input must be (N, 1, 28, 28) so that 32 * 7 * 7 == 1568 matches the module.
    x = jax.random.normal(kx, (2, 1, 28, 28), jnp.float32)
    P = init_params(kp)
    Q = preprocess_params(P)

    fwd = jax.jit(net_forward)
    out = jax.block_until_ready(fwd(x, Q))

    ref = reference_forward(x, P)
    assert out.shape == (2, 10) and out.dtype == jnp.float32
    # In-kernel dots now run at default MXU precision (per perf review); the gate
    # tolerance covers bf16-pass rounding accumulated across the 8-matmul chain.
    # Real layout/indexing bugs produce O(scale) errors and still trip this gate.
    scale = float(jnp.max(jnp.abs(ref)))
    max_err = float(jnp.max(jnp.abs(out - ref)))
    assert max_err <= 7.5e-2 * max(1.0, scale), (max_err, scale)

    print("KERNEL_OK")
</pallas_src>

<mosaic_0001>
module attributes {stable_mosaic.version = 11 : i64} {
  func.func @_fused_net_kernel(%arg0: i32, %arg1: memref<264x30xf32, #tpu.memory_space<vmem>>, %arg2: memref<3x30x256xf32, #tpu.memory_space<vmem>>, %arg3: memref<1x128xf32, #tpu.memory_space<vmem>>, %arg4: memref<272x256xf32, #tpu.memory_space<vmem>>, %arg5: memref<136x1xf32, #tpu.memory_space<vmem>>, %arg6: memref<3x128x288xf32, #tpu.memory_space<vmem>>, %arg7: memref<1x144xf32, #tpu.memory_space<vmem>>, %arg8: memref<272x128xf32, #tpu.memory_space<vmem>>, %arg9: memref<136x1xf32, #tpu.memory_space<vmem>>, %arg10: memref<3x144x224xf32, #tpu.memory_space<vmem>>, %arg11: memref<1x224xf32, #tpu.memory_space<vmem>>, %arg12: memref<56x128xf32, #tpu.memory_space<vmem>>, %arg13: memref<7x224x200xf32, #tpu.memory_space<vmem>>, %arg14: memref<1x200xf32, #tpu.memory_space<vmem>>, %arg15: memref<200x128xf32, #tpu.memory_space<vmem>>, %arg16: memref<1x128xf32, #tpu.memory_space<vmem>>, %arg17: memref<8x128xf32, #tpu.memory_space<vmem>>, %arg18: memref<136x128xf32, #tpu.memory_space<vmem>>, %arg19: memref<136x144xf32, #tpu.memory_space<vmem>>) attributes {dimension_semantics = [#tpu.dimension_semantics<parallel>], iteration_bounds = array<i64: 1>, scalar_prefetch = 0 : i64, scratch_operands = 2 : i64, tpu.core_type = #tpu.core_type<tc>, window_params = [{transform_indices = @transform_0, window_bounds = array<i64: 264, 30>}, {pipeline_mode = #tpu.pipeline_mode<synchronous>, transform_indices = @transform_1, window_bounds = array<i64: 3, 30, 256>}, {pipeline_mode = #tpu.pipeline_mode<synchronous>, transform_indices = @transform_2, window_bounds = array<i64: 1, 128>}, {pipeline_mode = #tpu.pipeline_mode<synchronous>, transform_indices = @transform_3, window_bounds = array<i64: 272, 256>}, {pipeline_mode = #tpu.pipeline_mode<synchronous>, transform_indices = @transform_4, window_bounds = array<i64: 136, 1>}, {pipeline_mode = #tpu.pipeline_mode<synchronous>, transform_indices = @transform_5, window_bounds = array<i64: 3, 128, 288>}, {pipeline_mode = #tpu.pipeline_mode<synchronous>, transform_indices = @transform_6, window_bounds = array<i64: 1, 144>}, {pipeline_mode = #tpu.pipeline_mode<synchronous>, transform_indices = @transform_7, window_bounds = array<i64: 272, 128>}, {pipeline_mode = #tpu.pipeline_mode<synchronous>, transform_indices = @transform_8, window_bounds = array<i64: 136, 1>}, {pipeline_mode = #tpu.pipeline_mode<synchronous>, transform_indices = @transform_9, window_bounds = array<i64: 3, 144, 224>}, {pipeline_mode = #tpu.pipeline_mode<synchronous>, transform_indices = @transform_10, window_bounds = array<i64: 1, 224>}, {pipeline_mode = #tpu.pipeline_mode<synchronous>, transform_indices = @transform_11, window_bounds = array<i64: 56, 128>}, {pipeline_mode = #tpu.pipeline_mode<synchronous>, transform_indices = @transform_12, window_bounds = array<i64: 7, 224, 200>}, {pipeline_mode = #tpu.pipeline_mode<synchronous>, transform_indices = @transform_13, window_bounds = array<i64: 1, 200>}, {pipeline_mode = #tpu.pipeline_mode<synchronous>, transform_indices = @transform_14, window_bounds = array<i64: 200, 128>}, {pipeline_mode = #tpu.pipeline_mode<synchronous>, transform_indices = @transform_15, window_bounds = array<i64: 1, 128>}, {transform_indices = @transform_16, window_bounds = array<i64: 8, 128>}]} {
    %cst = arith.constant 0.000000e+00 : f32
    %0 = vector.broadcast %cst : f32 to vector<256x256xf32>
    %c0 = arith.constant 0 : index
    %c0_0 = arith.constant 0 : index
    %1 = vector.load %arg1[%c0, %c0_0] : memref<264x30xf32, #tpu.memory_space<vmem>>, vector<256x30xf32>
    %c0_1 = arith.constant 0 : index
    %c0_2 = arith.constant 0 : index
    %c0_3 = arith.constant 0 : index
    %2 = vector.load %arg2[%c0_1, %c0_2, %c0_3] : memref<3x30x256xf32, #tpu.memory_space<vmem>>, vector<1x30x256xf32>
    %3 = vector.shape_cast %2 : vector<1x30x256xf32> to vector<30x256xf32>
    %cst_4 = arith.constant dense<0.000000e+00> : vector<256x256xf32>
    %4 = tpu.matmul %1, %3, %cst_4 {dimension_numbers = #tpu.dot_dimension_numbers<[1], [0], [0], [1], [0, 0, 1, 1], [], []>} : vector<256x30xf32>, vector<30x256xf32>, vector<256x256xf32> -> vector<256x256xf32>
    %5 = arith.addf %0, %4 : vector<256x256xf32>
    %c1 = arith.constant 1 : index
    %c0_5 = arith.constant 0 : index
    %6 = vector.load %arg1[%c1, %c0_5] : memref<264x30xf32, #tpu.memory_space<vmem>>, vector<256x30xf32>
    %c1_6 = arith.constant 1 : index
    %c0_7 = arith.constant 0 : index
    %c0_8 = arith.constant 0 : index
    %7 = vector.load %arg2[%c1_6, %c0_7, %c0_8] : memref<3x30x256xf32, #tpu.memory_space<vmem>>, vector<1x30x256xf32>
    %8 = vector.shape_cast %7 : vector<1x30x256xf32> to vector<30x256xf32>
    %cst_9 = arith.constant dense<0.000000e+00> : vector<256x256xf32>
    %9 = tpu.matmul %6, %8, %cst_9 {dimension_numbers = #tpu.dot_dimension_numbers<[1], [0], [0], [1], [0, 0, 1, 1], [], []>} : vector<256x30xf32>, vector<30x256xf32>, vector<256x256xf32> -> vector<256x256xf32>
    %10 = arith.addf %5, %9 : vector<256x256xf32>
    %c2 = arith.constant 2 : index
    %c0_10 = arith.constant 0 : index
    %11 = vector.load %arg1[%c2, %c0_10] : memref<264x30xf32, #tpu.memory_space<vmem>>, vector<256x30xf32>
    %c2_11 = arith.constant 2 : index
    %c0_12 = arith.constant 0 : index
    %c0_13 = arith.constant 0 : index
    %12 = vector.load %arg2[%c2_11, %c0_12, %c0_13] : memref<3x30x256xf32, #tpu.memory_space<vmem>>, vector<1x30x256xf32>
    %13 = vector.shape_cast %12 : vector<1x30x256xf32> to vector<30x256xf32>
    %cst_14 = arith.constant dense<0.000000e+00> : vector<256x256xf32>
    %14 = tpu.matmul %11, %13, %cst_14 {dimension_numbers = #tpu.dot_dimension_numbers<[1], [0], [0], [1], [0, 0, 1, 1], [], []>} : vector<256x30xf32>, vector<30x256xf32>, vector<256x256xf32> -> vector<256x256xf32>
    %15 = arith.addf %10, %14 : vector<256x256xf32>
    %c0_15 = arith.constant 0 : index
    %c0_16 = arith.constant 0 : index
    %16 = vector.load %arg4[%c0_15, %c0_16] : memref<272x256xf32, #tpu.memory_space<vmem>>, vector<272x256xf32>
    %cst_17 = arith.constant dense<0.000000e+00> : vector<272x256xf32>
    %17 = tpu.matmul %16, %15, %cst_17 {dimension_numbers = #tpu.dot_dimension_numbers<[1], [0], [0], [1], [0, 0, 1, 1], [], []>} : vector<272x256xf32>, vector<256x256xf32>, vector<272x256xf32> -> vector<272x256xf32>
    %18 = vector.extract_strided_slice %17 {offsets = [0, 0], sizes = [136, 256], strides = [1, 1]} : vector<272x256xf32> to vector<136x256xf32>
    %19 = vector.extract_strided_slice %17 {offsets = [136, 0], sizes = [136, 256], strides = [1, 1]} : vector<272x256xf32> to vector<136x256xf32>
    %20 = arith.maximumf %18, %19 : vector<136x256xf32>
    %21 = vector.extract_strided_slice %20 {offsets = [0, 0], sizes = [136, 128], strides = [1, 1]} : vector<136x256xf32> to vector<136x128xf32>
    %22 = vector.extract_strided_slice %20 {offsets = [0, 128], sizes = [136, 128], strides = [1, 1]} : vector<136x256xf32> to vector<136x128xf32>
    %23 = arith.maximumf %21, %22 : vector<136x128xf32>
    %c0_18 = arith.constant 0 : index
    %c0_19 = arith.constant 0 : index
    %24 = vector.load %arg5[%c0_18, %c0_19] : memref<136x1xf32, #tpu.memory_space<vmem>>, vector<136x1xf32>
    %c0_20 = arith.constant 0 : index
    %c0_21 = arith.constant 0 : index
    %25 = vector.load %arg3[%c0_20, %c0_21] : memref<1x128xf32, #tpu.memory_space<vmem>>, vector<1x128xf32>
    %26 = vector.broadcast %25 : vector<1x128xf32> to vector<136x128xf32>
    %27 = arith.addf %23, %26 : vector<136x128xf32>
    %cst_22 = arith.constant 0.000000e+00 : f32
    %28 = vector.broadcast %cst_22 : f32 to vector<136x128xf32>
    %29 = arith.maximumf %27, %28 : vector<136x128xf32>
    %30 = vector.broadcast %24 : vector<136x1xf32> to vector<136x128xf32>
    %31 = arith.mulf %30, %29 : vector<136x128xf32>
    %c0_23 = arith.constant 0 : index
    %c0_24 = arith.constant 0 : index
    %32 = vector.load %arg18[%c0_23, %c0_24] : memref<136x128xf32, #tpu.memory_space<vmem>>, vector<136x128xf32>
    tpu.vector_store %arg18[%c0_23, %c0_24], %31 {strides = array<i32>} : memref<136x128xf32, #tpu.memory_space<vmem>>, vector<136x128xf32>,
    %cst_25 = arith.constant 0.000000e+00 : f32
    %33 = vector.broadcast %cst_25 : f32 to vector<128x288xf32>
    %c0_26 = arith.constant 0 : index
    %c0_27 = arith.constant 0 : index
    %34 = vector.load %arg18[%c0_26, %c0_27] : memref<136x128xf32, #tpu.memory_space<vmem>>, vector<128x128xf32>
    %c0_28 = arith.constant 0 : index
    %c0_29 = arith.constant 0 : index
    %c0_30 = arith.constant 0 : index
    %35 = vector.load %arg6[%c0_28, %c0_29, %c0_30] : memref<3x128x288xf32, #tpu.memory_space<vmem>>, vector<1x128x288xf32>
    %36 = vector.shape_cast %35 : vector<1x128x288xf32> to vector<128x288xf32>
    %cst_31 = arith.constant dense<0.000000e+00> : vector<128x288xf32>
    %37 = tpu.matmul %34, %36, %cst_31 {dimension_numbers = #tpu.dot_dimension_numbers<[1], [0], [0], [1], [0, 0, 1, 1], [], []>} : vector<128x128xf32>, vector<128x288xf32>, vector<128x288xf32> -> vector<128x288xf32>
    %38 = arith.addf %33, %37 : vector<128x288xf32>
    %c1_32 = arith.constant 1 : index
    %c0_33 = arith.constant 0 : index
    %39 = vector.load %arg18[%c1_32, %c0_33] : memref<136x128xf32, #tpu.memory_space<vmem>>, vector<128x128xf32>
    %c1_34 = arith.constant 1 : index
    %c0_35 = arith.constant 0 : index
    %c0_36 = arith.constant 0 : index
    %40 = vector.load %arg6[%c1_34, %c0_35, %c0_36] : memref<3x128x288xf32, #tpu.memory_space<vmem>>, vector<1x128x288xf32>
    %41 = vector.shape_cast %40 : vector<1x128x288xf32> to vector<128x288xf32>
    %cst_37 = arith.constant dense<0.000000e+00> : vector<128x288xf32>
    %42 = tpu.matmul %39, %41, %cst_37 {dimension_numbers = #tpu.dot_dimension_numbers<[1], [0], [0], [1], [0, 0, 1, 1], [], []>} : vector<128x128xf32>, vector<128x288xf32>, vector<128x288xf32> -> vector<128x288xf32>
    %43 = arith.addf %38, %42 : vector<128x288xf32>
    %c2_38 = arith.constant 2 : index
    %c0_39 = arith.constant 0 : index
    %44 = vector.load %arg18[%c2_38, %c0_39] : memref<136x128xf32, #tpu.memory_space<vmem>>, vector<128x128xf32>
    %c2_40 = arith.constant 2 : index
    %c0_41 = arith.constant 0 : index
    %c0_42 = arith.constant 0 : index
    %45 = vector.load %arg6[%c2_40, %c0_41, %c0_42] : memref<3x128x288xf32, #tpu.memory_space<vmem>>, vector<1x128x288xf32>
    %46 = vector.shape_cast %45 : vector<1x128x288xf32> to vector<128x288xf32>
    %cst_43 = arith.constant dense<0.000000e+00> : vector<128x288xf32>
    %47 = tpu.matmul %44, %46, %cst_43 {dimension_numbers = #tpu.dot_dimension_numbers<[1], [0], [0], [1], [0, 0, 1, 1], [], []>} : vector<128x128xf32>, vector<128x288xf32>, vector<128x288xf32> -> vector<128x288xf32>
    %48 = arith.addf %43, %47 : vector<128x288xf32>
    %c0_44 = arith.constant 0 : index
    %c0_45 = arith.constant 0 : index
    %49 = vector.load %arg8[%c0_44, %c0_45] : memref<272x128xf32, #tpu.memory_space<vmem>>, vector<272x128xf32>
    %cst_46 = arith.constant dense<0.000000e+00> : vector<272x288xf32>
    %50 = tpu.matmul %49, %48, %cst_46 {dimension_numbers = #tpu.dot_dimension_numbers<[1], [0], [0], [1], [0, 0, 1, 1], [], []>} : vector<272x128xf32>, vector<128x288xf32>, vector<272x288xf32> -> vector<272x288xf32>
    %51 = vector.extract_strided_slice %50 {offsets = [0, 0], sizes = [136, 288], strides = [1, 1]} : vector<272x288xf32> to vector<136x288xf32>
    %52 = vector.extract_strided_slice %50 {offsets = [136, 0], sizes = [136, 288], strides = [1, 1]} : vector<272x288xf32> to vector<136x288xf32>
    %53 = arith.maximumf %51, %52 : vector<136x288xf32>
    %54 = vector.extract_strided_slice %53 {offsets = [0, 0], sizes = [136, 144], strides = [1, 1]} : vector<136x288xf32> to vector<136x144xf32>
    %55 = vector.extract_strided_slice %53 {offsets = [0, 144], sizes = [136, 144], strides = [1, 1]} : vector<136x288xf32> to vector<136x144xf32>
    %56 = arith.maximumf %54, %55 : vector<136x144xf32>
    %c0_47 = arith.constant 0 : index
    %c0_48 = arith.constant 0 : index
    %57 = vector.load %arg9[%c0_47, %c0_48] : memref<136x1xf32, #tpu.memory_space<vmem>>, vector<136x1xf32>
    %c0_49 = arith.constant 0 : index
    %c0_50 = arith.constant 0 : index
    %58 = vector.load %arg7[%c0_49, %c0_50] : memref<1x144xf32, #tpu.memory_space<vmem>>, vector<1x144xf32>
    %59 = vector.broadcast %58 : vector<1x144xf32> to vector<136x144xf32>
    %60 = arith.addf %56, %59 : vector<136x144xf32>
    %cst_51 = arith.constant 0.000000e+00 : f32
    %61 = vector.broadcast %cst_51 : f32 to vector<136x144xf32>
    %62 = arith.maximumf %60, %61 : vector<136x144xf32>
    %63 = vector.broadcast %57 : vector<136x1xf32> to vector<136x144xf32>
    %64 = arith.mulf %63, %62 : vector<136x144xf32>
    %c0_52 = arith.constant 0 : index
    %c0_53 = arith.constant 0 : index
    %65 = vector.load %arg19[%c0_52, %c0_53] : memref<136x144xf32, #tpu.memory_space<vmem>>, vector<136x144xf32>
    tpu.vector_store %arg19[%c0_52, %c0_53], %64 {strides = array<i32>} : memref<136x144xf32, #tpu.memory_space<vmem>>, vector<136x144xf32>,
    %cst_54 = arith.constant 0.000000e+00 : f32
    %66 = vector.broadcast %cst_54 : f32 to vector<128x224xf32>
    %c0_55 = arith.constant 0 : index
    %c0_56 = arith.constant 0 : index
    %67 = vector.load %arg19[%c0_55, %c0_56] : memref<136x144xf32, #tpu.memory_space<vmem>>, vector<128x144xf32>
    %c0_57 = arith.constant 0 : index
    %c0_58 = arith.constant 0 : index
    %c0_59 = arith.constant 0 : index
    %68 = vector.load %arg10[%c0_57, %c0_58, %c0_59] : memref<3x144x224xf32, #tpu.memory_space<vmem>>, vector<1x144x224xf32>
    %69 = vector.shape_cast %68 : vector<1x144x224xf32> to vector<144x224xf32>
    %cst_60 = arith.constant dense<0.000000e+00> : vector<128x224xf32>
    %70 = tpu.matmul %67, %69, %cst_60 {dimension_numbers = #tpu.dot_dimension_numbers<[1], [0], [0], [1], [0, 0, 1, 1], [], []>} : vector<128x144xf32>, vector<144x224xf32>, vector<128x224xf32> -> vector<128x224xf32>
    %71 = arith.addf %66, %70 : vector<128x224xf32>
    %c1_61 = arith.constant 1 : index
    %c0_62 = arith.constant 0 : index
    %72 = vector.load %arg19[%c1_61, %c0_62] : memref<136x144xf32, #tpu.memory_space<vmem>>, vector<128x144xf32>
    %c1_63 = arith.constant 1 : index
    %c0_64 = arith.constant 0 : index
    %c0_65 = arith.constant 0 : index
    %73 = vector.load %arg10[%c1_63, %c0_64, %c0_65] : memref<3x144x224xf32, #tpu.memory_space<vmem>>, vector<1x144x224xf32>
    %74 = vector.shape_cast %73 : vector<1x144x224xf32> to vector<144x224xf32>
    %cst_66 = arith.constant dense<0.000000e+00> : vector<128x224xf32>
    %75 = tpu.matmul %72, %74, %cst_66 {dimension_numbers = #tpu.dot_dimension_numbers<[1], [0], [0], [1], [0, 0, 1, 1], [], []>} : vector<128x144xf32>, vector<144x224xf32>, vector<128x224xf32> -> vector<128x224xf32>
    %76 = arith.addf %71, %75 : vector<128x224xf32>
    %c2_67 = arith.constant 2 : index
    %c0_68 = arith.constant 0 : index
    %77 = vector.load %arg19[%c2_67, %c0_68] : memref<136x144xf32, #tpu.memory_space<vmem>>, vector<128x144xf32>
    %c2_69 = arith.constant 2 : index
    %c0_70 = arith.constant 0 : index
    %c0_71 = arith.constant 0 : index
    %78 = vector.load %arg10[%c2_69, %c0_70, %c0_71] : memref<3x144x224xf32, #tpu.memory_space<vmem>>, vector<1x144x224xf32>
    %79 = vector.shape_cast %78 : vector<1x144x224xf32> to vector<144x224xf32>
    %cst_72 = arith.constant dense<0.000000e+00> : vector<128x224xf32>
    %80 = tpu.matmul %77, %79, %cst_72 {dimension_numbers = #tpu.dot_dimension_numbers<[1], [0], [0], [1], [0, 0, 1, 1], [], []>} : vector<128x144xf32>, vector<144x224xf32>, vector<128x224xf32> -> vector<128x224xf32>
    %81 = arith.addf %76, %80 : vector<128x224xf32>
    %c0_73 = arith.constant 0 : index
    %c0_74 = arith.constant 0 : index
    %82 = vector.load %arg11[%c0_73, %c0_74] : memref<1x224xf32, #tpu.memory_space<vmem>>, vector<1x224xf32>
    %83 = vector.broadcast %82 : vector<1x224xf32> to vector<128x224xf32>
    %84 = arith.addf %81, %83 : vector<128x224xf32>
    %cst_75 = arith.constant 0.000000e+00 : f32
    %85 = vector.broadcast %cst_75 : f32 to vector<128x224xf32>
    %86 = arith.maximumf %84, %85 : vector<128x224xf32>
    %c0_76 = arith.constant 0 : index
    %c0_77 = arith.constant 0 : index
    %87 = vector.load %arg12[%c0_76, %c0_77] : memref<56x128xf32, #tpu.memory_space<vmem>>, vector<56x128xf32>
    %cst_78 = arith.constant dense<0.000000e+00> : vector<56x224xf32>
    %88 = tpu.matmul %87, %86, %cst_78 {dimension_numbers = #tpu.dot_dimension_numbers<[1], [0], [0], [1], [0, 0, 1, 1], [], []>} : vector<56x128xf32>, vector<128x224xf32>, vector<56x224xf32> -> vector<56x224xf32>
    %cst_79 = arith.constant 0.000000e+00 : f32
    %89 = vector.broadcast %cst_79 : f32 to vector<8x200xf32>
    %90 = vector.extract_strided_slice %88 {offsets = [0, 0], sizes = [8, 224], strides = [1, 1]} : vector<56x224xf32> to vector<8x224xf32>
    %c0_80 = arith.constant 0 : index
    %c0_81 = arith.constant 0 : index
    %c0_82 = arith.constant 0 : index
    %91 = vector.load %arg13[%c0_80, %c0_81, %c0_82] : memref<7x224x200xf32, #tpu.memory_space<vmem>>, vector<1x224x200xf32>
    %92 = vector.shape_cast %91 : vector<1x224x200xf32> to vector<224x200xf32>
    %cst_83 = arith.constant dense<0.000000e+00> : vector<8x200xf32>
    %93 = tpu.matmul %90, %92, %cst_83 {dimension_numbers = #tpu.dot_dimension_numbers<[1], [0], [0], [1], [0, 0, 1, 1], [], []>} : vector<8x224xf32>, vector<224x200xf32>, vector<8x200xf32> -> vector<8x200xf32>
    %94 = arith.addf %89, %93 : vector<8x200xf32>
    %95 = vector.extract_strided_slice %88 {offsets = [8, 0], sizes = [8, 224], strides = [1, 1]} : vector<56x224xf32> to vector<8x224xf32>
    %c1_84 = arith.constant 1 : index
    %c0_85 = arith.constant 0 : index
    %c0_86 = arith.constant 0 : index
    %96 = vector.load %arg13[%c1_84, %c0_85, %c0_86] : memref<7x224x200xf32, #tpu.memory_space<vmem>>, vector<1x224x200xf32>
    %97 = vector.shape_cast %96 : vector<1x224x200xf32> to vector<224x200xf32>
    %cst_87 = arith.constant dense<0.000000e+00> : vector<8x200xf32>
    %98 = tpu.matmul %95, %97, %cst_87 {dimension_numbers = #tpu.dot_dimension_numbers<[1], [0], [0], [1], [0, 0, 1, 1], [], []>} : vector<8x224xf32>, vector<224x200xf32>, vector<8x200xf32> -> vector<8x200xf32>
    %99 = arith.addf %94, %98 : vector<8x200xf32>
    %100 = vector.extract_strided_slice %88 {offsets = [16, 0], sizes = [8, 224], strides = [1, 1]} : vector<56x224xf32> to vector<8x224xf32>
    %c2_88 = arith.constant 2 : index
    %c0_89 = arith.constant 0 : index
    %c0_90 = arith.constant 0 : index
    %101 = vector.load %arg13[%c2_88, %c0_89, %c0_90] : memref<7x224x200xf32, #tpu.memory_space<vmem>>, vector<1x224x200xf32>
    %102 = vector.shape_cast %101 : vector<1x224x200xf32> to vector<224x200xf32>
    %cst_91 = arith.constant dense<0.000000e+00> : vector<8x200xf32>
    %103 = tpu.matmul %100, %102, %cst_91 {dimension_numbers = #tpu.dot_dimension_numbers<[1], [0], [0], [1], [0, 0, 1, 1], [], []>} : vector<8x224xf32>, vector<224x200xf32>, vector<8x200xf32> -> vector<8x200xf32>
    %104 = arith.addf %99, %103 : vector<8x200xf32>
    %105 = vector.extract_strided_slice %88 {offsets = [24, 0], sizes = [8, 224], strides = [1, 1]} : vector<56x224xf32> to vector<8x224xf32>
    %c3 = arith.constant 3 : index
    %c0_92 = arith.constant 0 : index
    %c0_93 = arith.constant 0 : index
    %106 = vector.load %arg13[%c3, %c0_92, %c0_93] : memref<7x224x200xf32, #tpu.memory_space<vmem>>, vector<1x224x200xf32>
    %107 = vector.shape_cast %106 : vector<1x224x200xf32> to vector<224x200xf32>
    %cst_94 = arith.constant dense<0.000000e+00> : vector<8x200xf32>
    %108 = tpu.matmul %105, %107, %cst_94 {dimension_numbers = #tpu.dot_dimension_numbers<[1], [0], [0], [1], [0, 0, 1, 1], [], []>} : vector<8x224xf32>, vector<224x200xf32>, vector<8x200xf32> -> vector<8x200xf32>
    %109 = arith.addf %104, %108 : vector<8x200xf32>
    %110 = vector.extract_strided_slice %88 {offsets = [32, 0], sizes = [8, 224], strides = [1, 1]} : vector<56x224xf32> to vector<8x224xf32>
    %c4 = arith.constant 4 : index
    %c0_95 = arith.constant 0 : index
    %c0_96 = arith.constant 0 : index
    %111 = vector.load %arg13[%c4, %c0_95, %c0_96] : memref<7x224x200xf32, #tpu.memory_space<vmem>>, vector<1x224x200xf32>
    %112 = vector.shape_cast %111 : vector<1x224x200xf32> to vector<224x200xf32>
    %cst_97 = arith.constant dense<0.000000e+00> : vector<8x200xf32>
    %113 = tpu.matmul %110, %112, %cst_97 {dimension_numbers = #tpu.dot_dimension_numbers<[1], [0], [0], [1], [0, 0, 1, 1], [], []>} : vector<8x224xf32>, vector<224x200xf32>, vector<8x200xf32> -> vector<8x200xf32>
    %114 = arith.addf %109, %113 : vector<8x200xf32>
    %115 = vector.extract_strided_slice %88 {offsets = [40, 0], sizes = [8, 224], strides = [1, 1]} : vector<56x224xf32> to vector<8x224xf32>
    %c5 = arith.constant 5 : index
    %c0_98 = arith.constant 0 : index
    %c0_99 = arith.constant 0 : index
    %116 = vector.load %arg13[%c5, %c0_98, %c0_99] : memref<7x224x200xf32, #tpu.memory_space<vmem>>, vector<1x224x200xf32>
    %117 = vector.shape_cast %116 : vector<1x224x200xf32> to vector<224x200xf32>
    %cst_100 = arith.constant dense<0.000000e+00> : vector<8x200xf32>
    %118 = tpu.matmul %115, %117, %cst_100 {dimension_numbers = #tpu.dot_dimension_numbers<[1], [0], [0], [1], [0, 0, 1, 1], [], []>} : vector<8x224xf32>, vector<224x200xf32>, vector<8x200xf32> -> vector<8x200xf32>
    %119 = arith.addf %114, %118 : vector<8x200xf32>
    %120 = vector.extract_strided_slice %88 {offsets = [48, 0], sizes = [8, 224], strides = [1, 1]} : vector<56x224xf32> to vector<8x224xf32>
    %c6 = arith.constant 6 : index
    %c0_101 = arith.constant 0 : index
    %c0_102 = arith.constant 0 : index
    %121 = vector.load %arg13[%c6, %c0_101, %c0_102] : memref<7x224x200xf32, #tpu.memory_space<vmem>>, vector<1x224x200xf32>
    %122 = vector.shape_cast %121 : vector<1x224x200xf32> to vector<224x200xf32>
    %cst_103 = arith.constant dense<0.000000e+00> : vector<8x200xf32>
    %123 = tpu.matmul %120, %122, %cst_103 {dimension_numbers = #tpu.dot_dimension_numbers<[1], [0], [0], [1], [0, 0, 1, 1], [], []>} : vector<8x224xf32>, vector<224x200xf32>, vector<8x200xf32> -> vector<8x200xf32>
    %124 = arith.addf %119, %123 : vector<8x200xf32>
    %c0_104 = arith.constant 0 : index
    %c0_105 = arith.constant 0 : index
    %125 = vector.load %arg14[%c0_104, %c0_105] : memref<1x200xf32, #tpu.memory_space<vmem>>, vector<1x200xf32>
    %126 = vector.broadcast %125 : vector<1x200xf32> to vector<8x200xf32>
    %127 = arith.addf %124, %126 : vector<8x200xf32>
    %cst_106 = arith.constant 0.000000e+00 : f32
    %128 = vector.broadcast %cst_106 : f32 to vector<8x200xf32>
    %129 = arith.maximumf %127, %128 : vector<8x200xf32>
    %c0_107 = arith.constant 0 : index
    %c0_108 = arith.constant 0 : index
    %130 = vector.load %arg15[%c0_107, %c0_108] : memref<200x128xf32, #tpu.memory_space<vmem>>, vector<200x128xf32>
    %cst_109 = arith.constant dense<0.000000e+00> : vector<8x128xf32>
    %131 = tpu.matmul %129, %130, %cst_109 {dimension_numbers = #tpu.dot_dimension_numbers<[1], [0], [0], [1], [0, 0, 1, 1], [], []>} : vector<8x200xf32>, vector<200x128xf32>, vector<8x128xf32> -> vector<8x128xf32>
    %c0_110 = arith.constant 0 : index
    %c0_111 = arith.constant 0 : index
    %132 = vector.load %arg16[%c0_110, %c0_111] : memref<1x128xf32, #tpu.memory_space<vmem>>, vector<1x128xf32>
    %133 = vector.broadcast %132 : vector<1x128xf32> to vector<8x128xf32>
    %134 = arith.addf %131, %133 : vector<8x128xf32>
    %c0_112 = arith.constant 0 : index
    %c0_113 = arith.constant 0 : index
    %135 = vector.load %arg17[%c0_112, %c0_113] : memref<8x128xf32, #tpu.memory_space<vmem>>, vector<8x128xf32>
    tpu.vector_store %arg17[%c0_112, %c0_113], %134 {strides = array<i32>} : memref<8x128xf32, #tpu.memory_space<vmem>>, vector<8x128xf32>,
    return
  }
  func.func @transform_0(%arg0: i32) -> (i32, i32) {
    %c0_i32 = arith.constant 0 : i32
    %c0_i32_0 = arith.constant 0 : i32
    return %arg0, %c0_i32 : i32, i32
  }
  func.func @transform_1(%arg0: i32) -> (i32, i32, i32) {
    %c0_i32 = arith.constant 0 : i32
    %c0_i32_0 = arith.constant 0 : i32
    %c0_i32_1 = arith.constant 0 : i32
    %c0_i32_2 = arith.constant 0 : i32
    return %c0_i32, %c0_i32_0, %c0_i32_1 : i32, i32, i32
  }
  func.func @transform_2(%arg0: i32) -> (i32, i32) {
    %c0_i32 = arith.constant 0 : i32
    %c0_i32_0 = arith.constant 0 : i32
    %c0_i32_1 = arith.constant 0 : i32
    return %c0_i32, %c0_i32_0 : i32, i32
  }
  func.func @transform_3(%arg0: i32) -> (i32, i32) {
    %c0_i32 = arith.constant 0 : i32
    %c0_i32_0 = arith.constant 0 : i32
    %c0_i32_1 = arith.constant 0 : i32
    return %c0_i32, %c0_i32_0 : i32, i32
  }
  func.func @transform_4(%arg0: i32) -> (i32, i32) {
    %c0_i32 = arith.constant 0 : i32
    %c0_i32_0 = arith.constant 0 : i32
    %c0_i32_1 = arith.constant 0 : i32
    return %c0_i32, %c0_i32_0 : i32, i32
  }
  func.func @transform_5(%arg0: i32) -> (i32, i32, i32) {
    %c0_i32 = arith.constant 0 : i32
    %c0_i32_0 = arith.constant 0 : i32
    %c0_i32_1 = arith.constant 0 : i32
    %c0_i32_2 = arith.constant 0 : i32
    return %c0_i32, %c0_i32_0, %c0_i32_1 : i32, i32, i32
  }
  func.func @transform_6(%arg0: i32) -> (i32, i32) {
    %c0_i32 = arith.constant 0 : i32
    %c0_i32_0 = arith.constant 0 : i32
    %c0_i32_1 = arith.constant 0 : i32
    return %c0_i32, %c0_i32_0 : i32, i32
  }
  func.func @transform_7(%arg0: i32) -> (i32, i32) {
    %c0_i32 = arith.constant 0 : i32
    %c0_i32_0 = arith.constant 0 : i32
    %c0_i32_1 = arith.constant 0 : i32
    return %c0_i32, %c0_i32_0 : i32, i32
  }
  func.func @transform_8(%arg0: i32) -> (i32, i32) {
    %c0_i32 = arith.constant 0 : i32
    %c0_i32_0 = arith.constant 0 : i32
    %c0_i32_1 = arith.constant 0 : i32
    return %c0_i32, %c0_i32_0 : i32, i32
  }
  func.func @transform_9(%arg0: i32) -> (i32, i32, i32) {
    %c0_i32 = arith.constant 0 : i32
    %c0_i32_0 = arith.constant 0 : i32
    %c0_i32_1 = arith.constant 0 : i32
    %c0_i32_2 = arith.constant 0 : i32
    return %c0_i32, %c0_i32_0, %c0_i32_1 : i32, i32, i32
  }
  func.func @transform_10(%arg0: i32) -> (i32, i32) {
    %c0_i32 = arith.constant 0 : i32
    %c0_i32_0 = arith.constant 0 : i32
    %c0_i32_1 = arith.constant 0 : i32
    return %c0_i32, %c0_i32_0 : i32, i32
  }
  func.func @transform_11(%arg0: i32) -> (i32, i32) {
    %c0_i32 = arith.constant 0 : i32
    %c0_i32_0 = arith.constant 0 : i32
    %c0_i32_1 = arith.constant 0 : i32
    return %c0_i32, %c0_i32_0 : i32, i32
  }
  func.func @transform_12(%arg0: i32) -> (i32, i32, i32) {
    %c0_i32 = arith.constant 0 : i32
    %c0_i32_0 = arith.constant 0 : i32
    %c0_i32_1 = arith.constant 0 : i32
    %c0_i32_2 = arith.constant 0 : i32
    return %c0_i32, %c0_i32_0, %c0_i32_1 : i32, i32, i32
  }
  func.func @transform_13(%arg0: i32) -> (i32, i32) {
    %c0_i32 = arith.constant 0 : i32
    %c0_i32_0 = arith.constant 0 : i32
    %c0_i32_1 = arith.constant 0 : i32
    return %c0_i32, %c0_i32_0 : i32, i32
  }
  func.func @transform_14(%arg0: i32) -> (i32, i32) {
    %c0_i32 = arith.constant 0 : i32
    %c0_i32_0 = arith.constant 0 : i32
    %c0_i32_1 = arith.constant 0 : i32
    return %c0_i32, %c0_i32_0 : i32, i32
  }
  func.func @transform_15(%arg0: i32) -> (i32, i32) {
    %c0_i32 = arith.constant 0 : i32
    %c0_i32_0 = arith.constant 0 : i32
    %c0_i32_1 = arith.constant 0 : i32
    return %c0_i32, %c0_i32_0 : i32, i32
  }
  func.func @transform_16(%arg0: i32) -> (i32, i32) {
    %c0_i32 = arith.constant 0 : i32
    %c0_i32_0 = arith.constant 0 : i32
    return %arg0, %c0_i32 : i32, i32
  }
}

</mosaic_0001>

<llo_original>
// kernel: net_forward.1
$region0: #{net_forward.1}
  #allocation0 [shape = 'u32[]', space=smem, size = 0x4, offset = 0x4, fixed_abs, tag = 'smem constant byte address 0x4 - core index']
  #allocation1 [shape = 'u32[144,128]{1,0:T(1,128)}', space=vmem, size = 0x12000, scoped, tag = 'internal scratch']
  #allocation2 [shape = 'f32[136,128]{1,0:T(8,128)}', space=vmem, size = 0x11000, scoped, tag = 'scratch operand']
  #allocation3 [shape = 'f32[136,144]{1,0:T(8,128)}', space=vmem, size = 0x22000, scoped, tag = 'scratch operand']
  %s0 = inlined_call_operand.vmem [shape: f32[264,30], index: 0, kind: input, shape index: {}]
  %s1 = inlined_call_operand.vmem [shape: f32[3,30,256], index: 1, kind: input, shape index: {}]
  %s2 = inlined_call_operand.vmem [shape: f32[1,128], index: 2, kind: input, shape index: {}]
  %s3 = inlined_call_operand.vmem [shape: f32[272,256], index: 3, kind: input, shape index: {}]
  %s4 = inlined_call_operand.vmem [shape: f32[136,1], index: 4, kind: input, shape index: {}]
  %s5 = inlined_call_operand.vmem [shape: f32[3,128,288], index: 5, kind: input, shape index: {}]
  %s6 = inlined_call_operand.vmem [shape: f32[1,144], index: 6, kind: input, shape index: {}]
  %s7 = inlined_call_operand.vmem [shape: f32[272,128], index: 7, kind: input, shape index: {}]
  %s8 = inlined_call_operand.vmem [shape: f32[136,1], index: 8, kind: input, shape index: {}]
  %s9 = inlined_call_operand.vmem [shape: f32[3,144,224], index: 9, kind: input, shape index: {}]
  %s10 = inlined_call_operand.vmem [shape: f32[1,224], index: 10, kind: input, shape index: {}]
  %s11 = inlined_call_operand.vmem [shape: f32[56,128], index: 11, kind: input, shape index: {}]
  %s12 = inlined_call_operand.vmem [shape: f32[7,224,200], index: 12, kind: input, shape index: {}]
  %s13 = inlined_call_operand.vmem [shape: f32[1,200], index: 13, kind: input, shape index: {}]
  %s14 = inlined_call_operand.vmem [shape: f32[200,128], index: 14, kind: input, shape index: {}]
  %s15 = inlined_call_operand.vmem [shape: f32[1,128], index: 15, kind: input, shape index: {}]
  %s16 = inlined_call_operand.vmem [shape: f32[8,128], index: 16, kind: output, shape index: {}]
  %s17 = sld [smem:[#allocation0]]
  $region74: #{net_forward.1} parent=0
    _
  %s19 = ssub.s32 1, %s17
  %s20 = scalar_select 0, %s19, %s17
  // Predicated region
  $region2: #{net_forward.1} parent=0 // pred_check
    _
  $region3: #{net_forward.1} parent=0 // pred_check_branch
    %22 = sbr.rel (0) target = $region5
  $region4: #{net_forward.1} parent=0 // pred_region
    _
  $region5: #{net_forward.1} parent=0 // pred_fallthru
    _
  // Predicated region
  $region6: #{net_forward.1} parent=0 // pred_check
    _
  $region7: #{net_forward.1} parent=0 // pred_check_branch
    %24 = sbr.rel (0) target = $region9
  $region8: #{net_forward.1} parent=0 // pred_region
    _
  $region9: #{net_forward.1} parent=0 // pred_fallthru
    _
  // Predicated region
  $region10: #{net_forward.1} parent=0 // pred_check
    _
  $region11: #{net_forward.1} parent=0 // pred_check_branch
    %26 = sbr.rel (0) target = $region13
  $region12: #{net_forward.1} parent=0 // pred_region
    _
  $region13: #{net_forward.1} parent=0 // pred_fallthru
    _
  // Predicated region
  $region14: #{net_forward.1} parent=0 // pred_check
    _
  $region15: #{net_forward.1} parent=0 // pred_check_branch
    %28 = sbr.rel (0) target = $region17
  $region16: #{net_forward.1} parent=0 // pred_region
    _
  $region17: #{net_forward.1} parent=0 // pred_fallthru
    _
  // Predicated region
  $region18: #{net_forward.1} parent=0 // pred_check
    _
  $region19: #{net_forward.1} parent=0 // pred_check_branch
    %30 = sbr.rel (0) target = $region21
  $region20: #{net_forward.1} parent=0 // pred_region
    _
  $region21: #{net_forward.1} parent=0 // pred_fallthru
    _
  // Predicated region
  $region22: #{net_forward.1} parent=0 // pred_check
    _
  $region23: #{net_forward.1} parent=0 // pred_check_branch
    %32 = sbr.rel (0) target = $region25
  $region24: #{net_forward.1} parent=0 // pred_region
    _
  $region25: #{net_forward.1} parent=0 // pred_fallthru
    _
  // Predicated region
  $region26: #{net_forward.1} parent=0 // pred_check
    _
  $region27: #{net_forward.1} parent=0 // pred_check_branch
    %34 = sbr.rel (0) target = $region29
  $region28: #{net_forward.1} parent=0 // pred_region
    _
  $region29: #{net_forward.1} parent=0 // pred_fallthru
    _
  // Predicated region
  $region30: #{net_forward.1} parent=0 // pred_check
    _
  $region31: #{net_forward.1} parent=0 // pred_check_branch
    %36 = sbr.rel (0) target = $region33
  $region32: #{net_forward.1} parent=0 // pred_region
    _
  $region33: #{net_forward.1} parent=0 // pred_fallthru
    _
  // Predicated region
  $region34: #{net_forward.1} parent=0 // pred_check
    _
  $region35: #{net_forward.1} parent=0 // pred_check_branch
    %38 = sbr.rel (0) target = $region37
  $region36: #{net_forward.1} parent=0 // pred_region
    _
  $region37: #{net_forward.1} parent=0 // pred_fallthru
    _
  // Predicated region
  $region38: #{net_forward.1} parent=0 // pred_check
    _
  $region39: #{net_forward.1} parent=0 // pred_check_branch
    %40 = sbr.rel (0) target = $region41
  $region40: #{net_forward.1} parent=0 // pred_region
    _
  $region41: #{net_forward.1} parent=0 // pred_fallthru
    _
  // Predicated region
  $region42: #{net_forward.1} parent=0 // pred_check
    _
  $region43: #{net_forward.1} parent=0 // pred_check_branch
    %42 = sbr.rel (0) target = $region45
  $region44: #{net_forward.1} parent=0 // pred_region
    _
  $region45: #{net_forward.1} parent=0 // pred_fallthru
    _
  // Predicated region
  $region46: #{net_forward.1} parent=0 // pred_check
    _
  $region47: #{net_forward.1} parent=0 // pred_check_branch
    %44 = sbr.rel (0) target = $region49
  $region48: #{net_forward.1} parent=0 // pred_region
    _
  $region49: #{net_forward.1} parent=0 // pred_fallthru
    _
  // Predicated region
  $region50: #{net_forward.1} parent=0 // pred_check
    _
  $region51: #{net_forward.1} parent=0 // pred_check_branch
    %46 = sbr.rel (0) target = $region53
  $region52: #{net_forward.1} parent=0 // pred_region
    _
  $region53: #{net_forward.1} parent=0 // pred_fallthru
    _
  // Predicated region
  $region54: #{net_forward.1} parent=0 // pred_check
    _
  $region55: #{net_forward.1} parent=0 // pred_check_branch
    %48 = sbr.rel (0) target = $region57
  $region56: #{net_forward.1} parent=0 // pred_region
    _
  $region57: #{net_forward.1} parent=0 // pred_fallthru
    _
  // Predicated region
  $region58: #{net_forward.1} parent=0 // pred_check
    _
  $region59: #{net_forward.1} parent=0 // pred_check_branch
    %50 = sbr.rel (0) target = $region61
  $region60: #{net_forward.1} parent=0 // pred_region
    _
  $region61: #{net_forward.1} parent=0 // pred_fallthru
    _
  // Predicated region
  $region62: #{net_forward.1} parent=0 // pred_check
    _
  $region63: #{net_forward.1} parent=0 // pred_check_branch
    %52 = sbr.rel (0) target = $region65
  $region64: #{net_forward.1} parent=0 // pred_region
    _
  $region65: #{net_forward.1} parent=0 // pred_fallthru
    _
  %v53 = vld [vmem:[%s0] sm:$0xff]
  %v54 = vld [vmem:[%s0 + $0x8] sm:$0xff]
  %v55 = vld [vmem:[%s0 + $0x10] sm:$0xff]
  %v56 = vld [vmem:[%s0 + $0x18] sm:$0xff]
  %v57 = vld [vmem:[%s0 + $0x20] sm:$0xff]
  %v58 = vld [vmem:[%s0 + $0x28] sm:$0xff]
  %v59 = vld [vmem:[%s0 + $0x30] sm:$0xff]
  %v60 = vld [vmem:[%s0 + $0x38] sm:$0xff]
  %v61 = vld [vmem:[%s0 + $0x40] sm:$0xff]
  %v62 = vld [vmem:[%s0 + $0x48] sm:$0xff]
  %v63 = vld [vmem:[%s0 + $0x50] sm:$0xff]
  %v64 = vld [vmem:[%s0 + $0x58] sm:$0xff]
  %v65 = vld [vmem:[%s0 + $0x60] sm:$0xff]
  %v66 = vld [vmem:[%s0 + $0x68] sm:$0xff]
  %v67 = vld [vmem:[%s0 + $0x70] sm:$0xff]
  %v68 = vld [vmem:[%s0 + $0x78] sm:$0xff]
  %v69 = vld [vmem:[%s0 + $0x80] sm:$0xff]
  %v70 = vld [vmem:[%s0 + $0x88] sm:$0xff]
  %v71 = vld [vmem:[%s0 + $0x90] sm:$0xff]
  %v72 = vld [vmem:[%s0 + $0x98] sm:$0xff]
  %v73 = vld [vmem:[%s0 + $0xa0] sm:$0xff]
  %v74 = vld [vmem:[%s0 + $0xa8] sm:$0xff]
  %v75 = vld [vmem:[%s0 + $0xb0] sm:$0xff]
  %v76 = vld [vmem:[%s0 + $0xb8] sm:$0xff]
  %v77 = vld [vmem:[%s0 + $0xc0] sm:$0xff]
  %v78 = vld [vmem:[%s0 + $0xc8] sm:$0xff]
  %v79 = vld [vmem:[%s0 + $0xd0] sm:$0xff]
  %v80 = vld [vmem:[%s0 + $0xd8] sm:$0xff]
  %v81 = vld [vmem:[%s0 + $0xe0] sm:$0xff]
  %v82 = vld [vmem:[%s0 + $0xe8] sm:$0xff]
  %v83 = vld [vmem:[%s0 + $0xf0] sm:$0xff]
  %v84 = vld [vmem:[%s0 + $0xf8] sm:$0xff]
  %v85 = vld [vmem:[%s1] sm:$0xff]
  %v86 = vld [vmem:[%s1 + $0x8] sm:$0xff]
  %v87 = vld [vmem:[%s1 + $0x10] sm:$0xff]
  %v88 = vld [vmem:[%s1 + $0x18] sm:$0xff]
  %v89 = vld [vmem:[%s1 + $0x20] sm:$0xff]
  %v90 = vld [vmem:[%s1 + $0x28] sm:$0xff]
  %v91 = vld [vmem:[%s1 + $0x30] sm:$0x3f]
  %v92 = vld [vmem:[%s1 + $0x38] sm:$0x3f]
  %v93 = vld [vmem:[%s0 + $0x1] sm:$0xff]
  %v94 = vld [vmem:[%s0 + $0x9] sm:$0xff]
  %v95 = vld [vmem:[%s0 + $0x11] sm:$0xff]
  %v96 = vld [vmem:[%s0 + $0x19] sm:$0xff]
  %v97 = vld [vmem:[%s0 + $0x21] sm:$0xff]
  %v98 = vld [vmem:[%s0 + $0x29] sm:$0xff]
  %v99 = vld [vmem:[%s0 + $0x31] sm:$0xff]
  %v100 = vld [vmem:[%s0 + $0x39] sm:$0xff]
  %v101 = vld [vmem:[%s0 + $0x41] sm:$0xff]
  %v102 = vld [vmem:[%s0 + $0x49] sm:$0xff]
  %v103 = vld [vmem:[%s0 + $0x51] sm:$0xff]
  %v104 = vld [vmem:[%s0 + $0x59] sm:$0xff]
  %v105 = vld [vmem:[%s0 + $0x61] sm:$0xff]
  %v106 = vld [vmem:[%s0 + $0x69] sm:$0xff]
  %v107 = vld [vmem:[%s0 + $0x71] sm:$0xff]
  %v108 = vld [vmem:[%s0 + $0x79] sm:$0xff]
  %v109 = vld [vmem:[%s0 + $0x81] sm:$0xff]
  %v110 = vld [vmem:[%s0 + $0x89] sm:$0xff]
  %v111 = vld [vmem:[%s0 + $0x91] sm:$0xff]
  %v112 = vld [vmem:[%s0 + $0x99] sm:$0xff]
  %v113 = vld [vmem:[%s0 + $0xa1] sm:$0xff]
  %v114 = vld [vmem:[%s0 + $0xa9] sm:$0xff]
  %v115 = vld [vmem:[%s0 + $0xb1] sm:$0xff]
  %v116 = vld [vmem:[%s0 + $0xb9] sm:$0xff]
  %v117 = vld [vmem:[%s0 + $0xc1] sm:$0xff]
  %v118 = vld [vmem:[%s0 + $0xc9] sm:$0xff]
  %v119 = vld [vmem:[%s0 + $0xd1] sm:$0xff]
  %v120 = vld [vmem:[%s0 + $0xd9] sm:$0xff]
  %v121 = vld [vmem:[%s0 + $0xe1] sm:$0xff]
  %v122 = vld [vmem:[%s0 + $0xe9] sm:$0xff]
  %v123 = vld [vmem:[%s0 + $0xf1] sm:$0xff]
  %v124 = vld [vmem:[%s0 + $0xf9] sm:$0xff]
  %s125 = scalar_lea.vmem %s1, 64
  %v126 = vld [vmem:[%s125] sm:$0xff]
  %v127 = vld [vmem:[%s125 + $0x8] sm:$0xff]
  %v128 = vld [vmem:[%s125 + $0x10] sm:$0xff]
  %v129 = vld [vmem:[%s125 + $0x18] sm:$0xff]
  %v130 = vld [vmem:[%s125 + $0x20] sm:$0xff]
  %v131 = vld [vmem:[%s125 + $0x28] sm:$0xff]
  %v132 = vld [vmem:[%s125 + $0x30] sm:$0x3f]
  %v133 = vld [vmem:[%s125 + $0x38] sm:$0x3f]
  %vm134 = vcmask 244736
  %v136 = vsel %vm134, %v93, 0
  %v139 = vsel %vm134, %v94, 0
  %v142 = vsel %vm134, %v95, 0
  %v145 = vsel %vm134, %v96, 0
  %v148 = vsel %vm134, %v97, 0
  %v151 = vsel %vm134, %v98, 0
  %v154 = vsel %vm134, %v99, 0
  %v157 = vsel %vm134, %v100, 0
  %v160 = vsel %vm134, %v101, 0
  %v163 = vsel %vm134, %v102, 0
  %v166 = vsel %vm134, %v103, 0
  %v169 = vsel %vm134, %v104, 0
  %v172 = vsel %vm134, %v105, 0
  %v175 = vsel %vm134, %v106, 0
  %v178 = vsel %vm134, %v107, 0
  %v181 = vsel %vm134, %v108, 0
  %v184 = vsel %vm134, %v109, 0
  %v187 = vsel %vm134, %v110, 0
  %v190 = vsel %vm134, %v111, 0
  %v193 = vsel %vm134, %v112, 0
  %v196 = vsel %vm134, %v113, 0
  %v199 = vsel %vm134, %v114, 0
  %v202 = vsel %vm134, %v115, 0
  %v205 = vsel %vm134, %v116, 0
  %v208 = vsel %vm134, %v117, 0
  %v211 = vsel %vm134, %v118, 0
  %v214 = vsel %vm134, %v119, 0
  %v217 = vsel %vm134, %v120, 0
  %v220 = vsel %vm134, %v121, 0
  %v223 = vsel %vm134, %v122, 0
  %v226 = vsel %vm134, %v123, 0
  %v229 = vsel %vm134, %v124, 0
  %vm231 = vcmask 1045504
  %v233 = vsel %vm231, %v132, 0
  %v236 = vsel %vm231, %v133, 0
  %238 = vmatprep.subr.mxu0 %v127
  %239 = vmatpush1.msra.mxu0 %v126
  %240 = vmatprep.subr.mxu0 %v129
  %241 = vmatpush1.msra.mxu0 %v128
  %242 = vmatprep.subr.mxu0 %v131
  %243 = vmatpush1.msra.mxu0 %v130
  %244 = vmatprep.subr.mxu0 %v236
  %245 = vmatpush1.msra.mxu0 %v233
  %246 = vmatprep.subr.mxu0 0.0
  %247 = vmatpush1.msra.mxu0 0.0
  %248 = vmatprep.subr.mxu0 0.0
  %249 = vmatpush1.msra.mxu0 0.0
  %250 = vmatprep.subr.mxu0 0.0
  %251 = vmatpush1.msra.mxu0 0.0
  %252 = vmatprep.subr.mxu0 0.0
  %253 = vmatpush1.msra.mxu0 0.0
  %254 = vmatprep.subr.mxu0 0.0
  %255 = vmatpush1.msra.mxu0 0.0
  %256 = vmatprep.subr.mxu0 0.0
  %257 = vmatpush1.msra.mxu0 0.0
  %258 = vmatprep.subr.mxu0 0.0
  %259 = vmatpush1.msra.mxu0 0.0
  %260 = vmatprep.subr.mxu0 0.0
  %261 = vmatpush1.msra.mxu0 0.0
  %262 = vmatprep.subr.mxu0 0.0
  %263 = vmatpush1.msra.mxu0 0.0
  %264 = vmatprep.subr.mxu0 0.0
  %265 = vmatpush1.msra.mxu0 0.0
  %266 = vmatprep.subr.mxu0 0.0
  %267 = vmatpush1.msra.mxu0 0.0
  %268 = vmatprep.subr.mxu0 0.0
  %269 = vmatpush1.msra.mxu0 0.0
  %270 = vmatprep.subr.mxu0 0.0
  %271 = vmatpush1.msra.mxu0 0.0
  %272 = vmatprep.subr.mxu0 0.0
  %273 = vmatpush1.msra.mxu0 0.0
  %274 = vmatprep.subr.mxu0 0.0
  %275 = vmatpush1.msra.mxu0 0.0
  %276 = vmatprep.subr.mxu0 0.0
  %277 = vmatpush1.msra.mxu0 0.0
  %278 = vmatprep.subr.mxu0 0.0
  %279 = vmatpush1.msra.mxu0 0.0
  %280 = vmatprep.subr.mxu0 0.0
  %281 = vmatpush1.msra.mxu0 0.0
  %282 = vmatprep.subr.mxu0 0.0
  %283 = vmatpush1.msra.mxu0 0.0
  %284 = vmatprep.subr.mxu0 0.0
  %285 = vmatpush1.msra.mxu0 0.0
  %286 = vmatprep.subr.mxu0 0.0
  %287 = vmatpush1.msra.mxu0 0.0
  %288 = vmatprep.subr.mxu0 0.0
  %289 = vmatpush1.msra.mxu0 0.0
  %290 = vmatprep.subr.mxu0 0.0
  %291 = vmatpush1.msra.mxu0 0.0
  %292 = vmatprep.subr.mxu0 0.0
  %293 = vmatpush1.msra.mxu0 0.0
  %294 = vmatprep.subr.mxu0 0.0
  %295 = vmatpush1.msra.mxu0 0.0
  %296 = vmatprep.subr.mxu0 0.0
  %297 = vmatpush1.msra.mxu0 0.0
  %298 = vmatprep.subr.mxu0 0.0
  %299 = vmatpush1.msra.mxu0 0.0
  %300 = vmatprep.subr.mxu0 0.0
  %301 = vmatpush1.msra.mxu0 0.0
  %302 = vmatprep.mubr.f32.mxu0 0.0
  %303 = vmatmul.mubr.f32.gmra.mrb[0].mxu0 %v136
  %v304 = vpop.f32.mrb[0].mxu0
  %v305 = vadd.f32 0.0, %v304
  %v306 = vpop.f32.mrb[0].mxu0
  %v307 = vadd.f32 0.0, %v306
  %308 = vmatprep.mubr.f32.mxu0 0.0
  %309 = vmatmul.mubr.f32.gmra.mrb[0].mxu0 %v139
  %v310 = vpop.f32.mrb[0].mxu0
  %v311 = vadd.f32 0.0, %v310
  %v312 = vpop.f32.mrb[0].mxu0
  %v313 = vadd.f32 0.0, %v312
  %314 = vmatprep.mubr.f32.mxu0 0.0
  %315 = vmatmul.mubr.f32.gmra.mrb[0].mxu0 %v142
  %v316 = vpop.f32.mrb[0].mxu0
  %v317 = vadd.f32 0.0, %v316
  %v318 = vpop.f32.mrb[0].mxu0
  %v319 = vadd.f32 0.0, %v318
  %320 = vmatprep.mubr.f32.mxu0 0.0
  %321 = vmatmul.mubr.f32.gmra.mrb[0].mxu0 %v145
  %v322 = vpop.f32.mrb[0].mxu0
  %v323 = vadd.f32 0.0, %v322
  %v324 = vpop.f32.mrb[0].mxu0
  %v325 = vadd.f32 0.0, %v324
  %326 = vmatprep.mubr.f32.mxu0 0.0
  %327 = vmatmul.mubr.f32.gmra.mrb[0].mxu0 %v148
  %v328 = vpop.f32.mrb[0].mxu0
  %v329 = vadd.f32 0.0, %v328
  %v330 = vpop.f32.mrb[0].mxu0
  %v331 = vadd.f32 0.0, %v330
  %332 = vmatprep.mubr.f32.mxu0 0.0
  %333 = vmatmul.mubr.f32.gmra.mrb[0].mxu0 %v151
  %v334 = vpop.f32.mrb[0].mxu0
  %v335 = vadd.f32 0.0, %v334
  %v336 = vpop.f32.mrb[0].mxu0
  %v337 = vadd.f32 0.0, %v336
  %338 = vmatprep.mubr.f32.mxu0 0.0
  %339 = vmatmul.mubr.f32.gmra.mrb[0].mxu0 %v154
  %v340 = vpop.f32.mrb[0].mxu0
  %v341 = vadd.f32 0.0, %v340
  %v342 = vpop.f32.mrb[0].mxu0
  %v343 = vadd.f32 0.0, %v342
  %344 = vmatprep.mubr.f32.mxu0 0.0
  %345 = vmatmul.mubr.f32.gmra.mrb[0].mxu0 %v157
  %v346 = vpop.f32.mrb[0].mxu0
  %v347 = vadd.f32 0.0, %v346
  %v348 = vpop.f32.mrb[0].mxu0
  %v349 = vadd.f32 0.0, %v348
  %350 = vmatprep.mubr.f32.mxu0 0.0
  %351 = vmatmul.mubr.f32.gmra.mrb[0].mxu0 %v160
  %v352 = vpop.f32.mrb[0].mxu0
  %v353 = vadd.f32 0.0, %v352
  %v354 = vpop.f32.mrb[0].mxu0
  %v355 = vadd.f32 0.0, %v354
  %356 = vmatprep.mubr.f32.mxu0 0.0
  %357 = vmatmul.mubr.f32.gmra.mrb[0].mxu0 %v163
  %v358 = vpop.f32.mrb[0].mxu0
  %v359 = vadd.f32 0.0, %v358
  %v360 = vpop.f32.mrb[0].mxu0
  %v361 = vadd.f32 0.0, %v360
  %362 = vmatprep.mubr.f32.mxu0 0.0
  %363 = vmatmul.mubr.f32.gmra.mrb[0].mxu0 %v166
  %v364 = vpop.f32.mrb[0].mxu0
  %v365 = vadd.f32 0.0, %v364
  %v366 = vpop.f32.mrb[0].mxu0
  %v367 = vadd.f32 0.0, %v366
  %368 = vmatprep.mubr.f32.mxu0 0.0
  %369 = vmatmul.mubr.f32.gmra.mrb[0].mxu0 %v169
  %v370 = vpop.f32.mrb[0].mxu0
  %v371 = vadd.f32 0.0, %v370
  %v372 = vpop.f32.mrb[0].mxu0
  %v373 = vadd.f32 0.0, %v372
  %374 = vmatprep.mubr.f32.mxu0 0.0
  %375 = vmatmul.mubr.f32.gmra.mrb[0].mxu0 %v172
  %v376 = vpop.f32.mrb[0].mxu0
  %v377 = vadd.f32 0.0, %v376
  %v378 = vpop.f32.mrb[0].mxu0
  %v379 = vadd.f32 0.0, %v378
  %380 = vmatprep.mubr.f32.mxu0 0.0
  %381 = vmatmul.mubr.f32.gmra.mrb[0].mxu0 %v175
  %v382 = vpop.f32.mrb[0].mxu0
  %v383 = vadd.f32 0.0, %v382
  %v384 = vpop.f32.mrb[0].mxu0
  %v385 = vadd.f32 0.0, %v384
  %386 = vmatprep.mubr.f32.mxu0 0.0
  %387 = vmatmul.mubr.f32.gmra.mrb[0].mxu0 %v178
  %v388 = vpop.f32.mrb[0].mxu0
  %v389 = vadd.f32 0.0, %v388
  %v390 = vpop.f32.mrb[0].mxu0
  %v391 = vadd.f32 0.0, %v390
  %392 = vmatprep.mubr.f32.mxu0 0.0
  %393 = vmatmul.mubr.f32.gmra.mrb[0].mxu0 %v181
  %v394 = vpop.f32.mrb[0].mxu0
  %v395 = vadd.f32 0.0, %v394
  %v396 = vpop.f32.mrb[0].mxu0
  %v397 = vadd.f32 0.0, %v396
  %398 = vmatprep.mubr.f32.mxu0 0.0
  %399 = vmatmul.mubr.f32.gmra.mrb[0].mxu0 %v184
  %v400 = vpop.f32.mrb[0].mxu0
  %v401 = vadd.f32 0.0, %v400
  %v402 = vpop.f32.mrb[0].mxu0
  %v403 = vadd.f32 0.0, %v402
  %404 = vmatprep.mubr.f32.mxu0 0.0
  %405 = vmatmul.mubr.f32.gmra.mrb[0].mxu0 %v187
  %v406 = vpop.f32.mrb[0].mxu0
  %v407 = vadd.f32 0.0, %v406
  %v408 = vpop.f32.mrb[0].mxu0
  %v409 = vadd.f32 0.0, %v408
  %410 = vmatprep.mubr.f32.mxu0 0.0
  %411 = vmatmul.mubr.f32.gmra.mrb[0].mxu0 %v190
  %v412 = vpop.f32.mrb[0].mxu0
  %v413 = vadd.f32 0.0, %v412
  %v414 = vpop.f32.mrb[0].mxu0
  %v415 = vadd.f32 0.0, %v414
  %416 = vmatprep.mubr.f32.mxu0 0.0
  %417 = vmatmul.mubr.f32.gmra.mrb[0].mxu0 %v193
  %v418 = vpop.f32.mrb[0].mxu0
  %v419 = vadd.f32 0.0, %v418
  %v420 = vpop.f32.mrb[0].mxu0
  %v421 = vadd.f32 0.0, %v420
  %422 = vmatprep.mubr.f32.mxu0 0.0
  %423 = vmatmul.mubr.f32.gmra.mrb[0].mxu0 %v196
  %v424 = vpop.f32.mrb[0].mxu0
  %v425 = vadd.f32 0.0, %v424
  %v426 = vpop.f32.mrb[0].mxu0
  %v427 = vadd.f32 0.0, %v426
  %428 = vmatprep.mubr.f32.mxu0 0.0
  %429 = vmatmul.mubr.f32.gmra.mrb[0].mxu0 %v199
  %v430 = vpop.f32.mrb[0].mxu0
  %v431 = vadd.f32 0.0, %v430
  %v432 = vpop.f32.mrb[0].mxu0
  %v433 = vadd.f32 0.0, %v432
  %434 = vmatprep.mubr.f32.mxu0 0.0
  %435 = vmatmul.mubr.f32.gmra.mrb[0].mxu0 %v202
  %v436 = vpop.f32.mrb[0].mxu0
  %v437 = vadd.f32 0.0, %v436
  %v438 = vpop.f32.mrb[0].mxu0
  %v439 = vadd.f32 0.0, %v438
  %440 = vmatprep.mubr.f32.mxu0 0.0
  %441 = vmatmul.mubr.f32.gmra.mrb[0].mxu0 %v205
  %v442 = vpop.f32.mrb[0].mxu0
  %v443 = vadd.f32 0.0, %v442
  %v444 = vpop.f32.mrb[0].mxu0
  %v445 = vadd.f32 0.0, %v444
  %446 = vmatprep.mubr.f32.mxu0 0.0
  %447 = vmatmul.mubr.f32.gmra.mrb[0].mxu0 %v208
  %v448 = vpop.f32.mrb[0].mxu0
  %v449 = vadd.f32 0.0, %v448
  %v450 = vpop.f32.mrb[0].mxu0
  %v451 = vadd.f32 0.0, %v450
  %452 = vmatprep.mubr.f32.mxu0 0.0
  %453 = vmatmul.mubr.f32.gmra.mrb[0].mxu0 %v211
  %v454 = vpop.f32.mrb[0].mxu0
  %v455 = vadd.f32 0.0, %v454
  %v456 = vpop.f32.mrb[0].mxu0
  %v457 = vadd.f32 0.0, %v456
  %458 = vmatprep.mubr.f32.mxu0 0.0
  %459 = vmatmul.mubr.f32.gmra.mrb[0].mxu0 %v214
  %v460 = vpop.f32.mrb[0].mxu0
  %v461 = vadd.f32 0.0, %v460
  %v462 = vpop.f32.mrb[0].mxu0
  %v463 = vadd.f32 0.0, %v462
  %464 = vmatprep.mubr.f32.mxu0 0.0
  %465 = vmatmul.mubr.f32.gmra.mrb[0].mxu0 %v217
  %v466 = vpop.f32.mrb[0].mxu0
  %v467 = vadd.f32 0.0, %v466
  %v468 = vpop.f32.mrb[0].mxu0
  %v469 = vadd.f32 0.0, %v468
  %470 = vmatprep.mubr.f32.mxu0 0.0
  %471 = vmatmul.mubr.f32.gmra.mrb[0].mxu0 %v220
  %v472 = vpop.f32.mrb[0].mxu0
  %v473 = vadd.f32 0.0, %v472
  %v474 = vpop.f32.mrb[0].mxu0
  %v475 = vadd.f32 0.0, %v474
  %476 = vmatprep.mubr.f32.mxu0 0.0
  %477 = vmatmul.mubr.f32.gmra.mrb[0].mxu0 %v223
  %v478 = vpop.f32.mrb[0].mxu0
  %v479 = vadd.f32 0.0, %v478
  %v480 = vpop.f32.mrb[0].mxu0
  %v481 = vadd.f32 0.0, %v480
  %482 = vmatprep.mubr.f32.mxu0 0.0
  %483 = vmatmul.mubr.f32.gmra.mrb[0].mxu0 %v226
  %v484 = vpop.f32.mrb[0].mxu0
  %v485 = vadd.f32 0.0, %v484
  %v486 = vpop.f32.mrb[0].mxu0
  %v487 = vadd.f32 0.0, %v486
  %488 = vmatprep.mubr.f32.mxu0 0.0
  %489 = vmatmul.mubr.f32.gmra.mrb[0].mxu0 %v229
  %v490 = vpop.f32.mrb[0].mxu0
  %v491 = vadd.f32 0.0, %v490
  %v492 = vpop.f32.mrb[0].mxu0
  %v493 = vadd.f32 0.0, %v492
  %494 = vdwg.mxu0
  %v496 = vsel %vm134, %v53, 0
  %v499 = vsel %vm134, %v54, 0
  %v502 = vsel %vm134, %v55, 0
  %v505 = vsel %vm134, %v56, 0
  %v508 = vsel %vm134, %v57, 0
  %v511 = vsel %vm134, %v58, 0
  %v514 = vsel %vm134, %v59, 0
  %v517 = vsel %vm134, %v60, 0
  %v520 = vsel %vm134, %v61, 0
  %v523 = vsel %vm134, %v62, 0
  %v526 = vsel %vm134, %v63, 0
  %v529 = vsel %vm134, %v64, 0
  %v532 = vsel %vm134, %v65, 0
  %v535 = vsel %vm134, %v66, 0
  %v538 = vsel %vm134, %v67, 0
  %v541 = vsel %vm134, %v68, 0
  %v544 = vsel %vm134, %v69, 0
  %v547 = vsel %vm134, %v70, 0
  %v550 = vsel %vm134, %v71, 0
  %v553 = vsel %vm134, %v72, 0
  %v556 = vsel %vm134, %v73, 0
  %v559 = vsel %vm134, %v74, 0
  %v562 = vsel %vm134, %v75, 0
  %v565 = vsel %vm134, %v76, 0
  %v568 = vsel %vm134, %v77, 0
  %v571 = vsel %vm134, %v78, 0
  %v574 = vsel %vm134, %v79, 0
  %v577 = vsel %vm134, %v80, 0
  %v580 = vsel %vm134, %v81, 0
  %v583 = vsel %vm134, %v82, 0
  %v586 = vsel %vm134, %v83, 0
  %v589 = vsel %vm134, %v84, 0
  %v592 = vsel %vm231, %v91, 0
  %v595 = vsel %vm231, %v92, 0
  %597 = vmatprep.subr.mxu0 %v86
  %598 = vmatpush1.msra.mxu0 %v85
  %599 = vmatprep.subr.mxu0 %v88
  %600 = vmatpush1.msra.mxu0 %v87
  %601 = vmatprep.subr.mxu0 %v90
  %602 = vmatpush1.msra.mxu0 %v89
  %603 = vmatprep.subr.mxu0 %v595
  %604 = vmatpush1.msra.mxu0 %v592
  %605 = vmatprep.subr.mxu0 0.0
  %606 = vmatpush1.msra.mxu0 0.0
  %607 = vmatprep.subr.mxu0 0.0
  %608 = vmatpush1.msra.mxu0 0.0
  %609 = vmatprep.subr.mxu0 0.0
  %610 = vmatpush1.msra.mxu0 0.0
  %611 = vmatprep.subr.mxu0 0.0
  %612 = vmatpush1.msra.mxu0 0.0
  %613 = vmatprep.subr.mxu0 0.0
  %614 = vmatpush1.msra.mxu0 0.0
  %615 = vmatprep.subr.mxu0 0.0
  %616 = vmatpush1.msra.mxu0 0.0
  %617 = vmatprep.subr.mxu0 0.0
  %618 = vmatpush1.msra.mxu0 0.0
  %619 = vmatprep.subr.mxu0 0.0
  %620 = vmatpush1.msra.mxu0 0.0
  %621 = vmatprep.subr.mxu0 0.0
  %622 = vmatpush1.msra.mxu0 0.0
  %623 = vmatprep.subr.mxu0 0.0
  %624 = vmatpush1.msra.mxu0 0.0
  %625 = vmatprep.subr.mxu0 0.0
  %626 = vmatpush1.msra.mxu0 0.0
  %627 = vmatprep.subr.mxu0 0.0
  %628 = vmatpush1.msra.mxu0 0.0
  %629 = vmatprep.subr.mxu0 0.0
  %630 = vmatpush1.msra.mxu0 0.0
  %631 = vmatprep.subr.mxu0 0.0
  %632 = vmatpush1.msra.mxu0 0.0
  %633 = vmatprep.subr.mxu0 0.0
  %634 = vmatpush1.msra.mxu0 0.0
  %635 = vmatprep.subr.mxu0 0.0
  %636 = vmatpush1.msra.mxu0 0.0
  %637 = vmatprep.subr.mxu0 0.0
  %638 = vmatpush1.msra.mxu0 0.0
  %639 = vmatprep.subr.mxu0 0.0
  %640 = vmatpush1.msra.mxu0 0.0
  %641 = vmatprep.subr.mxu0 0.0
  %642 = vmatpush1.msra.mxu0 0.0
  %643 = vmatprep.subr.mxu0 0.0
  %644 = vmatpush1.msra.mxu0 0.0
  %645 = vmatprep.subr.mxu0 0.0
  %646 = vmatpush1.msra.mxu0 0.0
  %647 = vmatprep.subr.mxu0 0.0
  %648 = vmatpush1.msra.mxu0 0.0
  %649 = vmatprep.subr.mxu0 0.0
  %650 = vmatpush1.msra.mxu0 0.0
  %651 = vmatprep.subr.mxu0 0.0
  %652 = vmatpush1.msra.mxu0 0.0
  %653 = vmatprep.subr.mxu0 0.0
  %654 = vmatpush1.msra.mxu0 0.0
  %655 = vmatprep.subr.mxu0 0.0
  %656 = vmatpush1.msra.mxu0 0.0
  %657 = vmatprep.subr.mxu0 0.0
  %658 = vmatpush1.msra.mxu0 0.0
  %659 = vmatprep.subr.mxu0 0.0
  %660 = vmatpush1.msra.mxu0 0.0
  %661 = vmatprep.mubr.f32.mxu0 0.0
  %662 = vmatmul.mubr.f32.gmra.mrb[0].mxu0 %v496
  %v663 = vpop.f32.mrb[0].mxu0
  %v664 = vadd.f32 %v305, %v663
  %v665 = vpop.f32.mrb[0].mxu0
  %v666 = vadd.f32 %v307, %v665
  %667 = vmatprep.mubr.f32.mxu0 0.0
  %668 = vmatmul.mubr.f32.gmra.mrb[0].mxu0 %v499
  %v669 = vpop.f32.mrb[0].mxu0
  %v670 = vadd.f32 %v311, %v669
  %v671 = vpop.f32.mrb[0].mxu0
  %v672 = vadd.f32 %v313, %v671
  %673 = vmatprep.mubr.f32.mxu0 0.0
  %674 = vmatmul.mubr.f32.gmra.mrb[0].mxu0 %v502
  %v675 = vpop.f32.mrb[0].mxu0
  %v676 = vadd.f32 %v317, %v675
  %v677 = vpop.f32.mrb[0].mxu0
  %v678 = vadd.f32 %v319, %v677
  %679 = vmatprep.mubr.f32.mxu0 0.0
  %680 = vmatmul.mubr.f32.gmra.mrb[0].mxu0 %v505
  %v681 = vpop.f32.mrb[0].mxu0
  %v682 = vadd.f32 %v323, %v681
  %v683 = vpop.f32.mrb[0].mxu0
  %v684 = vadd.f32 %v325, %v683
  %685 = vmatprep.mubr.f32.mxu0 0.0
  %686 = vmatmul.mubr.f32.gmra.mrb[0].mxu0 %v508
  %v687 = vpop.f32.mrb[0].mxu0
  %v688 = vadd.f32 %v329, %v687
  %v689 = vpop.f32.mrb[0].mxu0
  %v690 = vadd.f32 %v331, %v689
  %691 = vmatprep.mubr.f32.mxu0 0.0
  %692 = vmatmul.mubr.f32.gmra.mrb[0].mxu0 %v511
  %v693 = vpop.f32.mrb[0].mxu0
  %v694 = vadd.f32 %v335, %v693
  %v695 = vpop.f32.mrb[0].mxu0
  %v696 = vadd.f32 %v337, %v695
  %697 = vmatprep.mubr.f32.mxu0 0.0
  %698 = vmatmul.mubr.f32.gmra.mrb[0].mxu0 %v514
  %v699 = vpop.f32.mrb[0].mxu0
  %v700 = vadd.f32 %v341, %v699
  %v701 = vpop.f32.mrb[0].mxu0
  %v702 = vadd.f32 %v343, %v701
  %703 = vmatprep.mubr.f32.mxu0 0.0
  %704 = vmatmul.mubr.f32.gmra.mrb[0].mxu0 %v517
  %v705 = vpop.f32.mrb[0].mxu0
  %v706 = vadd.f32 %v347, %v705
  %v707 = vpop.f32.mrb[0].mxu0
  %v708 = vadd.f32 %v349, %v707
  %709 = vmatprep.mubr.f32.mxu0 0.0
  %710 = vmatmul.mubr.f32.gmra.mrb[0].mxu0 %v520
  %v711 = vpop.f32.mrb[0].mxu0
  %v712 = vadd.f32 %v353, %v711
  %v713 = vpop.f32.mrb[0].mxu0
  %v714 = vadd.f32 %v355, %v713
  %715 = vmatprep.mubr.f32.mxu0 0.0
  %716 = vmatmul.mubr.f32.gmra.mrb[0].mxu0 %v523
  %v717 = vpop.f32.mrb[0].mxu0
  %v718 = vadd.f32 %v359, %v717
  %v719 = vpop.f32.mrb[0].mxu0
  %v720 = vadd.f32 %v361, %v719
  %721 = vmatprep.mubr.f32.mxu0 0.0
  %722 = vmatmul.mubr.f32.gmra.mrb[0].mxu0 %v526
  %v723 = vpop.f32.mrb[0].mxu0
  %v724 = vadd.f32 %v365, %v723
  %v725 = vpop.f32.mrb[0].mxu0
  %v726 = vadd.f32 %v367, %v725
  %727 = vmatprep.mubr.f32.mxu0 0.0
  %728 = vmatmul.mubr.f32.gmra.mrb[0].mxu0 %v529
  %v729 = vpop.f32.mrb[0].mxu0
  %v730 = vadd.f32 %v371, %v729
  %v731 = vpop.f32.mrb[0].mxu0
  %v732 = vadd.f32 %v373, %v731
  %733 = vmatprep.mubr.f32.mxu0 0.0
  %734 = vmatmul.mubr.f32.gmra.mrb[0].mxu0 %v532
  %v735 = vpop.f32.mrb[0].mxu0
  %v736 = vadd.f32 %v377, %v735
  %v737 = vpop.f32.mrb[0].mxu0
  %v738 = vadd.f32 %v379, %v737
  %739 = vmatprep.mubr.f32.mxu0 0.0
  %740 = vmatmul.mubr.f32.gmra.mrb[0].mxu0 %v535
  %v741 = vpop.f32.mrb[0].mxu0
  %v742 = vadd.f32 %v383, %v741
  %v743 = vpop.f32.mrb[0].mxu0
  %v744 = vadd.f32 %v385, %v743
  %745 = vmatprep.mubr.f32.mxu0 0.0
  %746 = vmatmul.mubr.f32.gmra.mrb[0].mxu0 %v538
  %v747 = vpop.f32.mrb[0].mxu0
  %v748 = vadd.f32 %v389, %v747
  %v749 = vpop.f32.mrb[0].mxu0
  %v750 = vadd.f32 %v391, %v749
  %751 = vmatprep.mubr.f32.mxu0 0.0
  %752 = vmatmul.mubr.f32.gmra.mrb[0].mxu0 %v541
  %v753 = vpop.f32.mrb[0].mxu0
  %v754 = vadd.f32 %v395, %v753
  %v755 = vpop.f32.mrb[0].mxu0
  %v756 = vadd.f32 %v397, %v755
  %757 = vmatprep.mubr.f32.mxu0 0.0
  %758 = vmatmul.mubr.f32.gmra.mrb[0].mxu0 %v544
  %v759 = vpop.f32.mrb[0].mxu0
  %v760 = vadd.f32 %v401, %v759
  %v761 = vpop.f32.mrb[0].mxu0
  %v762 = vadd.f32 %v403, %v761
  %763 = vmatprep.mubr.f32.mxu0 0.0
  %764 = vmatmul.mubr.f32.gmra.mrb[0].mxu0 %v547
  %v765 = vpop.f32.mrb[0].mxu0
  %v766 = vadd.f32 %v407, %v765
  %v767 = vpop.f32.mrb[0].mxu0
  %v768 = vadd.f32 %v409, %v767
  %769 = vmatprep.mubr.f32.mxu0 0.0
  %770 = vmatmul.mubr.f32.gmra.mrb[0].mxu0 %v550
  %v771 = vpop.f32.mrb[0].mxu0
  %v772 = vadd.f32 %v413, %v771
  %v773 = vpop.f32.mrb[0].mxu0
  %v774 = vadd.f32 %v415, %v773
  %775 = vmatprep.mubr.f32.mxu0 0.0
  %776 = vmatmul.mubr.f32.gmra.mrb[0].mxu0 %v553
  %v777 = vpop.f32.mrb[0].mxu0
  %v778 = vadd.f32 %v419, %v777
  %v779 = vpop.f32.mrb[0].mxu0
  %v780 = vadd.f32 %v421, %v779
  %781 = vmatprep.mubr.f32.mxu0 0.0
  %782 = vmatmul.mubr.f32.gmra.mrb[0].mxu0 %v556
  %v783 = vpop.f32.mrb[0].mxu0
  %v784 = vadd.f32 %v425, %v783
  %v785 = vpop.f32.mrb[0].mxu0
  %v786 = vadd.f32 %v427, %v785
  %787 = vmatprep.mubr.f32.mxu0 0.0
  %788 = vmatmul.mubr.f32.gmra.mrb[0].mxu0 %v559
  %v789 = vpop.f32.mrb[0].mxu0
  %v790 = vadd.f32 %v431, %v789
  %v791 = vpop.f32.mrb[0].mxu0
  %v792 = vadd.f32 %v433, %v791
  %793 = vmatprep.mubr.f32.mxu0 0.0
  %794 = vmatmul.mubr.f32.gmra.mrb[0].mxu0 %v562
  %v795 = vpop.f32.mrb[0].mxu0
  %v796 = vadd.f32 %v437, %v795
  %v797 = vpop.f32.mrb[0].mxu0
  %v798 = vadd.f32 %v439, %v797
  %799 = vmatprep.mubr.f32.mxu0 0.0
  %800 = vmatmul.mubr.f32.gmra.mrb[0].mxu0 %v565
  %v801 = vpop.f32.mrb[0].mxu0
  %v802 = vadd.f32 %v443, %v801
  %v803 = vpop.f32.mrb[0].mxu0
  %v804 = vadd.f32 %v445, %v803
  %805 = vmatprep.mubr.f32.mxu0 0.0
  %806 = vmatmul.mubr.f32.gmra.mrb[0].mxu0 %v568
  %v807 = vpop.f32.mrb[0].mxu0
  %v808 = vadd.f32 %v449, %v807
  %v809 = vpop.f32.mrb[0].mxu0
  %v810 = vadd.f32 %v451, %v809
  %811 = vmatprep.mubr.f32.mxu0 0.0
  %812 = vmatmul.mubr.f32.gmra.mrb[0].mxu0 %v571
  %v813 = vpop.f32.mrb[0].mxu0
  %v814 = vadd.f32 %v455, %v813
  %v815 = vpop.f32.mrb[0].mxu0
  %v816 = vadd.f32 %v457, %v815
  %817 = vmatprep.mubr.f32.mxu0 0.0
  %818 = vmatmul.mubr.f32.gmra.mrb[0].mxu0 %v574
  %v819 = vpop.f32.mrb[0].mxu0
  %v820 = vadd.f32 %v461, %v819
  %v821 = vpop.f32.mrb[0].mxu0
  %v822 = vadd.f32 %v463, %v821
  %823 = vmatprep.mubr.f32.mxu0 0.0
  %824 = vmatmul.mubr.f32.gmra.mrb[0].mxu0 %v577
  %v825 = vpop.f32.mrb[0].mxu0
  %v826 = vadd.f32 %v467, %v825
  %v827 = vpop.f32.mrb[0].mxu0
  %v828 = vadd.f32 %v469, %v827
  %829 = vmatprep.mubr.f32.mxu0 0.0
  %830 = vmatmul.mubr.f32.gmra.mrb[0].mxu0 %v580
  %v831 = vpop.f32.mrb[0].mxu0
  %v832 = vadd.f32 %v473, %v831
  %v833 = vpop.f32.mrb[0].mxu0
  %v834 = vadd.f32 %v475, %v833
  %835 = vmatprep.mubr.f32.mxu0 0.0
  %836 = vmatmul.mubr.f32.gmra.mrb[0].mxu0 %v583
  %v837 = vpop.f32.mrb[0].mxu0
  %v838 = vadd.f32 %v479, %v837
  %v839 = vpop.f32.mrb[0].mxu0
  %v840 = vadd.f32 %v481, %v839
  %841 = vmatprep.mubr.f32.mxu0 0.0
  %842 = vmatmul.mubr.f32.gmra.mrb[0].mxu0 %v586
  %v843 = vpop.f32.mrb[0].mxu0
  %v844 = vadd.f32 %v485, %v843
  %v845 = vpop.f32.mrb[0].mxu0
  %v846 = vadd.f32 %v487, %v845
  %847 = vmatprep.mubr.f32.mxu0 0.0
  %848 = vmatmul.mubr.f32.gmra.mrb[0].mxu0 %v589
  %v849 = vpop.f32.mrb[0].mxu0
  %v850 = vadd.f32 %v491, %v849
  %v851 = vpop.f32.mrb[0].mxu0
  %v852 = vadd.f32 %v493, %v851
  %853 = vdwg.mxu0
  %v854 = vld [vmem:[%s0 + $0x2] sm:$0xff]
  %v855 = vld [vmem:[%s0 + $0xa] sm:$0xff]
  %v856 = vld [vmem:[%s0 + $0x12] sm:$0xff]
  %v857 = vld [vmem:[%s0 + $0x1a] sm:$0xff]
  %v858 = vld [vmem:[%s0 + $0x22] sm:$0xff]
  %v859 = vld [vmem:[%s0 + $0x2a] sm:$0xff]
  %v860 = vld [vmem:[%s0 + $0x32] sm:$0xff]
  %v861 = vld [vmem:[%s0 + $0x3a] sm:$0xff]
  %v862 = vld [vmem:[%s0 + $0x42] sm:$0xff]
  %v863 = vld [vmem:[%s0 + $0x4a] sm:$0xff]
  %v864 = vld [vmem:[%s0 + $0x52] sm:$0xff]
  %v865 = vld [vmem:[%s0 + $0x5a] sm:$0xff]
  %v866 = vld [vmem:[%s0 + $0x62] sm:$0xff]
  %v867 = vld [vmem:[%s0 + $0x6a] sm:$0xff]
  %v868 = vld [vmem:[%s0 + $0x72] sm:$0xff]
  %v869 = vld [vmem:[%s0 + $0x7a] sm:$0xff]
  %v870 = vld [vmem:[%s0 + $0x82] sm:$0xff]
  %v871 = vld [vmem:[%s0 + $0x8a] sm:$0xff]
  %v872 = vld [vmem:[%s0 + $0x92] sm:$0xff]
  %v873 = vld [vmem:[%s0 + $0x9a] sm:$0xff]
  %v874 = vld [vmem:[%s0 + $0xa2] sm:$0xff]
  %v875 = vld [vmem:[%s0 + $0xaa] sm:$0xff]
  %v876 = vld [vmem:[%s0 + $0xb2] sm:$0xff]
  %v877 = vld [vmem:[%s0 + $0xba] sm:$0xff]
  %v878 = vld [vmem:[%s0 + $0xc2] sm:$0xff]
  %v879 = vld [vmem:[%s0 + $0xca] sm:$0xff]
  %v880 = vld [vmem:[%s0 + $0xd2] sm:$0xff]
  %v881 = vld [vmem:[%s0 + $0xda] sm:$0xff]
  %v882 = vld [vmem:[%s0 + $0xe2] sm:$0xff]
  %v883 = vld [vmem:[%s0 + $0xea] sm:$0xff]
  %v884 = vld [vmem:[%s0 + $0xf2] sm:$0xff]
  %v885 = vld [vmem:[%s0 + $0xfa] sm:$0xff]
  %s886 = scalar_lea.vmem %s1, 128
  %v887 = vld [vmem:[%s886] sm:$0xff]
  %v888 = vld [vmem:[%s886 + $0x8] sm:$0xff]
  %v889 = vld [vmem:[%s886 + $0x10] sm:$0xff]
  %v890 = vld [vmem:[%s886 + $0x18] sm:$0xff]
  %v891 = vld [vmem:[%s886 + $0x20] sm:$0xff]
  %v892 = vld [vmem:[%s886 + $0x28] sm:$0xff]
  %v893 = vld [vmem:[%s886 + $0x30] sm:$0x3f]
  %v894 = vld [vmem:[%s886 + $0x38] sm:$0x3f]
  %v896 = vsel %vm134, %v854, 0
  %v899 = vsel %vm134, %v855, 0
  %v902 = vsel %vm134, %v856, 0
  %v905 = vsel %vm134, %v857, 0
  %v908 = vsel %vm134, %v858, 0
  %v911 = vsel %vm134, %v859, 0
  %v914 = vsel %vm134, %v860, 0
  %v917 = vsel %vm134, %v861, 0
  %v920 = vsel %vm134, %v862, 0
  %v923 = vsel %vm134, %v863, 0
  %v926 = vsel %vm134, %v864, 0
  %v929 = vsel %vm134, %v865, 0
  %v932 = vsel %vm134, %v866, 0
  %v935 = vsel %vm134, %v867, 0
  %v938 = vsel %vm134, %v868, 0
  %v941 = vsel %vm134, %v869, 0
  %v944 = vsel %vm134, %v870, 0
  %v947 = vsel %vm134, %v871, 0
  %v950 = vsel %vm134, %v872, 0
  %v953 = vsel %vm134, %v873, 0
  %v956 = vsel %vm134, %v874, 0
  %v959 = vsel %vm134, %v875, 0
  %v962 = vsel %vm134, %v876, 0
  %v965 = vsel %vm134, %v877, 0
  %v968 = vsel %vm134, %v878, 0
  %v971 = vsel %vm134, %v879, 0
  %v974 = vsel %vm134, %v880, 0
  %v977 = vsel %vm134, %v881, 0
  %v980 = vsel %vm134, %v882, 0
  %v983 = vsel %vm134, %v883, 0
  %v986 = vsel %vm134, %v884, 0
  %v989 = vsel %vm134, %v885, 0
  %v992 = vsel %vm231, %v893, 0
  %v995 = vsel %vm231, %v894, 0
  %997 = vmatprep.subr.mxu0 %v888
  %998 = vmatpush1.msra.mxu0 %v887
  %999 = vmatprep.subr.mxu0 %v890
  %1000 = vmatpush1.msra.mxu0 %v889
  %1001 = vmatprep.subr.mxu0 %v892
  %1002 = vmatpush1.msra.mxu0 %v891
  %1003 = vmatprep.subr.mxu0 %v995
  %1004 = vmatpush1.msra.mxu0 %v992
  %1005 = vmatprep.subr.mxu0 0.0
  %1006 = vmatpush1.msra.mxu0 0.0
  %1007 = vmatprep.subr.mxu0 0.0
  %1008 = vmatpush1.msra.mxu0 0.0
  %1009 = vmatprep.subr.mxu0 0.0
  %1010 = vmatpush1.msra.mxu0 0.0
  %1011 = vmatprep.subr.mxu0 0.0
  %1012 = vmatpush1.msra.mxu0 0.0
  %1013 = vmatprep.subr.mxu0 0.0
  %1014 = vmatpush1.msra.mxu0 0.0
  %1015 = vmatprep.subr.mxu0 0.0
  %1016 = vmatpush1.msra.mxu0 0.0
  %1017 = vmatprep.subr.mxu0 0.0
  %1018 = vmatpush1.msra.mxu0 0.0
  %1019 = vmatprep.subr.mxu0 0.0
  %1020 = vmatpush1.msra.mxu0 0.0
  %1021 = vmatprep.subr.mxu0 0.0
  %1022 = vmatpush1.msra.mxu0 0.0
  %1023 = vmatprep.subr.mxu0 0.0
  %1024 = vmatpush1.msra.mxu0 0.0
  %1025 = vmatprep.subr.mxu0 0.0
  %1026 = vmatpush1.msra.mxu0 0.0
  %1027 = vmatprep.subr.mxu0 0.0
  %1028 = vmatpush1.msra.mxu0 0.0
  %1029 = vmatprep.subr.mxu0 0.0
  %1030 = vmatpush1.msra.mxu0 0.0
  %1031 = vmatprep.subr.mxu0 0.0
  %1032 = vmatpush1.msra.mxu0 0.0
  %1033 = vmatprep.subr.mxu0 0.0
  %1034 = vmatpush1.msra.mxu0 0.0
  %1035 = vmatprep.subr.mxu0 0.0
  %1036 = vmatpush1.msra.mxu0 0.0
  %1037 = vmatprep.subr.mxu0 0.0
  %1038 = vmatpush1.msra.mxu0 0.0
  %1039 = vmatprep.subr.mxu0 0.0
  %1040 = vmatpush1.msra.mxu0 0.0
  %1041 = vmatprep.subr.mxu0 0.0
  %1042 = vmatpush1.msra.mxu0 0.0
  %1043 = vmatprep.subr.mxu0 0.0
  %1044 = vmatpush1.msra.mxu0 0.0
  %1045 = vmatprep.subr.mxu0 0.0
  %1046 = vmatpush1.msra.mxu0 0.0
  %1047 = vmatprep.subr.mxu0 0.0
  %1048 = vmatpush1.msra.mxu0 0.0
  %1049 = vmatprep.subr.mxu0 0.0
  %1050 = vmatpush1.msra.mxu0 0.0
  %1051 = vmatprep.subr.mxu0 0.0
  %1052 = vmatpush1.msra.mxu0 0.0
  %1053 = vmatprep.subr.mxu0 0.0
  %1054 = vmatpush1.msra.mxu0 0.0
  %1055 = vmatprep.subr.mxu0 0.0
  %1056 = vmatpush1.msra.mxu0 0.0
  %1057 = vmatprep.subr.mxu0 0.0
  %1058 = vmatpush1.msra.mxu0 0.0
  %1059 = vmatprep.subr.mxu0 0.0
  %1060 = vmatpush1.msra.mxu0 0.0
  %1061 = vmatprep.mubr.f32.mxu0 0.0
  %1062 = vmatmul.mubr.f32.gmra.mrb[0].mxu0 %v896
  %v1063 = vpop.f32.mrb[0].mxu0
  %v1064 = vadd.f32 0.0, %v1063
  %v1065 = vpop.f32.mrb[0].mxu0
  %v1066 = vadd.f32 0.0, %v1065
  %1067 = vmatprep.mubr.f32.mxu0 0.0
  %1068 = vmatmul.mubr.f32.gmra.mrb[0].mxu0 %v899
  %v1069 = vpop.f32.mrb[0].mxu0
  %v1070 = vadd.f32 0.0, %v1069
  %v1071 = vpop.f32.mrb[0].mxu0
  %v1072 = vadd.f32 0.0, %v1071
  %1073 = vmatprep.mubr.f32.mxu0 0.0
  %1074 = vmatmul.mubr.f32.gmra.mrb[0].mxu0 %v902
  %v1075 = vpop.f32.mrb[0].mxu0
  %v1076 = vadd.f32 0.0, %v1075
  %v1077 = vpop.f32.mrb[0].mxu0
  %v1078 = vadd.f32 0.0, %v1077
  %1079 = vmatprep.mubr.f32.mxu0 0.0
  %1080 = vmatmul.mubr.f32.gmra.mrb[0].mxu0 %v905
  %v1081 = vpop.f32.mrb[0].mxu0
  %v1082 = vadd.f32 0.0, %v1081
  %v1083 = vpop.f32.mrb[0].mxu0
  %v1084 = vadd.f32 0.0, %v1083
  %1085 = vmatprep.mubr.f32.mxu0 0.0
  %1086 = vmatmul.mubr.f32.gmra.mrb[0].mxu0 %v908
  %v1087 = vpop.f32.mrb[0].mxu0
  %v1088 = vadd.f32 0.0, %v1087
  %v1089 = vpop.f32.mrb[0].mxu0
  %v1090 = vadd.f32 0.0, %v1089
  %1091 = vmatprep.mubr.f32.mxu0 0.0
  %1092 = vmatmul.mubr.f32.gmra.mrb[0].mxu0 %v911
  %v1093 = vpop.f32.mrb[0].mxu0
  %v1094 = vadd.f32 0.0, %v1093
  %v1095 = vpop.f32.mrb[0].mxu0
  %v1096 = vadd.f32 0.0, %v1095
  %1097 = vmatprep.mubr.f32.mxu0 0.0
  %1098 = vmatmul.mubr.f32.gmra.mrb[0].mxu0 %v914
  %v1099 = vpop.f32.mrb[0].mxu0
  %v1100 = vadd.f32 0.0, %v1099
  %v1101 = vpop.f32.mrb[0].mxu0
  %v1102 = vadd.f32 0.0, %v1101
  %1103 = vmatprep.mubr.f32.mxu0 0.0
  %1104 = vmatmul.mubr.f32.gmra.mrb[0].mxu0 %v917
  %v1105 = vpop.f32.mrb[0].mxu0
  %v1106 = vadd.f32 0.0, %v1105
  %v1107 = vpop.f32.mrb[0].mxu0
  %v1108 = vadd.f32 0.0, %v1107
  %1109 = vmatprep.mubr.f32.mxu0 0.0
  %1110 = vmatmul.mubr.f32.gmra.mrb[0].mxu0 %v920
  %v1111 = vpop.f32.mrb[0].mxu0
  %v1112 = vadd.f32 0.0, %v1111
  %v1113 = vpop.f32.mrb[0].mxu0
  %v1114 = vadd.f32 0.0, %v1113
  %1115 = vmatprep.mubr.f32.mxu0 0.0
  %1116 = vmatmul.mubr.f32.gmra.mrb[0].mxu0 %v923
  %v1117 = vpop.f32.mrb[0].mxu0
  %v1118 = vadd.f32 0.0, %v1117
  %v1119 = vpop.f32.mrb[0].mxu0
  %v1120 = vadd.f32 0.0, %v1119
  %1121 = vmatprep.mubr.f32.mxu0 0.0
  %1122 = vmatmul.mubr.f32.gmra.mrb[0].mxu0 %v926
  %v1123 = vpop.f32.mrb[0].mxu0
  %v1124 = vadd.f32 0.0, %v1123
  %v1125 = vpop.f32.mrb[0].mxu0
  %v1126 = vadd.f32 0.0, %v1125
  %1127 = vmatprep.mubr.f32.mxu0 0.0
  %1128 = vmatmul.mubr.f32.gmra.mrb[0].mxu0 %v929
  %v1129 = vpop.f32.mrb[0].mxu0
  %v1130 = vadd.f32 0.0, %v1129
  %v1131 = vpop.f32.mrb[0].mxu0
  %v1132 = vadd.f32 0.0, %v1131
  %1133 = vmatprep.mubr.f32.mxu0 0.0
  %1134 = vmatmul.mubr.f32.gmra.mrb[0].mxu0 %v932
  %v1135 = vpop.f32.mrb[0].mxu0
  %v1136 = vadd.f32 0.0, %v1135
  %v1137 = vpop.f32.mrb[0].mxu0
  %v1138 = vadd.f32 0.0, %v1137
  %1139 = vmatprep.mubr.f32.mxu0 0.0
  %1140 = vmatmul.mubr.f32.gmra.mrb[0].mxu0 %v935
  %v1141 = vpop.f32.mrb[0].mxu0
  %v1142 = vadd.f32 0.0, %v1141
  %v1143 = vpop.f32.mrb[0].mxu0
  %v1144 = vadd.f32 0.0, %v1143
  %1145 = vmatprep.mubr.f32.mxu0 0.0
  %1146 = vmatmul.mubr.f32.gmra.mrb[0].mxu0 %v938
  %v1147 = vpop.f32.mrb[0].mxu0
  %v1148 = vadd.f32 0.0, %v1147
  %v1149 = vpop.f32.mrb[0].mxu0
  %v1150 = vadd.f32 0.0, %v1149
  %1151 = vmatprep.mubr.f32.mxu0 0.0
  %1152 = vmatmul.mubr.f32.gmra.mrb[0].mxu0 %v941
  %v1153 = vpop.f32.mrb[0].mxu0
  %v1154 = vadd.f32 0.0, %v1153
  %v1155 = vpop.f32.mrb[0].mxu0
  %v1156 = vadd.f32 0.0, %v1155
  %1157 = vmatprep.mubr.f32.mxu0 0.0
  %1158 = vmatmul.mubr.f32.gmra.mrb[0].mxu0 %v944
  %v1159 = vpop.f32.mrb[0].mxu0
  %v1160 = vadd.f32 0.0, %v1159
  %v1161 = vpop.f32.mrb[0].mxu0
  %v1162 = vadd.f32 0.0, %v1161
  %1163 = vmatprep.mubr.f32.mxu0 0.0
  %1164 = vmatmul.mubr.f32.gmra.mrb[0].mxu0 %v947
  %v1165 = vpop.f32.mrb[0].mxu0
  %v1166 = vadd.f32 0.0, %v1165
  %v1167 = vpop.f32.mrb[0].mxu0
  %v1168 = vadd.f32 0.0, %v1167
  %1169 = vmatprep.mubr.f32.mxu0 0.0
  %1170 = vmatmul.mubr.f32.gmra.mrb[0].mxu0 %v950
  %v1171 = vpop.f32.mrb[0].mxu0
  %v1172 = vadd.f32 0.0, %v1171
  %v1173 = vpop.f32.mrb[0].mxu0
  %v1174 = vadd.f32 0.0, %v1173
  %1175 = vmatprep.mubr.f32.mxu0 0.0
  %1176 = vmatmul.mubr.f32.gmra.mrb[0].mxu0 %v953
  %v1177 = vpop.f32.mrb[0].mxu0
  %v1178 = vadd.f32 0.0, %v1177
  %v1179 = vpop.f32.mrb[0].mxu0
  %v1180 = vadd.f32 0.0, %v1179
  %1181 = vmatprep.mubr.f32.mxu0 0.0
  %1182 = vmatmul.mubr.f32.gmra.mrb[0].mxu0 %v956
  %v1183 = vpop.f32.mrb[0].mxu0
  %v1184 = vadd.f32 0.0, %v1183
  %v1185 = vpop.f32.mrb[0].mxu0
  %v1186 = vadd.f32 0.0, %v1185
  %1187 = vmatprep.mubr.f32.mxu0 0.0
  %1188 = vmatmul.mubr.f32.gmra.mrb[0].mxu0 %v959
  %v1189 = vpop.f32.mrb[0].mxu0
  %v1190 = vadd.f32 0.0, %v1189
  %v1191 = vpop.f32.mrb[0].mxu0
  %v1192 = vadd.f32 0.0, %v1191
  %1193 = vmatprep.mubr.f32.mxu0 0.0
  %1194 = vmatmul.mubr.f32.gmra.mrb[0].mxu0 %v962
  %v1195 = vpop.f32.mrb[0].mxu0
  %v1196 = vadd.f32 0.0, %v1195
  %v1197 = vpop.f32.mrb[0].mxu0
  %v1198 = vadd.f32 0.0, %v1197
  %1199 = vmatprep.mubr.f32.mxu0 0.0
  %1200 = vmatmul.mubr.f32.gmra.mrb[0].mxu0 %v965
  %v1201 = vpop.f32.mrb[0].mxu0
  %v1202 = vadd.f32 0.0, %v1201
  %v1203 = vpop.f32.mrb[0].mxu0
  %v1204 = vadd.f32 0.0, %v1203
  %1205 = vmatprep.mubr.f32.mxu0 0.0
  %1206 = vmatmul.mubr.f32.gmra.mrb[0].mxu0 %v968
  %v1207 = vpop.f32.mrb[0].mxu0
  %v1208 = vadd.f32 0.0, %v1207
  %v1209 = vpop.f32.mrb[0].mxu0
  %v1210 = vadd.f32 0.0, %v1209
  %1211 = vmatprep.mubr.f32.mxu0 0.0
  %1212 = vmatmul.mubr.f32.gmra.mrb[0].mxu0 %v971
  %v1213 = vpop.f32.mrb[0].mxu0
  %v1214 = vadd.f32 0.0, %v1213
  %v1215 = vpop.f32.mrb[0].mxu0
  %v1216 = vadd.f32 0.0, %v1215
  %1217 = vmatprep.mubr.f32.mxu0 0.0
  %1218 = vmatmul.mubr.f32.gmra.mrb[0].mxu0 %v974
  %v1219 = vpop.f32.mrb[0].mxu0
  %v1220 = vadd.f32 0.0, %v1219
  %v1221 = vpop.f32.mrb[0].mxu0
  %v1222 = vadd.f32 0.0, %v1221
  %1223 = vmatprep.mubr.f32.mxu0 0.0
  %1224 = vmatmul.mubr.f32.gmra.mrb[0].mxu0 %v977
  %v1225 = vpop.f32.mrb[0].mxu0
  %v1226 = vadd.f32 0.0, %v1225
  %v1227 = vpop.f32.mrb[0].mxu0
  %v1228 = vadd.f32 0.0, %v1227
  %1229 = vmatprep.mubr.f32.mxu0 0.0
  %1230 = vmatmul.mubr.f32.gmra.mrb[0].mxu0 %v980
  %v1231 = vpop.f32.mrb[0].mxu0
  %v1232 = vadd.f32 0.0, %v1231
  %v1233 = vpop.f32.mrb[0].mxu0
  %v1234 = vadd.f32 0.0, %v1233
  %1235 = vmatprep.mubr.f32.mxu0 0.0
  %1236 = vmatmul.mubr.f32.gmra.mrb[0].mxu0 %v983
  %v1237 = vpop.f32.mrb[0].mxu0
  %v1238 = vadd.f32 0.0, %v1237
  %v1239 = vpop.f32.mrb[0].mxu0
  %v1240 = vadd.f32 0.0, %v1239
  %1241 = vmatprep.mubr.f32.mxu0 0.0
  %1242 = vmatmul.mubr.f32.gmra.mrb[0].mxu0 %v986
  %v1243 = vpop.f32.mrb[0].mxu0
  %v1244 = vadd.f32 0.0, %v1243
  %v1245 = vpop.f32.mrb[0].mxu0
  %v1246 = vadd.f32 0.0, %v1245
  %1247 = vmatprep.mubr.f32.mxu0 0.0
  %1248 = vmatmul.mubr.f32.gmra.mrb[0].mxu0 %v989
  %v1249 = vpop.f32.mrb[0].mxu0
  %v1250 = vadd.f32 0.0, %v1249
  %v1251 = vpop.f32.mrb[0].mxu0
  %v1252 = vadd.f32 0.0, %v1251
  %1253 = vdwg.mxu0
  %v1254 = vadd.f32 %v664, %v1064
  %v1255 = vadd.f32 %v666, %v1066
  %v1256 = vadd.f32 %v670, %v1070
  %v1257 = vadd.f32 %v672, %v1072
  %v1258 = vadd.f32 %v676, %v1076
  %v1259 = vadd.f32 %v678, %v1078
  %v1260 = vadd.f32 %v682, %v1082
  %v1261 = vadd.f32 %v684, %v1084
  %v1262 = vadd.f32 %v688, %v1088
  %v1263 = vadd.f32 %v690, %v1090
  %v1264 = vadd.f32 %v694, %v1094
  %v1265 = vadd.f32 %v696, %v1096
  %v1266 = vadd.f32 %v700, %v1100
  %v1267 = vadd.f32 %v702, %v1102
  %v1268 = vadd.f32 %v706, %v1106
  %v1269 = vadd.f32 %v708, %v1108
  %v1270 = vadd.f32 %v712, %v1112
  %v1271 = vadd.f32 %v714, %v1114
  %v1272 = vadd.f32 %v718, %v1118
  %v1273 = vadd.f32 %v720, %v1120
  %v1274 = vadd.f32 %v724, %v1124
  %v1275 = vadd.f32 %v726, %v1126
  %v1276 = vadd.f32 %v730, %v1130
  %v1277 = vadd.f32 %v732, %v1132
  %v1278 = vadd.f32 %v736, %v1136
  %v1279 = vadd.f32 %v738, %v1138
  %v1280 = vadd.f32 %v742, %v1142
  %v1281 = vadd.f32 %v744, %v1144
  %v1282 = vadd.f32 %v748, %v1148
  %v1283 = vadd.f32 %v750, %v1150
  %v1284 = vadd.f32 %v754, %v1154
  %v1285 = vadd.f32 %v756, %v1156
  %v1286 = vadd.f32 %v760, %v1160
  %v1287 = vadd.f32 %v762, %v1162
  %v1288 = vadd.f32 %v766, %v1166
  %v1289 = vadd.f32 %v768, %v1168
  %v1290 = vadd.f32 %v772, %v1172
  %v1291 = vadd.f32 %v774, %v1174
  %v1292 = vadd.f32 %v778, %v1178
  %v1293 = vadd.f32 %v780, %v1180
  %v1294 = vadd.f32 %v784, %v1184
  %v1295 = vadd.f32 %v786, %v1186
  %v1296 = vadd.f32 %v790, %v1190
  %v1297 = vadd.f32 %v792, %v1192
  %v1298 = vadd.f32 %v796, %v1196
  %v1299 = vadd.f32 %v798, %v1198
  %v1300 = vadd.f32 %v802, %v1202
  %v1301 = vadd.f32 %v804, %v1204
  %v1302 = vadd.f32 %v808, %v1208
  %v1303 = vadd.f32 %v810, %v1210
  %v1304 = vadd.f32 %v814, %v1214
  %v1305 = vadd.f32 %v816, %v1216
  %v1306 = vadd.f32 %v820, %v1220
  %v1307 = vadd.f32 %v822, %v1222
  %v1308 = vadd.f32 %v826, %v1226
  %v1309 = vadd.f32 %v828, %v1228
  %v1310 = vadd.f32 %v832, %v1232
  %v1311 = vadd.f32 %v834, %v1234
  %v1312 = vadd.f32 %v838, %v1238
  %v1313 = vadd.f32 %v840, %v1240
  %v1314 = vadd.f32 %v844, %v1244
  %v1315 = vadd.f32 %v846, %v1246
  %v1316 = vadd.f32 %v850, %v1250
  %v1317 = vadd.f32 %v852, %v1252
  %v1318 = vld [vmem:[%s3] sm:$0xff]
  %v1319 = vld [vmem:[%s3 + $0x8] sm:$0xff]
  %v1320 = vld [vmem:[%s3 + $0x10] sm:$0xff]
  %v1321 = vld [vmem:[%s3 + $0x18] sm:$0xff]
  %v1322 = vld [vmem:[%s3 + $0x20] sm:$0xff]
  %v1323 = vld [vmem:[%s3 + $0x28] sm:$0xff]
  %v1324 = vld [vmem:[%s3 + $0x30] sm:$0xff]
  %v1325 = vld [vmem:[%s3 + $0x38] sm:$0xff]
  %v1326 = vld [vmem:[%s3 + $0x40] sm:$0xff]
  %v1327 = vld [vmem:[%s3 + $0x48] sm:$0xff]
  %v1328 = vld [vmem:[%s3 + $0x50] sm:$0xff]
  %v1329 = vld [vmem:[%s3 + $0x58] sm:$0xff]
  %v1330 = vld [vmem:[%s3 + $0x60] sm:$0xff]
  %v1331 = vld [vmem:[%s3 + $0x68] sm:$0xff]
  %v1332 = vld [vmem:[%s3 + $0x70] sm:$0xff]
  %v1333 = vld [vmem:[%s3 + $0x78] sm:$0xff]
  %v1334 = vld [vmem:[%s3 + $0x80] sm:$0xff]
  %v1335 = vld [vmem:[%s3 + $0x88] sm:$0xff]
  %v1336 = vld [vmem:[%s3 + $0x90] sm:$0xff]
  %v1337 = vld [vmem:[%s3 + $0x98] sm:$0xff]
  %v1338 = vld [vmem:[%s3 + $0xa0] sm:$0xff]
  %v1339 = vld [vmem:[%s3 + $0xa8] sm:$0xff]
  %v1340 = vld [vmem:[%s3 + $0xb0] sm:$0xff]
  %v1341 = vld [vmem:[%s3 + $0xb8] sm:$0xff]
  %v1342 = vld [vmem:[%s3 + $0xc0] sm:$0xff]
  %v1343 = vld [vmem:[%s3 + $0xc8] sm:$0xff]
  %v1344 = vld [vmem:[%s3 + $0xd0] sm:$0xff]
  %v1345 = vld [vmem:[%s3 + $0xd8] sm:$0xff]
  %v1346 = vld [vmem:[%s3 + $0xe0] sm:$0xff]
  %v1347 = vld [vmem:[%s3 + $0xe8] sm:$0xff]
  %v1348 = vld [vmem:[%s3 + $0xf0] sm:$0xff]
  %v1349 = vld [vmem:[%s3 + $0xf8] sm:$0xff]
  %v1350 = vld [vmem:[%s3 + $0x100] sm:$0xff]
  %v1351 = vld [vmem:[%s3 + $0x108] sm:$0xff]
  %v1352 = vld [vmem:[%s3 + $0x110] sm:$0xff]
  %v1353 = vld [vmem:[%s3 + $0x118] sm:$0xff]
  %v1354 = vld [vmem:[%s3 + $0x120] sm:$0xff]
  %v1355 = vld [vmem:[%s3 + $0x128] sm:$0xff]
  %v1356 = vld [vmem:[%s3 + $0x130] sm:$0xff]
  %v1357 = vld [vmem:[%s3 + $0x138] sm:$0xff]
  %v1358 = vld [vmem:[%s3 + $0x140] sm:$0xff]
  %v1359 = vld [vmem:[%s3 + $0x148] sm:$0xff]
  %v1360 = vld [vmem:[%s3 + $0x150] sm:$0xff]
  %v1361 = vld [vmem:[%s3 + $0x158] sm:$0xff]
  %v1362 = vld [vmem:[%s3 + $0x160] sm:$0xff]
  %v1363 = vld [vmem:[%s3 + $0x168] sm:$0xff]
  %v1364 = vld [vmem:[%s3 + $0x170] sm:$0xff]
  %v1365 = vld [vmem:[%s3 + $0x178] sm:$0xff]
  %v1366 = vld [vmem:[%s3 + $0x180] sm:$0xff]
  %v1367 = vld [vmem:[%s3 + $0x188] sm:$0xff]
  %v1368 = vld [vmem:[%s3 + $0x190] sm:$0xff]
  %v1369 = vld [vmem:[%s3 + $0x198] sm:$0xff]
  %v1370 = vld [vmem:[%s3 + $0x1a0] sm:$0xff]
  %v1371 = vld [vmem:[%s3 + $0x1a8] sm:$0xff]
  %v1372 = vld [vmem:[%s3 + $0x1b0] sm:$0xff]
  %v1373 = vld [vmem:[%s3 + $0x1b8] sm:$0xff]
  %v1374 = vld [vmem:[%s3 + $0x1c0] sm:$0xff]
  %v1375 = vld [vmem:[%s3 + $0x1c8] sm:$0xff]
  %v1376 = vld [vmem:[%s3 + $0x1d0] sm:$0xff]
  %v1377 = vld [vmem:[%s3 + $0x1d8] sm:$0xff]
  %v1378 = vld [vmem:[%s3 + $0x1e0] sm:$0xff]
  %v1379 = vld [vmem:[%s3 + $0x1e8] sm:$0xff]
  %v1380 = vld [vmem:[%s3 + $0x1f0] sm:$0xff]
  %v1381 = vld [vmem:[%s3 + $0x1f8] sm:$0xff]
  %v1382 = vld [vmem:[%s3 + $0x200] sm:$0xff]
  %v1383 = vld [vmem:[%s3 + $0x208] sm:$0xff]
  %v1384 = vld [vmem:[%s3 + $0x210] sm:$0xff]
  %v1385 = vld [vmem:[%s3 + $0x218] sm:$0xff]
  %1386 = vmatprep.subr.mxu0 %v1255
  %1387 = vmatpush1.msra.mxu0 %v1254
  %1388 = vmatprep.subr.mxu0 %v1257
  %1389 = vmatpush1.msra.mxu0 %v1256
  %1390 = vmatprep.subr.mxu0 %v1259
  %1391 = vmatpush1.msra.mxu0 %v1258
  %1392 = vmatprep.subr.mxu0 %v1261
  %1393 = vmatpush1.msra.mxu0 %v1260
  %1394 = vmatprep.subr.mxu0 %v1263
  %1395 = vmatpush1.msra.mxu0 %v1262
  %1396 = vmatprep.subr.mxu0 %v1265
  %1397 = vmatpush1.msra.mxu0 %v1264
  %1398 = vmatprep.subr.mxu0 %v1267
  %1399 = vmatpush1.msra.mxu0 %v1266
  %1400 = vmatprep.subr.mxu0 %v1269
  %1401 = vmatpush1.msra.mxu0 %v1268
  %1402 = vmatprep.subr.mxu0 %v1271
  %1403 = vmatpush1.msra.mxu0 %v1270
  %1404 = vmatprep.subr.mxu0 %v1273
  %1405 = vmatpush1.msra.mxu0 %v1272
  %1406 = vmatprep.subr.mxu0 %v1275
  %1407 = vmatpush1.msra.mxu0 %v1274
  %1408 = vmatprep.subr.mxu0 %v1277
  %1409 = vmatpush1.msra.mxu0 %v1276
  %1410 = vmatprep.subr.mxu0 %v1279
  %1411 = vmatpush1.msra.mxu0 %v1278
  %1412 = vmatprep.subr.mxu0 %v1281
  %1413 = vmatpush1.msra.mxu0 %v1280
  %1414 = vmatprep.subr.mxu0 %v1283
  %1415 = vmatpush1.msra.mxu0 %v1282
  %1416 = vmatprep.subr.mxu0 %v1285
  %1417 = vmatpush1.msra.mxu0 %v1284
  %1418 = vmatprep.subr.mxu0 %v1287
  %1419 = vmatpush1.msra.mxu0 %v1286
  %1420 = vmatprep.subr.mxu0 %v1289
  %1421 = vmatpush1.msra.mxu0 %v1288
  %1422 = vmatprep.subr.mxu0 %v1291
  %1423 = vmatpush1.msra.mxu0 %v1290
  %1424 = vmatprep.subr.mxu0 %v1293
  %1425 = vmatpush1.msra.mxu0 %v1292
  %1426 = vmatprep.subr.mxu0 %v1295
  %1427 = vmatpush1.msra.mxu0 %v1294
  %1428 = vmatprep.subr.mxu0 %v1297
  %1429 = vmatpush1.msra.mxu0 %v1296
  %1430 = vmatprep.subr.mxu0 %v1299
  %1431 = vmatpush1.msra.mxu0 %v1298
  %1432 = vmatprep.subr.mxu0 %v1301
  %1433 = vmatpush1.msra.mxu0 %v1300
  %1434 = vmatprep.subr.mxu0 %v1303
  %1435 = vmatpush1.msra.mxu0 %v1302
  %1436 = vmatprep.subr.mxu0 %v1305
  %1437 = vmatpush1.msra.mxu0 %v1304
  %1438 = vmatprep.subr.mxu0 %v1307
  %1439 = vmatpush1.msra.mxu0 %v1306
  %1440 = vmatprep.subr.mxu0 %v1309
  %1441 = vmatpush1.msra.mxu0 %v1308
  %1442 = vmatprep.subr.mxu0 %v1311
  %1443 = vmatpush1.msra.mxu0 %v1310
  %1444 = vmatprep.subr.mxu0 %v1313
  %1445 = vmatpush1.msra.mxu0 %v1312
  %1446 = vmatprep.subr.mxu0 %v1315
  %1447 = vmatpush1.msra.mxu0 %v1314
  %1448 = vmatprep.subr.mxu0 %v1317
  %1449 = vmatpush1.msra.mxu0 %v1316
  %1450 = vmatprep.mubr.f32.mxu0 %v1319
  %1451 = vmatmul.mubr.f32.gmra.mrb[0].mxu0 %v1318
  %v1452 = vpop.f32.mrb[0].mxu0
  %v1453 = vadd.f32 0.0, %v1452
  %v1454 = vpop.f32.mrb[0].mxu0
  %v1455 = vadd.f32 0.0, %v1454
  %1456 = vmatprep.mubr.f32.mxu0 %v1321
  %1457 = vmatmul.mubr.f32.gmra.mrb[0].mxu0 %v1320
  %v1458 = vpop.f32.mrb[0].mxu0
  %v1459 = vadd.f32 0.0, %v1458
  %v1460 = vpop.f32.mrb[0].mxu0
  %v1461 = vadd.f32 0.0, %v1460
  %1462 = vmatprep.mubr.f32.mxu0 %v1323
  %1463 = vmatmul.mubr.f32.gmra.mrb[0].mxu0 %v1322
  %v1464 = vpop.f32.mrb[0].mxu0
  %v1465 = vadd.f32 0.0, %v1464
  %v1466 = vpop.f32.mrb[0].mxu0
  %v1467 = vadd.f32 0.0, %v1466
  %1468 = vmatprep.mubr.f32.mxu0 %v1325
  %1469 = vmatmul.mubr.f32.gmra.mrb[0].mxu0 %v1324
  %v1470 = vpop.f32.mrb[0].mxu0
  %v1471 = vadd.f32 0.0, %v1470
  %v1472 = vpop.f32.mrb[0].mxu0
  %v1473 = vadd.f32 0.0, %v1472
  %1474 = vmatprep.mubr.f32.mxu0 %v1327
  %1475 = vmatmul.mubr.f32.gmra.mrb[0].mxu0 %v1326
  %v1476 = vpop.f32.mrb[0].mxu0
  %v1477 = vadd.f32 0.0, %v1476
  %v1478 = vpop.f32.mrb[0].mxu0
  %v1479 = vadd.f32 0.0, %v1478
  %1480 = vmatprep.mubr.f32.mxu0 %v1329
  %1481 = vmatmul.mubr.f32.gmra.mrb[0].mxu0 %v1328
  %v1482 = vpop.f32.mrb[0].mxu0
  %v1483 = vadd.f32 0.0, %v1482
  %v1484 = vpop.f32.mrb[0].mxu0
  %v1485 = vadd.f32 0.0, %v1484
  %1486 = vmatprep.mubr.f32.mxu0 %v1331
  %1487 = vmatmul.mubr.f32.gmra.mrb[0].mxu0 %v1330
  %v1488 = vpop.f32.mrb[0].mxu0
  %v1489 = vadd.f32 0.0, %v1488
  %v1490 = vpop.f32.mrb[0].mxu0
  %v1491 = vadd.f32 0.0, %v1490
  %1492 = vmatprep.mubr.f32.mxu0 %v1333
  %1493 = vmatmul.mubr.f32.gmra.mrb[0].mxu0 %v1332
  %v1494 = vpop.f32.mrb[0].mxu0
  %v1495 = vadd.f32 0.0, %v1494
  %v1496 = vpop.f32.mrb[0].mxu0
  %v1497 = vadd.f32 0.0, %v1496
  %1498 = vmatprep.mubr.f32.mxu0 %v1335
  %1499 = vmatmul.mubr.f32.gmra.mrb[0].mxu0 %v1334
  %v1500 = vpop.f32.mrb[0].mxu0
  %v1501 = vadd.f32 0.0, %v1500
  %v1502 = vpop.f32.mrb[0].mxu0
  %v1503 = vadd.f32 0.0, %v1502
  %1504 = vmatprep.mubr.f32.mxu0 %v1337
  %1505 = vmatmul.mubr.f32.gmra.mrb[0].mxu0 %v1336
  %v1506 = vpop.f32.mrb[0].mxu0
  %v1507 = vadd.f32 0.0, %v1506
  %v1508 = vpop.f32.mrb[0].mxu0
  %v1509 = vadd.f32 0.0, %v1508
  %1510 = vmatprep.mubr.f32.mxu0 %v1339
  %1511 = vmatmul.mubr.f32.gmra.mrb[0].mxu0 %v1338
  %v1512 = vpop.f32.mrb[0].mxu0
  %v1513 = vadd.f32 0.0, %v1512
  %v1514 = vpop.f32.mrb[0].mxu0
  %v1515 = vadd.f32 0.0, %v1514
  %1516 = vmatprep.mubr.f32.mxu0 %v1341
  %1517 = vmatmul.mubr.f32.gmra.mrb[0].mxu0 %v1340
  %v1518 = vpop.f32.mrb[0].mxu0
  %v1519 = vadd.f32 0.0, %v1518
  %v1520 = vpop.f32.mrb[0].mxu0
  %v1521 = vadd.f32 0.0, %v1520
  %1522 = vmatprep.mubr.f32.mxu0 %v1343
  %1523 = vmatmul.mubr.f32.gmra.mrb[0].mxu0 %v1342
  %v1524 = vpop.f32.mrb[0].mxu0
  %v1525 = vadd.f32 0.0, %v1524
  %v1526 = vpop.f32.mrb[0].mxu0
  %v1527 = vadd.f32 0.0, %v1526
  %1528 = vmatprep.mubr.f32.mxu0 %v1345
  %1529 = vmatmul.mubr.f32.gmra.mrb[0].mxu0 %v1344
  %v1530 = vpop.f32.mrb[0].mxu0
  %v1531 = vadd.f32 0.0, %v1530
  %v1532 = vpop.f32.mrb[0].mxu0
  %v1533 = vadd.f32 0.0, %v1532
  %1534 = vmatprep.mubr.f32.mxu0 %v1347
  %1535 = vmatmul.mubr.f32.gmra.mrb[0].mxu0 %v1346
  %v1536 = vpop.f32.mrb[0].mxu0
  %v1537 = vadd.f32 0.0, %v1536
  %v1538 = vpop.f32.mrb[0].mxu0
  %v1539 = vadd.f32 0.0, %v1538
  %1540 = vmatprep.mubr.f32.mxu0 %v1349
  %1541 = vmatmul.mubr.f32.gmra.mrb[0].mxu0 %v1348
  %v1542 = vpop.f32.mrb[0].mxu0
  %v1543 = vadd.f32 0.0, %v1542
  %v1544 = vpop.f32.mrb[0].mxu0
  %v1545 = vadd.f32 0.0, %v1544
  %1546 = vmatprep.mubr.f32.mxu0 %v1351
  %1547 = vmatmul.mubr.f32.gmra.mrb[0].mxu0 %v1350
  %v1548 = vpop.f32.mrb[0].mxu0
  %v1549 = vadd.f32 0.0, %v1548
  %v1550 = vpop.f32.mrb[0].mxu0
  %v1551 = vadd.f32 0.0, %v1550
  %1552 = vmatprep.mubr.f32.mxu0 %v1353
  %1553 = vmatmul.mubr.f32.gmra.mrb[0].mxu0 %v1352
  %v1554 = vpop.f32.mrb[0].mxu0
  %v1555 = vadd.f32 0.0, %v1554
  %v1556 = vpop.f32.mrb[0].mxu0
  %v1557 = vadd.f32 0.0, %v1556
  %1558 = vmatprep.mubr.f32.mxu0 %v1355
  %1559 = vmatmul.mubr.f32.gmra.mrb[0].mxu0 %v1354
  %v1560 = vpop.f32.mrb[0].mxu0
  %v1561 = vadd.f32 0.0, %v1560
  %v1562 = vpop.f32.mrb[0].mxu0
  %v1563 = vadd.f32 0.0, %v1562
  %1564 = vmatprep.mubr.f32.mxu0 %v1357
  %1565 = vmatmul.mubr.f32.gmra.mrb[0].mxu0 %v1356
  %v1566 = vpop.f32.mrb[0].mxu0
  %v1567 = vadd.f32 0.0, %v1566
  %v1568 = vpop.f32.mrb[0].mxu0
  %v1569 = vadd.f32 0.0, %v1568
  %1570 = vmatprep.mubr.f32.mxu0 %v1359
  %1571 = vmatmul.mubr.f32.gmra.mrb[0].mxu0 %v1358
  %v1572 = vpop.f32.mrb[0].mxu0
  %v1573 = vadd.f32 0.0, %v1572
  %v1574 = vpop.f32.mrb[0].mxu0
  %v1575 = vadd.f32 0.0, %v1574
  %1576 = vmatprep.mubr.f32.mxu0 %v1361
  %1577 = vmatmul.mubr.f32.gmra.mrb[0].mxu0 %v1360
  %v1578 = vpop.f32.mrb[0].mxu0
  %v1579 = vadd.f32 0.0, %v1578
  %v1580 = vpop.f32.mrb[0].mxu0
  %v1581 = vadd.f32 0.0, %v1580
  %1582 = vmatprep.mubr.f32.mxu0 %v1363
  %1583 = vmatmul.mubr.f32.gmra.mrb[0].mxu0 %v1362
  %v1584 = vpop.f32.mrb[0].mxu0
  %v1585 = vadd.f32 0.0, %v1584
  %v1586 = vpop.f32.mrb[0].mxu0
  %v1587 = vadd.f32 0.0, %v1586
  %1588 = vmatprep.mubr.f32.mxu0 %v1365
  %1589 = vmatmul.mubr.f32.gmra.mrb[0].mxu0 %v1364
  %v1590 = vpop.f32.mrb[0].mxu0
  %v1591 = vadd.f32 0.0, %v1590
  %v1592 = vpop.f32.mrb[0].mxu0
  %v1593 = vadd.f32 0.0, %v1592
  %1594 = vmatprep.mubr.f32.mxu0 %v1367
  %1595 = vmatmul.mubr.f32.gmra.mrb[0].mxu0 %v1366
  %v1596 = vpop.f32.mrb[0].mxu0
  %v1597 = vadd.f32 0.0, %v1596
  %v1598 = vpop.f32.mrb[0].mxu0
  %v1599 = vadd.f32 0.0, %v1598
  %1600 = vmatprep.mubr.f32.mxu0 %v1369
  %1601 = vmatmul.mubr.f32.gmra.mrb[0].mxu0 %v1368
  %v1602 = vpop.f32.mrb[0].mxu0
  %v1603 = vadd.f32 0.0, %v1602
  %v1604 = vpop.f32.mrb[0].mxu0
  %v1605 = vadd.f32 0.0, %v1604
  %1606 = vmatprep.mubr.f32.mxu0 %v1371
  %1607 = vmatmul.mubr.f32.gmra.mrb[0].mxu0 %v1370
  %v1608 = vpop.f32.mrb[0].mxu0
  %v1609 = vadd.f32 0.0, %v1608
  %v1610 = vpop.f32.mrb[0].mxu0
  %v1611 = vadd.f32 0.0, %v1610
  %1612 = vmatprep.mubr.f32.mxu0 %v1373
  %1613 = vmatmul.mubr.f32.gmra.mrb[0].mxu0 %v1372
  %v1614 = vpop.f32.mrb[0].mxu0
  %v1615 = vadd.f32 0.0, %v1614
  %v1616 = vpop.f32.mrb[0].mxu0
  %v1617 = vadd.f32 0.0, %v1616
  %1618 = vmatprep.mubr.f32.mxu0 %v1375
  %1619 = vmatmul.mubr.f32.gmra.mrb[0].mxu0 %v1374
  %v1620 = vpop.f32.mrb[0].mxu0
  %v1621 = vadd.f32 0.0, %v1620
  %v1622 = vpop.f32.mrb[0].mxu0
  %v1623 = vadd.f32 0.0, %v1622
  %1624 = vmatprep.mubr.f32.mxu0 %v1377
  %1625 = vmatmul.mubr.f32.gmra.mrb[0].mxu0 %v1376
  %v1626 = vpop.f32.mrb[0].mxu0
  %v1627 = vadd.f32 0.0, %v1626
  %v1628 = vpop.f32.mrb[0].mxu0
  %v1629 = vadd.f32 0.0, %v1628
  %1630 = vmatprep.mubr.f32.mxu0 %v1379
  %1631 = vmatmul.mubr.f32.gmra.mrb[0].mxu0 %v1378
  %v1632 = vpop.f32.mrb[0].mxu0
  %v1633 = vadd.f32 0.0, %v1632
  %v1634 = vpop.f32.mrb[0].mxu0
  %v1635 = vadd.f32 0.0, %v1634
  %1636 = vmatprep.mubr.f32.mxu0 %v1381
  %1637 = vmatmul.mubr.f32.gmra.mrb[0].mxu0 %v1380
  %v1638 = vpop.f32.mrb[0].mxu0
  %v1639 = vadd.f32 0.0, %v1638
  %v1640 = vpop.f32.mrb[0].mxu0
  %v1641 = vadd.f32 0.0, %v1640
  %1642 = vmatprep.mubr.f32.mxu0 %v1383
  %1643 = vmatmul.mubr.f32.gmra.mrb[0].mxu0 %v1382
  %v1644 = vpop.f32.mrb[0].mxu0
  %v1645 = vadd.f32 0.0, %v1644
  %v1646 = vpop.f32.mrb[0].mxu0
  %v1647 = vadd.f32 0.0, %v1646
  %1648 = vmatprep.mubr.f32.mxu0 %v1385
  %1649 = vmatmul.mubr.f32.gmra.mrb[0].mxu0 %v1384
  %v1650 = vpop.f32.mrb[0].mxu0
  %v1651 = vadd.f32 0.0, %v1650
  %v1652 = vpop.f32.mrb[0].mxu0
  %v1653 = vadd.f32 0.0, %v1652
  %1654 = vdwg.mxu0
  %v1655 = vmax.f32 %v1453, %v1555
  %v1656 = vmax.f32 %v1455, %v1557
  %v1657 = vmax.f32 %v1459, %v1561
  %v1658 = vmax.f32 %v1461, %v1563
  %v1659 = vmax.f32 %v1465, %v1567
  %v1660 = vmax.f32 %v1467, %v1569
  %v1661 = vmax.f32 %v1471, %v1573
  %v1662 = vmax.f32 %v1473, %v1575
  %v1663 = vmax.f32 %v1477, %v1579
  %v1664 = vmax.f32 %v1479, %v1581
  %v1665 = vmax.f32 %v1483, %v1585
  %v1666 = vmax.f32 %v1485, %v1587
  %v1667 = vmax.f32 %v1489, %v1591
  %v1668 = vmax.f32 %v1491, %v1593
  %v1669 = vmax.f32 %v1495, %v1597
  %v1670 = vmax.f32 %v1497, %v1599
  %v1671 = vmax.f32 %v1501, %v1603
  %v1672 = vmax.f32 %v1503, %v1605
  %v1673 = vmax.f32 %v1507, %v1609
  %v1674 = vmax.f32 %v1509, %v1611
  %v1675 = vmax.f32 %v1513, %v1615
  %v1676 = vmax.f32 %v1515, %v1617
  %v1677 = vmax.f32 %v1519, %v1621
  %v1678 = vmax.f32 %v1521, %v1623
  %v1679 = vmax.f32 %v1525, %v1627
  %v1680 = vmax.f32 %v1527, %v1629
  %v1681 = vmax.f32 %v1531, %v1633
  %v1682 = vmax.f32 %v1533, %v1635
  %v1683 = vmax.f32 %v1537, %v1639
  %v1684 = vmax.f32 %v1539, %v1641
  %v1685 = vmax.f32 %v1543, %v1645
  %v1686 = vmax.f32 %v1545, %v1647
  %v1687 = vmax.f32 %v1549, %v1651
  %v1688 = vmax.f32 %v1551, %v1653
  %v1689 = vmax.f32 %v1655, %v1656
  %v1690 = vmax.f32 %v1657, %v1658
  %v1691 = vmax.f32 %v1659, %v1660
  %v1692 = vmax.f32 %v1661, %v1662
  %v1693 = vmax.f32 %v1663, %v1664
  %v1694 = vmax.f32 %v1665, %v1666
  %v1695 = vmax.f32 %v1667, %v1668
  %v1696 = vmax.f32 %v1669, %v1670
  %v1697 = vmax.f32 %v1671, %v1672
  %v1698 = vmax.f32 %v1673, %v1674
  %v1699 = vmax.f32 %v1675, %v1676
  %v1700 = vmax.f32 %v1677, %v1678
  %v1701 = vmax.f32 %v1679, %v1680
  %v1702 = vmax.f32 %v1681, %v1682
  %v1703 = vmax.f32 %v1683, %v1684
  %v1704 = vmax.f32 %v1685, %v1686
  %v1705 = vmax.f32 %v1687, %v1688
  %v1706 = vld [vmem:[%s4] sm:$0xff]
  %v1707 = vld [vmem:[%s4 + $0x8] sm:$0xff]
  %v1708 = vld [vmem:[%s4 + $0x10] sm:$0xff]
  %v1709 = vld [vmem:[%s4 + $0x18] sm:$0xff]
  %v1710 = vld [vmem:[%s4 + $0x20] sm:$0xff]
  %v1711 = vld [vmem:[%s4 + $0x28] sm:$0xff]
  %v1712 = vld [vmem:[%s4 + $0x30] sm:$0xff]
  %v1713 = vld [vmem:[%s4 + $0x38] sm:$0xff]
  %v1714 = vld [vmem:[%s4 + $0x40] sm:$0xff]
  %v1715 = vld [vmem:[%s4 + $0x48] sm:$0xff]
  %v1716 = vld [vmem:[%s4 + $0x50] sm:$0xff]
  %v1717 = vld [vmem:[%s4 + $0x58] sm:$0xff]
  %v1718 = vld [vmem:[%s4 + $0x60] sm:$0xff]
  %v1719 = vld [vmem:[%s4 + $0x68] sm:$0xff]
  %v1720 = vld [vmem:[%s4 + $0x70] sm:$0xff]
  %v1721 = vld [vmem:[%s4 + $0x78] sm:$0xff]
  %v1722 = vld [vmem:[%s4 + $0x80] sm:$0xff]
  %v1723 = vld [vmem:[%s2] sm:$0x1]
  %v1725 = vlaneseq
  %v1726 = vshrl.u32 %v1725, 7
  %v1727 = vsub.s32 0, %v1726
  %v1728 = vrot.slane %v1723, %v1727
  %v1730 = vadd.f32 %v1689, %v1728
  %v1731 = vadd.f32 %v1690, %v1728
  %v1732 = vadd.f32 %v1691, %v1728
  %v1733 = vadd.f32 %v1692, %v1728
  %v1734 = vadd.f32 %v1693, %v1728
  %v1735 = vadd.f32 %v1694, %v1728
  %v1736 = vadd.f32 %v1695, %v1728
  %v1737 = vadd.f32 %v1696, %v1728
  %v1738 = vadd.f32 %v1697, %v1728
  %v1739 = vadd.f32 %v1698, %v1728
  %v1740 = vadd.f32 %v1699, %v1728
  %v1741 = vadd.f32 %v1700, %v1728
  %v1742 = vadd.f32 %v1701, %v1728
  %v1743 = vadd.f32 %v1702, %v1728
  %v1744 = vadd.f32 %v1703, %v1728
  %v1745 = vadd.f32 %v1704, %v1728
  %v1746 = vadd.f32 %v1705, %v1728
  %v1747 = vmax.f32 %v1730, 0.0
  %v1748 = vmax.f32 %v1731, 0.0
  %v1749 = vmax.f32 %v1732, 0.0
  %v1750 = vmax.f32 %v1733, 0.0
  %v1751 = vmax.f32 %v1734, 0.0
  %v1752 = vmax.f32 %v1735, 0.0
  %v1753 = vmax.f32 %v1736, 0.0
  %v1754 = vmax.f32 %v1737, 0.0
  %v1755 = vmax.f32 %v1738, 0.0
  %v1756 = vmax.f32 %v1739, 0.0
  %v1757 = vmax.f32 %v1740, 0.0
  %v1758 = vmax.f32 %v1741, 0.0
  %v1759 = vmax.f32 %v1742, 0.0
  %v1760 = vmax.f32 %v1743, 0.0
  %v1761 = vmax.f32 %v1744, 0.0
  %v1762 = vmax.f32 %v1745, 0.0
  %v1763 = vmax.f32 %v1746, 0.0
  %1765 = vset.pattern.permute.xlu0 0
  %1766 = vperm.xlu0 %1765, %v1706
  %v1767 = vpop.permute.xlu0 %1766
  %1770 = vset.pattern.permute.xlu0 0
  %1771 = vperm.xlu0 %1770, %v1707
  %v1772 = vpop.permute.xlu0 %1771
  %1775 = vset.pattern.permute.xlu0 0
  %1776 = vperm.xlu0 %1775, %v1708
  %v1777 = vpop.permute.xlu0 %1776
  %1780 = vset.pattern.permute.xlu0 0
  %1781 = vperm.xlu0 %1780, %v1709
  %v1782 = vpop.permute.xlu0 %1781
  %1785 = vset.pattern.permute.xlu0 0
  %1786 = vperm.xlu0 %1785, %v1710
  %v1787 = vpop.permute.xlu0 %1786
  %1790 = vset.pattern.permute.xlu0 0
  %1791 = vperm.xlu0 %1790, %v1711
  %v1792 = vpop.permute.xlu0 %1791
  %1795 = vset.pattern.permute.xlu0 0
  %1796 = vperm.xlu0 %1795, %v1712
  %v1797 = vpop.permute.xlu0 %1796
  %1800 = vset.pattern.permute.xlu0 0
  %1801 = vperm.xlu0 %1800, %v1713
  %v1802 = vpop.permute.xlu0 %1801
  %1805 = vset.pattern.permute.xlu0 0
  %1806 = vperm.xlu0 %1805, %v1714
  %v1807 = vpop.permute.xlu0 %1806
  %1810 = vset.pattern.permute.xlu0 0
  %1811 = vperm.xlu0 %1810, %v1715
  %v1812 = vpop.permute.xlu0 %1811
  %1815 = vset.pattern.permute.xlu0 0
  %1816 = vperm.xlu0 %1815, %v1716
  %v1817 = vpop.permute.xlu0 %1816
  %1820 = vset.pattern.permute.xlu0 0
  %1821 = vperm.xlu0 %1820, %v1717
  %v1822 = vpop.permute.xlu0 %1821
  %1825 = vset.pattern.permute.xlu0 0
  %1826 = vperm.xlu0 %1825, %v1718
  %v1827 = vpop.permute.xlu0 %1826
  %1830 = vset.pattern.permute.xlu0 0
  %1831 = vperm.xlu0 %1830, %v1719
  %v1832 = vpop.permute.xlu0 %1831
  %1835 = vset.pattern.permute.xlu0 0
  %1836 = vperm.xlu0 %1835, %v1720
  %v1837 = vpop.permute.xlu0 %1836
  %1840 = vset.pattern.permute.xlu0 0
  %1841 = vperm.xlu0 %1840, %v1721
  %v1842 = vpop.permute.xlu0 %1841
  %1845 = vset.pattern.permute.xlu0 0
  %1846 = vperm.xlu0 %1845, %v1722
  %v1847 = vpop.permute.xlu0 %1846
  %v1849 = vmul.f32 %v1767, %v1747
  %v1850 = vmul.f32 %v1772, %v1748
  %v1851 = vmul.f32 %v1777, %v1749
  %v1852 = vmul.f32 %v1782, %v1750
  %v1853 = vmul.f32 %v1787, %v1751
  %v1854 = vmul.f32 %v1792, %v1752
  %v1855 = vmul.f32 %v1797, %v1753
  %v1856 = vmul.f32 %v1802, %v1754
  %v1857 = vmul.f32 %v1807, %v1755
  %v1858 = vmul.f32 %v1812, %v1756
  %v1859 = vmul.f32 %v1817, %v1757
  %v1860 = vmul.f32 %v1822, %v1758
  %v1861 = vmul.f32 %v1827, %v1759
  %v1862 = vmul.f32 %v1832, %v1760
  %v1863 = vmul.f32 %v1837, %v1761
  %v1864 = vmul.f32 %v1842, %v1762
  %v1865 = vmul.f32 %v1847, %v1763
  %1866 = vst [vmem:[#allocation2] sm:$0xff] %v1849
  %1867 = vst [vmem:[#allocation2 + $0x8] sm:$0xff] %v1850
  %1868 = vst [vmem:[#allocation2 + $0x10] sm:$0xff] %v1851
  %1869 = vst [vmem:[#allocation2 + $0x18] sm:$0xff] %v1852
  %1870 = vst [vmem:[#allocation2 + $0x20] sm:$0xff] %v1853
  %1871 = vst [vmem:[#allocation2 + $0x28] sm:$0xff] %v1854
  %1872 = vst [vmem:[#allocation2 + $0x30] sm:$0xff] %v1855
  %1873 = vst [vmem:[#allocation2 + $0x38] sm:$0xff] %v1856
  %1874 = vst [vmem:[#allocation2 + $0x40] sm:$0xff] %v1857
  %1875 = vst [vmem:[#allocation2 + $0x48] sm:$0xff] %v1858
  %1876 = vst [vmem:[#allocation2 + $0x50] sm:$0xff] %v1859
  %1877 = vst [vmem:[#allocation2 + $0x58] sm:$0xff] %v1860
  %1878 = vst [vmem:[#allocation2 + $0x60] sm:$0xff] %v1861
  %1879 = vst [vmem:[#allocation2 + $0x68] sm:$0xff] %v1862
  %1880 = vst [vmem:[#allocation2 + $0x70] sm:$0xff] %v1863
  %1881 = vst [vmem:[#allocation2 + $0x78] sm:$0xff] %v1864
  %1882 = vst [vmem:[#allocation2 + $0x80] sm:$0xff] %v1865
  %v1883 = vld [vmem:[#allocation2] sm:$0xff]
  %v1884 = vld [vmem:[#allocation2 + $0x8] sm:$0xff]
  %v1885 = vld [vmem:[#allocation2 + $0x10] sm:$0xff]
  %v1886 = vld [vmem:[#allocation2 + $0x18] sm:$0xff]
  %v1887 = vld [vmem:[#allocation2 + $0x20] sm:$0xff]
  %v1888 = vld [vmem:[#allocation2 + $0x28] sm:$0xff]
  %v1889 = vld [vmem:[#allocation2 + $0x30] sm:$0xff]
  %v1890 = vld [vmem:[#allocation2 + $0x38] sm:$0xff]
  %v1891 = vld [vmem:[#allocation2 + $0x40] sm:$0xff]
  %v1892 = vld [vmem:[#allocation2 + $0x48] sm:$0xff]
  %v1893 = vld [vmem:[#allocation2 + $0x50] sm:$0xff]
  %v1894 = vld [vmem:[#allocation2 + $0x58] sm:$0xff]
  %v1895 = vld [vmem:[#allocation2 + $0x60] sm:$0xff]
  %v1896 = vld [vmem:[#allocation2 + $0x68] sm:$0xff]
  %v1897 = vld [vmem:[#allocation2 + $0x70] sm:$0xff]
  %v1898 = vld [vmem:[#allocation2 + $0x78] sm:$0xff]
  %v1899 = vld [vmem:[%s5] sm:$0xff]
  %v1900 = vld [vmem:[%s5 + $0x8] sm:$0xff]
  %v1901 = vld [vmem:[%s5 + $0x10] sm:$0xff]
  %v1902 = vld [vmem:[%s5 + $0x18] sm:$0xff]
  %v1903 = vld [vmem:[%s5 + $0x20] sm:$0xff]
  %v1904 = vld [vmem:[%s5 + $0x28] sm:$0xff]
  %v1905 = vld [vmem:[%s5 + $0x30] sm:$0xff]
  %v1906 = vld [vmem:[%s5 + $0x38] sm:$0xff]
  %v1907 = vld [vmem:[%s5 + $0x40] sm:$0xff]
  %v1908 = vld [vmem:[%s5 + $0x48] sm:$0xff]
  %v1909 = vld [vmem:[%s5 + $0x50] sm:$0xff]
  %v1910 = vld [vmem:[%s5 + $0x58] sm:$0xff]
  %v1911 = vld [vmem:[%s5 + $0x60] sm:$0xff]
  %v1912 = vld [vmem:[%s5 + $0x68] sm:$0xff]
  %v1913 = vld [vmem:[%s5 + $0x70] sm:$0xff]
  %v1914 = vld [vmem:[%s5 + $0x78] sm:$0xff]
  %v1915 = vld [vmem:[%s5 + $0x80] sm:$0xff]
  %v1916 = vld [vmem:[%s5 + $0x88] sm:$0xff]
  %v1917 = vld [vmem:[%s5 + $0x90] sm:$0xff]
  %v1918 = vld [vmem:[%s5 + $0x98] sm:$0xff]
  %v1919 = vld [vmem:[%s5 + $0xa0] sm:$0xff]
  %v1920 = vld [vmem:[%s5 + $0xa8] sm:$0xff]
  %v1921 = vld [vmem:[%s5 + $0xb0] sm:$0xff]
  %v1922 = vld [vmem:[%s5 + $0xb8] sm:$0xff]
  %v1923 = vld [vmem:[%s5 + $0xc0] sm:$0xff]
  %v1924 = vld [vmem:[%s5 + $0xc8] sm:$0xff]
  %v1925 = vld [vmem:[%s5 + $0xd0] sm:$0xff]
  %v1926 = vld [vmem:[%s5 + $0xd8] sm:$0xff]
  %v1927 = vld [vmem:[%s5 + $0xe0] sm:$0xff]
  %v1928 = vld [vmem:[%s5 + $0xe8] sm:$0xff]
  %v1929 = vld [vmem:[%s5 + $0xf0] sm:$0xff]
  %v1930 = vld [vmem:[%s5 + $0xf8] sm:$0xff]
  %v1931 = vld [vmem:[%s5 + $0x100] sm:$0xff]
  %v1932 = vld [vmem:[%s5 + $0x108] sm:$0xff]
  %v1933 = vld [vmem:[%s5 + $0x110] sm:$0xff]
  %v1934 = vld [vmem:[%s5 + $0x118] sm:$0xff]
  %v1935 = vld [vmem:[%s5 + $0x120] sm:$0xff]
  %v1936 = vld [vmem:[%s5 + $0x128] sm:$0xff]
  %v1937 = vld [vmem:[%s5 + $0x130] sm:$0xff]
  %v1938 = vld [vmem:[%s5 + $0x138] sm:$0xff]
  %v1939 = vld [vmem:[%s5 + $0x140] sm:$0xff]
  %v1940 = vld [vmem:[%s5 + $0x148] sm:$0xff]
  %v1941 = vld [vmem:[%s5 + $0x150] sm:$0xff]
  %v1942 = vld [vmem:[%s5 + $0x158] sm:$0xff]
  %v1943 = vld [vmem:[%s5 + $0x160] sm:$0xff]
  %v1944 = vld [vmem:[%s5 + $0x168] sm:$0xff]
  %v1945 = vld [vmem:[%s5 + $0x170] sm:$0xff]
  %v1946 = vld [vmem:[%s5 + $0x178] sm:$0xff]
  %v1947 = vld [vmem:[#allocation2 + $0x1] sm:$0xff]
  %v1948 = vld [vmem:[#allocation2 + $0x9] sm:$0xff]
  %v1949 = vld [vmem:[#allocation2 + $0x11] sm:$0xff]
  %v1950 = vld [vmem:[#allocation2 + $0x19] sm:$0xff]
  %v1951 = vld [vmem:[#allocation2 + $0x21] sm:$0xff]
  %v1952 = vld [vmem:[#allocation2 + $0x29] sm:$0xff]
  %v1953 = vld [vmem:[#allocation2 + $0x31] sm:$0xff]
  %v1954 = vld [vmem:[#allocation2 + $0x39] sm:$0xff]
  %v1955 = vld [vmem:[#allocation2 + $0x41] sm:$0xff]
  %v1956 = vld [vmem:[#allocation2 + $0x49] sm:$0xff]
  %v1957 = vld [vmem:[#allocation2 + $0x51] sm:$0xff]
  %v1958 = vld [vmem:[#allocation2 + $0x59] sm:$0xff]
  %v1959 = vld [vmem:[#allocation2 + $0x61] sm:$0xff]
  %v1960 = vld [vmem:[#allocation2 + $0x69] sm:$0xff]
  %v1961 = vld [vmem:[#allocation2 + $0x71] sm:$0xff]
  %v1962 = vld [vmem:[#allocation2 + $0x79] sm:$0xff]
  %s1963 = scalar_lea.vmem %s5, 384
  %v1964 = vld [vmem:[%s1963] sm:$0xff]
  %v1965 = vld [vmem:[%s1963 + $0x8] sm:$0xff]
  %v1966 = vld [vmem:[%s1963 + $0x10] sm:$0xff]
  %v1967 = vld [vmem:[%s1963 + $0x18] sm:$0xff]
  %v1968 = vld [vmem:[%s1963 + $0x20] sm:$0xff]
  %v1969 = vld [vmem:[%s1963 + $0x28] sm:$0xff]
  %v1970 = vld [vmem:[%s1963 + $0x30] sm:$0xff]
  %v1971 = vld [vmem:[%s1963 + $0x38] sm:$0xff]
  %v1972 = vld [vmem:[%s1963 + $0x40] sm:$0xff]
  %v1973 = vld [vmem:[%s1963 + $0x48] sm:$0xff]
  %v1974 = vld [vmem:[%s1963 + $0x50] sm:$0xff]
  %v1975 = vld [vmem:[%s1963 + $0x58] sm:$0xff]
  %v1976 = vld [vmem:[%s1963 + $0x60] sm:$0xff]
  %v1977 = vld [vmem:[%s1963 + $0x68] sm:$0xff]
  %v1978 = vld [vmem:[%s1963 + $0x70] sm:$0xff]
  %v1979 = vld [vmem:[%s1963 + $0x78] sm:$0xff]
  %v1980 = vld [vmem:[%s1963 + $0x80] sm:$0xff]
  %v1981 = vld [vmem:[%s1963 + $0x88] sm:$0xff]
  %v1982 = vld [vmem:[%s1963 + $0x90] sm:$0xff]
  %v1983 = vld [vmem:[%s1963 + $0x98] sm:$0xff]
  %v1984 = vld [vmem:[%s1963 + $0xa0] sm:$0xff]
  %v1985 = vld [vmem:[%s1963 + $0xa8] sm:$0xff]
  %v1986 = vld [vmem:[%s1963 + $0xb0] sm:$0xff]
  %v1987 = vld [vmem:[%s1963 + $0xb8] sm:$0xff]
  %v1988 = vld [vmem:[%s1963 + $0xc0] sm:$0xff]
  %v1989 = vld [vmem:[%s1963 + $0xc8] sm:$0xff]
  %v1990 = vld [vmem:[%s1963 + $0xd0] sm:$0xff]
  %v1991 = vld [vmem:[%s1963 + $0xd8] sm:$0xff]
  %v1992 = vld [vmem:[%s1963 + $0xe0] sm:$0xff]
  %v1993 = vld [vmem:[%s1963 + $0xe8] sm:$0xff]
  %v1994 = vld [vmem:[%s1963 + $0xf0] sm:$0xff]
  %v1995 = vld [vmem:[%s1963 + $0xf8] sm:$0xff]
  %v1996 = vld [vmem:[%s1963 + $0x100] sm:$0xff]
  %v1997 = vld [vmem:[%s1963 + $0x108] sm:$0xff]
  %v1998 = vld [vmem:[%s1963 + $0x110] sm:$0xff]
  %v1999 = vld [vmem:[%s1963 + $0x118] sm:$0xff]
  %v2000 = vld [vmem:[%s1963 + $0x120] sm:$0xff]
  %v2001 = vld [vmem:[%s1963 + $0x128] sm:$0xff]
  %v2002 = vld [vmem:[%s1963 + $0x130] sm:$0xff]
  %v2003 = vld [vmem:[%s1963 + $0x138] sm:$0xff]
  %v2004 = vld [vmem:[%s1963 + $0x140] sm:$0xff]
  %v2005 = vld [vmem:[%s1963 + $0x148] sm:$0xff]
  %v2006 = vld [vmem:[%s1963 + $0x150] sm:$0xff]
  %v2007 = vld [vmem:[%s1963 + $0x158] sm:$0xff]
  %v2008 = vld [vmem:[%s1963 + $0x160] sm:$0xff]
  %v2009 = vld [vmem:[%s1963 + $0x168] sm:$0xff]
  %v2010 = vld [vmem:[%s1963 + $0x170] sm:$0xff]
  %v2011 = vld [vmem:[%s1963 + $0x178] sm:$0xff]
  %2012 = vmatprep.subr.mxu0 %v1965
  %2013 = vmatpush1.msra.mxu0 %v1964
  %2014 = vmatprep.subr.mxu0 %v1968
  %2015 = vmatpush1.msra.mxu0 %v1967
  %2016 = vmatprep.subr.mxu0 %v1971
  %2017 = vmatpush1.msra.mxu0 %v1970
  %2018 = vmatprep.subr.mxu0 %v1974
  %2019 = vmatpush1.msra.mxu0 %v1973
  %2020 = vmatprep.subr.mxu0 %v1977
  %2021 = vmatpush1.msra.mxu0 %v1976
  %2022 = vmatprep.subr.mxu0 %v1980
  %2023 = vmatpush1.msra.mxu0 %v1979
  %2024 = vmatprep.subr.mxu0 %v1983
  %2025 = vmatpush1.msra.mxu0 %v1982
  %2026 = vmatprep.subr.mxu0 %v1986
  %2027 = vmatpush1.msra.mxu0 %v1985
  %2028 = vmatprep.subr.mxu0 %v1989
  %2029 = vmatpush1.msra.mxu0 %v1988
  %2030 = vmatprep.subr.mxu0 %v1992
  %2031 = vmatpush1.msra.mxu0 %v1991
  %2032 = vmatprep.subr.mxu0 %v1995
  %2033 = vmatpush1.msra.mxu0 %v1994
  %2034 = vmatprep.subr.mxu0 %v1998
  %2035 = vmatpush1.msra.mxu0 %v1997
  %2036 = vmatprep.subr.mxu0 %v2001
  %2037 = vmatpush1.msra.mxu0 %v2000
  %2038 = vmatprep.subr.mxu0 %v2004
  %2039 = vmatpush1.msra.mxu0 %v2003
  %2040 = vmatprep.subr.mxu0 %v2007
  %2041 = vmatpush1.msra.mxu0 %v2006
  %2042 = vmatprep.subr.mxu0 %v2010
  %2043 = vmatpush1.msra.mxu0 %v2009
  %2044 = vmatprep.subr.mxu0 0.0
  %2045 = vmatpush1.msra.mxu0 0.0
  %2046 = vmatprep.subr.mxu0 0.0
  %2047 = vmatpush1.msra.mxu0 0.0
  %2048 = vmatprep.subr.mxu0 0.0
  %2049 = vmatpush1.msra.mxu0 0.0
  %2050 = vmatprep.subr.mxu0 0.0
  %2051 = vmatpush1.msra.mxu0 0.0
  %2052 = vmatprep.subr.mxu0 0.0
  %2053 = vmatpush1.msra.mxu0 0.0
  %2054 = vmatprep.subr.mxu0 0.0
  %2055 = vmatpush1.msra.mxu0 0.0
  %2056 = vmatprep.subr.mxu0 0.0
  %2057 = vmatpush1.msra.mxu0 0.0
  %2058 = vmatprep.subr.mxu0 0.0
  %2059 = vmatpush1.msra.mxu0 0.0
  %2060 = vmatprep.subr.mxu0 0.0
  %2061 = vmatpush1.msra.mxu0 0.0
  %2062 = vmatprep.subr.mxu0 0.0
  %2063 = vmatpush1.msra.mxu0 0.0
  %2064 = vmatprep.subr.mxu0 0.0
  %2065 = vmatpush1.msra.mxu0 0.0
  %2066 = vmatprep.subr.mxu0 0.0
  %2067 = vmatpush1.msra.mxu0 0.0
  %2068 = vmatprep.subr.mxu0 0.0
  %2069 = vmatpush1.msra.mxu0 0.0
  %2070 = vmatprep.subr.mxu0 0.0
  %2071 = vmatpush1.msra.mxu0 0.0
  %2072 = vmatprep.subr.mxu0 0.0
  %2073 = vmatpush1.msra.mxu0 0.0
  %2074 = vmatprep.subr.mxu0 0.0
  %2075 = vmatpush1.msra.mxu0 0.0
  %2076 = vmatprep.mubr.f32.mxu0 0.0
  %2077 = vmatmul.mubr.f32.gmra.mrb[0].mxu0 %v1947
  %v2078 = vpop.f32.mrb[0].mxu0
  %v2079 = vadd.f32 0.0, %v2078
  %v2080 = vpop.f32.mrb[0].mxu0
  %v2081 = vadd.f32 0.0, %v2080
  %2082 = vmatprep.mubr.f32.mxu0 0.0
  %2083 = vmatmul.mubr.f32.gmra.mrb[0].mxu0 %v1948
  %v2084 = vpop.f32.mrb[0].mxu0
  %v2085 = vadd.f32 0.0, %v2084
  %v2086 = vpop.f32.mrb[0].mxu0
  %v2087 = vadd.f32 0.0, %v2086
  %2088 = vmatprep.mubr.f32.mxu0 0.0
  %2089 = vmatmul.mubr.f32.gmra.mrb[0].mxu0 %v1949
  %v2090 = vpop.f32.mrb[0].mxu0
  %v2091 = vadd.f32 0.0, %v2090
  %v2092 = vpop.f32.mrb[0].mxu0
  %v2093 = vadd.f32 0.0, %v2092
  %2094 = vmatprep.mubr.f32.mxu0 0.0
  %2095 = vmatmul.mubr.f32.gmra.mrb[0].mxu0 %v1950
  %v2096 = vpop.f32.mrb[0].mxu0
  %v2097 = vadd.f32 0.0, %v2096
  %v2098 = vpop.f32.mrb[0].mxu0
  %v2099 = vadd.f32 0.0, %v2098
  %2100 = vmatprep.mubr.f32.mxu0 0.0
  %2101 = vmatmul.mubr.f32.gmra.mrb[0].mxu0 %v1951
  %v2102 = vpop.f32.mrb[0].mxu0
  %v2103 = vadd.f32 0.0, %v2102
  %v2104 = vpop.f32.mrb[0].mxu0
  %v2105 = vadd.f32 0.0, %v2104
  %2106 = vmatprep.mubr.f32.mxu0 0.0
  %2107 = vmatmul.mubr.f32.gmra.mrb[0].mxu0 %v1952
  %v2108 = vpop.f32.mrb[0].mxu0
  %v2109 = vadd.f32 0.0, %v2108
  %v2110 = vpop.f32.mrb[0].mxu0
  %v2111 = vadd.f32 0.0, %v2110
  %2112 = vmatprep.mubr.f32.mxu0 0.0
  %2113 = vmatmul.mubr.f32.gmra.mrb[0].mxu0 %v1953
  %v2114 = vpop.f32.mrb[0].mxu0
  %v2115 = vadd.f32 0.0, %v2114
  %v2116 = vpop.f32.mrb[0].mxu0
  %v2117 = vadd.f32 0.0, %v2116
  %2118 = vmatprep.mubr.f32.mxu0 0.0
  %2119 = vmatmul.mubr.f32.gmra.mrb[0].mxu0 %v1954
  %v2120 = vpop.f32.mrb[0].mxu0
  %v2121 = vadd.f32 0.0, %v2120
  %v2122 = vpop.f32.mrb[0].mxu0
  %v2123 = vadd.f32 0.0, %v2122
  %2124 = vmatprep.mubr.f32.mxu0 0.0
  %2125 = vmatmul.mubr.f32.gmra.mrb[0].mxu0 %v1955
  %v2126 = vpop.f32.mrb[0].mxu0
  %v2127 = vadd.f32 0.0, %v2126
  %v2128 = vpop.f32.mrb[0].mxu0
  %v2129 = vadd.f32 0.0, %v2128
  %2130 = vmatprep.mubr.f32.mxu0 0.0
  %2131 = vmatmul.mubr.f32.gmra.mrb[0].mxu0 %v1956
  %v2132 = vpop.f32.mrb[0].mxu0
  %v2133 = vadd.f32 0.0, %v2132
  %v2134 = vpop.f32.mrb[0].mxu0
  %v2135 = vadd.f32 0.0, %v2134
  %2136 = vmatprep.mubr.f32.mxu0 0.0
  %2137 = vmatmul.mubr.f32.gmra.mrb[0].mxu0 %v1957
  %v2138 = vpop.f32.mrb[0].mxu0
  %v2139 = vadd.f32 0.0, %v2138
  %v2140 = vpop.f32.mrb[0].mxu0
  %v2141 = vadd.f32 0.0, %v2140
  %2142 = vmatprep.mubr.f32.mxu0 0.0
  %2143 = vmatmul.mubr.f32.gmra.mrb[0].mxu0 %v1958
  %v2144 = vpop.f32.mrb[0].mxu0
  %v2145 = vadd.f32 0.0, %v2144
  %v2146 = vpop.f32.mrb[0].mxu0
  %v2147 = vadd.f32 0.0, %v2146
  %2148 = vmatprep.mubr.f32.mxu0 0.0
  %2149 = vmatmul.mubr.f32.gmra.mrb[0].mxu0 %v1959
  %v2150 = vpop.f32.mrb[0].mxu0
  %v2151 = vadd.f32 0.0, %v2150
  %v2152 = vpop.f32.mrb[0].mxu0
  %v2153 = vadd.f32 0.0, %v2152
  %2154 = vmatprep.mubr.f32.mxu0 0.0
  %2155 = vmatmul.mubr.f32.gmra.mrb[0].mxu0 %v1960
  %v2156 = vpop.f32.mrb[0].mxu0
  %v2157 = vadd.f32 0.0, %v2156
  %v2158 = vpop.f32.mrb[0].mxu0
  %v2159 = vadd.f32 0.0, %v2158
  %2160 = vmatprep.mubr.f32.mxu0 0.0
  %2161 = vmatmul.mubr.f32.gmra.mrb[0].mxu0 %v1961
  %v2162 = vpop.f32.mrb[0].mxu0
  %v2163 = vadd.f32 0.0, %v2162
  %v2164 = vpop.f32.mrb[0].mxu0
  %v2165 = vadd.f32 0.0, %v2164
  %2166 = vmatprep.mubr.f32.mxu0 0.0
  %2167 = vmatmul.mubr.f32.gmra.mrb[0].mxu0 %v1962
  %v2168 = vpop.f32.mrb[0].mxu0
  %v2169 = vadd.f32 0.0, %v2168
  %v2170 = vpop.f32.mrb[0].mxu0
  %v2171 = vadd.f32 0.0, %v2170
  %2172 = vdwg.mxu0
  %2173 = vmatprep.subr.mxu0 0.0
  %2174 = vmatpush1.msra.mxu0 %v1966
  %2175 = vmatprep.subr.mxu0 0.0
  %2176 = vmatpush1.msra.mxu0 %v1969
  %2177 = vmatprep.subr.mxu0 0.0
  %2178 = vmatpush1.msra.mxu0 %v1972
  %2179 = vmatprep.subr.mxu0 0.0
  %2180 = vmatpush1.msra.mxu0 %v1975
  %2181 = vmatprep.subr.mxu0 0.0
  %2182 = vmatpush1.msra.mxu0 %v1978
  %2183 = vmatprep.subr.mxu0 0.0
  %2184 = vmatpush1.msra.mxu0 %v1981
  %2185 = vmatprep.subr.mxu0 0.0
  %2186 = vmatpush1.msra.mxu0 %v1984
  %2187 = vmatprep.subr.mxu0 0.0
  %2188 = vmatpush1.msra.mxu0 %v1987
  %2189 = vmatprep.subr.mxu0 0.0
  %2190 = vmatpush1.msra.mxu0 %v1990
  %2191 = vmatprep.subr.mxu0 0.0
  %2192 = vmatpush1.msra.mxu0 %v1993
  %2193 = vmatprep.subr.mxu0 0.0
  %2194 = vmatpush1.msra.mxu0 %v1996
  %2195 = vmatprep.subr.mxu0 0.0
  %2196 = vmatpush1.msra.mxu0 %v1999
  %2197 = vmatprep.subr.mxu0 0.0
  %2198 = vmatpush1.msra.mxu0 %v2002
  %2199 = vmatprep.subr.mxu0 0.0
  %2200 = vmatpush1.msra.mxu0 %v2005
  %2201 = vmatprep.subr.mxu0 0.0
  %2202 = vmatpush1.msra.mxu0 %v2008
  %2203 = vmatprep.subr.mxu0 0.0
  %2204 = vmatpush1.msra.mxu0 %v2011
  %2205 = vmatprep.subr.mxu0 0.0
  %2206 = vmatpush1.msra.mxu0 0.0
  %2207 = vmatprep.subr.mxu0 0.0
  %2208 = vmatpush1.msra.mxu0 0.0
  %2209 = vmatprep.subr.mxu0 0.0
  %2210 = vmatpush1.msra.mxu0 0.0
  %2211 = vmatprep.subr.mxu0 0.0
  %2212 = vmatpush1.msra.mxu0 0.0
  %2213 = vmatprep.subr.mxu0 0.0
  %2214 = vmatpush1.msra.mxu0 0.0
  %2215 = vmatprep.subr.mxu0 0.0
  %2216 = vmatpush1.msra.mxu0 0.0
  %2217 = vmatprep.subr.mxu0 0.0
  %2218 = vmatpush1.msra.mxu0 0.0
  %2219 = vmatprep.subr.mxu0 0.0
  %2220 = vmatpush1.msra.mxu0 0.0
  %2221 = vmatprep.subr.mxu0 0.0
  %2222 = vmatpush1.msra.mxu0 0.0
  %2223 = vmatprep.subr.mxu0 0.0
  %2224 = vmatpush1.msra.mxu0 0.0
  %2225 = vmatprep.subr.mxu0 0.0
  %2226 = vmatpush1.msra.mxu0 0.0
  %2227 = vmatprep.subr.mxu0 0.0
  %2228 = vmatpush1.msra.mxu0 0.0
  %2229 = vmatprep.subr.mxu0 0.0
  %2230 = vmatpush1.msra.mxu0 0.0
  %2231 = vmatprep.subr.mxu0 0.0
  %2232 = vmatpush1.msra.mxu0 0.0
  %2233 = vmatprep.subr.mxu0 0.0
  %2234 = vmatpush1.msra.mxu0 0.0
  %2235 = vmatprep.subr.mxu0 0.0
  %2236 = vmatpush1.msra.mxu0 0.0
  %2237 = vmatprep.mubr.f32.mxu0 0.0
  %2238 = vmatmul.mubr.f32.gmra.mrb[0].mxu0 %v1947
  %v2239 = vpop.f32.mrb[0].mxu0
  %v2240 = vadd.f32 0.0, %v2239
  %v2241 = vpop.f32.mrb[0].mxu0
  %2242 = vmatprep.mubr.f32.mxu0 0.0
  %2243 = vmatmul.mubr.f32.gmra.mrb[0].mxu0 %v1948
  %v2244 = vpop.f32.mrb[0].mxu0
  %v2245 = vadd.f32 0.0, %v2244
  %v2246 = vpop.f32.mrb[0].mxu0
  %2247 = vmatprep.mubr.f32.mxu0 0.0
  %2248 = vmatmul.mubr.f32.gmra.mrb[0].mxu0 %v1949
  %v2249 = vpop.f32.mrb[0].mxu0
  %v2250 = vadd.f32 0.0, %v2249
  %v2251 = vpop.f32.mrb[0].mxu0
  %2252 = vmatprep.mubr.f32.mxu0 0.0
  %2253 = vmatmul.mubr.f32.gmra.mrb[0].mxu0 %v1950
  %v2254 = vpop.f32.mrb[0].mxu0
  %v2255 = vadd.f32 0.0, %v2254
  %v2256 = vpop.f32.mrb[0].mxu0
  %2257 = vmatprep.mubr.f32.mxu0 0.0
  %2258 = vmatmul.mubr.f32.gmra.mrb[0].mxu0 %v1951
  %v2259 = vpop.f32.mrb[0].mxu0
  %v2260 = vadd.f32 0.0, %v2259
  %v2261 = vpop.f32.mrb[0].mxu0
  %2262 = vmatprep.mubr.f32.mxu0 0.0
  %2263 = vmatmul.mubr.f32.gmra.mrb[0].mxu0 %v1952
  %v2264 = vpop.f32.mrb[0].mxu0
  %v2265 = vadd.f32 0.0, %v2264
  %v2266 = vpop.f32.mrb[0].mxu0
  %2267 = vmatprep.mubr.f32.mxu0 0.0
  %2268 = vmatmul.mubr.f32.gmra.mrb[0].mxu0 %v1953
  %v2269 = vpop.f32.mrb[0].mxu0
  %v2270 = vadd.f32 0.0, %v2269
  %v2271 = vpop.f32.mrb[0].mxu0
  %2272 = vmatprep.mubr.f32.mxu0 0.0
  %2273 = vmatmul.mubr.f32.gmra.mrb[0].mxu0 %v1954
  %v2274 = vpop.f32.mrb[0].mxu0
  %v2275 = vadd.f32 0.0, %v2274
  %v2276 = vpop.f32.mrb[0].mxu0
  %2277 = vmatprep.mubr.f32.mxu0 0.0
  %2278 = vmatmul.mubr.f32.gmra.mrb[0].mxu0 %v1955
  %v2279 = vpop.f32.mrb[0].mxu0
  %v2280 = vadd.f32 0.0, %v2279
  %v2281 = vpop.f32.mrb[0].mxu0
  %2282 = vmatprep.mubr.f32.mxu0 0.0
  %2283 = vmatmul.mubr.f32.gmra.mrb[0].mxu0 %v1956
  %v2284 = vpop.f32.mrb[0].mxu0
  %v2285 = vadd.f32 0.0, %v2284
  %v2286 = vpop.f32.mrb[0].mxu0
  %2287 = vmatprep.mubr.f32.mxu0 0.0
  %2288 = vmatmul.mubr.f32.gmra.mrb[0].mxu0 %v1957
  %v2289 = vpop.f32.mrb[0].mxu0
  %v2290 = vadd.f32 0.0, %v2289
  %v2291 = vpop.f32.mrb[0].mxu0
  %2292 = vmatprep.mubr.f32.mxu0 0.0
  %2293 = vmatmul.mubr.f32.gmra.mrb[0].mxu0 %v1958
  %v2294 = vpop.f32.mrb[0].mxu0
  %v2295 = vadd.f32 0.0, %v2294
  %v2296 = vpop.f32.mrb[0].mxu0
  %2297 = vmatprep.mubr.f32.mxu0 0.0
  %2298 = vmatmul.mubr.f32.gmra.mrb[0].mxu0 %v1959
  %v2299 = vpop.f32.mrb[0].mxu0
  %v2300 = vadd.f32 0.0, %v2299
  %v2301 = vpop.f32.mrb[0].mxu0
  %2302 = vmatprep.mubr.f32.mxu0 0.0
  %2303 = vmatmul.mubr.f32.gmra.mrb[0].mxu0 %v1960
  %v2304 = vpop.f32.mrb[0].mxu0
  %v2305 = vadd.f32 0.0, %v2304
  %v2306 = vpop.f32.mrb[0].mxu0
  %2307 = vmatprep.mubr.f32.mxu0 0.0
  %2308 = vmatmul.mubr.f32.gmra.mrb[0].mxu0 %v1961
  %v2309 = vpop.f32.mrb[0].mxu0
  %v2310 = vadd.f32 0.0, %v2309
  %v2311 = vpop.f32.mrb[0].mxu0
  %2312 = vmatprep.mubr.f32.mxu0 0.0
  %2313 = vmatmul.mubr.f32.gmra.mrb[0].mxu0 %v1962
  %v2314 = vpop.f32.mrb[0].mxu0
  %v2315 = vadd.f32 0.0, %v2314
  %v2316 = vpop.f32.mrb[0].mxu0
  %2317 = vdwg.mxu0
  %2318 = vmatprep.subr.mxu0 %v1900
  %2319 = vmatpush1.msra.mxu0 %v1899
  %2320 = vmatprep.subr.mxu0 %v1903
  %2321 = vmatpush1.msra.mxu0 %v1902
  %2322 = vmatprep.subr.mxu0 %v1906
  %2323 = vmatpush1.msra.mxu0 %v1905
  %2324 = vmatprep.subr.mxu0 %v1909
  %2325 = vmatpush1.msra.mxu0 %v1908
  %2326 = vmatprep.subr.mxu0 %v1912
  %2327 = vmatpush1.msra.mxu0 %v1911
  %2328 = vmatprep.subr.mxu0 %v1915
  %2329 = vmatpush1.msra.mxu0 %v1914
  %2330 = vmatprep.subr.mxu0 %v1918
  %2331 = vmatpush1.msra.mxu0 %v1917
  %2332 = vmatprep.subr.mxu0 %v1921
  %2333 = vmatpush1.msra.mxu0 %v1920
  %2334 = vmatprep.subr.mxu0 %v1924
  %2335 = vmatpush1.msra.mxu0 %v1923
  %2336 = vmatprep.subr.mxu0 %v1927
  %2337 = vmatpush1.msra.mxu0 %v1926
  %2338 = vmatprep.subr.mxu0 %v1930
  %2339 = vmatpush1.msra.mxu0 %v1929
  %2340 = vmatprep.subr.mxu0 %v1933
  %2341 = vmatpush1.msra.mxu0 %v1932
  %2342 = vmatprep.subr.mxu0 %v1936
  %2343 = vmatpush1.msra.mxu0 %v1935
  %2344 = vmatprep.subr.mxu0 %v1939
  %2345 = vmatpush1.msra.mxu0 %v1938
  %2346 = vmatprep.subr.mxu0 %v1942
  %2347 = vmatpush1.msra.mxu0 %v1941
  %2348 = vmatprep.subr.mxu0 %v1945
  %2349 = vmatpush1.msra.mxu0 %v1944
  %2350 = vmatprep.subr.mxu0 0.0
  %2351 = vmatpush1.msra.mxu0 0.0
  %2352 = vmatprep.subr.mxu0 0.0
  %2353 = vmatpush1.msra.mxu0 0.0
  %2354 = vmatprep.subr.mxu0 0.0
  %2355 = vmatpush1.msra.mxu0 0.0
  %2356 = vmatprep.subr.mxu0 0.0
  %2357 = vmatpush1.msra.mxu0 0.0
  %2358 = vmatprep.subr.mxu0 0.0
  %2359 = vmatpush1.msra.mxu0 0.0
  %2360 = vmatprep.subr.mxu0 0.0
  %2361 = vmatpush1.msra.mxu0 0.0
  %2362 = vmatprep.subr.mxu0 0.0
  %2363 = vmatpush1.msra.mxu0 0.0
  %2364 = vmatprep.subr.mxu0 0.0
  %2365 = vmatpush1.msra.mxu0 0.0
  %2366 = vmatprep.subr.mxu0 0.0
  %2367 = vmatpush1.msra.mxu0 0.0
  %2368 = vmatprep.subr.mxu0 0.0
  %2369 = vmatpush1.msra.mxu0 0.0
  %2370 = vmatprep.subr.mxu0 0.0
  %2371 = vmatpush1.msra.mxu0 0.0
  %2372 = vmatprep.subr.mxu0 0.0
  %2373 = vmatpush1.msra.mxu0 0.0
  %2374 = vmatprep.subr.mxu0 0.0
  %2375 = vmatpush1.msra.mxu0 0.0
  %2376 = vmatprep.subr.mxu0 0.0
  %2377 = vmatpush1.msra.mxu0 0.0
  %2378 = vmatprep.subr.mxu0 0.0
  %2379 = vmatpush1.msra.mxu0 0.0
  %2380 = vmatprep.subr.mxu0 0.0
  %2381 = vmatpush1.msra.mxu0 0.0
  %2382 = vmatprep.mubr.f32.mxu0 0.0
  %2383 = vmatmul.mubr.f32.gmra.mrb[0].mxu0 %v1883
  %v2384 = vpop.f32.mrb[0].mxu0
  %v2385 = vadd.f32 %v2079, %v2384
  %v2386 = vpop.f32.mrb[0].mxu0
  %v2387 = vadd.f32 %v2081, %v2386
  %2388 = vmatprep.mubr.f32.mxu0 0.0
  %2389 = vmatmul.mubr.f32.gmra.mrb[0].mxu0 %v1884
  %v2390 = vpop.f32.mrb[0].mxu0
  %v2391 = vadd.f32 %v2085, %v2390
  %v2392 = vpop.f32.mrb[0].mxu0
  %v2393 = vadd.f32 %v2087, %v2392
  %2394 = vmatprep.mubr.f32.mxu0 0.0
  %2395 = vmatmul.mubr.f32.gmra.mrb[0].mxu0 %v1885
  %v2396 = vpop.f32.mrb[0].mxu0
  %v2397 = vadd.f32 %v2091, %v2396
  %v2398 = vpop.f32.mrb[0].mxu0
  %v2399 = vadd.f32 %v2093, %v2398
  %2400 = vmatprep.mubr.f32.mxu0 0.0
  %2401 = vmatmul.mubr.f32.gmra.mrb[0].mxu0 %v1886
  %v2402 = vpop.f32.mrb[0].mxu0
  %v2403 = vadd.f32 %v2097, %v2402
  %v2404 = vpop.f32.mrb[0].mxu0
  %v2405 = vadd.f32 %v2099, %v2404
  %2406 = vmatprep.mubr.f32.mxu0 0.0
  %2407 = vmatmul.mubr.f32.gmra.mrb[0].mxu0 %v1887
  %v2408 = vpop.f32.mrb[0].mxu0
  %v2409 = vadd.f32 %v2103, %v2408
  %v2410 = vpop.f32.mrb[0].mxu0
  %v2411 = vadd.f32 %v2105, %v2410
  %2412 = vmatprep.mubr.f32.mxu0 0.0
  %2413 = vmatmul.mubr.f32.gmra.mrb[0].mxu0 %v1888
  %v2414 = vpop.f32.mrb[0].mxu0
  %v2415 = vadd.f32 %v2109, %v2414
  %v2416 = vpop.f32.mrb[0].mxu0
  %v2417 = vadd.f32 %v2111, %v2416
  %2418 = vmatprep.mubr.f32.mxu0 0.0
  %2419 = vmatmul.mubr.f32.gmra.mrb[0].mxu0 %v1889
  %v2420 = vpop.f32.mrb[0].mxu0
  %v2421 = vadd.f32 %v2115, %v2420
  %v2422 = vpop.f32.mrb[0].mxu0
  %v2423 = vadd.f32 %v2117, %v2422
  %2424 = vmatprep.mubr.f32.mxu0 0.0
  %2425 = vmatmul.mubr.f32.gmra.mrb[0].mxu0 %v1890
  %v2426 = vpop.f32.mrb[0].mxu0
  %v2427 = vadd.f32 %v2121, %v2426
  %v2428 = vpop.f32.mrb[0].mxu0
  %v2429 = vadd.f32 %v2123, %v2428
  %2430 = vmatprep.mubr.f32.mxu0 0.0
  %2431 = vmatmul.mubr.f32.gmra.mrb[0].mxu0 %v1891
  %v2432 = vpop.f32.mrb[0].mxu0
  %v2433 = vadd.f32 %v2127, %v2432
  %v2434 = vpop.f32.mrb[0].mxu0
  %v2435 = vadd.f32 %v2129, %v2434
  %2436 = vmatprep.mubr.f32.mxu0 0.0
  %2437 = vmatmul.mubr.f32.gmra.mrb[0].mxu0 %v1892
  %v2438 = vpop.f32.mrb[0].mxu0
  %v2439 = vadd.f32 %v2133, %v2438
  %v2440 = vpop.f32.mrb[0].mxu0
  %v2441 = vadd.f32 %v2135, %v2440
  %2442 = vmatprep.mubr.f32.mxu0 0.0
  %2443 = vmatmul.mubr.f32.gmra.mrb[0].mxu0 %v1893
  %v2444 = vpop.f32.mrb[0].mxu0
  %v2445 = vadd.f32 %v2139, %v2444
  %v2446 = vpop.f32.mrb[0].mxu0
  %v2447 = vadd.f32 %v2141, %v2446
  %2448 = vmatprep.mubr.f32.mxu0 0.0
  %2449 = vmatmul.mubr.f32.gmra.mrb[0].mxu0 %v1894
  %v2450 = vpop.f32.mrb[0].mxu0
  %v2451 = vadd.f32 %v2145, %v2450
  %v2452 = vpop.f32.mrb[0].mxu0
  %v2453 = vadd.f32 %v2147, %v2452
  %2454 = vmatprep.mubr.f32.mxu0 0.0
  %2455 = vmatmul.mubr.f32.gmra.mrb[0].mxu0 %v1895
  %v2456 = vpop.f32.mrb[0].mxu0
  %v2457 = vadd.f32 %v2151, %v2456
  %v2458 = vpop.f32.mrb[0].mxu0
  %v2459 = vadd.f32 %v2153, %v2458
  %2460 = vmatprep.mubr.f32.mxu0 0.0
  %2461 = vmatmul.mubr.f32.gmra.mrb[0].mxu0 %v1896
  %v2462 = vpop.f32.mrb[0].mxu0
  %v2463 = vadd.f32 %v2157, %v2462
  %v2464 = vpop.f32.mrb[0].mxu0
  %v2465 = vadd.f32 %v2159, %v2464
  %2466 = vmatprep.mubr.f32.mxu0 0.0
  %2467 = vmatmul.mubr.f32.gmra.mrb[0].mxu0 %v1897
  %v2468 = vpop.f32.mrb[0].mxu0
  %v2469 = vadd.f32 %v2163, %v2468
  %v2470 = vpop.f32.mrb[0].mxu0
  %v2471 = vadd.f32 %v2165, %v2470
  %2472 = vmatprep.mubr.f32.mxu0 0.0
  %2473 = vmatmul.mubr.f32.gmra.mrb[0].mxu0 %v1898
  %v2474 = vpop.f32.mrb[0].mxu0
  %v2475 = vadd.f32 %v2169, %v2474
  %v2476 = vpop.f32.mrb[0].mxu0
  %v2477 = vadd.f32 %v2171, %v2476
  %2478 = vdwg.mxu0
  %2479 = vmatprep.subr.mxu0 0.0
  %2480 = vmatpush1.msra.mxu0 %v1901
  %2481 = vmatprep.subr.mxu0 0.0
  %2482 = vmatpush1.msra.mxu0 %v1904
  %2483 = vmatprep.subr.mxu0 0.0
  %2484 = vmatpush1.msra.mxu0 %v1907
  %2485 = vmatprep.subr.mxu0 0.0
  %2486 = vmatpush1.msra.mxu0 %v1910
  %2487 = vmatprep.subr.mxu0 0.0
  %2488 = vmatpush1.msra.mxu0 %v1913
  %2489 = vmatprep.subr.mxu0 0.0
  %2490 = vmatpush1.msra.mxu0 %v1916
  %2491 = vmatprep.subr.mxu0 0.0
  %2492 = vmatpush1.msra.mxu0 %v1919
  %2493 = vmatprep.subr.mxu0 0.0
  %2494 = vmatpush1.msra.mxu0 %v1922
  %2495 = vmatprep.subr.mxu0 0.0
  %2496 = vmatpush1.msra.mxu0 %v1925
  %2497 = vmatprep.subr.mxu0 0.0
  %2498 = vmatpush1.msra.mxu0 %v1928
  %2499 = vmatprep.subr.mxu0 0.0
  %2500 = vmatpush1.msra.mxu0 %v1931
  %2501 = vmatprep.subr.mxu0 0.0
  %2502 = vmatpush1.msra.mxu0 %v1934
  %2503 = vmatprep.subr.mxu0 0.0
  %2504 = vmatpush1.msra.mxu0 %v1937
  %2505 = vmatprep.subr.mxu0 0.0
  %2506 = vmatpush1.msra.mxu0 %v1940
  %2507 = vmatprep.subr.mxu0 0.0
  %2508 = vmatpush1.msra.mxu0 %v1943
  %2509 = vmatprep.subr.mxu0 0.0
  %2510 = vmatpush1.msra.mxu0 %v1946
  %2511 = vmatprep.subr.mxu0 0.0
  %2512 = vmatpush1.msra.mxu0 0.0
  %2513 = vmatprep.subr.mxu0 0.0
  %2514 = vmatpush1.msra.mxu0 0.0
  %2515 = vmatprep.subr.mxu0 0.0
  %2516 = vmatpush1.msra.mxu0 0.0
  %2517 = vmatprep.subr.mxu0 0.0
  %2518 = vmatpush1.msra.mxu0 0.0
  %2519 = vmatprep.subr.mxu0 0.0
  %2520 = vmatpush1.msra.mxu0 0.0
  %2521 = vmatprep.subr.mxu0 0.0
  %2522 = vmatpush1.msra.mxu0 0.0
  %2523 = vmatprep.subr.mxu0 0.0
  %2524 = vmatpush1.msra.mxu0 0.0
  %2525 = vmatprep.subr.mxu0 0.0
  %2526 = vmatpush1.msra.mxu0 0.0
  %2527 = vmatprep.subr.mxu0 0.0
  %2528 = vmatpush1.msra.mxu0 0.0
  %2529 = vmatprep.subr.mxu0 0.0
  %2530 = vmatpush1.msra.mxu0 0.0
  %2531 = vmatprep.subr.mxu0 0.0
  %2532 = vmatpush1.msra.mxu0 0.0
  %2533 = vmatprep.subr.mxu0 0.0
  %2534 = vmatpush1.msra.mxu0 0.0
  %2535 = vmatprep.subr.mxu0 0.0
  %2536 = vmatpush1.msra.mxu0 0.0
  %2537 = vmatprep.subr.mxu0 0.0
  %2538 = vmatpush1.msra.mxu0 0.0
  %2539 = vmatprep.subr.mxu0 0.0
  %2540 = vmatpush1.msra.mxu0 0.0
  %2541 = vmatprep.subr.mxu0 0.0
  %2542 = vmatpush1.msra.mxu0 0.0
  %2543 = vmatprep.mubr.f32.mxu0 0.0
  %2544 = vmatmul.mubr.f32.gmra.mrb[0].mxu0 %v1883
  %v2545 = vpop.f32.mrb[0].mxu0
  %v2546 = vadd.f32 %v2240, %v2545
  %v2547 = vpop.f32.mrb[0].mxu0
  %2548 = vmatprep.mubr.f32.mxu0 0.0
  %2549 = vmatmul.mubr.f32.gmra.mrb[0].mxu0 %v1884
  %v2550 = vpop.f32.mrb[0].mxu0
  %v2551 = vadd.f32 %v2245, %v2550
  %v2552 = vpop.f32.mrb[0].mxu0
  %2553 = vmatprep.mubr.f32.mxu0 0.0
  %2554 = vmatmul.mubr.f32.gmra.mrb[0].mxu0 %v1885
  %v2555 = vpop.f32.mrb[0].mxu0
  %v2556 = vadd.f32 %v2250, %v2555
  %v2557 = vpop.f32.mrb[0].mxu0
  %2558 = vmatprep.mubr.f32.mxu0 0.0
  %2559 = vmatmul.mubr.f32.gmra.mrb[0].mxu0 %v1886
  %v2560 = vpop.f32.mrb[0].mxu0
  %v2561 = vadd.f32 %v2255, %v2560
  %v2562 = vpop.f32.mrb[0].mxu0
  %2563 = vmatprep.mubr.f32.mxu0 0.0
  %2564 = vmatmul.mubr.f32.gmra.mrb[0].mxu0 %v1887
  %v2565 = vpop.f32.mrb[0].mxu0
  %v2566 = vadd.f32 %v2260, %v2565
  %v2567 = vpop.f32.mrb[0].mxu0
  %2568 = vmatprep.mubr.f32.mxu0 0.0
  %2569 = vmatmul.mubr.f32.gmra.mrb[0].mxu0 %v1888
  %v2570 = vpop.f32.mrb[0].mxu0
  %v2571 = vadd.f32 %v2265, %v2570
  %v2572 = vpop.f32.mrb[0].mxu0
  %2573 = vmatprep.mubr.f32.mxu0 0.0
  %2574 = vmatmul.mubr.f32.gmra.mrb[0].mxu0 %v1889
  %v2575 = vpop.f32.mrb[0].mxu0
  %v2576 = vadd.f32 %v2270, %v2575
  %v2577 = vpop.f32.mrb[0].mxu0
  %2578 = vmatprep.mubr.f32.mxu0 0.0
  %2579 = vmatmul.mubr.f32.gmra.mrb[0].mxu0 %v1890
  %v2580 = vpop.f32.mrb[0].mxu0
  %v2581 = vadd.f32 %v2275, %v2580
  %v2582 = vpop.f32.mrb[0].mxu0
  %2583 = vmatprep.mubr.f32.mxu0 0.0
  %2584 = vmatmul.mubr.f32.gmra.mrb[0].mxu0 %v1891
  %v2585 = vpop.f32.mrb[0].mxu0
  %v2586 = vadd.f32 %v2280, %v2585
  %v2587 = vpop.f32.mrb[0].mxu0
  %2588 = vmatprep.mubr.f32.mxu0 0.0
  %2589 = vmatmul.mubr.f32.gmra.mrb[0].mxu0 %v1892
  %v2590 = vpop.f32.mrb[0].mxu0
  %v2591 = vadd.f32 %v2285, %v2590
  %v2592 = vpop.f32.mrb[0].mxu0
  %2593 = vmatprep.mubr.f32.mxu0 0.0
  %2594 = vmatmul.mubr.f32.gmra.mrb[0].mxu0 %v1893
  %v2595 = vpop.f32.mrb[0].mxu0
  %v2596 = vadd.f32 %v2290, %v2595
  %v2597 = vpop.f32.mrb[0].mxu0
  %2598 = vmatprep.mubr.f32.mxu0 0.0
  %2599 = vmatmul.mubr.f32.gmra.mrb[0].mxu0 %v1894
  %v2600 = vpop.f32.mrb[0].mxu0
  %v2601 = vadd.f32 %v2295, %v2600
  %v2602 = vpop.f32.mrb[0].mxu0
  %2603 = vmatprep.mubr.f32.mxu0 0.0
  %2604 = vmatmul.mubr.f32.gmra.mrb[0].mxu0 %v1895
  %v2605 = vpop.f32.mrb[0].mxu0
  %v2606 = vadd.f32 %v2300, %v2605
  %v2607 = vpop.f32.mrb[0].mxu0
  %2608 = vmatprep.mubr.f32.mxu0 0.0
  %2609 = vmatmul.mubr.f32.gmra.mrb[0].mxu0 %v1896
  %v2610 = vpop.f32.mrb[0].mxu0
  %v2611 = vadd.f32 %v2305, %v2610
  %v2612 = vpop.f32.mrb[0].mxu0
  %2613 = vmatprep.mubr.f32.mxu0 0.0
  %2614 = vmatmul.mubr.f32.gmra.mrb[0].mxu0 %v1897
  %v2615 = vpop.f32.mrb[0].mxu0
  %v2616 = vadd.f32 %v2310, %v2615
  %v2617 = vpop.f32.mrb[0].mxu0
  %2618 = vmatprep.mubr.f32.mxu0 0.0
  %2619 = vmatmul.mubr.f32.gmra.mrb[0].mxu0 %v1898
  %v2620 = vpop.f32.mrb[0].mxu0
  %v2621 = vadd.f32 %v2315, %v2620
  %v2622 = vpop.f32.mrb[0].mxu0
  %2623 = vdwg.mxu0
  %v2624 = vld [vmem:[#allocation2 + $0x2] sm:$0xff]
  %v2625 = vld [vmem:[#allocation2 + $0xa] sm:$0xff]
  %v2626 = vld [vmem:[#allocation2 + $0x12] sm:$0xff]
  %v2627 = vld [vmem:[#allocation2 + $0x1a] sm:$0xff]
  %v2628 = vld [vmem:[#allocation2 + $0x22] sm:$0xff]
  %v2629 = vld [vmem:[#allocation2 + $0x2a] sm:$0xff]
  %v2630 = vld [vmem:[#allocation2 + $0x32] sm:$0xff]
  %v2631 = vld [vmem:[#allocation2 + $0x3a] sm:$0xff]
  %v2632 = vld [vmem:[#allocation2 + $0x42] sm:$0xff]
  %v2633 = vld [vmem:[#allocation2 + $0x4a] sm:$0xff]
  %v2634 = vld [vmem:[#allocation2 + $0x52] sm:$0xff]
  %v2635 = vld [vmem:[#allocation2 + $0x5a] sm:$0xff]
  %v2636 = vld [vmem:[#allocation2 + $0x62] sm:$0xff]
  %v2637 = vld [vmem:[#allocation2 + $0x6a] sm:$0xff]
  %v2638 = vld [vmem:[#allocation2 + $0x72] sm:$0xff]
  %v2639 = vld [vmem:[#allocation2 + $0x7a] sm:$0xff]
  %s2640 = scalar_lea.vmem %s5, 768
  %v2641 = vld [vmem:[%s2640] sm:$0xff]
  %v2642 = vld [vmem:[%s2640 + $0x8] sm:$0xff]
  %v2643 = vld [vmem:[%s2640 + $0x10] sm:$0xff]
  %v2644 = vld [vmem:[%s2640 + $0x18] sm:$0xff]
  %v2645 = vld [vmem:[%s2640 + $0x20] sm:$0xff]
  %v2646 = vld [vmem:[%s2640 + $0x28] sm:$0xff]
  %v2647 = vld [vmem:[%s2640 + $0x30] sm:$0xff]
  %v2648 = vld [vmem:[%s2640 + $0x38] sm:$0xff]
  %v2649 = vld [vmem:[%s2640 + $0x40] sm:$0xff]
  %v2650 = vld [vmem:[%s2640 + $0x48] sm:$0xff]
  %v2651 = vld [vmem:[%s2640 + $0x50] sm:$0xff]
  %v2652 = vld [vmem:[%s2640 + $0x58] sm:$0xff]
  %v2653 = vld [vmem:[%s2640 + $0x60] sm:$0xff]
  %v2654 = vld [vmem:[%s2640 + $0x68] sm:$0xff]
  %v2655 = vld [vmem:[%s2640 + $0x70] sm:$0xff]
  %v2656 = vld [vmem:[%s2640 + $0x78] sm:$0xff]
  %v2657 = vld [vmem:[%s2640 + $0x80] sm:$0xff]
  %v2658 = vld [vmem:[%s2640 + $0x88] sm:$0xff]
  %v2659 = vld [vmem:[%s2640 + $0x90] sm:$0xff]
  %v2660 = vld [vmem:[%s2640 + $0x98] sm:$0xff]
  %v2661 = vld [vmem:[%s2640 + $0xa0] sm:$0xff]
  %v2662 = vld [vmem:[%s2640 + $0xa8] sm:$0xff]
  %v2663 = vld [vmem:[%s2640 + $0xb0] sm:$0xff]
  %v2664 = vld [vmem:[%s2640 + $0xb8] sm:$0xff]
  %v2665 = vld [vmem:[%s2640 + $0xc0] sm:$0xff]
  %v2666 = vld [vmem:[%s2640 + $0xc8] sm:$0xff]
  %v2667 = vld [vmem:[%s2640 + $0xd0] sm:$0xff]
  %v2668 = vld [vmem:[%s2640 + $0xd8] sm:$0xff]
  %v2669 = vld [vmem:[%s2640 + $0xe0] sm:$0xff]
  %v2670 = vld [vmem:[%s2640 + $0xe8] sm:$0xff]
  %v2671 = vld [vmem:[%s2640 + $0xf0] sm:$0xff]
  %v2672 = vld [vmem:[%s2640 + $0xf8] sm:$0xff]
  %v2673 = vld [vmem:[%s2640 + $0x100] sm:$0xff]
  %v2674 = vld [vmem:[%s2640 + $0x108] sm:$0xff]
  %v2675 = vld [vmem:[%s2640 + $0x110] sm:$0xff]
  %v2676 = vld [vmem:[%s2640 + $0x118] sm:$0xff]
  %v2677 = vld [vmem:[%s2640 + $0x120] sm:$0xff]
  %v2678 = vld [vmem:[%s2640 + $0x128] sm:$0xff]
  %v2679 = vld [vmem:[%s2640 + $0x130] sm:$0xff]
  %v2680 = vld [vmem:[%s2640 + $0x138] sm:$0xff]
  %v2681 = vld [vmem:[%s2640 + $0x140] sm:$0xff]
  %v2682 = vld [vmem:[%s2640 + $0x148] sm:$0xff]
  %v2683 = vld [vmem:[%s2640 + $0x150] sm:$0xff]
  %v2684 = vld [vmem:[%s2640 + $0x158] sm:$0xff]
  %v2685 = vld [vmem:[%s2640 + $0x160] sm:$0xff]
  %v2686 = vld [vmem:[%s2640 + $0x168] sm:$0xff]
  %v2687 = vld [vmem:[%s2640 + $0x170] sm:$0xff]
  %v2688 = vld [vmem:[%s2640 + $0x178] sm:$0xff]
  %2689 = vmatprep.subr.mxu0 %v2642
  %2690 = vmatpush1.msra.mxu0 %v2641
  %2691 = vmatprep.subr.mxu0 %v2645
  %2692 = vmatpush1.msra.mxu0 %v2644
  %2693 = vmatprep.subr.mxu0 %v2648
  %2694 = vmatpush1.msra.mxu0 %v2647
  %2695 = vmatprep.subr.mxu0 %v2651
  %2696 = vmatpush1.msra.mxu0 %v2650
  %2697 = vmatprep.subr.mxu0 %v2654
  %2698 = vmatpush1.msra.mxu0 %v2653
  %2699 = vmatprep.subr.mxu0 %v2657
  %2700 = vmatpush1.msra.mxu0 %v2656
  %2701 = vmatprep.subr.mxu0 %v2660
  %2702 = vmatpush1.msra.mxu0 %v2659
  %2703 = vmatprep.subr.mxu0 %v2663
  %2704 = vmatpush1.msra.mxu0 %v2662
  %2705 = vmatprep.subr.mxu0 %v2666
  %2706 = vmatpush1.msra.mxu0 %v2665
  %2707 = vmatprep.subr.mxu0 %v2669
  %2708 = vmatpush1.msra.mxu0 %v2668
  %2709 = vmatprep.subr.mxu0 %v2672
  %2710 = vmatpush1.msra.mxu0 %v2671
  %2711 = vmatprep.subr.mxu0 %v2675
  %2712 = vmatpush1.msra.mxu0 %v2674
  %2713 = vmatprep.subr.mxu0 %v2678
  %2714 = vmatpush1.msra.mxu0 %v2677
  %2715 = vmatprep.subr.mxu0 %v2681
  %2716 = vmatpush1.msra.mxu0 %v2680
  %2717 = vmatprep.subr.mxu0 %v2684
  %2718 = vmatpush1.msra.mxu0 %v2683
  %2719 = vmatprep.subr.mxu0 %v2687
  %2720 = vmatpush1.msra.mxu0 %v2686
  %2721 = vmatprep.subr.mxu0 0.0
  %2722 = vmatpush1.msra.mxu0 0.0
  %2723 = vmatprep.subr.mxu0 0.0
  %2724 = vmatpush1.msra.mxu0 0.0
  %2725 = vmatprep.subr.mxu0 0.0
  %2726 = vmatpush1.msra.mxu0 0.0
  %2727 = vmatprep.subr.mxu0 0.0
  %2728 = vmatpush1.msra.mxu0 0.0
  %2729 = vmatprep.subr.mxu0 0.0
  %2730 = vmatpush1.msra.mxu0 0.0
  %2731 = vmatprep.subr.mxu0 0.0
  %2732 = vmatpush1.msra.mxu0 0.0
  %2733 = vmatprep.subr.mxu0 0.0
  %2734 = vmatpush1.msra.mxu0 0.0
  %2735 = vmatprep.subr.mxu0 0.0
  %2736 = vmatpush1.msra.mxu0 0.0
  %2737 = vmatprep.subr.mxu0 0.0
  %2738 = vmatpush1.msra.mxu0 0.0
  %2739 = vmatprep.subr.mxu0 0.0
  %2740 = vmatpush1.msra.mxu0 0.0
  %2741 = vmatprep.subr.mxu0 0.0
  %2742 = vmatpush1.msra.mxu0 0.0
  %2743 = vmatprep.subr.mxu0 0.0
  %2744 = vmatpush1.msra.mxu0 0.0
  %2745 = vmatprep.subr.mxu0 0.0
  %2746 = vmatpush1.msra.mxu0 0.0
  %2747 = vmatprep.subr.mxu0 0.0
  %2748 = vmatpush1.msra.mxu0 0.0
  %2749 = vmatprep.subr.mxu0 0.0
  %2750 = vmatpush1.msra.mxu0 0.0
  %2751 = vmatprep.subr.mxu0 0.0
  %2752 = vmatpush1.msra.mxu0 0.0
  %2753 = vmatprep.mubr.f32.mxu0 0.0
  %2754 = vmatmul.mubr.f32.gmra.mrb[0].mxu0 %v2624
  %v2755 = vpop.f32.mrb[0].mxu0
  %v2756 = vadd.f32 0.0, %v2755
  %v2757 = vpop.f32.mrb[0].mxu0
  %v2758 = vadd.f32 0.0, %v2757
  %2759 = vmatprep.mubr.f32.mxu0 0.0
  %2760 = vmatmul.mubr.f32.gmra.mrb[0].mxu0 %v2625
  %v2761 = vpop.f32.mrb[0].mxu0
  %v2762 = vadd.f32 0.0, %v2761
  %v2763 = vpop.f32.mrb[0].mxu0
  %v2764 = vadd.f32 0.0, %v2763
  %2765 = vmatprep.mubr.f32.mxu0 0.0
  %2766 = vmatmul.mubr.f32.gmra.mrb[0].mxu0 %v2626
  %v2767 = vpop.f32.mrb[0].mxu0
  %v2768 = vadd.f32 0.0, %v2767
  %v2769 = vpop.f32.mrb[0].mxu0
  %v2770 = vadd.f32 0.0, %v2769
  %2771 = vmatprep.mubr.f32.mxu0 0.0
  %2772 = vmatmul.mubr.f32.gmra.mrb[0].mxu0 %v2627
  %v2773 = vpop.f32.mrb[0].mxu0
  %v2774 = vadd.f32 0.0, %v2773
  %v2775 = vpop.f32.mrb[0].mxu0
  %v2776 = vadd.f32 0.0, %v2775
  %2777 = vmatprep.mubr.f32.mxu0 0.0
  %2778 = vmatmul.mubr.f32.gmra.mrb[0].mxu0 %v2628
  %v2779 = vpop.f32.mrb[0].mxu0
  %v2780 = vadd.f32 0.0, %v2779
  %v2781 = vpop.f32.mrb[0].mxu0
  %v2782 = vadd.f32 0.0, %v2781
  %2783 = vmatprep.mubr.f32.mxu0 0.0
  %2784 = vmatmul.mubr.f32.gmra.mrb[0].mxu0 %v2629
  %v2785 = vpop.f32.mrb[0].mxu0
  %v2786 = vadd.f32 0.0, %v2785
  %v2787 = vpop.f32.mrb[0].mxu0
  %v2788 = vadd.f32 0.0, %v2787
  %2789 = vmatprep.mubr.f32.mxu0 0.0
  %2790 = vmatmul.mubr.f32.gmra.mrb[0].mxu0 %v2630
  %v2791 = vpop.f32.mrb[0].mxu0
  %v2792 = vadd.f32 0.0, %v2791
  %v2793 = vpop.f32.mrb[0].mxu0
  %v2794 = vadd.f32 0.0, %v2793
  %2795 = vmatprep.mubr.f32.mxu0 0.0
  %2796 = vmatmul.mubr.f32.gmra.mrb[0].mxu0 %v2631
  %v2797 = vpop.f32.mrb[0].mxu0
  %v2798 = vadd.f32 0.0, %v2797
  %v2799 = vpop.f32.mrb[0].mxu0
  %v2800 = vadd.f32 0.0, %v2799
  %2801 = vmatprep.mubr.f32.mxu0 0.0
  %2802 = vmatmul.mubr.f32.gmra.mrb[0].mxu0 %v2632
  %v2803 = vpop.f32.mrb[0].mxu0
  %v2804 = vadd.f32 0.0, %v2803
  %v2805 = vpop.f32.mrb[0].mxu0
  %v2806 = vadd.f32 0.0, %v2805
  %2807 = vmatprep.mubr.f32.mxu0 0.0
  %2808 = vmatmul.mubr.f32.gmra.mrb[0].mxu0 %v2633
  %v2809 = vpop.f32.mrb[0].mxu0
  %v2810 = vadd.f32 0.0, %v2809
  %v2811 = vpop.f32.mrb[0].mxu0
  %v2812 = vadd.f32 0.0, %v2811
  %2813 = vmatprep.mubr.f32.mxu0 0.0
  %2814 = vmatmul.mubr.f32.gmra.mrb[0].mxu0 %v2634
  %v2815 = vpop.f32.mrb[0].mxu0
  %v2816 = vadd.f32 0.0, %v2815
  %v2817 = vpop.f32.mrb[0].mxu0
  %v2818 = vadd.f32 0.0, %v2817
  %2819 = vmatprep.mubr.f32.mxu0 0.0
  %2820 = vmatmul.mubr.f32.gmra.mrb[0].mxu0 %v2635
  %v2821 = vpop.f32.mrb[0].mxu0
  %v2822 = vadd.f32 0.0, %v2821
  %v2823 = vpop.f32.mrb[0].mxu0
  %v2824 = vadd.f32 0.0, %v2823
  %2825 = vmatprep.mubr.f32.mxu0 0.0
  %2826 = vmatmul.mubr.f32.gmra.mrb[0].mxu0 %v2636
  %v2827 = vpop.f32.mrb[0].mxu0
  %v2828 = vadd.f32 0.0, %v2827
  %v2829 = vpop.f32.mrb[0].mxu0
  %v2830 = vadd.f32 0.0, %v2829
  %2831 = vmatprep.mubr.f32.mxu0 0.0
  %2832 = vmatmul.mubr.f32.gmra.mrb[0].mxu0 %v2637
  %v2833 = vpop.f32.mrb[0].mxu0
  %v2834 = vadd.f32 0.0, %v2833
  %v2835 = vpop.f32.mrb[0].mxu0
  %v2836 = vadd.f32 0.0, %v2835
  %2837 = vmatprep.mubr.f32.mxu0 0.0
  %2838 = vmatmul.mubr.f32.gmra.mrb[0].mxu0 %v2638
  %v2839 = vpop.f32.mrb[0].mxu0
  %v2840 = vadd.f32 0.0, %v2839
  %v2841 = vpop.f32.mrb[0].mxu0
  %v2842 = vadd.f32 0.0, %v2841
  %2843 = vmatprep.mubr.f32.mxu0 0.0
  %2844 = vmatmul.mubr.f32.gmra.mrb[0].mxu0 %v2639
  %v2845 = vpop.f32.mrb[0].mxu0
  %v2846 = vadd.f32 0.0, %v2845
  %v2847 = vpop.f32.mrb[0].mxu0
  %v2848 = vadd.f32 0.0, %v2847
  %2849 = vdwg.mxu0
  %2850 = vmatprep.subr.mxu0 0.0
  %2851 = vmatpush1.msra.mxu0 %v2643
  %2852 = vmatprep.subr.mxu0 0.0
  %2853 = vmatpush1.msra.mxu0 %v2646
  %2854 = vmatprep.subr.mxu0 0.0
  %2855 = vmatpush1.msra.mxu0 %v2649
  %2856 = vmatprep.subr.mxu0 0.0
  %2857 = vmatpush1.msra.mxu0 %v2652
  %2858 = vmatprep.subr.mxu0 0.0
  %2859 = vmatpush1.msra.mxu0 %v2655
  %2860 = vmatprep.subr.mxu0 0.0
  %2861 = vmatpush1.msra.mxu0 %v2658
  %2862 = vmatprep.subr.mxu0 0.0
  %2863 = vmatpush1.msra.mxu0 %v2661
  %2864 = vmatprep.subr.mxu0 0.0
  %2865 = vmatpush1.msra.mxu0 %v2664
  %2866 = vmatprep.subr.mxu0 0.0
  %2867 = vmatpush1.msra.mxu0 %v2667
  %2868 = vmatprep.subr.mxu0 0.0
  %2869 = vmatpush1.msra.mxu0 %v2670
  %2870 = vmatprep.subr.mxu0 0.0
  %2871 = vmatpush1.msra.mxu0 %v2673
  %2872 = vmatprep.subr.mxu0 0.0
  %2873 = vmatpush1.msra.mxu0 %v2676
  %2874 = vmatprep.subr.mxu0 0.0
  %2875 = vmatpush1.msra.mxu0 %v2679
  %2876 = vmatprep.subr.mxu0 0.0
  %2877 = vmatpush1.msra.mxu0 %v2682
  %2878 = vmatprep.subr.mxu0 0.0
  %2879 = vmatpush1.msra.mxu0 %v2685
  %2880 = vmatprep.subr.mxu0 0.0
  %2881 = vmatpush1.msra.mxu0 %v2688
  %2882 = vmatprep.subr.mxu0 0.0
  %2883 = vmatpush1.msra.mxu0 0.0
  %2884 = vmatprep.subr.mxu0 0.0
  %2885 = vmatpush1.msra.mxu0 0.0
  %2886 = vmatprep.subr.mxu0 0.0
  %2887 = vmatpush1.msra.mxu0 0.0
  %2888 = vmatprep.subr.mxu0 0.0
  %2889 = vmatpush1.msra.mxu0 0.0
  %2890 = vmatprep.subr.mxu0 0.0
  %2891 = vmatpush1.msra.mxu0 0.0
  %2892 = vmatprep.subr.mxu0 0.0
  %2893 = vmatpush1.msra.mxu0 0.0
  %2894 = vmatprep.subr.mxu0 0.0
  %2895 = vmatpush1.msra.mxu0 0.0
  %2896 = vmatprep.subr.mxu0 0.0
  %2897 = vmatpush1.msra.mxu0 0.0
  %2898 = vmatprep.subr.mxu0 0.0
  %2899 = vmatpush1.msra.mxu0 0.0
  %2900 = vmatprep.subr.mxu0 0.0
  %2901 = vmatpush1.msra.mxu0 0.0
  %2902 = vmatprep.subr.mxu0 0.0
  %2903 = vmatpush1.msra.mxu0 0.0
  %2904 = vmatprep.subr.mxu0 0.0
  %2905 = vmatpush1.msra.mxu0 0.0
  %2906 = vmatprep.subr.mxu0 0.0
  %2907 = vmatpush1.msra.mxu0 0.0
  %2908 = vmatprep.subr.mxu0 0.0
  %2909 = vmatpush1.msra.mxu0 0.0
  %2910 = vmatprep.subr.mxu0 0.0
  %2911 = vmatpush1.msra.mxu0 0.0
  %2912 = vmatprep.subr.mxu0 0.0
  %2913 = vmatpush1.msra.mxu0 0.0
  %2914 = vmatprep.mubr.f32.mxu0 0.0
  %2915 = vmatmul.mubr.f32.gmra.mrb[0].mxu0 %v2624
  %v2916 = vpop.f32.mrb[0].mxu0
  %v2917 = vadd.f32 0.0, %v2916
  %v2918 = vpop.f32.mrb[0].mxu0
  %2919 = vmatprep.mubr.f32.mxu0 0.0
  %2920 = vmatmul.mubr.f32.gmra.mrb[0].mxu0 %v2625
  %v2921 = vpop.f32.mrb[0].mxu0
  %v2922 = vadd.f32 0.0, %v2921
  %v2923 = vpop.f32.mrb[0].mxu0
  %2924 = vmatprep.mubr.f32.mxu0 0.0
  %2925 = vmatmul.mubr.f32.gmra.mrb[0].mxu0 %v2626
  %v2926 = vpop.f32.mrb[0].mxu0
  %v2927 = vadd.f32 0.0, %v2926
  %v2928 = vpop.f32.mrb[0].mxu0
  %2929 = vmatprep.mubr.f32.mxu0 0.0
  %2930 = vmatmul.mubr.f32.gmra.mrb[0].mxu0 %v2627
  %v2931 = vpop.f32.mrb[0].mxu0
  %v2932 = vadd.f32 0.0, %v2931
  %v2933 = vpop.f32.mrb[0].mxu0
  %2934 = vmatprep.mubr.f32.mxu0 0.0
  %2935 = vmatmul.mubr.f32.gmra.mrb[0].mxu0 %v2628
  %v2936 = vpop.f32.mrb[0].mxu0
  %v2937 = vadd.f32 0.0, %v2936
  %v2938 = vpop.f32.mrb[0].mxu0
  %2939 = vmatprep.mubr.f32.mxu0 0.0
  %2940 = vmatmul.mubr.f32.gmra.mrb[0].mxu0 %v2629
  %v2941 = vpop.f32.mrb[0].mxu0
  %v2942 = vadd.f32 0.0, %v2941
  %v2943 = vpop.f32.mrb[0].mxu0
  %2944 = vmatprep.mubr.f32.mxu0 0.0
  %2945 = vmatmul.mubr.f32.gmra.mrb[0].mxu0 %v2630
  %v2946 = vpop.f32.mrb[0].mxu0
  %v2947 = vadd.f32 0.0, %v2946
  %v2948 = vpop.f32.mrb[0].mxu0
  %2949 = vmatprep.mubr.f32.mxu0 0.0
  %2950 = vmatmul.mubr.f32.gmra.mrb[0].mxu0 %v2631
  %v2951 = vpop.f32.mrb[0].mxu0
  %v2952 = vadd.f32 0.0, %v2951
  %v2953 = vpop.f32.mrb[0].mxu0
  %2954 = vmatprep.mubr.f32.mxu0 0.0
  %2955 = vmatmul.mubr.f32.gmra.mrb[0].mxu0 %v2632
  %v2956 = vpop.f32.mrb[0].mxu0
  %v2957 = vadd.f32 0.0, %v2956
  %v2958 = vpop.f32.mrb[0].mxu0
  %2959 = vmatprep.mubr.f32.mxu0 0.0
  %2960 = vmatmul.mubr.f32.gmra.mrb[0].mxu0 %v2633
  %v2961 = vpop.f32.mrb[0].mxu0
  %v2962 = vadd.f32 0.0, %v2961
  %v2963 = vpop.f32.mrb[0].mxu0
  %2964 = vmatprep.mubr.f32.mxu0 0.0
  %2965 = vmatmul.mubr.f32.gmra.mrb[0].mxu0 %v2634
  %v2966 = vpop.f32.mrb[0].mxu0
  %v2967 = vadd.f32 0.0, %v2966
  %v2968 = vpop.f32.mrb[0].mxu0
  %2969 = vmatprep.mubr.f32.mxu0 0.0
  %2970 = vmatmul.mubr.f32.gmra.mrb[0].mxu0 %v2635
  %v2971 = vpop.f32.mrb[0].mxu0
  %v2972 = vadd.f32 0.0, %v2971
  %v2973 = vpop.f32.mrb[0].mxu0
  %2974 = vmatprep.mubr.f32.mxu0 0.0
  %2975 = vmatmul.mubr.f32.gmra.mrb[0].mxu0 %v2636
  %v2976 = vpop.f32.mrb[0].mxu0
  %v2977 = vadd.f32 0.0, %v2976
  %v2978 = vpop.f32.mrb[0].mxu0
  %2979 = vmatprep.mubr.f32.mxu0 0.0
  %2980 = vmatmul.mubr.f32.gmra.mrb[0].mxu0 %v2637
  %v2981 = vpop.f32.mrb[0].mxu0
  %v2982 = vadd.f32 0.0, %v2981
  %v2983 = vpop.f32.mrb[0].mxu0
  %2984 = vmatprep.mubr.f32.mxu0 0.0
  %2985 = vmatmul.mubr.f32.gmra.mrb[0].mxu0 %v2638
  %v2986 = vpop.f32.mrb[0].mxu0
  %v2987 = vadd.f32 0.0, %v2986
  %v2988 = vpop.f32.mrb[0].mxu0
  %2989 = vmatprep.mubr.f32.mxu0 0.0
  %2990 = vmatmul.mubr.f32.gmra.mrb[0].mxu0 %v2639
  %v2991 = vpop.f32.mrb[0].mxu0
  %v2992 = vadd.f32 0.0, %v2991
  %v2993 = vpop.f32.mrb[0].mxu0
  %2994 = vdwg.mxu0
  %v2995 = vadd.f32 %v2385, %v2756
  %v2996 = vadd.f32 %v2387, %v2758
  %v2997 = vadd.f32 %v2546, %v2917
  %v2998 = vadd.f32 %v2391, %v2762
  %v2999 = vadd.f32 %v2393, %v2764
  %v3000 = vadd.f32 %v2551, %v2922
  %v3001 = vadd.f32 %v2397, %v2768
  %v3002 = vadd.f32 %v2399, %v2770
  %v3003 = vadd.f32 %v2556, %v2927
  %v3004 = vadd.f32 %v2403, %v2774
  %v3005 = vadd.f32 %v2405, %v2776
  %v3006 = vadd.f32 %v2561, %v2932
  %v3007 = vadd.f32 %v2409, %v2780
  %v3008 = vadd.f32 %v2411, %v2782
  %v3009 = vadd.f32 %v2566, %v2937
  %v3010 = vadd.f32 %v2415, %v2786
  %v3011 = vadd.f32 %v2417, %v2788
  %v3012 = vadd.f32 %v2571, %v2942
  %v3013 = vadd.f32 %v2421, %v2792
  %v3014 = vadd.f32 %v2423, %v2794
  %v3015 = vadd.f32 %v2576, %v2947
  %v3016 = vadd.f32 %v2427, %v2798
  %v3017 = vadd.f32 %v2429, %v2800
  %v3018 = vadd.f32 %v2581, %v2952
  %v3019 = vadd.f32 %v2433, %v2804
  %v3020 = vadd.f32 %v2435, %v2806
  %v3021 = vadd.f32 %v2586, %v2957
  %v3022 = vadd.f32 %v2439, %v2810
  %v3023 = vadd.f32 %v2441, %v2812
  %v3024 = vadd.f32 %v2591, %v2962
  %v3025 = vadd.f32 %v2445, %v2816
  %v3026 = vadd.f32 %v2447, %v2818
  %v3027 = vadd.f32 %v2596, %v2967
  %v3028 = vadd.f32 %v2451, %v2822
  %v3029 = vadd.f32 %v2453, %v2824
  %v3030 = vadd.f32 %v2601, %v2972
  %v3031 = vadd.f32 %v2457, %v2828
  %v3032 = vadd.f32 %v2459, %v2830
  %v3033 = vadd.f32 %v2606, %v2977
  %v3034 = vadd.f32 %v2463, %v2834
  %v3035 = vadd.f32 %v2465, %v2836
  %v3036 = vadd.f32 %v2611, %v2982
  %v3037 = vadd.f32 %v2469, %v2840
  %v3038 = vadd.f32 %v2471, %v2842
  %v3039 = vadd.f32 %v2616, %v2987
  %v3040 = vadd.f32 %v2475, %v2846
  %v3041 = vadd.f32 %v2477, %v2848
  %v3042 = vadd.f32 %v2621, %v2992
  %v3043 = vld [vmem:[%s7] sm:$0xff]
  %v3044 = vld [vmem:[%s7 + $0x8] sm:$0xff]
  %v3045 = vld [vmem:[%s7 + $0x10] sm:$0xff]
  %v3046 = vld [vmem:[%s7 + $0x18] sm:$0xff]
  %v3047 = vld [vmem:[%s7 + $0x20] sm:$0xff]
  %v3048 = vld [vmem:[%s7 + $0x28] sm:$0xff]
  %v3049 = vld [vmem:[%s7 + $0x30] sm:$0xff]
  %v3050 = vld [vmem:[%s7 + $0x38] sm:$0xff]
  %v3051 = vld [vmem:[%s7 + $0x40] sm:$0xff]
  %v3052 = vld [vmem:[%s7 + $0x48] sm:$0xff]
  %v3053 = vld [vmem:[%s7 + $0x50] sm:$0xff]
  %v3054 = vld [vmem:[%s7 + $0x58] sm:$0xff]
  %v3055 = vld [vmem:[%s7 + $0x60] sm:$0xff]
  %v3056 = vld [vmem:[%s7 + $0x68] sm:$0xff]
  %v3057 = vld [vmem:[%s7 + $0x70] sm:$0xff]
  %v3058 = vld [vmem:[%s7 + $0x78] sm:$0xff]
  %v3059 = vld [vmem:[%s7 + $0x80] sm:$0xff]
  %v3060 = vld [vmem:[%s7 + $0x88] sm:$0xff]
  %v3061 = vld [vmem:[%s7 + $0x90] sm:$0xff]
  %v3062 = vld [vmem:[%s7 + $0x98] sm:$0xff]
  %v3063 = vld [vmem:[%s7 + $0xa0] sm:$0xff]
  %v3064 = vld [vmem:[%s7 + $0xa8] sm:$0xff]
  %v3065 = vld [vmem:[%s7 + $0xb0] sm:$0xff]
  %v3066 = vld [vmem:[%s7 + $0xb8] sm:$0xff]
  %v3067 = vld [vmem:[%s7 + $0xc0] sm:$0xff]
  %v3068 = vld [vmem:[%s7 + $0xc8] sm:$0xff]
  %v3069 = vld [vmem:[%s7 + $0xd0] sm:$0xff]
  %v3070 = vld [vmem:[%s7 + $0xd8] sm:$0xff]
  %v3071 = vld [vmem:[%s7 + $0xe0] sm:$0xff]
  %v3072 = vld [vmem:[%s7 + $0xe8] sm:$0xff]
  %v3073 = vld [vmem:[%s7 + $0xf0] sm:$0xff]
  %v3074 = vld [vmem:[%s7 + $0xf8] sm:$0xff]
  %v3075 = vld [vmem:[%s7 + $0x100] sm:$0xff]
  %v3076 = vld [vmem:[%s7 + $0x108] sm:$0xff]
  %3077 = vmatprep.subr.mxu0 %v2996
  %3078 = vmatpush1.msra.mxu0 %v2995
  %3079 = vmatprep.subr.mxu0 %v2999
  %3080 = vmatpush1.msra.mxu0 %v2998
  %3081 = vmatprep.subr.mxu0 %v3002
  %3082 = vmatpush1.msra.mxu0 %v3001
  %3083 = vmatprep.subr.mxu0 %v3005
  %3084 = vmatpush1.msra.mxu0 %v3004
  %3085 = vmatprep.subr.mxu0 %v3008
  %3086 = vmatpush1.msra.mxu0 %v3007
  %3087 = vmatprep.subr.mxu0 %v3011
  %3088 = vmatpush1.msra.mxu0 %v3010
  %3089 = vmatprep.subr.mxu0 %v3014
  %3090 = vmatpush1.msra.mxu0 %v3013
  %3091 = vmatprep.subr.mxu0 %v3017
  %3092 = vmatpush1.msra.mxu0 %v3016
  %3093 = vmatprep.subr.mxu0 %v3020
  %3094 = vmatpush1.msra.mxu0 %v3019
  %3095 = vmatprep.subr.mxu0 %v3023
  %3096 = vmatpush1.msra.mxu0 %v3022
  %3097 = vmatprep.subr.mxu0 %v3026
  %3098 = vmatpush1.msra.mxu0 %v3025
  %3099 = vmatprep.subr.mxu0 %v3029
  %3100 = vmatpush1.msra.mxu0 %v3028
  %3101 = vmatprep.subr.mxu0 %v3032
  %3102 = vmatpush1.msra.mxu0 %v3031
  %3103 = vmatprep.subr.mxu0 %v3035
  %3104 = vmatpush1.msra.mxu0 %v3034
  %3105 = vmatprep.subr.mxu0 %v3038
  %3106 = vmatpush1.msra.mxu0 %v3037
  %3107 = vmatprep.subr.mxu0 %v3041
  %3108 = vmatpush1.msra.mxu0 %v3040
  %3109 = vmatprep.subr.mxu0 0.0
  %3110 = vmatpush1.msra.mxu0 0.0
  %3111 = vmatprep.subr.mxu0 0.0
  %3112 = vmatpush1.msra.mxu0 0.0
  %3113 = vmatprep.subr.mxu0 0.0
  %3114 = vmatpush1.msra.mxu0 0.0
  %3115 = vmatprep.subr.mxu0 0.0
  %3116 = vmatpush1.msra.mxu0 0.0
  %3117 = vmatprep.subr.mxu0 0.0
  %3118 = vmatpush1.msra.mxu0 0.0
  %3119 = vmatprep.subr.mxu0 0.0
  %3120 = vmatpush1.msra.mxu0 0.0
  %3121 = vmatprep.subr.mxu0 0.0
  %3122 = vmatpush1.msra.mxu0 0.0
  %3123 = vmatprep.subr.mxu0 0.0
  %3124 = vmatpush1.msra.mxu0 0.0
  %3125 = vmatprep.subr.mxu0 0.0
  %3126 = vmatpush1.msra.mxu0 0.0
  %3127 = vmatprep.subr.mxu0 0.0
  %3128 = vmatpush1.msra.mxu0 0.0
  %3129 = vmatprep.subr.mxu0 0.0
  %3130 = vmatpush1.msra.mxu0 0.0
  %3131 = vmatprep.subr.mxu0 0.0
  %3132 = vmatpush1.msra.mxu0 0.0
  %3133 = vmatprep.subr.mxu0 0.0
  %3134 = vmatpush1.msra.mxu0 0.0
  %3135 = vmatprep.subr.mxu0 0.0
  %3136 = vmatpush1.msra.mxu0 0.0
  %3137 = vmatprep.subr.mxu0 0.0
  %3138 = vmatpush1.msra.mxu0 0.0
  %3139 = vmatprep.subr.mxu0 0.0
  %3140 = vmatpush1.msra.mxu0 0.0
  %3141 = vmatprep.mubr.f32.mxu0 0.0
  %3142 = vmatmul.mubr.f32.gmra.mrb[0].mxu0 %v3043
  %v3143 = vpop.f32.mrb[0].mxu0
  %v3144 = vadd.f32 0.0, %v3143
  %v3145 = vpop.f32.mrb[0].mxu0
  %v3146 = vadd.f32 0.0, %v3145
  %3147 = vmatprep.mubr.f32.mxu0 0.0
  %3148 = vmatmul.mubr.f32.gmra.mrb[0].mxu0 %v3044
  %v3149 = vpop.f32.mrb[0].mxu0
  %v3150 = vadd.f32 0.0, %v3149
  %v3151 = vpop.f32.mrb[0].mxu0
  %v3152 = vadd.f32 0.0, %v3151
  %3153 = vmatprep.mubr.f32.mxu0 0.0
  %3154 = vmatmul.mubr.f32.gmra.mrb[0].mxu0 %v3045
  %v3155 = vpop.f32.mrb[0].mxu0
  %v3156 = vadd.f32 0.0, %v3155
  %v3157 = vpop.f32.mrb[0].mxu0
  %v3158 = vadd.f32 0.0, %v3157
  %3159 = vmatprep.mubr.f32.mxu0 0.0
  %3160 = vmatmul.mubr.f32.gmra.mrb[0].mxu0 %v3046
  %v3161 = vpop.f32.mrb[0].mxu0
  %v3162 = vadd.f32 0.0, %v3161
  %v3163 = vpop.f32.mrb[0].mxu0
  %v3164 = vadd.f32 0.0, %v3163
  %3165 = vmatprep.mubr.f32.mxu0 0.0
  %3166 = vmatmul.mubr.f32.gmra.mrb[0].mxu0 %v3047
  %v3167 = vpop.f32.mrb[0].mxu0
  %v3168 = vadd.f32 0.0, %v3167
  %v3169 = vpop.f32.mrb[0].mxu0
  %v3170 = vadd.f32 0.0, %v3169
  %3171 = vmatprep.mubr.f32.mxu0 0.0
  %3172 = vmatmul.mubr.f32.gmra.mrb[0].mxu0 %v3048
  %v3173 = vpop.f32.mrb[0].mxu0
  %v3174 = vadd.f32 0.0, %v3173
  %v3175 = vpop.f32.mrb[0].mxu0
  %v3176 = vadd.f32 0.0, %v3175
  %3177 = vmatprep.mubr.f32.mxu0 0.0
  %3178 = vmatmul.mubr.f32.gmra.mrb[0].mxu0 %v3049
  %v3179 = vpop.f32.mrb[0].mxu0
  %v3180 = vadd.f32 0.0, %v3179
  %v3181 = vpop.f32.mrb[0].mxu0
  %v3182 = vadd.f32 0.0, %v3181
  %3183 = vmatprep.mubr.f32.mxu0 0.0
  %3184 = vmatmul.mubr.f32.gmra.mrb[0].mxu0 %v3050
  %v3185 = vpop.f32.mrb[0].mxu0
  %v3186 = vadd.f32 0.0, %v3185
  %v3187 = vpop.f32.mrb[0].mxu0
  %v3188 = vadd.f32 0.0, %v3187
  %3189 = vmatprep.mubr.f32.mxu0 0.0
  %3190 = vmatmul.mubr.f32.gmra.mrb[0].mxu0 %v3051
  %v3191 = vpop.f32.mrb[0].mxu0
  %v3192 = vadd.f32 0.0, %v3191
  %v3193 = vpop.f32.mrb[0].mxu0
  %v3194 = vadd.f32 0.0, %v3193
  %3195 = vmatprep.mubr.f32.mxu0 0.0
  %3196 = vmatmul.mubr.f32.gmra.mrb[0].mxu0 %v3052
  %v3197 = vpop.f32.mrb[0].mxu0
  %v3198 = vadd.f32 0.0, %v3197
  %v3199 = vpop.f32.mrb[0].mxu0
  %v3200 = vadd.f32 0.0, %v3199
  %3201 = vmatprep.mubr.f32.mxu0 0.0
  %3202 = vmatmul.mubr.f32.gmra.mrb[0].mxu0 %v3053
  %v3203 = vpop.f32.mrb[0].mxu0
  %v3204 = vadd.f32 0.0, %v3203
  %v3205 = vpop.f32.mrb[0].mxu0
  %v3206 = vadd.f32 0.0, %v3205
  %3207 = vmatprep.mubr.f32.mxu0 0.0
  %3208 = vmatmul.mubr.f32.gmra.mrb[0].mxu0 %v3054
  %v3209 = vpop.f32.mrb[0].mxu0
  %v3210 = vadd.f32 0.0, %v3209
  %v3211 = vpop.f32.mrb[0].mxu0
  %v3212 = vadd.f32 0.0, %v3211
  %3213 = vmatprep.mubr.f32.mxu0 0.0
  %3214 = vmatmul.mubr.f32.gmra.mrb[0].mxu0 %v3055
  %v3215 = vpop.f32.mrb[0].mxu0
  %v3216 = vadd.f32 0.0, %v3215
  %v3217 = vpop.f32.mrb[0].mxu0
  %v3218 = vadd.f32 0.0, %v3217
  %3219 = vmatprep.mubr.f32.mxu0 0.0
  %3220 = vmatmul.mubr.f32.gmra.mrb[0].mxu0 %v3056
  %v3221 = vpop.f32.mrb[0].mxu0
  %v3222 = vadd.f32 0.0, %v3221
  %v3223 = vpop.f32.mrb[0].mxu0
  %v3224 = vadd.f32 0.0, %v3223
  %3225 = vmatprep.mubr.f32.mxu0 0.0
  %3226 = vmatmul.mubr.f32.gmra.mrb[0].mxu0 %v3057
  %v3227 = vpop.f32.mrb[0].mxu0
  %v3228 = vadd.f32 0.0, %v3227
  %v3229 = vpop.f32.mrb[0].mxu0
  %v3230 = vadd.f32 0.0, %v3229
  %3231 = vmatprep.mubr.f32.mxu0 0.0
  %3232 = vmatmul.mubr.f32.gmra.mrb[0].mxu0 %v3058
  %v3233 = vpop.f32.mrb[0].mxu0
  %v3234 = vadd.f32 0.0, %v3233
  %v3235 = vpop.f32.mrb[0].mxu0
  %v3236 = vadd.f32 0.0, %v3235
  %3237 = vmatprep.mubr.f32.mxu0 0.0
  %3238 = vmatmul.mubr.f32.gmra.mrb[0].mxu0 %v3059
  %v3239 = vpop.f32.mrb[0].mxu0
  %v3240 = vadd.f32 0.0, %v3239
  %v3241 = vpop.f32.mrb[0].mxu0
  %v3242 = vadd.f32 0.0, %v3241
  %3243 = vmatprep.mubr.f32.mxu0 0.0
  %3244 = vmatmul.mubr.f32.gmra.mrb[0].mxu0 %v3060
  %v3245 = vpop.f32.mrb[0].mxu0
  %v3246 = vadd.f32 0.0, %v3245
  %v3247 = vpop.f32.mrb[0].mxu0
  %v3248 = vadd.f32 0.0, %v3247
  %3249 = vmatprep.mubr.f32.mxu0 0.0
  %3250 = vmatmul.mubr.f32.gmra.mrb[0].mxu0 %v3061
  %v3251 = vpop.f32.mrb[0].mxu0
  %v3252 = vadd.f32 0.0, %v3251
  %v3253 = vpop.f32.mrb[0].mxu0
  %v3254 = vadd.f32 0.0, %v3253
  %3255 = vmatprep.mubr.f32.mxu0 0.0
  %3256 = vmatmul.mubr.f32.gmra.mrb[0].mxu0 %v3062
  %v3257 = vpop.f32.mrb[0].mxu0
  %v3258 = vadd.f32 0.0, %v3257
  %v3259 = vpop.f32.mrb[0].mxu0
  %v3260 = vadd.f32 0.0, %v3259
  %3261 = vmatprep.mubr.f32.mxu0 0.0
  %3262 = vmatmul.mubr.f32.gmra.mrb[0].mxu0 %v3063
  %v3263 = vpop.f32.mrb[0].mxu0
  %v3264 = vadd.f32 0.0, %v3263
  %v3265 = vpop.f32.mrb[0].mxu0
  %v3266 = vadd.f32 0.0, %v3265
  %3267 = vmatprep.mubr.f32.mxu0 0.0
  %3268 = vmatmul.mubr.f32.gmra.mrb[0].mxu0 %v3064
  %v3269 = vpop.f32.mrb[0].mxu0
  %v3270 = vadd.f32 0.0, %v3269
  %v3271 = vpop.f32.mrb[0].mxu0
  %v3272 = vadd.f32 0.0, %v3271
  %3273 = vmatprep.mubr.f32.mxu0 0.0
  %3274 = vmatmul.mubr.f32.gmra.mrb[0].mxu0 %v3065
  %v3275 = vpop.f32.mrb[0].mxu0
  %v3276 = vadd.f32 0.0, %v3275
  %v3277 = vpop.f32.mrb[0].mxu0
  %v3278 = vadd.f32 0.0, %v3277
  %3279 = vmatprep.mubr.f32.mxu0 0.0
  %3280 = vmatmul.mubr.f32.gmra.mrb[0].mxu0 %v3066
  %v3281 = vpop.f32.mrb[0].mxu0
  %v3282 = vadd.f32 0.0, %v3281
  %v3283 = vpop.f32.mrb[0].mxu0
  %v3284 = vadd.f32 0.0, %v3283
  %3285 = vmatprep.mubr.f32.mxu0 0.0
  %3286 = vmatmul.mubr.f32.gmra.mrb[0].mxu0 %v3067
  %v3287 = vpop.f32.mrb[0].mxu0
  %v3288 = vadd.f32 0.0, %v3287
  %v3289 = vpop.f32.mrb[0].mxu0
  %v3290 = vadd.f32 0.0, %v3289
  %3291 = vmatprep.mubr.f32.mxu0 0.0
  %3292 = vmatmul.mubr.f32.gmra.mrb[0].mxu0 %v3068
  %v3293 = vpop.f32.mrb[0].mxu0
  %v3294 = vadd.f32 0.0, %v3293
  %v3295 = vpop.f32.mrb[0].mxu0
  %v3296 = vadd.f32 0.0, %v3295
  %3297 = vmatprep.mubr.f32.mxu0 0.0
  %3298 = vmatmul.mubr.f32.gmra.mrb[0].mxu0 %v3069
  %v3299 = vpop.f32.mrb[0].mxu0
  %v3300 = vadd.f32 0.0, %v3299
  %v3301 = vpop.f32.mrb[0].mxu0
  %v3302 = vadd.f32 0.0, %v3301
  %3303 = vmatprep.mubr.f32.mxu0 0.0
  %3304 = vmatmul.mubr.f32.gmra.mrb[0].mxu0 %v3070
  %v3305 = vpop.f32.mrb[0].mxu0
  %v3306 = vadd.f32 0.0, %v3305
  %v3307 = vpop.f32.mrb[0].mxu0
  %v3308 = vadd.f32 0.0, %v3307
  %3309 = vmatprep.mubr.f32.mxu0 0.0
  %3310 = vmatmul.mubr.f32.gmra.mrb[0].mxu0 %v3071
  %v3311 = vpop.f32.mrb[0].mxu0
  %v3312 = vadd.f32 0.0, %v3311
  %v3313 = vpop.f32.mrb[0].mxu0
  %v3314 = vadd.f32 0.0, %v3313
  %3315 = vmatprep.mubr.f32.mxu0 0.0
  %3316 = vmatmul.mubr.f32.gmra.mrb[0].mxu0 %v3072
  %v3317 = vpop.f32.mrb[0].mxu0
  %v3318 = vadd.f32 0.0, %v3317
  %v3319 = vpop.f32.mrb[0].mxu0
  %v3320 = vadd.f32 0.0, %v3319
  %3321 = vmatprep.mubr.f32.mxu0 0.0
  %3322 = vmatmul.mubr.f32.gmra.mrb[0].mxu0 %v3073
  %v3323 = vpop.f32.mrb[0].mxu0
  %v3324 = vadd.f32 0.0, %v3323
  %v3325 = vpop.f32.mrb[0].mxu0
  %v3326 = vadd.f32 0.0, %v3325
  %3327 = vmatprep.mubr.f32.mxu0 0.0
  %3328 = vmatmul.mubr.f32.gmra.mrb[0].mxu0 %v3074
  %v3329 = vpop.f32.mrb[0].mxu0
  %v3330 = vadd.f32 0.0, %v3329
  %v3331 = vpop.f32.mrb[0].mxu0
  %v3332 = vadd.f32 0.0, %v3331
  %3333 = vmatprep.mubr.f32.mxu0 0.0
  %3334 = vmatmul.mubr.f32.gmra.mrb[0].mxu0 %v3075
  %v3335 = vpop.f32.mrb[0].mxu0
  %v3336 = vadd.f32 0.0, %v3335
  %v3337 = vpop.f32.mrb[0].mxu0
  %v3338 = vadd.f32 0.0, %v3337
  %3339 = vmatprep.mubr.f32.mxu0 0.0
  %3340 = vmatmul.mubr.f32.gmra.mrb[0].mxu0 %v3076
  %v3341 = vpop.f32.mrb[0].mxu0
  %v3342 = vadd.f32 0.0, %v3341
  %v3343 = vpop.f32.mrb[0].mxu0
  %v3344 = vadd.f32 0.0, %v3343
  %3345 = vdwg.mxu0
  %3346 = vmatprep.subr.mxu0 0.0
  %3347 = vmatpush1.msra.mxu0 %v2997
  %3348 = vmatprep.subr.mxu0 0.0
  %3349 = vmatpush1.msra.mxu0 %v3000
  %3350 = vmatprep.subr.mxu0 0.0
  %3351 = vmatpush1.msra.mxu0 %v3003
  %3352 = vmatprep.subr.mxu0 0.0
  %3353 = vmatpush1.msra.mxu0 %v3006
  %3354 = vmatprep.subr.mxu0 0.0
  %3355 = vmatpush1.msra.mxu0 %v3009
  %3356 = vmatprep.subr.mxu0 0.0
  %3357 = vmatpush1.msra.mxu0 %v3012
  %3358 = vmatprep.subr.mxu0 0.0
  %3359 = vmatpush1.msra.mxu0 %v3015
  %3360 = vmatprep.subr.mxu0 0.0
  %3361 = vmatpush1.msra.mxu0 %v3018
  %3362 = vmatprep.subr.mxu0 0.0
  %3363 = vmatpush1.msra.mxu0 %v3021
  %3364 = vmatprep.subr.mxu0 0.0
  %3365 = vmatpush1.msra.mxu0 %v3024
  %3366 = vmatprep.subr.mxu0 0.0
  %3367 = vmatpush1.msra.mxu0 %v3027
  %3368 = vmatprep.subr.mxu0 0.0
  %3369 = vmatpush1.msra.mxu0 %v3030
  %3370 = vmatprep.subr.mxu0 0.0
  %3371 = vmatpush1.msra.mxu0 %v3033
  %3372 = vmatprep.subr.mxu0 0.0
  %3373 = vmatpush1.msra.mxu0 %v3036
  %3374 = vmatprep.subr.mxu0 0.0
  %3375 = vmatpush1.msra.mxu0 %v3039
  %3376 = vmatprep.subr.mxu0 0.0
  %3377 = vmatpush1.msra.mxu0 %v3042
  %3378 = vmatprep.subr.mxu0 0.0
  %3379 = vmatpush1.msra.mxu0 0.0
  %3380 = vmatprep.subr.mxu0 0.0
  %3381 = vmatpush1.msra.mxu0 0.0
  %3382 = vmatprep.subr.mxu0 0.0
  %3383 = vmatpush1.msra.mxu0 0.0
  %3384 = vmatprep.subr.mxu0 0.0
  %3385 = vmatpush1.msra.mxu0 0.0
  %3386 = vmatprep.subr.mxu0 0.0
  %3387 = vmatpush1.msra.mxu0 0.0
  %3388 = vmatprep.subr.mxu0 0.0
  %3389 = vmatpush1.msra.mxu0 0.0
  %3390 = vmatprep.subr.mxu0 0.0
  %3391 = vmatpush1.msra.mxu0 0.0
  %3392 = vmatprep.subr.mxu0 0.0
  %3393 = vmatpush1.msra.mxu0 0.0
  %3394 = vmatprep.subr.mxu0 0.0
  %3395 = vmatpush1.msra.mxu0 0.0
  %3396 = vmatprep.subr.mxu0 0.0
  %3397 = vmatpush1.msra.mxu0 0.0
  %3398 = vmatprep.subr.mxu0 0.0
  %3399 = vmatpush1.msra.mxu0 0.0
  %3400 = vmatprep.subr.mxu0 0.0
  %3401 = vmatpush1.msra.mxu0 0.0
  %3402 = vmatprep.subr.mxu0 0.0
  %3403 = vmatpush1.msra.mxu0 0.0
  %3404 = vmatprep.subr.mxu0 0.0
  %3405 = vmatpush1.msra.mxu0 0.0
  %3406 = vmatprep.subr.mxu0 0.0
  %3407 = vmatpush1.msra.mxu0 0.0
  %3408 = vmatprep.subr.mxu0 0.0
  %3409 = vmatpush1.msra.mxu0 0.0
  %3410 = vmatprep.mubr.f32.mxu0 0.0
  %3411 = vmatmul.mubr.f32.gmra.mrb[0].mxu0 %v3043
  %v3412 = vpop.f32.mrb[0].mxu0
  %v3413 = vadd.f32 0.0, %v3412
  %v3414 = vpop.f32.mrb[0].mxu0
  %3415 = vmatprep.mubr.f32.mxu0 0.0
  %3416 = vmatmul.mubr.f32.gmra.mrb[0].mxu0 %v3044
  %v3417 = vpop.f32.mrb[0].mxu0
  %v3418 = vadd.f32 0.0, %v3417
  %v3419 = vpop.f32.mrb[0].mxu0
  %3420 = vmatprep.mubr.f32.mxu0 0.0
  %3421 = vmatmul.mubr.f32.gmra.mrb[0].mxu0 %v3045
  %v3422 = vpop.f32.mrb[0].mxu0
  %v3423 = vadd.f32 0.0, %v3422
  %v3424 = vpop.f32.mrb[0].mxu0
  %3425 = vmatprep.mubr.f32.mxu0 0.0
  %3426 = vmatmul.mubr.f32.gmra.mrb[0].mxu0 %v3046
  %v3427 = vpop.f32.mrb[0].mxu0
  %v3428 = vadd.f32 0.0, %v3427
  %v3429 = vpop.f32.mrb[0].mxu0
  %3430 = vmatprep.mubr.f32.mxu0 0.0
  %3431 = vmatmul.mubr.f32.gmra.mrb[0].mxu0 %v3047
  %v3432 = vpop.f32.mrb[0].mxu0
  %v3433 = vadd.f32 0.0, %v3432
  %v3434 = vpop.f32.mrb[0].mxu0
  %3435 = vmatprep.mubr.f32.mxu0 0.0
  %3436 = vmatmul.mubr.f32.gmra.mrb[0].mxu0 %v3048
  %v3437 = vpop.f32.mrb[0].mxu0
  %v3438 = vadd.f32 0.0, %v3437
  %v3439 = vpop.f32.mrb[0].mxu0
  %3440 = vmatprep.mubr.f32.mxu0 0.0
  %3441 = vmatmul.mubr.f32.gmra.mrb[0].mxu0 %v3049
  %v3442 = vpop.f32.mrb[0].mxu0
  %v3443 = vadd.f32 0.0, %v3442
  %v3444 = vpop.f32.mrb[0].mxu0
  %3445 = vmatprep.mubr.f32.mxu0 0.0
  %3446 = vmatmul.mubr.f32.gmra.mrb[0].mxu0 %v3050
  %v3447 = vpop.f32.mrb[0].mxu0
  %v3448 = vadd.f32 0.0, %v3447
  %v3449 = vpop.f32.mrb[0].mxu0
  %3450 = vmatprep.mubr.f32.mxu0 0.0
  %3451 = vmatmul.mubr.f32.gmra.mrb[0].mxu0 %v3051
  %v3452 = vpop.f32.mrb[0].mxu0
  %v3453 = vadd.f32 0.0, %v3452
  %v3454 = vpop.f32.mrb[0].mxu0
  %3455 = vmatprep.mubr.f32.mxu0 0.0
  %3456 = vmatmul.mubr.f32.gmra.mrb[0].mxu0 %v3052
  %v3457 = vpop.f32.mrb[0].mxu0
  %v3458 = vadd.f32 0.0, %v3457
  %v3459 = vpop.f32.mrb[0].mxu0
  %3460 = vmatprep.mubr.f32.mxu0 0.0
  %3461 = vmatmul.mubr.f32.gmra.mrb[0].mxu0 %v3053
  %v3462 = vpop.f32.mrb[0].mxu0
  %v3463 = vadd.f32 0.0, %v3462
  %v3464 = vpop.f32.mrb[0].mxu0
  %3465 = vmatprep.mubr.f32.mxu0 0.0
  %3466 = vmatmul.mubr.f32.gmra.mrb[0].mxu0 %v3054
  %v3467 = vpop.f32.mrb[0].mxu0
  %v3468 = vadd.f32 0.0, %v3467
  %v3469 = vpop.f32.mrb[0].mxu0
  %3470 = vmatprep.mubr.f32.mxu0 0.0
  %3471 = vmatmul.mubr.f32.gmra.mrb[0].mxu0 %v3055
  %v3472 = vpop.f32.mrb[0].mxu0
  %v3473 = vadd.f32 0.0, %v3472
  %v3474 = vpop.f32.mrb[0].mxu0
  %3475 = vmatprep.mubr.f32.mxu0 0.0
  %3476 = vmatmul.mubr.f32.gmra.mrb[0].mxu0 %v3056
  %v3477 = vpop.f32.mrb[0].mxu0
  %v3478 = vadd.f32 0.0, %v3477
  %v3479 = vpop.f32.mrb[0].mxu0
  %3480 = vmatprep.mubr.f32.mxu0 0.0
  %3481 = vmatmul.mubr.f32.gmra.mrb[0].mxu0 %v3057
  %v3482 = vpop.f32.mrb[0].mxu0
  %v3483 = vadd.f32 0.0, %v3482
  %v3484 = vpop.f32.mrb[0].mxu0
  %3485 = vmatprep.mubr.f32.mxu0 0.0
  %3486 = vmatmul.mubr.f32.gmra.mrb[0].mxu0 %v3058
  %v3487 = vpop.f32.mrb[0].mxu0
  %v3488 = vadd.f32 0.0, %v3487
  %v3489 = vpop.f32.mrb[0].mxu0
  %3490 = vmatprep.mubr.f32.mxu0 0.0
  %3491 = vmatmul.mubr.f32.gmra.mrb[0].mxu0 %v3059
  %v3492 = vpop.f32.mrb[0].mxu0
  %v3493 = vadd.f32 0.0, %v3492
  %v3494 = vpop.f32.mrb[0].mxu0
  %3495 = vmatprep.mubr.f32.mxu0 0.0
  %3496 = vmatmul.mubr.f32.gmra.mrb[0].mxu0 %v3060
  %v3497 = vpop.f32.mrb[0].mxu0
  %v3498 = vadd.f32 0.0, %v3497
  %v3499 = vpop.f32.mrb[0].mxu0
  %3500 = vmatprep.mubr.f32.mxu0 0.0
  %3501 = vmatmul.mubr.f32.gmra.mrb[0].mxu0 %v3061
  %v3502 = vpop.f32.mrb[0].mxu0
  %v3503 = vadd.f32 0.0, %v3502
  %v3504 = vpop.f32.mrb[0].mxu0
  %3505 = vmatprep.mubr.f32.mxu0 0.0
  %3506 = vmatmul.mubr.f32.gmra.mrb[0].mxu0 %v3062
  %v3507 = vpop.f32.mrb[0].mxu0
  %v3508 = vadd.f32 0.0, %v3507
  %v3509 = vpop.f32.mrb[0].mxu0
  %3510 = vmatprep.mubr.f32.mxu0 0.0
  %3511 = vmatmul.mubr.f32.gmra.mrb[0].mxu0 %v3063
  %v3512 = vpop.f32.mrb[0].mxu0
  %v3513 = vadd.f32 0.0, %v3512
  %v3514 = vpop.f32.mrb[0].mxu0
  %3515 = vmatprep.mubr.f32.mxu0 0.0
  %3516 = vmatmul.mubr.f32.gmra.mrb[0].mxu0 %v3064
  %v3517 = vpop.f32.mrb[0].mxu0
  %v3518 = vadd.f32 0.0, %v3517
  %v3519 = vpop.f32.mrb[0].mxu0
  %3520 = vmatprep.mubr.f32.mxu0 0.0
  %3521 = vmatmul.mubr.f32.gmra.mrb[0].mxu0 %v3065
  %v3522 = vpop.f32.mrb[0].mxu0
  %v3523 = vadd.f32 0.0, %v3522
  %v3524 = vpop.f32.mrb[0].mxu0
  %3525 = vmatprep.mubr.f32.mxu0 0.0
  %3526 = vmatmul.mubr.f32.gmra.mrb[0].mxu0 %v3066
  %v3527 = vpop.f32.mrb[0].mxu0
  %v3528 = vadd.f32 0.0, %v3527
  %v3529 = vpop.f32.mrb[0].mxu0
  %3530 = vmatprep.mubr.f32.mxu0 0.0
  %3531 = vmatmul.mubr.f32.gmra.mrb[0].mxu0 %v3067
  %v3532 = vpop.f32.mrb[0].mxu0
  %v3533 = vadd.f32 0.0, %v3532
  %v3534 = vpop.f32.mrb[0].mxu0
  %3535 = vmatprep.mubr.f32.mxu0 0.0
  %3536 = vmatmul.mubr.f32.gmra.mrb[0].mxu0 %v3068
  %v3537 = vpop.f32.mrb[0].mxu0
  %v3538 = vadd.f32 0.0, %v3537
  %v3539 = vpop.f32.mrb[0].mxu0
  %3540 = vmatprep.mubr.f32.mxu0 0.0
  %3541 = vmatmul.mubr.f32.gmra.mrb[0].mxu0 %v3069
  %v3542 = vpop.f32.mrb[0].mxu0
  %v3543 = vadd.f32 0.0, %v3542
  %v3544 = vpop.f32.mrb[0].mxu0
  %3545 = vmatprep.mubr.f32.mxu0 0.0
  %3546 = vmatmul.mubr.f32.gmra.mrb[0].mxu0 %v3070
  %v3547 = vpop.f32.mrb[0].mxu0
  %v3548 = vadd.f32 0.0, %v3547
  %v3549 = vpop.f32.mrb[0].mxu0
  %3550 = vmatprep.mubr.f32.mxu0 0.0
  %3551 = vmatmul.mubr.f32.gmra.mrb[0].mxu0 %v3071
  %v3552 = vpop.f32.mrb[0].mxu0
  %v3553 = vadd.f32 0.0, %v3552
  %v3554 = vpop.f32.mrb[0].mxu0
  %3555 = vmatprep.mubr.f32.mxu0 0.0
  %3556 = vmatmul.mubr.f32.gmra.mrb[0].mxu0 %v3072
  %v3557 = vpop.f32.mrb[0].mxu0
  %v3558 = vadd.f32 0.0, %v3557
  %v3559 = vpop.f32.mrb[0].mxu0
  %3560 = vmatprep.mubr.f32.mxu0 0.0
  %3561 = vmatmul.mubr.f32.gmra.mrb[0].mxu0 %v3073
  %v3562 = vpop.f32.mrb[0].mxu0
  %v3563 = vadd.f32 0.0, %v3562
  %v3564 = vpop.f32.mrb[0].mxu0
  %3565 = vmatprep.mubr.f32.mxu0 0.0
  %3566 = vmatmul.mubr.f32.gmra.mrb[0].mxu0 %v3074
  %v3567 = vpop.f32.mrb[0].mxu0
  %v3568 = vadd.f32 0.0, %v3567
  %v3569 = vpop.f32.mrb[0].mxu0
  %3570 = vmatprep.mubr.f32.mxu0 0.0
  %3571 = vmatmul.mubr.f32.gmra.mrb[0].mxu0 %v3075
  %v3572 = vpop.f32.mrb[0].mxu0
  %v3573 = vadd.f32 0.0, %v3572
  %v3574 = vpop.f32.mrb[0].mxu0
  %3575 = vmatprep.mubr.f32.mxu0 0.0
  %3576 = vmatmul.mubr.f32.gmra.mrb[0].mxu0 %v3076
  %v3577 = vpop.f32.mrb[0].mxu0
  %v3578 = vadd.f32 0.0, %v3577
  %v3579 = vpop.f32.mrb[0].mxu0
  %3580 = vdwg.mxu0
  %v3581 = vmax.f32 %v3144, %v3246
  %v3582 = vmax.f32 %v3146, %v3248
  %v3583 = vmax.f32 %v3413, %v3498
  %v3584 = vmax.f32 %v3150, %v3252
  %v3585 = vmax.f32 %v3152, %v3254
  %v3586 = vmax.f32 %v3418, %v3503
  %v3587 = vmax.f32 %v3156, %v3258
  %v3588 = vmax.f32 %v3158, %v3260
  %v3589 = vmax.f32 %v3423, %v3508
  %v3590 = vmax.f32 %v3162, %v3264
  %v3591 = vmax.f32 %v3164, %v3266
  %v3592 = vmax.f32 %v3428, %v3513
  %v3593 = vmax.f32 %v3168, %v3270
  %v3594 = vmax.f32 %v3170, %v3272
  %v3595 = vmax.f32 %v3433, %v3518
  %v3596 = vmax.f32 %v3174, %v3276
  %v3597 = vmax.f32 %v3176, %v3278
  %v3598 = vmax.f32 %v3438, %v3523
  %v3599 = vmax.f32 %v3180, %v3282
  %v3600 = vmax.f32 %v3182, %v3284
  %v3601 = vmax.f32 %v3443, %v3528
  %v3602 = vmax.f32 %v3186, %v3288
  %v3603 = vmax.f32 %v3188, %v3290
  %v3604 = vmax.f32 %v3448, %v3533
  %v3605 = vmax.f32 %v3192, %v3294
  %v3606 = vmax.f32 %v3194, %v3296
  %v3607 = vmax.f32 %v3453, %v3538
  %v3608 = vmax.f32 %v3198, %v3300
  %v3609 = vmax.f32 %v3200, %v3302
  %v3610 = vmax.f32 %v3458, %v3543
  %v3611 = vmax.f32 %v3204, %v3306
  %v3612 = vmax.f32 %v3206, %v3308
  %v3613 = vmax.f32 %v3463, %v3548
  %v3614 = vmax.f32 %v3210, %v3312
  %v3615 = vmax.f32 %v3212, %v3314
  %v3616 = vmax.f32 %v3468, %v3553
  %v3617 = vmax.f32 %v3216, %v3318
  %v3618 = vmax.f32 %v3218, %v3320
  %v3619 = vmax.f32 %v3473, %v3558
  %v3620 = vmax.f32 %v3222, %v3324
  %v3621 = vmax.f32 %v3224, %v3326
  %v3622 = vmax.f32 %v3478, %v3563
  %v3623 = vmax.f32 %v3228, %v3330
  %v3624 = vmax.f32 %v3230, %v3332
  %v3625 = vmax.f32 %v3483, %v3568
  %v3626 = vmax.f32 %v3234, %v3336
  %v3627 = vmax.f32 %v3236, %v3338
  %v3628 = vmax.f32 %v3488, %v3573
  %v3629 = vmax.f32 %v3240, %v3342
  %v3630 = vmax.f32 %v3242, %v3344
  %v3631 = vmax.f32 %v3493, %v3578
  %3666 = vrot.lane.b32.xlu0 %v3582, 112
  %v3667 = vpop.permute.xlu0 %3666
  %3668 = vrot.lane.b32.xlu0 %v3583, 112
  %v3669 = vpop.permute.xlu0 %3668
  %3670 = vrot.lane.b32.xlu0 %v3585, 112
  %v3671 = vpop.permute.xlu0 %3670
  %3672 = vrot.lane.b32.xlu0 %v3586, 112
  %v3673 = vpop.permute.xlu0 %3672
  %3674 = vrot.lane.b32.xlu0 %v3588, 112
  %v3675 = vpop.permute.xlu0 %3674
  %3676 = vrot.lane.b32.xlu0 %v3589, 112
  %v3677 = vpop.permute.xlu0 %3676
  %3678 = vrot.lane.b32.xlu0 %v3591, 112
  %v3679 = vpop.permute.xlu0 %3678
  %3680 = vrot.lane.b32.xlu0 %v3592, 112
  %v3681 = vpop.permute.xlu0 %3680
  %3682 = vrot.lane.b32.xlu0 %v3594, 112
  %v3683 = vpop.permute.xlu0 %3682
  %3684 = vrot.lane.b32.xlu0 %v3595, 112
  %v3685 = vpop.permute.xlu0 %3684
  %3686 = vrot.lane.b32.xlu0 %v3597, 112
  %v3687 = vpop.permute.xlu0 %3686
  %3688 = vrot.lane.b32.xlu0 %v3598, 112
  %v3689 = vpop.permute.xlu0 %3688
  %3690 = vrot.lane.b32.xlu0 %v3600, 112
  %v3691 = vpop.permute.xlu0 %3690
  %3692 = vrot.lane.b32.xlu0 %v3601, 112
  %v3693 = vpop.permute.xlu0 %3692
  %3694 = vrot.lane.b32.xlu0 %v3603, 112
  %v3695 = vpop.permute.xlu0 %3694
  %3696 = vrot.lane.b32.xlu0 %v3604, 112
  %v3697 = vpop.permute.xlu0 %3696
  %3698 = vrot.lane.b32.xlu0 %v3606, 112
  %v3699 = vpop.permute.xlu0 %3698
  %3700 = vrot.lane.b32.xlu0 %v3607, 112
  %v3701 = vpop.permute.xlu0 %3700
  %3702 = vrot.lane.b32.xlu0 %v3609, 112
  %v3703 = vpop.permute.xlu0 %3702
  %3704 = vrot.lane.b32.xlu0 %v3610, 112
  %v3705 = vpop.permute.xlu0 %3704
  %3706 = vrot.lane.b32.xlu0 %v3612, 112
  %v3707 = vpop.permute.xlu0 %3706
  %3708 = vrot.lane.b32.xlu0 %v3613, 112
  %v3709 = vpop.permute.xlu0 %3708
  %3710 = vrot.lane.b32.xlu0 %v3615, 112
  %v3711 = vpop.permute.xlu0 %3710
  %3712 = vrot.lane.b32.xlu0 %v3616, 112
  %v3713 = vpop.permute.xlu0 %3712
  %3714 = vrot.lane.b32.xlu0 %v3618, 112
  %v3715 = vpop.permute.xlu0 %3714
  %3716 = vrot.lane.b32.xlu0 %v3619, 112
  %v3717 = vpop.permute.xlu0 %3716
  %3718 = vrot.lane.b32.xlu0 %v3621, 112
  %v3719 = vpop.permute.xlu0 %3718
  %3720 = vrot.lane.b32.xlu0 %v3622, 112
  %v3721 = vpop.permute.xlu0 %3720
  %3722 = vrot.lane.b32.xlu0 %v3624, 112
  %v3723 = vpop.permute.xlu0 %3722
  %3724 = vrot.lane.b32.xlu0 %v3625, 112
  %v3725 = vpop.permute.xlu0 %3724
  %3726 = vrot.lane.b32.xlu0 %v3627, 112
  %v3727 = vpop.permute.xlu0 %3726
  %3728 = vrot.lane.b32.xlu0 %v3628, 112
  %v3729 = vpop.permute.xlu0 %3728
  %3730 = vrot.lane.b32.xlu0 %v3630, 112
  %v3731 = vpop.permute.xlu0 %3730
  %3732 = vrot.lane.b32.xlu0 %v3631, 112
  %v3733 = vpop.permute.xlu0 %3732
  %vm3734 = vcmask 916480
  %v3735 = vsel %vm3734, %v3667, %v3669
  %v3736 = vsel %vm3734, %v3671, %v3673
  %v3737 = vsel %vm3734, %v3675, %v3677
  %v3738 = vsel %vm3734, %v3679, %v3681
  %v3739 = vsel %vm3734, %v3683, %v3685
  %v3740 = vsel %vm3734, %v3687, %v3689
  %v3741 = vsel %vm3734, %v3691, %v3693
  %v3742 = vsel %vm3734, %v3695, %v3697
  %v3743 = vsel %vm3734, %v3699, %v3701
  %v3744 = vsel %vm3734, %v3703, %v3705
  %v3745 = vsel %vm3734, %v3707, %v3709
  %v3746 = vsel %vm3734, %v3711, %v3713
  %v3747 = vsel %vm3734, %v3715, %v3717
  %v3748 = vsel %vm3734, %v3719, %v3721
  %v3749 = vsel %vm3734, %v3723, %v3725
  %v3750 = vsel %vm3734, %v3727, %v3729
  %v3751 = vsel %vm3734, %v3731, %v3733
  %v3786 = vmax.f32 %v3581, %v3735
  %v3787 = vmax.f32 %v3582, %v3669
  %v3788 = vmax.f32 %v3584, %v3736
  %v3789 = vmax.f32 %v3585, %v3673
  %v3790 = vmax.f32 %v3587, %v3737
  %v3791 = vmax.f32 %v3588, %v3677
  %v3792 = vmax.f32 %v3590, %v3738
  %v3793 = vmax.f32 %v3591, %v3681
  %v3794 = vmax.f32 %v3593, %v3739
  %v3795 = vmax.f32 %v3594, %v3685
  %v3796 = vmax.f32 %v3596, %v3740
  %v3797 = vmax.f32 %v3597, %v3689
  %v3798 = vmax.f32 %v3599, %v3741
  %v3799 = vmax.f32 %v3600, %v3693
  %v3800 = vmax.f32 %v3602, %v3742
  %v3801 = vmax.f32 %v3603, %v3697
  %v3802 = vmax.f32 %v3605, %v3743
  %v3803 = vmax.f32 %v3606, %v3701
  %v3804 = vmax.f32 %v3608, %v3744
  %v3805 = vmax.f32 %v3609, %v3705
  %v3806 = vmax.f32 %v3611, %v3745
  %v3807 = vmax.f32 %v3612, %v3709
  %v3808 = vmax.f32 %v3614, %v3746
  %v3809 = vmax.f32 %v3615, %v3713
  %v3810 = vmax.f32 %v3617, %v3747
  %v3811 = vmax.f32 %v3618, %v3717
  %v3812 = vmax.f32 %v3620, %v3748
  %v3813 = vmax.f32 %v3621, %v3721
  %v3814 = vmax.f32 %v3623, %v3749
  %v3815 = vmax.f32 %v3624, %v3725
  %v3816 = vmax.f32 %v3626, %v3750
  %v3817 = vmax.f32 %v3627, %v3729
  %v3818 = vmax.f32 %v3629, %v3751
  %v3819 = vmax.f32 %v3630, %v3733
  %v3820 = vld [vmem:[%s8] sm:$0xff]
  %v3821 = vld [vmem:[%s8 + $0x8] sm:$0xff]
  %v3822 = vld [vmem:[%s8 + $0x10] sm:$0xff]
  %v3823 = vld [vmem:[%s8 + $0x18] sm:$0xff]
  %v3824 = vld [vmem:[%s8 + $0x20] sm:$0xff]
  %v3825 = vld [vmem:[%s8 + $0x28] sm:$0xff]
  %v3826 = vld [vmem:[%s8 + $0x30] sm:$0xff]
  %v3827 = vld [vmem:[%s8 + $0x38] sm:$0xff]
  %v3828 = vld [vmem:[%s8 + $0x40] sm:$0xff]
  %v3829 = vld [vmem:[%s8 + $0x48] sm:$0xff]
  %v3830 = vld [vmem:[%s8 + $0x50] sm:$0xff]
  %v3831 = vld [vmem:[%s8 + $0x58] sm:$0xff]
  %v3832 = vld [vmem:[%s8 + $0x60] sm:$0xff]
  %v3833 = vld [vmem:[%s8 + $0x68] sm:$0xff]
  %v3834 = vld [vmem:[%s8 + $0x70] sm:$0xff]
  %v3835 = vld [vmem:[%s8 + $0x78] sm:$0xff]
  %v3836 = vld [vmem:[%s8 + $0x80] sm:$0xff]
  %v3837 = vld [vmem:[%s6] sm:$0x3]
  %v3839 = vlaneseq
  %v3840 = vshrl.u32 %v3839, 7
  %v3841 = vsub.s32 0, %v3840
  %v3842 = vrot.slane %v3837, %v3841
  %v3843 = vlaneseq
  %v3844 = vshrl.u32 %v3843, 7
  %v3845 = vsub.s32 1, %v3844
  %v3846 = vrot.slane %v3837, %v3845
  %v3849 = vadd.f32 %v3786, %v3842
  %v3850 = vadd.f32 %v3787, %v3846
  %v3851 = vadd.f32 %v3788, %v3842
  %v3852 = vadd.f32 %v3789, %v3846
  %v3853 = vadd.f32 %v3790, %v3842
  %v3854 = vadd.f32 %v3791, %v3846
  %v3855 = vadd.f32 %v3792, %v3842
  %v3856 = vadd.f32 %v3793, %v3846
  %v3857 = vadd.f32 %v3794, %v3842
  %v3858 = vadd.f32 %v3795, %v3846
  %v3859 = vadd.f32 %v3796, %v3842
  %v3860 = vadd.f32 %v3797, %v3846
  %v3861 = vadd.f32 %v3798, %v3842
  %v3862 = vadd.f32 %v3799, %v3846
  %v3863 = vadd.f32 %v3800, %v3842
  %v3864 = vadd.f32 %v3801, %v3846
  %v3865 = vadd.f32 %v3802, %v3842
  %v3866 = vadd.f32 %v3803, %v3846
  %v3867 = vadd.f32 %v3804, %v3842
  %v3868 = vadd.f32 %v3805, %v3846
  %v3869 = vadd.f32 %v3806, %v3842
  %v3870 = vadd.f32 %v3807, %v3846
  %v3871 = vadd.f32 %v3808, %v3842
  %v3872 = vadd.f32 %v3809, %v3846
  %v3873 = vadd.f32 %v3810, %v3842
  %v3874 = vadd.f32 %v3811, %v3846
  %v3875 = vadd.f32 %v3812, %v3842
  %v3876 = vadd.f32 %v3813, %v3846
  %v3877 = vadd.f32 %v3814, %v3842
  %v3878 = vadd.f32 %v3815, %v3846
  %v3879 = vadd.f32 %v3816, %v3842
  %v3880 = vadd.f32 %v3817, %v3846
  %v3881 = vadd.f32 %v3818, %v3842
  %v3882 = vadd.f32 %v3819, %v3846
  %v3883 = vmax.f32 %v3849, 0.0
  %v3884 = vmax.f32 %v3850, 0.0
  %v3885 = vmax.f32 %v3851, 0.0
  %v3886 = vmax.f32 %v3852, 0.0
  %v3887 = vmax.f32 %v3853, 0.0
  %v3888 = vmax.f32 %v3854, 0.0
  %v3889 = vmax.f32 %v3855, 0.0
  %v3890 = vmax.f32 %v3856, 0.0
  %v3891 = vmax.f32 %v3857, 0.0
  %v3892 = vmax.f32 %v3858, 0.0
  %v3893 = vmax.f32 %v3859, 0.0
  %v3894 = vmax.f32 %v3860, 0.0
  %v3895 = vmax.f32 %v3861, 0.0
  %v3896 = vmax.f32 %v3862, 0.0
  %v3897 = vmax.f32 %v3863, 0.0
  %v3898 = vmax.f32 %v3864, 0.0
  %v3899 = vmax.f32 %v3865, 0.0
  %v3900 = vmax.f32 %v3866, 0.0
  %v3901 = vmax.f32 %v3867, 0.0
  %v3902 = vmax.f32 %v3868, 0.0
  %v3903 = vmax.f32 %v3869, 0.0
  %v3904 = vmax.f32 %v3870, 0.0
  %v3905 = vmax.f32 %v3871, 0.0
  %v3906 = vmax.f32 %v3872, 0.0
  %v3907 = vmax.f32 %v3873, 0.0
  %v3908 = vmax.f32 %v3874, 0.0
  %v3909 = vmax.f32 %v3875, 0.0
  %v3910 = vmax.f32 %v3876, 0.0
  %v3911 = vmax.f32 %v3877, 0.0
  %v3912 = vmax.f32 %v3878, 0.0
  %v3913 = vmax.f32 %v3879, 0.0
  %v3914 = vmax.f32 %v3880, 0.0
  %v3915 = vmax.f32 %v3881, 0.0
  %v3916 = vmax.f32 %v3882, 0.0
  %3918 = vset.pattern.permute.xlu0 0
  %3919 = vperm.xlu0 %3918, %v3820
  %v3920 = vpop.permute.xlu0 %3919
  %3923 = vset.pattern.permute.xlu0 0
  %3924 = vperm.xlu0 %3923, %v3821
  %v3925 = vpop.permute.xlu0 %3924
  %3928 = vset.pattern.permute.xlu0 0
  %3929 = vperm.xlu0 %3928, %v3822
  %v3930 = vpop.permute.xlu0 %3929
  %3933 = vset.pattern.permute.xlu0 0
  %3934 = vperm.xlu0 %3933, %v3823
  %v3935 = vpop.permute.xlu0 %3934
  %3938 = vset.pattern.permute.xlu0 0
  %3939 = vperm.xlu0 %3938, %v3824
  %v3940 = vpop.permute.xlu0 %3939
  %3943 = vset.pattern.permute.xlu0 0
  %3944 = vperm.xlu0 %3943, %v3825
  %v3945 = vpop.permute.xlu0 %3944
  %3948 = vset.pattern.permute.xlu0 0
  %3949 = vperm.xlu0 %3948, %v3826
  %v3950 = vpop.permute.xlu0 %3949
  %3953 = vset.pattern.permute.xlu0 0
  %3954 = vperm.xlu0 %3953, %v3827
  %v3955 = vpop.permute.xlu0 %3954
  %3958 = vset.pattern.permute.xlu0 0
  %3959 = vperm.xlu0 %3958, %v3828
  %v3960 = vpop.permute.xlu0 %3959
  %3963 = vset.pattern.permute.xlu0 0
  %3964 = vperm.xlu0 %3963, %v3829
  %v3965 = vpop.permute.xlu0 %3964
  %3968 = vset.pattern.permute.xlu0 0
  %3969 = vperm.xlu0 %3968, %v3830
  %v3970 = vpop.permute.xlu0 %3969
  %3973 = vset.pattern.permute.xlu0 0
  %3974 = vperm.xlu0 %3973, %v3831
  %v3975 = vpop.permute.xlu0 %3974
  %3978 = vset.pattern.permute.xlu0 0
  %3979 = vperm.xlu0 %3978, %v3832
  %v3980 = vpop.permute.xlu0 %3979
  %3983 = vset.pattern.permute.xlu0 0
  %3984 = vperm.xlu0 %3983, %v3833
  %v3985 = vpop.permute.xlu0 %3984
  %3988 = vset.pattern.permute.xlu0 0
  %3989 = vperm.xlu0 %3988, %v3834
  %v3990 = vpop.permute.xlu0 %3989
  %3993 = vset.pattern.permute.xlu0 0
  %3994 = vperm.xlu0 %3993, %v3835
  %v3995 = vpop.permute.xlu0 %3994
  %3998 = vset.pattern.permute.xlu0 0
  %3999 = vperm.xlu0 %3998, %v3836
  %v4000 = vpop.permute.xlu0 %3999
  %v4002 = vmul.f32 %v3920, %v3883
  %v4003 = vmul.f32 %v3920, %v3884
  %v4004 = vmul.f32 %v3925, %v3885
  %v4005 = vmul.f32 %v3925, %v3886
  %v4006 = vmul.f32 %v3930, %v3887
  %v4007 = vmul.f32 %v3930, %v3888
  %v4008 = vmul.f32 %v3935, %v3889
  %v4009 = vmul.f32 %v3935, %v3890
  %v4010 = vmul.f32 %v3940, %v3891
  %v4011 = vmul.f32 %v3940, %v3892
  %v4012 = vmul.f32 %v3945, %v3893
  %v4013 = vmul.f32 %v3945, %v3894
  %v4014 = vmul.f32 %v3950, %v3895
  %v4015 = vmul.f32 %v3950, %v3896
  %v4016 = vmul.f32 %v3955, %v3897
  %v4017 = vmul.f32 %v3955, %v3898
  %v4018 = vmul.f32 %v3960, %v3899
  %v4019 = vmul.f32 %v3960, %v3900
  %v4020 = vmul.f32 %v3965, %v3901
  %v4021 = vmul.f32 %v3965, %v3902
  %v4022 = vmul.f32 %v3970, %v3903
  %v4023 = vmul.f32 %v3970, %v3904
  %v4024 = vmul.f32 %v3975, %v3905
  %v4025 = vmul.f32 %v3975, %v3906
  %v4026 = vmul.f32 %v3980, %v3907
  %v4027 = vmul.f32 %v3980, %v3908
  %v4028 = vmul.f32 %v3985, %v3909
  %v4029 = vmul.f32 %v3985, %v3910
  %v4030 = vmul.f32 %v3990, %v3911
  %v4031 = vmul.f32 %v3990, %v3912
  %v4032 = vmul.f32 %v3995, %v3913
  %v4033 = vmul.f32 %v3995, %v3914
  %v4034 = vmul.f32 %v4000, %v3915
  %v4035 = vmul.f32 %v4000, %v3916
  %4036 = vst [vmem:[#allocation3] sm:$0xff] %v4002
  %vm4037 = vcmask 130048
  %4038 = vst.msk [vmem:[#allocation3 + $0x8] sm:$0xff] %vm4037, %v4003
  %4039 = vst [vmem:[#allocation3 + $0x10] sm:$0xff] %v4004
  %4040 = vst.msk [vmem:[#allocation3 + $0x18] sm:$0xff] %vm4037, %v4005
  %4041 = vst [vmem:[#allocation3 + $0x20] sm:$0xff] %v4006
  %4042 = vst.msk [vmem:[#allocation3 + $0x28] sm:$0xff] %vm4037, %v4007
  %4043 = vst [vmem:[#allocation3 + $0x30] sm:$0xff] %v4008
  %4044 = vst.msk [vmem:[#allocation3 + $0x38] sm:$0xff] %vm4037, %v4009
  %4045 = vst [vmem:[#allocation3 + $0x40] sm:$0xff] %v4010
  %4046 = vst.msk [vmem:[#allocation3 + $0x48] sm:$0xff] %vm4037, %v4011
  %4047 = vst [vmem:[#allocation3 + $0x50] sm:$0xff] %v4012
  %4048 = vst.msk [vmem:[#allocation3 + $0x58] sm:$0xff] %vm4037, %v4013
  %4049 = vst [vmem:[#allocation3 + $0x60] sm:$0xff] %v4014
  %4050 = vst.msk [vmem:[#allocation3 + $0x68] sm:$0xff] %vm4037, %v4015
  %4051 = vst [vmem:[#allocation3 + $0x70] sm:$0xff] %v4016
  %4052 = vst.msk [vmem:[#allocation3 + $0x78] sm:$0xff] %vm4037, %v4017
  %4053 = vst [vmem:[#allocation3 + $0x80] sm:$0xff] %v4018
  %4054 = vst.msk [vmem:[#allocation3 + $0x88] sm:$0xff] %vm4037, %v4019
  %4055 = vst [vmem:[#allocation3 + $0x90] sm:$0xff] %v4020
  %4056 = vst.msk [vmem:[#allocation3 + $0x98] sm:$0xff] %vm4037, %v4021
  %4057 = vst [vmem:[#allocation3 + $0xa0] sm:$0xff] %v4022
  %4058 = vst.msk [vmem:[#allocation3 + $0xa8] sm:$0xff] %vm4037, %v4023
  %4059 = vst [vmem:[#allocation3 + $0xb0] sm:$0xff] %v4024
  %4060 = vst.msk [vmem:[#allocation3 + $0xb8] sm:$0xff] %vm4037, %v4025
  %4061 = vst [vmem:[#allocation3 + $0xc0] sm:$0xff] %v4026
  %4062 = vst.msk [vmem:[#allocation3 + $0xc8] sm:$0xff] %vm4037, %v4027
  %4063 = vst [vmem:[#allocation3 + $0xd0] sm:$0xff] %v4028
  %4064 = vst.msk [vmem:[#allocation3 + $0xd8] sm:$0xff] %vm4037, %v4029
  %4065 = vst [vmem:[#allocation3 + $0xe0] sm:$0xff] %v4030
  %4066 = vst.msk [vmem:[#allocation3 + $0xe8] sm:$0xff] %vm4037, %v4031
  %4067 = vst [vmem:[#allocation3 + $0xf0] sm:$0xff] %v4032
  %4068 = vst.msk [vmem:[#allocation3 + $0xf8] sm:$0xff] %vm4037, %v4033
  %4069 = vst [vmem:[#allocation3 + $0x100] sm:$0xff] %v4034
  %4070 = vst.msk [vmem:[#allocation3 + $0x108] sm:$0xff] %vm4037, %v4035
  %v4071 = vld [vmem:[#allocation3] sm:$0xff]
  %v4072 = vld [vmem:[#allocation3 + $0x8] sm:$0xff]
  %v4073 = vld [vmem:[#allocation3 + $0x10] sm:$0xff]
  %v4074 = vld [vmem:[#allocation3 + $0x18] sm:$0xff]
  %v4075 = vld [vmem:[#allocation3 + $0x20] sm:$0xff]
  %v4076 = vld [vmem:[#allocation3 + $0x28] sm:$0xff]
  %v4077 = vld [vmem:[#allocation3 + $0x30] sm:$0xff]
  %v4078 = vld [vmem:[#allocation3 + $0x38] sm:$0xff]
  %v4079 = vld [vmem:[#allocation3 + $0x40] sm:$0xff]
  %v4080 = vld [vmem:[#allocation3 + $0x48] sm:$0xff]
  %v4081 = vld [vmem:[#allocation3 + $0x50] sm:$0xff]
  %v4082 = vld [vmem:[#allocation3 + $0x58] sm:$0xff]
  %v4083 = vld [vmem:[#allocation3 + $0x60] sm:$0xff]
  %v4084 = vld [vmem:[#allocation3 + $0x68] sm:$0xff]
  %v4085 = vld [vmem:[#allocation3 + $0x70] sm:$0xff]
  %v4086 = vld [vmem:[#allocation3 + $0x78] sm:$0xff]
  %v4087 = vld [vmem:[#allocation3 + $0x80] sm:$0xff]
  %v4088 = vld [vmem:[#allocation3 + $0x88] sm:$0xff]
  %v4089 = vld [vmem:[#allocation3 + $0x90] sm:$0xff]
  %v4090 = vld [vmem:[#allocation3 + $0x98] sm:$0xff]
  %v4091 = vld [vmem:[#allocation3 + $0xa0] sm:$0xff]
  %v4092 = vld [vmem:[#allocation3 + $0xa8] sm:$0xff]
  %v4093 = vld [vmem:[#allocation3 + $0xb0] sm:$0xff]
  %v4094 = vld [vmem:[#allocation3 + $0xb8] sm:$0xff]
  %v4095 = vld [vmem:[#allocation3 + $0xc0] sm:$0xff]
  %v4096 = vld [vmem:[#allocation3 + $0xc8] sm:$0xff]
  %v4097 = vld [vmem:[#allocation3 + $0xd0] sm:$0xff]
  %v4098 = vld [vmem:[#allocation3 + $0xd8] sm:$0xff]
  %v4099 = vld [vmem:[#allocation3 + $0xe0] sm:$0xff]
  %v4100 = vld [vmem:[#allocation3 + $0xe8] sm:$0xff]
  %v4101 = vld [vmem:[#allocation3 + $0xf0] sm:$0xff]
  %v4102 = vld [vmem:[#allocation3 + $0xf8] sm:$0xff]
  %v4103 = vld [vmem:[%s9] sm:$0xff]
  %v4104 = vld [vmem:[%s9 + $0x8] sm:$0xff]
  %v4105 = vld [vmem:[%s9 + $0x10] sm:$0xff]
  %v4106 = vld [vmem:[%s9 + $0x18] sm:$0xff]
  %v4107 = vld [vmem:[%s9 + $0x20] sm:$0xff]
  %v4108 = vld [vmem:[%s9 + $0x28] sm:$0xff]
  %v4109 = vld [vmem:[%s9 + $0x30] sm:$0xff]
  %v4110 = vld [vmem:[%s9 + $0x38] sm:$0xff]
  %v4111 = vld [vmem:[%s9 + $0x40] sm:$0xff]
  %v4112 = vld [vmem:[%s9 + $0x48] sm:$0xff]
  %v4113 = vld [vmem:[%s9 + $0x50] sm:$0xff]
  %v4114 = vld [vmem:[%s9 + $0x58] sm:$0xff]
  %v4115 = vld [vmem:[%s9 + $0x60] sm:$0xff]
  %v4116 = vld [vmem:[%s9 + $0x68] sm:$0xff]
  %v4117 = vld [vmem:[%s9 + $0x70] sm:$0xff]
  %v4118 = vld [vmem:[%s9 + $0x78] sm:$0xff]
  %v4119 = vld [vmem:[%s9 + $0x80] sm:$0xff]
  %v4120 = vld [vmem:[%s9 + $0x88] sm:$0xff]
  %v4121 = vld [vmem:[%s9 + $0x90] sm:$0xff]
  %v4122 = vld [vmem:[%s9 + $0x98] sm:$0xff]
  %v4123 = vld [vmem:[%s9 + $0xa0] sm:$0xff]
  %v4124 = vld [vmem:[%s9 + $0xa8] sm:$0xff]
  %v4125 = vld [vmem:[%s9 + $0xb0] sm:$0xff]
  %v4126 = vld [vmem:[%s9 + $0xb8] sm:$0xff]
  %v4127 = vld [vmem:[%s9 + $0xc0] sm:$0xff]
  %v4128 = vld [vmem:[%s9 + $0xc8] sm:$0xff]
  %v4129 = vld [vmem:[%s9 + $0xd0] sm:$0xff]
  %v4130 = vld [vmem:[%s9 + $0xd8] sm:$0xff]
  %v4131 = vld [vmem:[%s9 + $0xe0] sm:$0xff]
  %v4132 = vld [vmem:[%s9 + $0xe8] sm:$0xff]
  %v4133 = vld [vmem:[%s9 + $0xf0] sm:$0xff]
  %v4134 = vld [vmem:[%s9 + $0xf8] sm:$0xff]
  %v4135 = vld [vmem:[%s9 + $0x100] sm:$0xff]
  %v4136 = vld [vmem:[%s9 + $0x108] sm:$0xff]
  %v4137 = vld [vmem:[%s9 + $0x110] sm:$0xff]
  %v4138 = vld [vmem:[%s9 + $0x118] sm:$0xff]
  %v4139 = vld [vmem:[#allocation3] sm:$0xfe]
  %v4140 = vld [vmem:[#allocation3 + $0x8] sm:$0xfe]
  %v4141 = vld [vmem:[#allocation3 + $0x100] sm:$0x1]
  %v4142 = vld [vmem:[#allocation3 + $0x108] sm:$0x1]
  %s4143 = scalar_lea.vmem %s9, 288
  %v4144 = vld [vmem:[%s4143] sm:$0xff]
  %v4145 = vld [vmem:[%s4143 + $0x8] sm:$0xff]
  %v4146 = vld [vmem:[%s4143 + $0x10] sm:$0xff]
  %v4147 = vld [vmem:[%s4143 + $0x18] sm:$0xff]
  %v4148 = vld [vmem:[%s4143 + $0x20] sm:$0xff]
  %v4149 = vld [vmem:[%s4143 + $0x28] sm:$0xff]
  %v4150 = vld [vmem:[%s4143 + $0x30] sm:$0xff]
  %v4151 = vld [vmem:[%s4143 + $0x38] sm:$0xff]
  %v4152 = vld [vmem:[%s4143 + $0x40] sm:$0xff]
  %v4153 = vld [vmem:[%s4143 + $0x48] sm:$0xff]
  %v4154 = vld [vmem:[%s4143 + $0x50] sm:$0xff]
  %v4155 = vld [vmem:[%s4143 + $0x58] sm:$0xff]
  %v4156 = vld [vmem:[%s4143 + $0x60] sm:$0xff]
  %v4157 = vld [vmem:[%s4143 + $0x68] sm:$0xff]
  %v4158 = vld [vmem:[%s4143 + $0x70] sm:$0xff]
  %v4159 = vld [vmem:[%s4143 + $0x78] sm:$0xff]
  %v4160 = vld [vmem:[%s4143 + $0x80] sm:$0xff]
  %v4161 = vld [vmem:[%s4143 + $0x88] sm:$0xff]
  %v4162 = vld [vmem:[%s4143 + $0x90] sm:$0xff]
  %v4163 = vld [vmem:[%s4143 + $0x98] sm:$0xff]
  %v4164 = vld [vmem:[%s4143 + $0xa0] sm:$0xff]
  %v4165 = vld [vmem:[%s4143 + $0xa8] sm:$0xff]
  %v4166 = vld [vmem:[%s4143 + $0xb0] sm:$0xff]
  %v4167 = vld [vmem:[%s4143 + $0xb8] sm:$0xff]
  %v4168 = vld [vmem:[%s4143 + $0xc0] sm:$0xff]
  %v4169 = vld [vmem:[%s4143 + $0xc8] sm:$0xff]
  %v4170 = vld [vmem:[%s4143 + $0xd0] sm:$0xff]
  %v4171 = vld [vmem:[%s4143 + $0xd8] sm:$0xff]
  %v4172 = vld [vmem:[%s4143 + $0xe0] sm:$0xff]
  %v4173 = vld [vmem:[%s4143 + $0xe8] sm:$0xff]
  %v4174 = vld [vmem:[%s4143 + $0xf0] sm:$0xff]
  %v4175 = vld [vmem:[%s4143 + $0xf8] sm:$0xff]
  %v4176 = vld [vmem:[%s4143 + $0x100] sm:$0xff]
  %v4177 = vld [vmem:[%s4143 + $0x108] sm:$0xff]
  %v4178 = vld [vmem:[%s4143 + $0x110] sm:$0xff]
  %v4179 = vld [vmem:[%s4143 + $0x118] sm:$0xff]
  %vm4214 = vcmask 1046528
  %v4215 = vrot.slane %v4139, 1
  %v4216 = vrot.slane %v4073, 1
  %v4217 = vsel %vm4214, %v4215, %v4216
  %v4218 = vrot.slane %v4140, 1
  %v4219 = vrot.slane %v4074, 1
  %v4220 = vsel %vm4214, %v4218, %v4219
  %v4221 = vrot.slane %v4075, 1
  %v4222 = vsel %vm4214, %v4216, %v4221
  %v4223 = vrot.slane %v4076, 1
  %v4224 = vsel %vm4214, %v4219, %v4223
  %v4225 = vrot.slane %v4077, 1
  %v4226 = vsel %vm4214, %v4221, %v4225
  %v4227 = vrot.slane %v4078, 1
  %v4228 = vsel %vm4214, %v4223, %v4227
  %v4229 = vrot.slane %v4079, 1
  %v4230 = vsel %vm4214, %v4225, %v4229
  %v4231 = vrot.slane %v4080, 1
  %v4232 = vsel %vm4214, %v4227, %v4231
  %v4233 = vrot.slane %v4081, 1
  %v4234 = vsel %vm4214, %v4229, %v4233
  %v4235 = vrot.slane %v4082, 1
  %v4236 = vsel %vm4214, %v4231, %v4235
  %v4237 = vrot.slane %v4083, 1
  %v4238 = vsel %vm4214, %v4233, %v4237
  %v4239 = vrot.slane %v4084, 1
  %v4240 = vsel %vm4214, %v4235, %v4239
  %v4241 = vrot.slane %v4085, 1
  %v4242 = vsel %vm4214, %v4237, %v4241
  %v4243 = vrot.slane %v4086, 1
  %v4244 = vsel %vm4214, %v4239, %v4243
  %v4245 = vrot.slane %v4087, 1
  %v4246 = vsel %vm4214, %v4241, %v4245
  %v4247 = vrot.slane %v4088, 1
  %v4248 = vsel %vm4214, %v4243, %v4247
  %v4249 = vrot.slane %v4089, 1
  %v4250 = vsel %vm4214, %v4245, %v4249
  %v4251 = vrot.slane %v4090, 1
  %v4252 = vsel %vm4214, %v4247, %v4251
  %v4253 = vrot.slane %v4091, 1
  %v4254 = vsel %vm4214, %v4249, %v4253
  %v4255 = vrot.slane %v4092, 1
  %v4256 = vsel %vm4214, %v4251, %v4255
  %v4257 = vrot.slane %v4093, 1
  %v4258 = vsel %vm4214, %v4253, %v4257
  %v4259 = vrot.slane %v4094, 1
  %v4260 = vsel %vm4214, %v4255, %v4259
  %v4261 = vrot.slane %v4095, 1
  %v4262 = vsel %vm4214, %v4257, %v4261
  %v4263 = vrot.slane %v4096, 1
  %v4264 = vsel %vm4214, %v4259, %v4263
  %v4265 = vrot.slane %v4097, 1
  %v4266 = vsel %vm4214, %v4261, %v4265
  %v4267 = vrot.slane %v4098, 1
  %v4268 = vsel %vm4214, %v4263, %v4267
  %v4269 = vrot.slane %v4099, 1
  %v4270 = vsel %vm4214, %v4265, %v4269
  %v4271 = vrot.slane %v4100, 1
  %v4272 = vsel %vm4214, %v4267, %v4271
  %v4273 = vrot.slane %v4101, 1
  %v4274 = vsel %vm4214, %v4269, %v4273
  %v4275 = vrot.slane %v4102, 1
  %v4276 = vsel %vm4214, %v4271, %v4275
  %v4277 = vrot.slane %v4141, 1
  %v4278 = vsel %vm4214, %v4273, %v4277
  %v4279 = vrot.slane %v4142, 1
  %v4280 = vsel %vm4214, %v4275, %v4279
  %v4297 = vsel %vm4037, %v4220, 0
  %v4299 = vsel %vm4037, %v4224, 0
  %v4301 = vsel %vm4037, %v4228, 0
  %v4303 = vsel %vm4037, %v4232, 0
  %v4305 = vsel %vm4037, %v4236, 0
  %v4307 = vsel %vm4037, %v4240, 0
  %v4309 = vsel %vm4037, %v4244, 0
  %v4311 = vsel %vm4037, %v4248, 0
  %v4313 = vsel %vm4037, %v4252, 0
  %v4315 = vsel %vm4037, %v4256, 0
  %v4317 = vsel %vm4037, %v4260, 0
  %v4319 = vsel %vm4037, %v4264, 0
  %v4321 = vsel %vm4037, %v4268, 0
  %v4323 = vsel %vm4037, %v4272, 0
  %v4325 = vsel %vm4037, %v4276, 0
  %v4327 = vsel %vm4037, %v4280, 0
  %4329 = vmatprep.subr.mxu0 %v4145
  %4330 = vmatpush1.msra.mxu0 %v4144
  %4331 = vmatprep.subr.mxu0 %v4147
  %4332 = vmatpush1.msra.mxu0 %v4146
  %4333 = vmatprep.subr.mxu0 %v4149
  %4334 = vmatpush1.msra.mxu0 %v4148
  %4335 = vmatprep.subr.mxu0 %v4151
  %4336 = vmatpush1.msra.mxu0 %v4150
  %4337 = vmatprep.subr.mxu0 %v4153
  %4338 = vmatpush1.msra.mxu0 %v4152
  %4339 = vmatprep.subr.mxu0 %v4155
  %4340 = vmatpush1.msra.mxu0 %v4154
  %4341 = vmatprep.subr.mxu0 %v4157
  %4342 = vmatpush1.msra.mxu0 %v4156
  %4343 = vmatprep.subr.mxu0 %v4159
  %4344 = vmatpush1.msra.mxu0 %v4158
  %4345 = vmatprep.subr.mxu0 %v4161
  %4346 = vmatpush1.msra.mxu0 %v4160
  %4347 = vmatprep.subr.mxu0 %v4163
  %4348 = vmatpush1.msra.mxu0 %v4162
  %4349 = vmatprep.subr.mxu0 %v4165
  %4350 = vmatpush1.msra.mxu0 %v4164
  %4351 = vmatprep.subr.mxu0 %v4167
  %4352 = vmatpush1.msra.mxu0 %v4166
  %4353 = vmatprep.subr.mxu0 %v4169
  %4354 = vmatpush1.msra.mxu0 %v4168
  %4355 = vmatprep.subr.mxu0 %v4171
  %4356 = vmatpush1.msra.mxu0 %v4170
  %4357 = vmatprep.subr.mxu0 %v4173
  %4358 = vmatpush1.msra.mxu0 %v4172
  %4359 = vmatprep.subr.mxu0 %v4175
  %4360 = vmatpush1.msra.mxu0 %v4174
  %4361 = vmatprep.subr.mxu0 %v4177
  %4362 = vmatpush1.msra.mxu0 %v4176
  %4363 = vmatprep.subr.mxu0 %v4179
  %4364 = vmatpush1.msra.mxu0 %v4178
  %4365 = vmatprep.subr.mxu0 0.0
  %4366 = vmatpush1.msra.mxu0 0.0
  %4367 = vmatprep.subr.mxu0 0.0
  %4368 = vmatpush1.msra.mxu0 0.0
  %4369 = vmatprep.subr.mxu0 0.0
  %4370 = vmatpush1.msra.mxu0 0.0
  %4371 = vmatprep.subr.mxu0 0.0
  %4372 = vmatpush1.msra.mxu0 0.0
  %4373 = vmatprep.subr.mxu0 0.0
  %4374 = vmatpush1.msra.mxu0 0.0
  %4375 = vmatprep.subr.mxu0 0.0
  %4376 = vmatpush1.msra.mxu0 0.0
  %4377 = vmatprep.subr.mxu0 0.0
  %4378 = vmatpush1.msra.mxu0 0.0
  %4379 = vmatprep.subr.mxu0 0.0
  %4380 = vmatpush1.msra.mxu0 0.0
  %4381 = vmatprep.subr.mxu0 0.0
  %4382 = vmatpush1.msra.mxu0 0.0
  %4383 = vmatprep.subr.mxu0 0.0
  %4384 = vmatpush1.msra.mxu0 0.0
  %4385 = vmatprep.subr.mxu0 0.0
  %4386 = vmatpush1.msra.mxu0 0.0
  %4387 = vmatprep.subr.mxu0 0.0
  %4388 = vmatpush1.msra.mxu0 0.0
  %4389 = vmatprep.subr.mxu0 0.0
  %4390 = vmatpush1.msra.mxu0 0.0
  %4391 = vmatprep.subr.mxu0 0.0
  %4392 = vmatpush1.msra.mxu0 0.0
  %4393 = vmatprep.mubr.f32.mxu0 %v4297
  %4394 = vmatmul.mubr.f32.gmra.mrb[0].mxu0 %v4217
  %v4395 = vpop.f32.mrb[0].mxu0
  %v4396 = vadd.f32 0.0, %v4395
  %v4397 = vpop.f32.mrb[0].mxu0
  %v4398 = vadd.f32 0.0, %v4397
  %4399 = vmatprep.mubr.f32.mxu0 %v4299
  %4400 = vmatmul.mubr.f32.gmra.mrb[0].mxu0 %v4222
  %v4401 = vpop.f32.mrb[0].mxu0
  %v4402 = vadd.f32 0.0, %v4401
  %v4403 = vpop.f32.mrb[0].mxu0
  %v4404 = vadd.f32 0.0, %v4403
  %4405 = vmatprep.mubr.f32.mxu0 %v4301
  %4406 = vmatmul.mubr.f32.gmra.mrb[0].mxu0 %v4226
  %v4407 = vpop.f32.mrb[0].mxu0
  %v4408 = vadd.f32 0.0, %v4407
  %v4409 = vpop.f32.mrb[0].mxu0
  %v4410 = vadd.f32 0.0, %v4409
  %4411 = vmatprep.mubr.f32.mxu0 %v4303
  %4412 = vmatmul.mubr.f32.gmra.mrb[0].mxu0 %v4230
  %v4413 = vpop.f32.mrb[0].mxu0
  %v4414 = vadd.f32 0.0, %v4413
  %v4415 = vpop.f32.mrb[0].mxu0
  %v4416 = vadd.f32 0.0, %v4415
  %4417 = vmatprep.mubr.f32.mxu0 %v4305
  %4418 = vmatmul.mubr.f32.gmra.mrb[0].mxu0 %v4234
  %v4419 = vpop.f32.mrb[0].mxu0
  %v4420 = vadd.f32 0.0, %v4419
  %v4421 = vpop.f32.mrb[0].mxu0
  %v4422 = vadd.f32 0.0, %v4421
  %4423 = vmatprep.mubr.f32.mxu0 %v4307
  %4424 = vmatmul.mubr.f32.gmra.mrb[0].mxu0 %v4238
  %v4425 = vpop.f32.mrb[0].mxu0
  %v4426 = vadd.f32 0.0, %v4425
  %v4427 = vpop.f32.mrb[0].mxu0
  %v4428 = vadd.f32 0.0, %v4427
  %4429 = vmatprep.mubr.f32.mxu0 %v4309
  %4430 = vmatmul.mubr.f32.gmra.mrb[0].mxu0 %v4242
  %v4431 = vpop.f32.mrb[0].mxu0
  %v4432 = vadd.f32 0.0, %v4431
  %v4433 = vpop.f32.mrb[0].mxu0
  %v4434 = vadd.f32 0.0, %v4433
  %4435 = vmatprep.mubr.f32.mxu0 %v4311
  %4436 = vmatmul.mubr.f32.gmra.mrb[0].mxu0 %v4246
  %v4437 = vpop.f32.mrb[0].mxu0
  %v4438 = vadd.f32 0.0, %v4437
  %v4439 = vpop.f32.mrb[0].mxu0
  %v4440 = vadd.f32 0.0, %v4439
  %4441 = vmatprep.mubr.f32.mxu0 %v4313
  %4442 = vmatmul.mubr.f32.gmra.mrb[0].mxu0 %v4250
  %v4443 = vpop.f32.mrb[0].mxu0
  %v4444 = vadd.f32 0.0, %v4443
  %v4445 = vpop.f32.mrb[0].mxu0
  %v4446 = vadd.f32 0.0, %v4445
  %4447 = vmatprep.mubr.f32.mxu0 %v4315
  %4448 = vmatmul.mubr.f32.gmra.mrb[0].mxu0 %v4254
  %v4449 = vpop.f32.mrb[0].mxu0
  %v4450 = vadd.f32 0.0, %v4449
  %v4451 = vpop.f32.mrb[0].mxu0
  %v4452 = vadd.f32 0.0, %v4451
  %4453 = vmatprep.mubr.f32.mxu0 %v4317
  %4454 = vmatmul.mubr.f32.gmra.mrb[0].mxu0 %v4258
  %v4455 = vpop.f32.mrb[0].mxu0
  %v4456 = vadd.f32 0.0, %v4455
  %v4457 = vpop.f32.mrb[0].mxu0
  %v4458 = vadd.f32 0.0, %v4457
  %4459 = vmatprep.mubr.f32.mxu0 %v4319
  %4460 = vmatmul.mubr.f32.gmra.mrb[0].mxu0 %v4262
  %v4461 = vpop.f32.mrb[0].mxu0
  %v4462 = vadd.f32 0.0, %v4461
  %v4463 = vpop.f32.mrb[0].mxu0
  %v4464 = vadd.f32 0.0, %v4463
  %4465 = vmatprep.mubr.f32.mxu0 %v4321
  %4466 = vmatmul.mubr.f32.gmra.mrb[0].mxu0 %v4266
  %v4467 = vpop.f32.mrb[0].mxu0
  %v4468 = vadd.f32 0.0, %v4467
  %v4469 = vpop.f32.mrb[0].mxu0
  %v4470 = vadd.f32 0.0, %v4469
  %4471 = vmatprep.mubr.f32.mxu0 %v4323
  %4472 = vmatmul.mubr.f32.gmra.mrb[0].mxu0 %v4270
  %v4473 = vpop.f32.mrb[0].mxu0
  %v4474 = vadd.f32 0.0, %v4473
  %v4475 = vpop.f32.mrb[0].mxu0
  %v4476 = vadd.f32 0.0, %v4475
  %4477 = vmatprep.mubr.f32.mxu0 %v4325
  %4478 = vmatmul.mubr.f32.gmra.mrb[0].mxu0 %v4274
  %v4479 = vpop.f32.mrb[0].mxu0
  %v4480 = vadd.f32 0.0, %v4479
  %v4481 = vpop.f32.mrb[0].mxu0
  %v4482 = vadd.f32 0.0, %v4481
  %4483 = vmatprep.mubr.f32.mxu0 %v4327
  %4484 = vmatmul.mubr.f32.gmra.mrb[0].mxu0 %v4278
  %v4485 = vpop.f32.mrb[0].mxu0
  %v4486 = vadd.f32 0.0, %v4485
  %v4487 = vpop.f32.mrb[0].mxu0
  %v4488 = vadd.f32 0.0, %v4487
  %4489 = vdwg.mxu0
  %v4491 = vsel %vm4037, %v4072, 0
  %v4493 = vsel %vm4037, %v4074, 0
  %v4495 = vsel %vm4037, %v4076, 0
  %v4497 = vsel %vm4037, %v4078, 0
  %v4499 = vsel %vm4037, %v4080, 0
  %v4501 = vsel %vm4037, %v4082, 0
  %v4503 = vsel %vm4037, %v4084, 0
  %v4505 = vsel %vm4037, %v4086, 0
  %v4507 = vsel %vm4037, %v4088, 0
  %v4509 = vsel %vm4037, %v4090, 0
  %v4511 = vsel %vm4037, %v4092, 0
  %v4513 = vsel %vm4037, %v4094, 0
  %v4515 = vsel %vm4037, %v4096, 0
  %v4517 = vsel %vm4037, %v4098, 0
  %v4519 = vsel %vm4037, %v4100, 0
  %v4521 = vsel %vm4037, %v4102, 0
  %4523 = vmatprep.subr.mxu0 %v4104
  %4524 = vmatpush1.msra.mxu0 %v4103
  %4525 = vmatprep.subr.mxu0 %v4106
  %4526 = vmatpush1.msra.mxu0 %v4105
  %4527 = vmatprep.subr.mxu0 %v4108
  %4528 = vmatpush1.msra.mxu0 %v4107
  %4529 = vmatprep.subr.mxu0 %v4110
  %4530 = vmatpush1.msra.mxu0 %v4109
  %4531 = vmatprep.subr.mxu0 %v4112
  %4532 = vmatpush1.msra.mxu0 %v4111
  %4533 = vmatprep.subr.mxu0 %v4114
  %4534 = vmatpush1.msra.mxu0 %v4113
  %4535 = vmatprep.subr.mxu0 %v4116
  %4536 = vmatpush1.msra.mxu0 %v4115
  %4537 = vmatprep.subr.mxu0 %v4118
  %4538 = vmatpush1.msra.mxu0 %v4117
  %4539 = vmatprep.subr.mxu0 %v4120
  %4540 = vmatpush1.msra.mxu0 %v4119
  %4541 = vmatprep.subr.mxu0 %v4122
  %4542 = vmatpush1.msra.mxu0 %v4121
  %4543 = vmatprep.subr.mxu0 %v4124
  %4544 = vmatpush1.msra.mxu0 %v4123
  %4545 = vmatprep.subr.mxu0 %v4126
  %4546 = vmatpush1.msra.mxu0 %v4125
  %4547 = vmatprep.subr.mxu0 %v4128
  %4548 = vmatpush1.msra.mxu0 %v4127
  %4549 = vmatprep.subr.mxu0 %v4130
  %4550 = vmatpush1.msra.mxu0 %v4129
  %4551 = vmatprep.subr.mxu0 %v4132
  %4552 = vmatpush1.msra.mxu0 %v4131
  %4553 = vmatprep.subr.mxu0 %v4134
  %4554 = vmatpush1.msra.mxu0 %v4133
  %4555 = vmatprep.subr.mxu0 %v4136
  %4556 = vmatpush1.msra.mxu0 %v4135
  %4557 = vmatprep.subr.mxu0 %v4138
  %4558 = vmatpush1.msra.mxu0 %v4137
  %4559 = vmatprep.subr.mxu0 0.0
  %4560 = vmatpush1.msra.mxu0 0.0
  %4561 = vmatprep.subr.mxu0 0.0
  %4562 = vmatpush1.msra.mxu0 0.0
  %4563 = vmatprep.subr.mxu0 0.0
  %4564 = vmatpush1.msra.mxu0 0.0
  %4565 = vmatprep.subr.mxu0 0.0
  %4566 = vmatpush1.msra.mxu0 0.0
  %4567 = vmatprep.subr.mxu0 0.0
  %4568 = vmatpush1.msra.mxu0 0.0
  %4569 = vmatprep.subr.mxu0 0.0
  %4570 = vmatpush1.msra.mxu0 0.0
  %4571 = vmatprep.subr.mxu0 0.0
  %4572 = vmatpush1.msra.mxu0 0.0
  %4573 = vmatprep.subr.mxu0 0.0
  %4574 = vmatpush1.msra.mxu0 0.0
  %4575 = vmatprep.subr.mxu0 0.0
  %4576 = vmatpush1.msra.mxu0 0.0
  %4577 = vmatprep.subr.mxu0 0.0
  %4578 = vmatpush1.msra.mxu0 0.0
  %4579 = vmatprep.subr.mxu0 0.0
  %4580 = vmatpush1.msra.mxu0 0.0
  %4581 = vmatprep.subr.mxu0 0.0
  %4582 = vmatpush1.msra.mxu0 0.0
  %4583 = vmatprep.subr.mxu0 0.0
  %4584 = vmatpush1.msra.mxu0 0.0
  %4585 = vmatprep.subr.mxu0 0.0
  %4586 = vmatpush1.msra.mxu0 0.0
  %4587 = vmatprep.mubr.f32.mxu0 %v4491
  %4588 = vmatmul.mubr.f32.gmra.mrb[0].mxu0 %v4071
  %v4589 = vpop.f32.mrb[0].mxu0
  %v4590 = vadd.f32 %v4396, %v4589
  %v4591 = vpop.f32.mrb[0].mxu0
  %v4592 = vadd.f32 %v4398, %v4591
  %4593 = vmatprep.mubr.f32.mxu0 %v4493
  %4594 = vmatmul.mubr.f32.gmra.mrb[0].mxu0 %v4073
  %v4595 = vpop.f32.mrb[0].mxu0
  %v4596 = vadd.f32 %v4402, %v4595
  %v4597 = vpop.f32.mrb[0].mxu0
  %v4598 = vadd.f32 %v4404, %v4597
  %4599 = vmatprep.mubr.f32.mxu0 %v4495
  %4600 = vmatmul.mubr.f32.gmra.mrb[0].mxu0 %v4075
  %v4601 = vpop.f32.mrb[0].mxu0
  %v4602 = vadd.f32 %v4408, %v4601
  %v4603 = vpop.f32.mrb[0].mxu0
  %v4604 = vadd.f32 %v4410, %v4603
  %4605 = vmatprep.mubr.f32.mxu0 %v4497
  %4606 = vmatmul.mubr.f32.gmra.mrb[0].mxu0 %v4077
  %v4607 = vpop.f32.mrb[0].mxu0
  %v4608 = vadd.f32 %v4414, %v4607
  %v4609 = vpop.f32.mrb[0].mxu0
  %v4610 = vadd.f32 %v4416, %v4609
  %4611 = vmatprep.mubr.f32.mxu0 %v4499
  %4612 = vmatmul.mubr.f32.gmra.mrb[0].mxu0 %v4079
  %v4613 = vpop.f32.mrb[0].mxu0
  %v4614 = vadd.f32 %v4420, %v4613
  %v4615 = vpop.f32.mrb[0].mxu0
  %v4616 = vadd.f32 %v4422, %v4615
  %4617 = vmatprep.mubr.f32.mxu0 %v4501
  %4618 = vmatmul.mubr.f32.gmra.mrb[0].mxu0 %v4081
  %v4619 = vpop.f32.mrb[0].mxu0
  %v4620 = vadd.f32 %v4426, %v4619
  %v4621 = vpop.f32.mrb[0].mxu0
  %v4622 = vadd.f32 %v4428, %v4621
  %4623 = vmatprep.mubr.f32.mxu0 %v4503
  %4624 = vmatmul.mubr.f32.gmra.mrb[0].mxu0 %v4083
  %v4625 = vpop.f32.mrb[0].mxu0
  %v4626 = vadd.f32 %v4432, %v4625
  %v4627 = vpop.f32.mrb[0].mxu0
  %v4628 = vadd.f32 %v4434, %v4627
  %4629 = vmatprep.mubr.f32.mxu0 %v4505
  %4630 = vmatmul.mubr.f32.gmra.mrb[0].mxu0 %v4085
  %v4631 = vpop.f32.mrb[0].mxu0
  %v4632 = vadd.f32 %v4438, %v4631
  %v4633 = vpop.f32.mrb[0].mxu0
  %v4634 = vadd.f32 %v4440, %v4633
  %4635 = vmatprep.mubr.f32.mxu0 %v4507
  %4636 = vmatmul.mubr.f32.gmra.mrb[0].mxu0 %v4087
  %v4637 = vpop.f32.mrb[0].mxu0
  %v4638 = vadd.f32 %v4444, %v4637
  %v4639 = vpop.f32.mrb[0].mxu0
  %v4640 = vadd.f32 %v4446, %v4639
  %4641 = vmatprep.mubr.f32.mxu0 %v4509
  %4642 = vmatmul.mubr.f32.gmra.mrb[0].mxu0 %v4089
  %v4643 = vpop.f32.mrb[0].mxu0
  %v4644 = vadd.f32 %v4450, %v4643
  %v4645 = vpop.f32.mrb[0].mxu0
  %v4646 = vadd.f32 %v4452, %v4645
  %4647 = vmatprep.mubr.f32.mxu0 %v4511
  %4648 = vmatmul.mubr.f32.gmra.mrb[0].mxu0 %v4091
  %v4649 = vpop.f32.mrb[0].mxu0
  %v4650 = vadd.f32 %v4456, %v4649
  %v4651 = vpop.f32.mrb[0].mxu0
  %v4652 = vadd.f32 %v4458, %v4651
  %4653 = vmatprep.mubr.f32.mxu0 %v4513
  %4654 = vmatmul.mubr.f32.gmra.mrb[0].mxu0 %v4093
  %v4655 = vpop.f32.mrb[0].mxu0
  %v4656 = vadd.f32 %v4462, %v4655
  %v4657 = vpop.f32.mrb[0].mxu0
  %v4658 = vadd.f32 %v4464, %v4657
  %4659 = vmatprep.mubr.f32.mxu0 %v4515
  %4660 = vmatmul.mubr.f32.gmra.mrb[0].mxu0 %v4095
  %v4661 = vpop.f32.mrb[0].mxu0
  %v4662 = vadd.f32 %v4468, %v4661
  %v4663 = vpop.f32.mrb[0].mxu0
  %v4664 = vadd.f32 %v4470, %v4663
  %4665 = vmatprep.mubr.f32.mxu0 %v4517
  %4666 = vmatmul.mubr.f32.gmra.mrb[0].mxu0 %v4097
  %v4667 = vpop.f32.mrb[0].mxu0
  %v4668 = vadd.f32 %v4474, %v4667
  %v4669 = vpop.f32.mrb[0].mxu0
  %v4670 = vadd.f32 %v4476, %v4669
  %4671 = vmatprep.mubr.f32.mxu0 %v4519
  %4672 = vmatmul.mubr.f32.gmra.mrb[0].mxu0 %v4099
  %v4673 = vpop.f32.mrb[0].mxu0
  %v4674 = vadd.f32 %v4480, %v4673
  %v4675 = vpop.f32.mrb[0].mxu0
  %v4676 = vadd.f32 %v4482, %v4675
  %4677 = vmatprep.mubr.f32.mxu0 %v4521
  %4678 = vmatmul.mubr.f32.gmra.mrb[0].mxu0 %v4101
  %v4679 = vpop.f32.mrb[0].mxu0
  %v4680 = vadd.f32 %v4486, %v4679
  %v4681 = vpop.f32.mrb[0].mxu0
  %v4682 = vadd.f32 %v4488, %v4681
  %4683 = vdwg.mxu0
  %v4684 = vld [vmem:[#allocation3] sm:$0xfc]
  %v4685 = vld [vmem:[#allocation3 + $0x8] sm:$0xfc]
  %v4686 = vld [vmem:[#allocation3 + $0x100] sm:$0x3]
  %v4687 = vld [vmem:[#allocation3 + $0x108] sm:$0x3]
  %s4688 = scalar_lea.vmem %s9, 576
  %v4689 = vld [vmem:[%s4688] sm:$0xff]
  %v4690 = vld [vmem:[%s4688 + $0x8] sm:$0xff]
  %v4691 = vld [vmem:[%s4688 + $0x10] sm:$0xff]
  %v4692 = vld [vmem:[%s4688 + $0x18] sm:$0xff]
  %v4693 = vld [vmem:[%s4688 + $0x20] sm:$0xff]
  %v4694 = vld [vmem:[%s4688 + $0x28] sm:$0xff]
  %v4695 = vld [vmem:[%s4688 + $0x30] sm:$0xff]
  %v4696 = vld [vmem:[%s4688 + $0x38] sm:$0xff]
  %v4697 = vld [vmem:[%s4688 + $0x40] sm:$0xff]
  %v4698 = vld [vmem:[%s4688 + $0x48] sm:$0xff]
  %v4699 = vld [vmem:[%s4688 + $0x50] sm:$0xff]
  %v4700 = vld [vmem:[%s4688 + $0x58] sm:$0xff]
  %v4701 = vld [vmem:[%s4688 + $0x60] sm:$0xff]
  %v4702 = vld [vmem:[%s4688 + $0x68] sm:$0xff]
  %v4703 = vld [vmem:[%s4688 + $0x70] sm:$0xff]
  %v4704 = vld [vmem:[%s4688 + $0x78] sm:$0xff]
  %v4705 = vld [vmem:[%s4688 + $0x80] sm:$0xff]
  %v4706 = vld [vmem:[%s4688 + $0x88] sm:$0xff]
  %v4707 = vld [vmem:[%s4688 + $0x90] sm:$0xff]
  %v4708 = vld [vmem:[%s4688 + $0x98] sm:$0xff]
  %v4709 = vld [vmem:[%s4688 + $0xa0] sm:$0xff]
  %v4710 = vld [vmem:[%s4688 + $0xa8] sm:$0xff]
  %v4711 = vld [vmem:[%s4688 + $0xb0] sm:$0xff]
  %v4712 = vld [vmem:[%s4688 + $0xb8] sm:$0xff]
  %v4713 = vld [vmem:[%s4688 + $0xc0] sm:$0xff]
  %v4714 = vld [vmem:[%s4688 + $0xc8] sm:$0xff]
  %v4715 = vld [vmem:[%s4688 + $0xd0] sm:$0xff]
  %v4716 = vld [vmem:[%s4688 + $0xd8] sm:$0xff]
  %v4717 = vld [vmem:[%s4688 + $0xe0] sm:$0xff]
  %v4718 = vld [vmem:[%s4688 + $0xe8] sm:$0xff]
  %v4719 = vld [vmem:[%s4688 + $0xf0] sm:$0xff]
  %v4720 = vld [vmem:[%s4688 + $0xf8] sm:$0xff]
  %v4721 = vld [vmem:[%s4688 + $0x100] sm:$0xff]
  %v4722 = vld [vmem:[%s4688 + $0x108] sm:$0xff]
  %v4723 = vld [vmem:[%s4688 + $0x110] sm:$0xff]
  %v4724 = vld [vmem:[%s4688 + $0x118] sm:$0xff]
  %v4729 = vrot.slane %v4684, 2
  %v4730 = vrot.slane %v4073, 2
  %v4731 = vsel %vm231, %v4729, %v4730
  %v4732 = vrot.slane %v4685, 2
  %v4733 = vrot.slane %v4074, 2
  %v4734 = vsel %vm231, %v4732, %v4733
  %v4735 = vrot.slane %v4075, 2
  %v4736 = vsel %vm231, %v4730, %v4735
  %v4737 = vrot.slane %v4076, 2
  %v4738 = vsel %vm231, %v4733, %v4737
  %v4739 = vrot.slane %v4077, 2
  %v4740 = vsel %vm231, %v4735, %v4739
  %v4741 = vrot.slane %v4078, 2
  %v4742 = vsel %vm231, %v4737, %v4741
  %v4743 = vrot.slane %v4079, 2
  %v4744 = vsel %vm231, %v4739, %v4743
  %v4745 = vrot.slane %v4080, 2
  %v4746 = vsel %vm231, %v4741, %v4745
  %v4747 = vrot.slane %v4081, 2
  %v4748 = vsel %vm231, %v4743, %v4747
  %v4749 = vrot.slane %v4082, 2
  %v4750 = vsel %vm231, %v4745, %v4749
  %v4751 = vrot.slane %v4083, 2
  %v4752 = vsel %vm231, %v4747, %v4751
  %v4753 = vrot.slane %v4084, 2
  %v4754 = vsel %vm231, %v4749, %v4753
  %v4755 = vrot.slane %v4085, 2
  %v4756 = vsel %vm231, %v4751, %v4755
  %v4757 = vrot.slane %v4086, 2
  %v4758 = vsel %vm231, %v4753, %v4757
  %v4759 = vrot.slane %v4087, 2
  %v4760 = vsel %vm231, %v4755, %v4759
  %v4761 = vrot.slane %v4088, 2
  %v4762 = vsel %vm231, %v4757, %v4761
  %v4763 = vrot.slane %v4089, 2
  %v4764 = vsel %vm231, %v4759, %v4763
  %v4765 = vrot.slane %v4090, 2
  %v4766 = vsel %vm231, %v4761, %v4765
  %v4767 = vrot.slane %v4091, 2
  %v4768 = vsel %vm231, %v4763, %v4767
  %v4769 = vrot.slane %v4092, 2
  %v4770 = vsel %vm231, %v4765, %v4769
  %v4771 = vrot.slane %v4093, 2
  %v4772 = vsel %vm231, %v4767, %v4771
  %v4773 = vrot.slane %v4094, 2
  %v4774 = vsel %vm231, %v4769, %v4773
  %v4775 = vrot.slane %v4095, 2
  %v4776 = vsel %vm231, %v4771, %v4775
  %v4777 = vrot.slane %v4096, 2
  %v4778 = vsel %vm231, %v4773, %v4777
  %v4779 = vrot.slane %v4097, 2
  %v4780 = vsel %vm231, %v4775, %v4779
  %v4781 = vrot.slane %v4098, 2
  %v4782 = vsel %vm231, %v4777, %v4781
  %v4783 = vrot.slane %v4099, 2
  %v4784 = vsel %vm231, %v4779, %v4783
  %v4785 = vrot.slane %v4100, 2
  %v4786 = vsel %vm231, %v4781, %v4785
  %v4787 = vrot.slane %v4101, 2
  %v4788 = vsel %vm231, %v4783, %v4787
  %v4789 = vrot.slane %v4102, 2
  %v4790 = vsel %vm231, %v4785, %v4789
  %v4791 = vrot.slane %v4686, 2
  %v4792 = vsel %vm231, %v4787, %v4791
  %v4793 = vrot.slane %v4687, 2
  %v4794 = vsel %vm231, %v4789, %v4793
  %v4811 = vsel %vm4037, %v4734, 0
  %v4813 = vsel %vm4037, %v4738, 0
  %v4815 = vsel %vm4037, %v4742, 0
  %v4817 = vsel %vm4037, %v4746, 0
  %v4819 = vsel %vm4037, %v4750, 0
  %v4821 = vsel %vm4037, %v4754, 0
  %v4823 = vsel %vm4037, %v4758, 0
  %v4825 = vsel %vm4037, %v4762, 0
  %v4827 = vsel %vm4037, %v4766, 0
  %v4829 = vsel %vm4037, %v4770, 0
  %v4831 = vsel %vm4037, %v4774, 0
  %v4833 = vsel %vm4037, %v4778, 0
  %v4835 = vsel %vm4037, %v4782, 0
  %v4837 = vsel %vm4037, %v4786, 0
  %v4839 = vsel %vm4037, %v4790, 0
  %v4841 = vsel %vm4037, %v4794, 0
  %4843 = vmatprep.subr.mxu0 %v4690
  %4844 = vmatpush1.msra.mxu0 %v4689
  %4845 = vmatprep.subr.mxu0 %v4692
  %4846 = vmatpush1.msra.mxu0 %v4691
  %4847 = vmatprep.subr.mxu0 %v4694
  %4848 = vmatpush1.msra.mxu0 %v4693
  %4849 = vmatprep.subr.mxu0 %v4696
  %4850 = vmatpush1.msra.mxu0 %v4695
  %4851 = vmatprep.subr.mxu0 %v4698
  %4852 = vmatpush1.msra.mxu0 %v4697
  %4853 = vmatprep.subr.mxu0 %v4700
  %4854 = vmatpush1.msra.mxu0 %v4699
  %4855 = vmatprep.subr.mxu0 %v4702
  %4856 = vmatpush1.msra.mxu0 %v4701
  %4857 = vmatprep.subr.mxu0 %v4704
  %4858 = vmatpush1.msra.mxu0 %v4703
  %4859 = vmatprep.subr.mxu0 %v4706
  %4860 = vmatpush1.msra.mxu0 %v4705
  %4861 = vmatprep.subr.mxu0 %v4708
  %4862 = vmatpush1.msra.mxu0 %v4707
  %4863 = vmatprep.subr.mxu0 %v4710
  %4864 = vmatpush1.msra.mxu0 %v4709
  %4865 = vmatprep.subr.mxu0 %v4712
  %4866 = vmatpush1.msra.mxu0 %v4711
  %4867 = vmatprep.subr.mxu0 %v4714
  %4868 = vmatpush1.msra.mxu0 %v4713
  %4869 = vmatprep.subr.mxu0 %v4716
  %4870 = vmatpush1.msra.mxu0 %v4715
  %4871 = vmatprep.subr.mxu0 %v4718
  %4872 = vmatpush1.msra.mxu0 %v4717
  %4873 = vmatprep.subr.mxu0 %v4720
  %4874 = vmatpush1.msra.mxu0 %v4719
  %4875 = vmatprep.subr.mxu0 %v4722
  %4876 = vmatpush1.msra.mxu0 %v4721
  %4877 = vmatprep.subr.mxu0 %v4724
  %4878 = vmatpush1.msra.mxu0 %v4723
  %4879 = vmatprep.subr.mxu0 0.0
  %4880 = vmatpush1.msra.mxu0 0.0
  %4881 = vmatprep.subr.mxu0 0.0
  %4882 = vmatpush1.msra.mxu0 0.0
  %4883 = vmatprep.subr.mxu0 0.0
  %4884 = vmatpush1.msra.mxu0 0.0
  %4885 = vmatprep.subr.mxu0 0.0
  %4886 = vmatpush1.msra.mxu0 0.0
  %4887 = vmatprep.subr.mxu0 0.0
  %4888 = vmatpush1.msra.mxu0 0.0
  %4889 = vmatprep.subr.mxu0 0.0
  %4890 = vmatpush1.msra.mxu0 0.0
  %4891 = vmatprep.subr.mxu0 0.0
  %4892 = vmatpush1.msra.mxu0 0.0
  %4893 = vmatprep.subr.mxu0 0.0
  %4894 = vmatpush1.msra.mxu0 0.0
  %4895 = vmatprep.subr.mxu0 0.0
  %4896 = vmatpush1.msra.mxu0 0.0
  %4897 = vmatprep.subr.mxu0 0.0
  %4898 = vmatpush1.msra.mxu0 0.0
  %4899 = vmatprep.subr.mxu0 0.0
  %4900 = vmatpush1.msra.mxu0 0.0
  %4901 = vmatprep.subr.mxu0 0.0
  %4902 = vmatpush1.msra.mxu0 0.0
  %4903 = vmatprep.subr.mxu0 0.0
  %4904 = vmatpush1.msra.mxu0 0.0
  %4905 = vmatprep.subr.mxu0 0.0
  %4906 = vmatpush1.msra.mxu0 0.0
  %4907 = vmatprep.mubr.f32.mxu0 %v4811
  %4908 = vmatmul.mubr.f32.gmra.mrb[0].mxu0 %v4731
  %v4909 = vpop.f32.mrb[0].mxu0
  %v4910 = vadd.f32 0.0, %v4909
  %v4911 = vpop.f32.mrb[0].mxu0
  %v4912 = vadd.f32 0.0, %v4911
  %4913 = vmatprep.mubr.f32.mxu0 %v4813
  %4914 = vmatmul.mubr.f32.gmra.mrb[0].mxu0 %v4736
  %v4915 = vpop.f32.mrb[0].mxu0
  %v4916 = vadd.f32 0.0, %v4915
  %v4917 = vpop.f32.mrb[0].mxu0
  %v4918 = vadd.f32 0.0, %v4917
  %4919 = vmatprep.mubr.f32.mxu0 %v4815
  %4920 = vmatmul.mubr.f32.gmra.mrb[0].mxu0 %v4740
  %v4921 = vpop.f32.mrb[0].mxu0
  %v4922 = vadd.f32 0.0, %v4921
  %v4923 = vpop.f32.mrb[0].mxu0
  %v4924 = vadd.f32 0.0, %v4923
  %4925 = vmatprep.mubr.f32.mxu0 %v4817
  %4926 = vmatmul.mubr.f32.gmra.mrb[0].mxu0 %v4744
  %v4927 = vpop.f32.mrb[0].mxu0
  %v4928 = vadd.f32 0.0, %v4927
  %v4929 = vpop.f32.mrb[0].mxu0
  %v4930 = vadd.f32 0.0, %v4929
  %4931 = vmatprep.mubr.f32.mxu0 %v4819
  %4932 = vmatmul.mubr.f32.gmra.mrb[0].mxu0 %v4748
  %v4933 = vpop.f32.mrb[0].mxu0
  %v4934 = vadd.f32 0.0, %v4933
  %v4935 = vpop.f32.mrb[0].mxu0
  %v4936 = vadd.f32 0.0, %v4935
  %4937 = vmatprep.mubr.f32.mxu0 %v4821
  %4938 = vmatmul.mubr.f32.gmra.mrb[0].mxu0 %v4752
  %v4939 = vpop.f32.mrb[0].mxu0
  %v4940 = vadd.f32 0.0, %v4939
  %v4941 = vpop.f32.mrb[0].mxu0
  %v4942 = vadd.f32 0.0, %v4941
  %4943 = vmatprep.mubr.f32.mxu0 %v4823
  %4944 = vmatmul.mubr.f32.gmra.mrb[0].mxu0 %v4756
  %v4945 = vpop.f32.mrb[0].mxu0
  %v4946 = vadd.f32 0.0, %v4945
  %v4947 = vpop.f32.mrb[0].mxu0
  %v4948 = vadd.f32 0.0, %v4947
  %4949 = vmatprep.mubr.f32.mxu0 %v4825
  %4950 = vmatmul.mubr.f32.gmra.mrb[0].mxu0 %v4760
  %v4951 = vpop.f32.mrb[0].mxu0
  %v4952 = vadd.f32 0.0, %v4951
  %v4953 = vpop.f32.mrb[0].mxu0
  %v4954 = vadd.f32 0.0, %v4953
  %4955 = vmatprep.mubr.f32.mxu0 %v4827
  %4956 = vmatmul.mubr.f32.gmra.mrb[0].mxu0 %v4764
  %v4957 = vpop.f32.mrb[0].mxu0
  %v4958 = vadd.f32 0.0, %v4957
  %v4959 = vpop.f32.mrb[0].mxu0
  %v4960 = vadd.f32 0.0, %v4959
  %4961 = vmatprep.mubr.f32.mxu0 %v4829
  %4962 = vmatmul.mubr.f32.gmra.mrb[0].mxu0 %v4768
  %v4963 = vpop.f32.mrb[0].mxu0
  %v4964 = vadd.f32 0.0, %v4963
  %v4965 = vpop.f32.mrb[0].mxu0
  %v4966 = vadd.f32 0.0, %v4965
  %4967 = vmatprep.mubr.f32.mxu0 %v4831
  %4968 = vmatmul.mubr.f32.gmra.mrb[0].mxu0 %v4772
  %v4969 = vpop.f32.mrb[0].mxu0
  %v4970 = vadd.f32 0.0, %v4969
  %v4971 = vpop.f32.mrb[0].mxu0
  %v4972 = vadd.f32 0.0, %v4971
  %4973 = vmatprep.mubr.f32.mxu0 %v4833
  %4974 = vmatmul.mubr.f32.gmra.mrb[0].mxu0 %v4776
  %v4975 = vpop.f32.mrb[0].mxu0
  %v4976 = vadd.f32 0.0, %v4975
  %v4977 = vpop.f32.mrb[0].mxu0
  %v4978 = vadd.f32 0.0, %v4977
  %4979 = vmatprep.mubr.f32.mxu0 %v4835
  %4980 = vmatmul.mubr.f32.gmra.mrb[0].mxu0 %v4780
  %v4981 = vpop.f32.mrb[0].mxu0
  %v4982 = vadd.f32 0.0, %v4981
  %v4983 = vpop.f32.mrb[0].mxu0
  %v4984 = vadd.f32 0.0, %v4983
  %4985 = vmatprep.mubr.f32.mxu0 %v4837
  %4986 = vmatmul.mubr.f32.gmra.mrb[0].mxu0 %v4784
  %v4987 = vpop.f32.mrb[0].mxu0
  %v4988 = vadd.f32 0.0, %v4987
  %v4989 = vpop.f32.mrb[0].mxu0
  %v4990 = vadd.f32 0.0, %v4989
  %4991 = vmatprep.mubr.f32.mxu0 %v4839
  %4992 = vmatmul.mubr.f32.gmra.mrb[0].mxu0 %v4788
  %v4993 = vpop.f32.mrb[0].mxu0
  %v4994 = vadd.f32 0.0, %v4993
  %v4995 = vpop.f32.mrb[0].mxu0
  %v4996 = vadd.f32 0.0, %v4995
  %4997 = vmatprep.mubr.f32.mxu0 %v4841
  %4998 = vmatmul.mubr.f32.gmra.mrb[0].mxu0 %v4792
  %v4999 = vpop.f32.mrb[0].mxu0
  %v5000 = vadd.f32 0.0, %v4999
  %v5001 = vpop.f32.mrb[0].mxu0
  %v5002 = vadd.f32 0.0, %v5001
  %5003 = vdwg.mxu0
  %v5004 = vadd.f32 %v4590, %v4910
  %v5005 = vadd.f32 %v4592, %v4912
  %v5006 = vadd.f32 %v4596, %v4916
  %v5007 = vadd.f32 %v4598, %v4918
  %v5008 = vadd.f32 %v4602, %v4922
  %v5009 = vadd.f32 %v4604, %v4924
  %v5010 = vadd.f32 %v4608, %v4928
  %v5011 = vadd.f32 %v4610, %v4930
  %v5012 = vadd.f32 %v4614, %v4934
  %v5013 = vadd.f32 %v4616, %v4936
  %v5014 = vadd.f32 %v4620, %v4940
  %v5015 = vadd.f32 %v4622, %v4942
  %v5016 = vadd.f32 %v4626, %v4946
  %v5017 = vadd.f32 %v4628, %v4948
  %v5018 = vadd.f32 %v4632, %v4952
  %v5019 = vadd.f32 %v4634, %v4954
  %v5020 = vadd.f32 %v4638, %v4958
  %v5021 = vadd.f32 %v4640, %v4960
  %v5022 = vadd.f32 %v4644, %v4964
  %v5023 = vadd.f32 %v4646, %v4966
  %v5024 = vadd.f32 %v4650, %v4970
  %v5025 = vadd.f32 %v4652, %v4972
  %v5026 = vadd.f32 %v4656, %v4976
  %v5027 = vadd.f32 %v4658, %v4978
  %v5028 = vadd.f32 %v4662, %v4982
  %v5029 = vadd.f32 %v4664, %v4984
  %v5030 = vadd.f32 %v4668, %v4988
  %v5031 = vadd.f32 %v4670, %v4990
  %v5032 = vadd.f32 %v4674, %v4994
  %v5033 = vadd.f32 %v4676, %v4996
  %v5034 = vadd.f32 %v4680, %v5000
  %v5035 = vadd.f32 %v4682, %v5002
  %v5036 = vld [vmem:[%s10] sm:$0x3]
  %v5038 = vlaneseq
  %v5039 = vshrl.u32 %v5038, 7
  %v5040 = vsub.s32 0, %v5039
  %v5041 = vrot.slane %v5036, %v5040
  %v5042 = vlaneseq
  %v5043 = vshrl.u32 %v5042, 7
  %v5044 = vsub.s32 1, %v5043
  %v5045 = vrot.slane %v5036, %v5044
  %v5048 = vadd.f32 %v5004, %v5041
  %v5049 = vadd.f32 %v5005, %v5045
  %v5050 = vadd.f32 %v5006, %v5041
  %v5051 = vadd.f32 %v5007, %v5045
  %v5052 = vadd.f32 %v5008, %v5041
  %v5053 = vadd.f32 %v5009, %v5045
  %v5054 = vadd.f32 %v5010, %v5041
  %v5055 = vadd.f32 %v5011, %v5045
  %v5056 = vadd.f32 %v5012, %v5041
  %v5057 = vadd.f32 %v5013, %v5045
  %v5058 = vadd.f32 %v5014, %v5041
  %v5059 = vadd.f32 %v5015, %v5045
  %v5060 = vadd.f32 %v5016, %v5041
  %v5061 = vadd.f32 %v5017, %v5045
  %v5062 = vadd.f32 %v5018, %v5041
  %v5063 = vadd.f32 %v5019, %v5045
  %v5064 = vadd.f32 %v5020, %v5041
  %v5065 = vadd.f32 %v5021, %v5045
  %v5066 = vadd.f32 %v5022, %v5041
  %v5067 = vadd.f32 %v5023, %v5045
  %v5068 = vadd.f32 %v5024, %v5041
  %v5069 = vadd.f32 %v5025, %v5045
  %v5070 = vadd.f32 %v5026, %v5041
  %v5071 = vadd.f32 %v5027, %v5045
  %v5072 = vadd.f32 %v5028, %v5041
  %v5073 = vadd.f32 %v5029, %v5045
  %v5074 = vadd.f32 %v5030, %v5041
  %v5075 = vadd.f32 %v5031, %v5045
  %v5076 = vadd.f32 %v5032, %v5041
  %v5077 = vadd.f32 %v5033, %v5045
  %v5078 = vadd.f32 %v5034, %v5041
  %v5079 = vadd.f32 %v5035, %v5045
  %v5080 = vmax.f32 %v5048, 0.0
  %v5081 = vmax.f32 %v5049, 0.0
  %v5082 = vmax.f32 %v5050, 0.0
  %v5083 = vmax.f32 %v5051, 0.0
  %v5084 = vmax.f32 %v5052, 0.0
  %v5085 = vmax.f32 %v5053, 0.0
  %v5086 = vmax.f32 %v5054, 0.0
  %v5087 = vmax.f32 %v5055, 0.0
  %v5088 = vmax.f32 %v5056, 0.0
  %v5089 = vmax.f32 %v5057, 0.0
  %v5090 = vmax.f32 %v5058, 0.0
  %v5091 = vmax.f32 %v5059, 0.0
  %v5092 = vmax.f32 %v5060, 0.0
  %v5093 = vmax.f32 %v5061, 0.0
  %v5094 = vmax.f32 %v5062, 0.0
  %v5095 = vmax.f32 %v5063, 0.0
  %v5096 = vmax.f32 %v5064, 0.0
  %v5097 = vmax.f32 %v5065, 0.0
  %v5098 = vmax.f32 %v5066, 0.0
  %v5099 = vmax.f32 %v5067, 0.0
  %v5100 = vmax.f32 %v5068, 0.0
  %v5101 = vmax.f32 %v5069, 0.0
  %v5102 = vmax.f32 %v5070, 0.0
  %v5103 = vmax.f32 %v5071, 0.0
  %v5104 = vmax.f32 %v5072, 0.0
  %v5105 = vmax.f32 %v5073, 0.0
  %v5106 = vmax.f32 %v5074, 0.0
  %v5107 = vmax.f32 %v5075, 0.0
  %v5108 = vmax.f32 %v5076, 0.0
  %v5109 = vmax.f32 %v5077, 0.0
  %v5110 = vmax.f32 %v5078, 0.0
  %v5111 = vmax.f32 %v5079, 0.0
  %v5112 = vld [vmem:[%s11] sm:$0xff]
  %v5113 = vld [vmem:[%s11 + $0x8] sm:$0xff]
  %v5114 = vld [vmem:[%s11 + $0x10] sm:$0xff]
  %v5115 = vld [vmem:[%s11 + $0x18] sm:$0xff]
  %v5116 = vld [vmem:[%s11 + $0x20] sm:$0xff]
  %v5117 = vld [vmem:[%s11 + $0x28] sm:$0xff]
  %v5118 = vld [vmem:[%s11 + $0x30] sm:$0xff]
  %5119 = vmatprep.subr.mxu0 %v5081
  %5120 = vmatpush1.msra.mxu0 %v5080
  %5121 = vmatprep.subr.mxu0 %v5083
  %5122 = vmatpush1.msra.mxu0 %v5082
  %5123 = vmatprep.subr.mxu0 %v5085
  %5124 = vmatpush1.msra.mxu0 %v5084
  %5125 = vmatprep.subr.mxu0 %v5087
  %5126 = vmatpush1.msra.mxu0 %v5086
  %5127 = vmatprep.subr.mxu0 %v5089
  %5128 = vmatpush1.msra.mxu0 %v5088
  %5129 = vmatprep.subr.mxu0 %v5091
  %5130 = vmatpush1.msra.mxu0 %v5090
  %5131 = vmatprep.subr.mxu0 %v5093
  %5132 = vmatpush1.msra.mxu0 %v5092
  %5133 = vmatprep.subr.mxu0 %v5095
  %5134 = vmatpush1.msra.mxu0 %v5094
  %5135 = vmatprep.subr.mxu0 %v5097
  %5136 = vmatpush1.msra.mxu0 %v5096
  %5137 = vmatprep.subr.mxu0 %v5099
  %5138 = vmatpush1.msra.mxu0 %v5098
  %5139 = vmatprep.subr.mxu0 %v5101
  %5140 = vmatpush1.msra.mxu0 %v5100
  %5141 = vmatprep.subr.mxu0 %v5103
  %5142 = vmatpush1.msra.mxu0 %v5102
  %5143 = vmatprep.subr.mxu0 %v5105
  %5144 = vmatpush1.msra.mxu0 %v5104
  %5145 = vmatprep.subr.mxu0 %v5107
  %5146 = vmatpush1.msra.mxu0 %v5106
  %5147 = vmatprep.subr.mxu0 %v5109
  %5148 = vmatpush1.msra.mxu0 %v5108
  %5149 = vmatprep.subr.mxu0 %v5111
  %5150 = vmatpush1.msra.mxu0 %v5110
  %5151 = vmatprep.subr.mxu0 0.0
  %5152 = vmatpush1.msra.mxu0 0.0
  %5153 = vmatprep.subr.mxu0 0.0
  %5154 = vmatpush1.msra.mxu0 0.0
  %5155 = vmatprep.subr.mxu0 0.0
  %5156 = vmatpush1.msra.mxu0 0.0
  %5157 = vmatprep.subr.mxu0 0.0
  %5158 = vmatpush1.msra.mxu0 0.0
  %5159 = vmatprep.subr.mxu0 0.0
  %5160 = vmatpush1.msra.mxu0 0.0
  %5161 = vmatprep.subr.mxu0 0.0
  %5162 = vmatpush1.msra.mxu0 0.0
  %5163 = vmatprep.subr.mxu0 0.0
  %5164 = vmatpush1.msra.mxu0 0.0
  %5165 = vmatprep.subr.mxu0 0.0
  %5166 = vmatpush1.msra.mxu0 0.0
  %5167 = vmatprep.subr.mxu0 0.0
  %5168 = vmatpush1.msra.mxu0 0.0
  %5169 = vmatprep.subr.mxu0 0.0
  %5170 = vmatpush1.msra.mxu0 0.0
  %5171 = vmatprep.subr.mxu0 0.0
  %5172 = vmatpush1.msra.mxu0 0.0
  %5173 = vmatprep.subr.mxu0 0.0
  %5174 = vmatpush1.msra.mxu0 0.0
  %5175 = vmatprep.subr.mxu0 0.0
  %5176 = vmatpush1.msra.mxu0 0.0
  %5177 = vmatprep.subr.mxu0 0.0
  %5178 = vmatpush1.msra.mxu0 0.0
  %5179 = vmatprep.subr.mxu0 0.0
  %5180 = vmatpush1.msra.mxu0 0.0
  %5181 = vmatprep.subr.mxu0 0.0
  %5182 = vmatpush1.msra.mxu0 0.0
  %5183 = vmatprep.mubr.f32.mxu0 0.0
  %5184 = vmatmul.mubr.f32.gmra.mrb[0].mxu0 %v5112
  %v5185 = vpop.f32.mrb[0].mxu0
  %v5186 = vadd.f32 0.0, %v5185
  %v5187 = vpop.f32.mrb[0].mxu0
  %v5188 = vadd.f32 0.0, %v5187
  %5189 = vmatprep.mubr.f32.mxu0 0.0
  %5190 = vmatmul.mubr.f32.gmra.mrb[0].mxu0 %v5113
  %v5191 = vpop.f32.mrb[0].mxu0
  %v5192 = vadd.f32 0.0, %v5191
  %v5193 = vpop.f32.mrb[0].mxu0
  %v5194 = vadd.f32 0.0, %v5193
  %5195 = vmatprep.mubr.f32.mxu0 0.0
  %5196 = vmatmul.mubr.f32.gmra.mrb[0].mxu0 %v5114
  %v5197 = vpop.f32.mrb[0].mxu0
  %v5198 = vadd.f32 0.0, %v5197
  %v5199 = vpop.f32.mrb[0].mxu0
  %v5200 = vadd.f32 0.0, %v5199
  %5201 = vmatprep.mubr.f32.mxu0 0.0
  %5202 = vmatmul.mubr.f32.gmra.mrb[0].mxu0 %v5115
  %v5203 = vpop.f32.mrb[0].mxu0
  %v5204 = vadd.f32 0.0, %v5203
  %v5205 = vpop.f32.mrb[0].mxu0
  %v5206 = vadd.f32 0.0, %v5205
  %5207 = vmatprep.mubr.f32.mxu0 0.0
  %5208 = vmatmul.mubr.f32.gmra.mrb[0].mxu0 %v5116
  %v5209 = vpop.f32.mrb[0].mxu0
  %v5210 = vadd.f32 0.0, %v5209
  %v5211 = vpop.f32.mrb[0].mxu0
  %v5212 = vadd.f32 0.0, %v5211
  %5213 = vmatprep.mubr.f32.mxu0 0.0
  %5214 = vmatmul.mubr.f32.gmra.mrb[0].mxu0 %v5117
  %v5215 = vpop.f32.mrb[0].mxu0
  %v5216 = vadd.f32 0.0, %v5215
  %v5217 = vpop.f32.mrb[0].mxu0
  %v5218 = vadd.f32 0.0, %v5217
  %5219 = vmatprep.mubr.f32.mxu0 0.0
  %5220 = vmatmul.mubr.f32.gmra.mrb[0].mxu0 %v5118
  %v5221 = vpop.f32.mrb[0].mxu0
  %v5222 = vadd.f32 0.0, %v5221
  %v5223 = vpop.f32.mrb[0].mxu0
  %v5224 = vadd.f32 0.0, %v5223
  %5225 = vdwg.mxu0
  %v5226 = vld [vmem:[%s12] sm:$0xff]
  %v5227 = vld [vmem:[%s12 + $0x8] sm:$0xff]
  %v5228 = vld [vmem:[%s12 + $0x10] sm:$0xff]
  %v5229 = vld [vmem:[%s12 + $0x18] sm:$0xff]
  %v5230 = vld [vmem:[%s12 + $0x20] sm:$0xff]
  %v5231 = vld [vmem:[%s12 + $0x28] sm:$0xff]
  %v5232 = vld [vmem:[%s12 + $0x30] sm:$0xff]
  %v5233 = vld [vmem:[%s12 + $0x38] sm:$0xff]
  %v5234 = vld [vmem:[%s12 + $0x40] sm:$0xff]
  %v5235 = vld [vmem:[%s12 + $0x48] sm:$0xff]
  %v5236 = vld [vmem:[%s12 + $0x50] sm:$0xff]
  %v5237 = vld [vmem:[%s12 + $0x58] sm:$0xff]
  %v5238 = vld [vmem:[%s12 + $0x60] sm:$0xff]
  %v5239 = vld [vmem:[%s12 + $0x68] sm:$0xff]
  %v5240 = vld [vmem:[%s12 + $0x70] sm:$0xff]
  %v5241 = vld [vmem:[%s12 + $0x78] sm:$0xff]
  %v5242 = vld [vmem:[%s12 + $0x80] sm:$0xff]
  %v5243 = vld [vmem:[%s12 + $0x88] sm:$0xff]
  %v5244 = vld [vmem:[%s12 + $0x90] sm:$0xff]
  %v5245 = vld [vmem:[%s12 + $0x98] sm:$0xff]
  %v5246 = vld [vmem:[%s12 + $0xa0] sm:$0xff]
  %v5247 = vld [vmem:[%s12 + $0xa8] sm:$0xff]
  %v5248 = vld [vmem:[%s12 + $0xb0] sm:$0xff]
  %v5249 = vld [vmem:[%s12 + $0xb8] sm:$0xff]
  %v5250 = vld [vmem:[%s12 + $0xc0] sm:$0xff]
  %v5251 = vld [vmem:[%s12 + $0xc8] sm:$0xff]
  %v5252 = vld [vmem:[%s12 + $0xd0] sm:$0xff]
  %v5253 = vld [vmem:[%s12 + $0xd8] sm:$0xff]
  %v5254 = vld [vmem:[%s12 + $0xe0] sm:$0xff]
  %v5255 = vld [vmem:[%s12 + $0xe8] sm:$0xff]
  %v5256 = vld [vmem:[%s12 + $0xf0] sm:$0xff]
  %v5257 = vld [vmem:[%s12 + $0xf8] sm:$0xff]
  %v5258 = vld [vmem:[%s12 + $0x100] sm:$0xff]
  %v5259 = vld [vmem:[%s12 + $0x108] sm:$0xff]
  %v5260 = vld [vmem:[%s12 + $0x110] sm:$0xff]
  %v5261 = vld [vmem:[%s12 + $0x118] sm:$0xff]
  %v5262 = vld [vmem:[%s12 + $0x120] sm:$0xff]
  %v5263 = vld [vmem:[%s12 + $0x128] sm:$0xff]
  %v5264 = vld [vmem:[%s12 + $0x130] sm:$0xff]
  %v5265 = vld [vmem:[%s12 + $0x138] sm:$0xff]
  %v5266 = vld [vmem:[%s12 + $0x140] sm:$0xff]
  %v5267 = vld [vmem:[%s12 + $0x148] sm:$0xff]
  %v5268 = vld [vmem:[%s12 + $0x150] sm:$0xff]
  %v5269 = vld [vmem:[%s12 + $0x158] sm:$0xff]
  %v5270 = vld [vmem:[%s12 + $0x160] sm:$0xff]
  %v5271 = vld [vmem:[%s12 + $0x168] sm:$0xff]
  %v5272 = vld [vmem:[%s12 + $0x170] sm:$0xff]
  %v5273 = vld [vmem:[%s12 + $0x178] sm:$0xff]
  %v5274 = vld [vmem:[%s12 + $0x180] sm:$0xff]
  %v5275 = vld [vmem:[%s12 + $0x188] sm:$0xff]
  %v5276 = vld [vmem:[%s12 + $0x190] sm:$0xff]
  %v5277 = vld [vmem:[%s12 + $0x198] sm:$0xff]
  %v5278 = vld [vmem:[%s12 + $0x1a0] sm:$0xff]
  %v5279 = vld [vmem:[%s12 + $0x1a8] sm:$0xff]
  %v5280 = vld [vmem:[%s12 + $0x1b0] sm:$0xff]
  %v5281 = vld [vmem:[%s12 + $0x1b8] sm:$0xff]
  %s5282 = scalar_lea.vmem %s12, 448
  %v5283 = vld [vmem:[%s5282] sm:$0xff]
  %v5284 = vld [vmem:[%s5282 + $0x8] sm:$0xff]
  %v5285 = vld [vmem:[%s5282 + $0x10] sm:$0xff]
  %v5286 = vld [vmem:[%s5282 + $0x18] sm:$0xff]
  %v5287 = vld [vmem:[%s5282 + $0x20] sm:$0xff]
  %v5288 = vld [vmem:[%s5282 + $0x28] sm:$0xff]
  %v5289 = vld [vmem:[%s5282 + $0x30] sm:$0xff]
  %v5290 = vld [vmem:[%s5282 + $0x38] sm:$0xff]
  %v5291 = vld [vmem:[%s5282 + $0x40] sm:$0xff]
  %v5292 = vld [vmem:[%s5282 + $0x48] sm:$0xff]
  %v5293 = vld [vmem:[%s5282 + $0x50] sm:$0xff]
  %v5294 = vld [vmem:[%s5282 + $0x58] sm:$0xff]
  %v5295 = vld [vmem:[%s5282 + $0x60] sm:$0xff]
  %v5296 = vld [vmem:[%s5282 + $0x68] sm:$0xff]
  %v5297 = vld [vmem:[%s5282 + $0x70] sm:$0xff]
  %v5298 = vld [vmem:[%s5282 + $0x78] sm:$0xff]
  %v5299 = vld [vmem:[%s5282 + $0x80] sm:$0xff]
  %v5300 = vld [vmem:[%s5282 + $0x88] sm:$0xff]
  %v5301 = vld [vmem:[%s5282 + $0x90] sm:$0xff]
  %v5302 = vld [vmem:[%s5282 + $0x98] sm:$0xff]
  %v5303 = vld [vmem:[%s5282 + $0xa0] sm:$0xff]
  %v5304 = vld [vmem:[%s5282 + $0xa8] sm:$0xff]
  %v5305 = vld [vmem:[%s5282 + $0xb0] sm:$0xff]
  %v5306 = vld [vmem:[%s5282 + $0xb8] sm:$0xff]
  %v5307 = vld [vmem:[%s5282 + $0xc0] sm:$0xff]
  %v5308 = vld [vmem:[%s5282 + $0xc8] sm:$0xff]
  %v5309 = vld [vmem:[%s5282 + $0xd0] sm:$0xff]
  %v5310 = vld [vmem:[%s5282 + $0xd8] sm:$0xff]
  %v5311 = vld [vmem:[%s5282 + $0xe0] sm:$0xff]
  %v5312 = vld [vmem:[%s5282 + $0xe8] sm:$0xff]
  %v5313 = vld [vmem:[%s5282 + $0xf0] sm:$0xff]
  %v5314 = vld [vmem:[%s5282 + $0xf8] sm:$0xff]
  %v5315 = vld [vmem:[%s5282 + $0x100] sm:$0xff]
  %v5316 = vld [vmem:[%s5282 + $0x108] sm:$0xff]
  %v5317 = vld [vmem:[%s5282 + $0x110] sm:$0xff]
  %v5318 = vld [vmem:[%s5282 + $0x118] sm:$0xff]
  %v5319 = vld [vmem:[%s5282 + $0x120] sm:$0xff]
  %v5320 = vld [vmem:[%s5282 + $0x128] sm:$0xff]
  %v5321 = vld [vmem:[%s5282 + $0x130] sm:$0xff]
  %v5322 = vld [vmem:[%s5282 + $0x138] sm:$0xff]
  %v5323 = vld [vmem:[%s5282 + $0x140] sm:$0xff]
  %v5324 = vld [vmem:[%s5282 + $0x148] sm:$0xff]
  %v5325 = vld [vmem:[%s5282 + $0x150] sm:$0xff]
  %v5326 = vld [vmem:[%s5282 + $0x158] sm:$0xff]
  %v5327 = vld [vmem:[%s5282 + $0x160] sm:$0xff]
  %v5328 = vld [vmem:[%s5282 + $0x168] sm:$0xff]
  %v5329 = vld [vmem:[%s5282 + $0x170] sm:$0xff]
  %v5330 = vld [vmem:[%s5282 + $0x178] sm:$0xff]
  %v5331 = vld [vmem:[%s5282 + $0x180] sm:$0xff]
  %v5332 = vld [vmem:[%s5282 + $0x188] sm:$0xff]
  %v5333 = vld [vmem:[%s5282 + $0x190] sm:$0xff]
  %v5334 = vld [vmem:[%s5282 + $0x198] sm:$0xff]
  %v5335 = vld [vmem:[%s5282 + $0x1a0] sm:$0xff]
  %v5336 = vld [vmem:[%s5282 + $0x1a8] sm:$0xff]
  %v5337 = vld [vmem:[%s5282 + $0x1b0] sm:$0xff]
  %v5338 = vld [vmem:[%s5282 + $0x1b8] sm:$0xff]
  %vm5339 = vcmask 785408
  %v5341 = vsel %vm5339, %v5194, 0
  %5343 = vmatprep.subr.mxu0 %v5284
  %5344 = vmatpush1.msra.mxu0 %v5283
  %5345 = vmatprep.subr.mxu0 %v5286
  %5346 = vmatpush1.msra.mxu0 %v5285
  %5347 = vmatprep.subr.mxu0 %v5288
  %5348 = vmatpush1.msra.mxu0 %v5287
  %5349 = vmatprep.subr.mxu0 %v5290
  %5350 = vmatpush1.msra.mxu0 %v5289
  %5351 = vmatprep.subr.mxu0 %v5292
  %5352 = vmatpush1.msra.mxu0 %v5291
  %5353 = vmatprep.subr.mxu0 %v5294
  %5354 = vmatpush1.msra.mxu0 %v5293
  %5355 = vmatprep.subr.mxu0 %v5296
  %5356 = vmatpush1.msra.mxu0 %v5295
  %5357 = vmatprep.subr.mxu0 %v5298
  %5358 = vmatpush1.msra.mxu0 %v5297
  %5359 = vmatprep.subr.mxu0 %v5300
  %5360 = vmatpush1.msra.mxu0 %v5299
  %5361 = vmatprep.subr.mxu0 %v5302
  %5362 = vmatpush1.msra.mxu0 %v5301
  %5363 = vmatprep.subr.mxu0 %v5304
  %5364 = vmatpush1.msra.mxu0 %v5303
  %5365 = vmatprep.subr.mxu0 %v5306
  %5366 = vmatpush1.msra.mxu0 %v5305
  %5367 = vmatprep.subr.mxu0 %v5308
  %5368 = vmatpush1.msra.mxu0 %v5307
  %5369 = vmatprep.subr.mxu0 %v5310
  %5370 = vmatpush1.msra.mxu0 %v5309
  %5371 = vmatprep.subr.mxu0 %v5312
  %5372 = vmatpush1.msra.mxu0 %v5311
  %5373 = vmatprep.subr.mxu0 %v5314
  %5374 = vmatpush1.msra.mxu0 %v5313
  %5375 = vmatprep.subr.mxu0 %v5316
  %5376 = vmatpush1.msra.mxu0 %v5315
  %5377 = vmatprep.subr.mxu0 %v5318
  %5378 = vmatpush1.msra.mxu0 %v5317
  %5379 = vmatprep.subr.mxu0 %v5320
  %5380 = vmatpush1.msra.mxu0 %v5319
  %5381 = vmatprep.subr.mxu0 %v5322
  %5382 = vmatpush1.msra.mxu0 %v5321
  %5383 = vmatprep.subr.mxu0 %v5324
  %5384 = vmatpush1.msra.mxu0 %v5323
  %5385 = vmatprep.subr.mxu0 %v5326
  %5386 = vmatpush1.msra.mxu0 %v5325
  %5387 = vmatprep.subr.mxu0 %v5328
  %5388 = vmatpush1.msra.mxu0 %v5327
  %5389 = vmatprep.subr.mxu0 %v5330
  %5390 = vmatpush1.msra.mxu0 %v5329
  %5391 = vmatprep.subr.mxu0 %v5332
  %5392 = vmatpush1.msra.mxu0 %v5331
  %5393 = vmatprep.subr.mxu0 %v5334
  %5394 = vmatpush1.msra.mxu0 %v5333
  %5395 = vmatprep.subr.mxu0 %v5336
  %5396 = vmatpush1.msra.mxu0 %v5335
  %5397 = vmatprep.subr.mxu0 %v5338
  %5398 = vmatpush1.msra.mxu0 %v5337
  %5399 = vmatprep.subr.mxu0 0.0
  %5400 = vmatpush1.msra.mxu0 0.0
  %5401 = vmatprep.subr.mxu0 0.0
  %5402 = vmatpush1.msra.mxu0 0.0
  %5403 = vmatprep.subr.mxu0 0.0
  %5404 = vmatpush1.msra.mxu0 0.0
  %5405 = vmatprep.subr.mxu0 0.0
  %5406 = vmatpush1.msra.mxu0 0.0
  %5407 = vmatprep.mubr.f32.mxu0 %v5341
  %5408 = vmatmul.mubr.f32.gmra.mrb[0].mxu0 %v5192
  %v5409 = vpop.f32.mrb[0].mxu0
  %v5410 = vadd.f32 0.0, %v5409
  %v5411 = vpop.f32.mrb[0].mxu0
  %v5412 = vadd.f32 0.0, %v5411
  %5413 = vdwg.mxu0
  %v5415 = vsel %vm5339, %v5188, 0
  %5417 = vmatprep.subr.mxu0 %v5227
  %5418 = vmatpush1.msra.mxu0 %v5226
  %5419 = vmatprep.subr.mxu0 %v5229
  %5420 = vmatpush1.msra.mxu0 %v5228
  %5421 = vmatprep.subr.mxu0 %v5231
  %5422 = vmatpush1.msra.mxu0 %v5230
  %5423 = vmatprep.subr.mxu0 %v5233
  %5424 = vmatpush1.msra.mxu0 %v5232
  %5425 = vmatprep.subr.mxu0 %v5235
  %5426 = vmatpush1.msra.mxu0 %v5234
  %5427 = vmatprep.subr.mxu0 %v5237
  %5428 = vmatpush1.msra.mxu0 %v5236
  %5429 = vmatprep.subr.mxu0 %v5239
  %5430 = vmatpush1.msra.mxu0 %v5238
  %5431 = vmatprep.subr.mxu0 %v5241
  %5432 = vmatpush1.msra.mxu0 %v5240
  %5433 = vmatprep.subr.mxu0 %v5243
  %5434 = vmatpush1.msra.mxu0 %v5242
  %5435 = vmatprep.subr.mxu0 %v5245
  %5436 = vmatpush1.msra.mxu0 %v5244
  %5437 = vmatprep.subr.mxu0 %v5247
  %5438 = vmatpush1.msra.mxu0 %v5246
  %5439 = vmatprep.subr.mxu0 %v5249
  %5440 = vmatpush1.msra.mxu0 %v5248
  %5441 = vmatprep.subr.mxu0 %v5251
  %5442 = vmatpush1.msra.mxu0 %v5250
  %5443 = vmatprep.subr.mxu0 %v5253
  %5444 = vmatpush1.msra.mxu0 %v5252
  %5445 = vmatprep.subr.mxu0 %v5255
  %5446 = vmatpush1.msra.mxu0 %v5254
  %5447 = vmatprep.subr.mxu0 %v5257
  %5448 = vmatpush1.msra.mxu0 %v5256
  %5449 = vmatprep.subr.mxu0 %v5259
  %5450 = vmatpush1.msra.mxu0 %v5258
  %5451 = vmatprep.subr.mxu0 %v5261
  %5452 = vmatpush1.msra.mxu0 %v5260
  %5453 = vmatprep.subr.mxu0 %v5263
  %5454 = vmatpush1.msra.mxu0 %v5262
  %5455 = vmatprep.subr.mxu0 %v5265
  %5456 = vmatpush1.msra.mxu0 %v5264
  %5457 = vmatprep.subr.mxu0 %v5267
  %5458 = vmatpush1.msra.mxu0 %v5266
  %5459 = vmatprep.subr.mxu0 %v5269
  %5460 = vmatpush1.msra.mxu0 %v5268
  %5461 = vmatprep.subr.mxu0 %v5271
  %5462 = vmatpush1.msra.mxu0 %v5270
  %5463 = vmatprep.subr.mxu0 %v5273
  %5464 = vmatpush1.msra.mxu0 %v5272
  %5465 = vmatprep.subr.mxu0 %v5275
  %5466 = vmatpush1.msra.mxu0 %v5274
  %5467 = vmatprep.subr.mxu0 %v5277
  %5468 = vmatpush1.msra.mxu0 %v5276
  %5469 = vmatprep.subr.mxu0 %v5279
  %5470 = vmatpush1.msra.mxu0 %v5278
  %5471 = vmatprep.subr.mxu0 %v5281
  %5472 = vmatpush1.msra.mxu0 %v5280
  %5473 = vmatprep.subr.mxu0 0.0
  %5474 = vmatpush1.msra.mxu0 0.0
  %5475 = vmatprep.subr.mxu0 0.0
  %5476 = vmatpush1.msra.mxu0 0.0
  %5477 = vmatprep.subr.mxu0 0.0
  %5478 = vmatpush1.msra.mxu0 0.0
  %5479 = vmatprep.subr.mxu0 0.0
  %5480 = vmatpush1.msra.mxu0 0.0
  %5481 = vmatprep.mubr.f32.mxu0 %v5415
  %5482 = vmatmul.mubr.f32.gmra.mrb[0].mxu0 %v5186
  %v5483 = vpop.f32.mrb[0].mxu0
  %v5484 = vadd.f32 %v5410, %v5483
  %v5485 = vpop.f32.mrb[0].mxu0
  %v5486 = vadd.f32 %v5412, %v5485
  %5487 = vdwg.mxu0
  %s5488 = scalar_lea.vmem %s12, 896
  %v5489 = vld [vmem:[%s5488] sm:$0xff]
  %v5490 = vld [vmem:[%s5488 + $0x8] sm:$0xff]
  %v5491 = vld [vmem:[%s5488 + $0x10] sm:$0xff]
  %v5492 = vld [vmem:[%s5488 + $0x18] sm:$0xff]
  %v5493 = vld [vmem:[%s5488 + $0x20] sm:$0xff]
  %v5494 = vld [vmem:[%s5488 + $0x28] sm:$0xff]
  %v5495 = vld [vmem:[%s5488 + $0x30] sm:$0xff]
  %v5496 = vld [vmem:[%s5488 + $0x38] sm:$0xff]
  %v5497 = vld [vmem:[%s5488 + $0x40] sm:$0xff]
  %v5498 = vld [vmem:[%s5488 + $0x48] sm:$0xff]
  %v5499 = vld [vmem:[%s5488 + $0x50] sm:$0xff]
  %v5500 = vld [vmem:[%s5488 + $0x58] sm:$0xff]
  %v5501 = vld [vmem:[%s5488 + $0x60] sm:$0xff]
  %v5502 = vld [vmem:[%s5488 + $0x68] sm:$0xff]
  %v5503 = vld [vmem:[%s5488 + $0x70] sm:$0xff]
  %v5504 = vld [vmem:[%s5488 + $0x78] sm:$0xff]
  %v5505 = vld [vmem:[%s5488 + $0x80] sm:$0xff]
  %v5506 = vld [vmem:[%s5488 + $0x88] sm:$0xff]
  %v5507 = vld [vmem:[%s5488 + $0x90] sm:$0xff]
  %v5508 = vld [vmem:[%s5488 + $0x98] sm:$0xff]
  %v5509 = vld [vmem:[%s5488 + $0xa0] sm:$0xff]
  %v5510 = vld [vmem:[%s5488 + $0xa8] sm:$0xff]
  %v5511 = vld [vmem:[%s5488 + $0xb0] sm:$0xff]
  %v5512 = vld [vmem:[%s5488 + $0xb8] sm:$0xff]
  %v5513 = vld [vmem:[%s5488 + $0xc0] sm:$0xff]
  %v5514 = vld [vmem:[%s5488 + $0xc8] sm:$0xff]
  %v5515 = vld [vmem:[%s5488 + $0xd0] sm:$0xff]
  %v5516 = vld [vmem:[%s5488 + $0xd8] sm:$0xff]
  %v5517 = vld [vmem:[%s5488 + $0xe0] sm:$0xff]
  %v5518 = vld [vmem:[%s5488 + $0xe8] sm:$0xff]
  %v5519 = vld [vmem:[%s5488 + $0xf0] sm:$0xff]
  %v5520 = vld [vmem:[%s5488 + $0xf8] sm:$0xff]
  %v5521 = vld [vmem:[%s5488 + $0x100] sm:$0xff]
  %v5522 = vld [vmem:[%s5488 + $0x108] sm:$0xff]
  %v5523 = vld [vmem:[%s5488 + $0x110] sm:$0xff]
  %v5524 = vld [vmem:[%s5488 + $0x118] sm:$0xff]
  %v5525 = vld [vmem:[%s5488 + $0x120] sm:$0xff]
  %v5526 = vld [vmem:[%s5488 + $0x128] sm:$0xff]
  %v5527 = vld [vmem:[%s5488 + $0x130] sm:$0xff]
  %v5528 = vld [vmem:[%s5488 + $0x138] sm:$0xff]
  %v5529 = vld [vmem:[%s5488 + $0x140] sm:$0xff]
  %v5530 = vld [vmem:[%s5488 + $0x148] sm:$0xff]
  %v5531 = vld [vmem:[%s5488 + $0x150] sm:$0xff]
  %v5532 = vld [vmem:[%s5488 + $0x158] sm:$0xff]
  %v5533 = vld [vmem:[%s5488 + $0x160] sm:$0xff]
  %v5534 = vld [vmem:[%s5488 + $0x168] sm:$0xff]
  %v5535 = vld [vmem:[%s5488 + $0x170] sm:$0xff]
  %v5536 = vld [vmem:[%s5488 + $0x178] sm:$0xff]
  %v5537 = vld [vmem:[%s5488 + $0x180] sm:$0xff]
  %v5538 = vld [vmem:[%s5488 + $0x188] sm:$0xff]
  %v5539 = vld [vmem:[%s5488 + $0x190] sm:$0xff]
  %v5540 = vld [vmem:[%s5488 + $0x198] sm:$0xff]
  %v5541 = vld [vmem:[%s5488 + $0x1a0] sm:$0xff]
  %v5542 = vld [vmem:[%s5488 + $0x1a8] sm:$0xff]
  %v5543 = vld [vmem:[%s5488 + $0x1b0] sm:$0xff]
  %v5544 = vld [vmem:[%s5488 + $0x1b8] sm:$0xff]
  %v5546 = vsel %vm5339, %v5200, 0
  %5548 = vmatprep.subr.mxu0 %v5490
  %5549 = vmatpush1.msra.mxu0 %v5489
  %5550 = vmatprep.subr.mxu0 %v5492
  %5551 = vmatpush1.msra.mxu0 %v5491
  %5552 = vmatprep.subr.mxu0 %v5494
  %5553 = vmatpush1.msra.mxu0 %v5493
  %5554 = vmatprep.subr.mxu0 %v5496
  %5555 = vmatpush1.msra.mxu0 %v5495
  %5556 = vmatprep.subr.mxu0 %v5498
  %5557 = vmatpush1.msra.mxu0 %v5497
  %5558 = vmatprep.subr.mxu0 %v5500
  %5559 = vmatpush1.msra.mxu0 %v5499
  %5560 = vmatprep.subr.mxu0 %v5502
  %5561 = vmatpush1.msra.mxu0 %v5501
  %5562 = vmatprep.subr.mxu0 %v5504
  %5563 = vmatpush1.msra.mxu0 %v5503
  %5564 = vmatprep.subr.mxu0 %v5506
  %5565 = vmatpush1.msra.mxu0 %v5505
  %5566 = vmatprep.subr.mxu0 %v5508
  %5567 = vmatpush1.msra.mxu0 %v5507
  %5568 = vmatprep.subr.mxu0 %v5510
  %5569 = vmatpush1.msra.mxu0 %v5509
  %5570 = vmatprep.subr.mxu0 %v5512
  %5571 = vmatpush1.msra.mxu0 %v5511
  %5572 = vmatprep.subr.mxu0 %v5514
  %5573 = vmatpush1.msra.mxu0 %v5513
  %5574 = vmatprep.subr.mxu0 %v5516
  %5575 = vmatpush1.msra.mxu0 %v5515
  %5576 = vmatprep.subr.mxu0 %v5518
  %5577 = vmatpush1.msra.mxu0 %v5517
  %5578 = vmatprep.subr.mxu0 %v5520
  %5579 = vmatpush1.msra.mxu0 %v5519
  %5580 = vmatprep.subr.mxu0 %v5522
  %5581 = vmatpush1.msra.mxu0 %v5521
  %5582 = vmatprep.subr.mxu0 %v5524
  %5583 = vmatpush1.msra.mxu0 %v5523
  %5584 = vmatprep.subr.mxu0 %v5526
  %5585 = vmatpush1.msra.mxu0 %v5525
  %5586 = vmatprep.subr.mxu0 %v5528
  %5587 = vmatpush1.msra.mxu0 %v5527
  %5588 = vmatprep.subr.mxu0 %v5530
  %5589 = vmatpush1.msra.mxu0 %v5529
  %5590 = vmatprep.subr.mxu0 %v5532
  %5591 = vmatpush1.msra.mxu0 %v5531
  %5592 = vmatprep.subr.mxu0 %v5534
  %5593 = vmatpush1.msra.mxu0 %v5533
  %5594 = vmatprep.subr.mxu0 %v5536
  %5595 = vmatpush1.msra.mxu0 %v5535
  %5596 = vmatprep.subr.mxu0 %v5538
  %5597 = vmatpush1.msra.mxu0 %v5537
  %5598 = vmatprep.subr.mxu0 %v5540
  %5599 = vmatpush1.msra.mxu0 %v5539
  %5600 = vmatprep.subr.mxu0 %v5542
  %5601 = vmatpush1.msra.mxu0 %v5541
  %5602 = vmatprep.subr.mxu0 %v5544
  %5603 = vmatpush1.msra.mxu0 %v5543
  %5604 = vmatprep.subr.mxu0 0.0
  %5605 = vmatpush1.msra.mxu0 0.0
  %5606 = vmatprep.subr.mxu0 0.0
  %5607 = vmatpush1.msra.mxu0 0.0
  %5608 = vmatprep.subr.mxu0 0.0
  %5609 = vmatpush1.msra.mxu0 0.0
  %5610 = vmatprep.subr.mxu0 0.0
  %5611 = vmatpush1.msra.mxu0 0.0
  %5612 = vmatprep.mubr.f32.mxu0 %v5546
  %5613 = vmatmul.mubr.f32.gmra.mrb[0].mxu0 %v5198
  %v5614 = vpop.f32.mrb[0].mxu0
  %v5615 = vadd.f32 0.0, %v5614
  %v5616 = vpop.f32.mrb[0].mxu0
  %v5617 = vadd.f32 0.0, %v5616
  %5618 = vdwg.mxu0
  %v5619 = vadd.f32 %v5484, %v5615
  %v5620 = vadd.f32 %v5486, %v5617
  %s5621 = scalar_lea.vmem %s12, 1344
  %v5622 = vld [vmem:[%s5621] sm:$0xff]
  %v5623 = vld [vmem:[%s5621 + $0x8] sm:$0xff]
  %v5624 = vld [vmem:[%s5621 + $0x10] sm:$0xff]
  %v5625 = vld [vmem:[%s5621 + $0x18] sm:$0xff]
  %v5626 = vld [vmem:[%s5621 + $0x20] sm:$0xff]
  %v5627 = vld [vmem:[%s5621 + $0x28] sm:$0xff]
  %v5628 = vld [vmem:[%s5621 + $0x30] sm:$0xff]
  %v5629 = vld [vmem:[%s5621 + $0x38] sm:$0xff]
  %v5630 = vld [vmem:[%s5621 + $0x40] sm:$0xff]
  %v5631 = vld [vmem:[%s5621 + $0x48] sm:$0xff]
  %v5632 = vld [vmem:[%s5621 + $0x50] sm:$0xff]
  %v5633 = vld [vmem:[%s5621 + $0x58] sm:$0xff]
  %v5634 = vld [vmem:[%s5621 + $0x60] sm:$0xff]
  %v5635 = vld [vmem:[%s5621 + $0x68] sm:$0xff]
  %v5636 = vld [vmem:[%s5621 + $0x70] sm:$0xff]
  %v5637 = vld [vmem:[%s5621 + $0x78] sm:$0xff]
  %v5638 = vld [vmem:[%s5621 + $0x80] sm:$0xff]
  %v5639 = vld [vmem:[%s5621 + $0x88] sm:$0xff]
  %v5640 = vld [vmem:[%s5621 + $0x90] sm:$0xff]
  %v5641 = vld [vmem:[%s5621 + $0x98] sm:$0xff]
  %v5642 = vld [vmem:[%s5621 + $0xa0] sm:$0xff]
  %v5643 = vld [vmem:[%s5621 + $0xa8] sm:$0xff]
  %v5644 = vld [vmem:[%s5621 + $0xb0] sm:$0xff]
  %v5645 = vld [vmem:[%s5621 + $0xb8] sm:$0xff]
  %v5646 = vld [vmem:[%s5621 + $0xc0] sm:$0xff]
  %v5647 = vld [vmem:[%s5621 + $0xc8] sm:$0xff]
  %v5648 = vld [vmem:[%s5621 + $0xd0] sm:$0xff]
  %v5649 = vld [vmem:[%s5621 + $0xd8] sm:$0xff]
  %v5650 = vld [vmem:[%s5621 + $0xe0] sm:$0xff]
  %v5651 = vld [vmem:[%s5621 + $0xe8] sm:$0xff]
  %v5652 = vld [vmem:[%s5621 + $0xf0] sm:$0xff]
  %v5653 = vld [vmem:[%s5621 + $0xf8] sm:$0xff]
  %v5654 = vld [vmem:[%s5621 + $0x100] sm:$0xff]
  %v5655 = vld [vmem:[%s5621 + $0x108] sm:$0xff]
  %v5656 = vld [vmem:[%s5621 + $0x110] sm:$0xff]
  %v5657 = vld [vmem:[%s5621 + $0x118] sm:$0xff]
  %v5658 = vld [vmem:[%s5621 + $0x120] sm:$0xff]
  %v5659 = vld [vmem:[%s5621 + $0x128] sm:$0xff]
  %v5660 = vld [vmem:[%s5621 + $0x130] sm:$0xff]
  %v5661 = vld [vmem:[%s5621 + $0x138] sm:$0xff]
  %v5662 = vld [vmem:[%s5621 + $0x140] sm:$0xff]
  %v5663 = vld [vmem:[%s5621 + $0x148] sm:$0xff]
  %v5664 = vld [vmem:[%s5621 + $0x150] sm:$0xff]
  %v5665 = vld [vmem:[%s5621 + $0x158] sm:$0xff]
  %v5666 = vld [vmem:[%s5621 + $0x160] sm:$0xff]
  %v5667 = vld [vmem:[%s5621 + $0x168] sm:$0xff]
  %v5668 = vld [vmem:[%s5621 + $0x170] sm:$0xff]
  %v5669 = vld [vmem:[%s5621 + $0x178] sm:$0xff]
  %v5670 = vld [vmem:[%s5621 + $0x180] sm:$0xff]
  %v5671 = vld [vmem:[%s5621 + $0x188] sm:$0xff]
  %v5672 = vld [vmem:[%s5621 + $0x190] sm:$0xff]
  %v5673 = vld [vmem:[%s5621 + $0x198] sm:$0xff]
  %v5674 = vld [vmem:[%s5621 + $0x1a0] sm:$0xff]
  %v5675 = vld [vmem:[%s5621 + $0x1a8] sm:$0xff]
  %v5676 = vld [vmem:[%s5621 + $0x1b0] sm:$0xff]
  %v5677 = vld [vmem:[%s5621 + $0x1b8] sm:$0xff]
  %v5679 = vsel %vm5339, %v5206, 0
  %5681 = vmatprep.subr.mxu0 %v5623
  %5682 = vmatpush1.msra.mxu0 %v5622
  %5683 = vmatprep.subr.mxu0 %v5625
  %5684 = vmatpush1.msra.mxu0 %v5624
  %5685 = vmatprep.subr.mxu0 %v5627
  %5686 = vmatpush1.msra.mxu0 %v5626
  %5687 = vmatprep.subr.mxu0 %v5629
  %5688 = vmatpush1.msra.mxu0 %v5628
  %5689 = vmatprep.subr.mxu0 %v5631
  %5690 = vmatpush1.msra.mxu0 %v5630
  %5691 = vmatprep.subr.mxu0 %v5633
  %5692 = vmatpush1.msra.mxu0 %v5632
  %5693 = vmatprep.subr.mxu0 %v5635
  %5694 = vmatpush1.msra.mxu0 %v5634
  %5695 = vmatprep.subr.mxu0 %v5637
  %5696 = vmatpush1.msra.mxu0 %v5636
  %5697 = vmatprep.subr.mxu0 %v5639
  %5698 = vmatpush1.msra.mxu0 %v5638
  %5699 = vmatprep.subr.mxu0 %v5641
  %5700 = vmatpush1.msra.mxu0 %v5640
  %5701 = vmatprep.subr.mxu0 %v5643
  %5702 = vmatpush1.msra.mxu0 %v5642
  %5703 = vmatprep.subr.mxu0 %v5645
  %5704 = vmatpush1.msra.mxu0 %v5644
  %5705 = vmatprep.subr.mxu0 %v5647
  %5706 = vmatpush1.msra.mxu0 %v5646
  %5707 = vmatprep.subr.mxu0 %v5649
  %5708 = vmatpush1.msra.mxu0 %v5648
  %5709 = vmatprep.subr.mxu0 %v5651
  %5710 = vmatpush1.msra.mxu0 %v5650
  %5711 = vmatprep.subr.mxu0 %v5653
  %5712 = vmatpush1.msra.mxu0 %v5652
  %5713 = vmatprep.subr.mxu0 %v5655
  %5714 = vmatpush1.msra.mxu0 %v5654
  %5715 = vmatprep.subr.mxu0 %v5657
  %5716 = vmatpush1.msra.mxu0 %v5656
  %5717 = vmatprep.subr.mxu0 %v5659
  %5718 = vmatpush1.msra.mxu0 %v5658
  %5719 = vmatprep.subr.mxu0 %v5661
  %5720 = vmatpush1.msra.mxu0 %v5660
  %5721 = vmatprep.subr.mxu0 %v5663
  %5722 = vmatpush1.msra.mxu0 %v5662
  %5723 = vmatprep.subr.mxu0 %v5665
  %5724 = vmatpush1.msra.mxu0 %v5664
  %5725 = vmatprep.subr.mxu0 %v5667
  %5726 = vmatpush1.msra.mxu0 %v5666
  %5727 = vmatprep.subr.mxu0 %v5669
  %5728 = vmatpush1.msra.mxu0 %v5668
  %5729 = vmatprep.subr.mxu0 %v5671
  %5730 = vmatpush1.msra.mxu0 %v5670
  %5731 = vmatprep.subr.mxu0 %v5673
  %5732 = vmatpush1.msra.mxu0 %v5672
  %5733 = vmatprep.subr.mxu0 %v5675
  %5734 = vmatpush1.msra.mxu0 %v5674
  %5735 = vmatprep.subr.mxu0 %v5677
  %5736 = vmatpush1.msra.mxu0 %v5676
  %5737 = vmatprep.subr.mxu0 0.0
  %5738 = vmatpush1.msra.mxu0 0.0
  %5739 = vmatprep.subr.mxu0 0.0
  %5740 = vmatpush1.msra.mxu0 0.0
  %5741 = vmatprep.subr.mxu0 0.0
  %5742 = vmatpush1.msra.mxu0 0.0
  %5743 = vmatprep.subr.mxu0 0.0
  %5744 = vmatpush1.msra.mxu0 0.0
  %5745 = vmatprep.mubr.f32.mxu0 %v5679
  %5746 = vmatmul.mubr.f32.gmra.mrb[0].mxu0 %v5204
  %v5747 = vpop.f32.mrb[0].mxu0
  %v5748 = vadd.f32 0.0, %v5747
  %v5749 = vpop.f32.mrb[0].mxu0
  %v5750 = vadd.f32 0.0, %v5749
  %5751 = vdwg.mxu0
  %v5752 = vadd.f32 %v5619, %v5748
  %v5753 = vadd.f32 %v5620, %v5750
  %s5754 = scalar_lea.vmem %s12, 1792
  %v5755 = vld [vmem:[%s5754] sm:$0xff]
  %v5756 = vld [vmem:[%s5754 + $0x8] sm:$0xff]
  %v5757 = vld [vmem:[%s5754 + $0x10] sm:$0xff]
  %v5758 = vld [vmem:[%s5754 + $0x18] sm:$0xff]
  %v5759 = vld [vmem:[%s5754 + $0x20] sm:$0xff]
  %v5760 = vld [vmem:[%s5754 + $0x28] sm:$0xff]
  %v5761 = vld [vmem:[%s5754 + $0x30] sm:$0xff]
  %v5762 = vld [vmem:[%s5754 + $0x38] sm:$0xff]
  %v5763 = vld [vmem:[%s5754 + $0x40] sm:$0xff]
  %v5764 = vld [vmem:[%s5754 + $0x48] sm:$0xff]
  %v5765 = vld [vmem:[%s5754 + $0x50] sm:$0xff]
  %v5766 = vld [vmem:[%s5754 + $0x58] sm:$0xff]
  %v5767 = vld [vmem:[%s5754 + $0x60] sm:$0xff]
  %v5768 = vld [vmem:[%s5754 + $0x68] sm:$0xff]
  %v5769 = vld [vmem:[%s5754 + $0x70] sm:$0xff]
  %v5770 = vld [vmem:[%s5754 + $0x78] sm:$0xff]
  %v5771 = vld [vmem:[%s5754 + $0x80] sm:$0xff]
  %v5772 = vld [vmem:[%s5754 + $0x88] sm:$0xff]
  %v5773 = vld [vmem:[%s5754 + $0x90] sm:$0xff]
  %v5774 = vld [vmem:[%s5754 + $0x98] sm:$0xff]
  %v5775 = vld [vmem:[%s5754 + $0xa0] sm:$0xff]
  %v5776 = vld [vmem:[%s5754 + $0xa8] sm:$0xff]
  %v5777 = vld [vmem:[%s5754 + $0xb0] sm:$0xff]
  %v5778 = vld [vmem:[%s5754 + $0xb8] sm:$0xff]
  %v5779 = vld [vmem:[%s5754 + $0xc0] sm:$0xff]
  %v5780 = vld [vmem:[%s5754 + $0xc8] sm:$0xff]
  %v5781 = vld [vmem:[%s5754 + $0xd0] sm:$0xff]
  %v5782 = vld [vmem:[%s5754 + $0xd8] sm:$0xff]
  %v5783 = vld [vmem:[%s5754 + $0xe0] sm:$0xff]
  %v5784 = vld [vmem:[%s5754 + $0xe8] sm:$0xff]
  %v5785 = vld [vmem:[%s5754 + $0xf0] sm:$0xff]
  %v5786 = vld [vmem:[%s5754 + $0xf8] sm:$0xff]
  %v5787 = vld [vmem:[%s5754 + $0x100] sm:$0xff]
  %v5788 = vld [vmem:[%s5754 + $0x108] sm:$0xff]
  %v5789 = vld [vmem:[%s5754 + $0x110] sm:$0xff]
  %v5790 = vld [vmem:[%s5754 + $0x118] sm:$0xff]
  %v5791 = vld [vmem:[%s5754 + $0x120] sm:$0xff]
  %v5792 = vld [vmem:[%s5754 + $0x128] sm:$0xff]
  %v5793 = vld [vmem:[%s5754 + $0x130] sm:$0xff]
  %v5794 = vld [vmem:[%s5754 + $0x138] sm:$0xff]
  %v5795 = vld [vmem:[%s5754 + $0x140] sm:$0xff]
  %v5796 = vld [vmem:[%s5754 + $0x148] sm:$0xff]
  %v5797 = vld [vmem:[%s5754 + $0x150] sm:$0xff]
  %v5798 = vld [vmem:[%s5754 + $0x158] sm:$0xff]
  %v5799 = vld [vmem:[%s5754 + $0x160] sm:$0xff]
  %v5800 = vld [vmem:[%s5754 + $0x168] sm:$0xff]
  %v5801 = vld [vmem:[%s5754 + $0x170] sm:$0xff]
  %v5802 = vld [vmem:[%s5754 + $0x178] sm:$0xff]
  %v5803 = vld [vmem:[%s5754 + $0x180] sm:$0xff]
  %v5804 = vld [vmem:[%s5754 + $0x188] sm:$0xff]
  %v5805 = vld [vmem:[%s5754 + $0x190] sm:$0xff]
  %v5806 = vld [vmem:[%s5754 + $0x198] sm:$0xff]
  %v5807 = vld [vmem:[%s5754 + $0x1a0] sm:$0xff]
  %v5808 = vld [vmem:[%s5754 + $0x1a8] sm:$0xff]
  %v5809 = vld [vmem:[%s5754 + $0x1b0] sm:$0xff]
  %v5810 = vld [vmem:[%s5754 + $0x1b8] sm:$0xff]
  %v5812 = vsel %vm5339, %v5212, 0
  %5814 = vmatprep.subr.mxu0 %v5756
  %5815 = vmatpush1.msra.mxu0 %v5755
  %5816 = vmatprep.subr.mxu0 %v5758
  %5817 = vmatpush1.msra.mxu0 %v5757
  %5818 = vmatprep.subr.mxu0 %v5760
  %5819 = vmatpush1.msra.mxu0 %v5759
  %5820 = vmatprep.subr.mxu0 %v5762
  %5821 = vmatpush1.msra.mxu0 %v5761
  %5822 = vmatprep.subr.mxu0 %v5764
  %5823 = vmatpush1.msra.mxu0 %v5763
  %5824 = vmatprep.subr.mxu0 %v5766
  %5825 = vmatpush1.msra.mxu0 %v5765
  %5826 = vmatprep.subr.mxu0 %v5768
  %5827 = vmatpush1.msra.mxu0 %v5767
  %5828 = vmatprep.subr.mxu0 %v5770
  %5829 = vmatpush1.msra.mxu0 %v5769
  %5830 = vmatprep.subr.mxu0 %v5772
  %5831 = vmatpush1.msra.mxu0 %v5771
  %5832 = vmatprep.subr.mxu0 %v5774
  %5833 = vmatpush1.msra.mxu0 %v5773
  %5834 = vmatprep.subr.mxu0 %v5776
  %5835 = vmatpush1.msra.mxu0 %v5775
  %5836 = vmatprep.subr.mxu0 %v5778
  %5837 = vmatpush1.msra.mxu0 %v5777
  %5838 = vmatprep.subr.mxu0 %v5780
  %5839 = vmatpush1.msra.mxu0 %v5779
  %5840 = vmatprep.subr.mxu0 %v5782
  %5841 = vmatpush1.msra.mxu0 %v5781
  %5842 = vmatprep.subr.mxu0 %v5784
  %5843 = vmatpush1.msra.mxu0 %v5783
  %5844 = vmatprep.subr.mxu0 %v5786
  %5845 = vmatpush1.msra.mxu0 %v5785
  %5846 = vmatprep.subr.mxu0 %v5788
  %5847 = vmatpush1.msra.mxu0 %v5787
  %5848 = vmatprep.subr.mxu0 %v5790
  %5849 = vmatpush1.msra.mxu0 %v5789
  %5850 = vmatprep.subr.mxu0 %v5792
  %5851 = vmatpush1.msra.mxu0 %v5791
  %5852 = vmatprep.subr.mxu0 %v5794
  %5853 = vmatpush1.msra.mxu0 %v5793
  %5854 = vmatprep.subr.mxu0 %v5796
  %5855 = vmatpush1.msra.mxu0 %v5795
  %5856 = vmatprep.subr.mxu0 %v5798
  %5857 = vmatpush1.msra.mxu0 %v5797
  %5858 = vmatprep.subr.mxu0 %v5800
  %5859 = vmatpush1.msra.mxu0 %v5799
  %5860 = vmatprep.subr.mxu0 %v5802
  %5861 = vmatpush1.msra.mxu0 %v5801
  %5862 = vmatprep.subr.mxu0 %v5804
  %5863 = vmatpush1.msra.mxu0 %v5803
  %5864 = vmatprep.subr.mxu0 %v5806
  %5865 = vmatpush1.msra.mxu0 %v5805
  %5866 = vmatprep.subr.mxu0 %v5808
  %5867 = vmatpush1.msra.mxu0 %v5807
  %5868 = vmatprep.subr.mxu0 %v5810
  %5869 = vmatpush1.msra.mxu0 %v5809
  %5870 = vmatprep.subr.mxu0 0.0
  %5871 = vmatpush1.msra.mxu0 0.0
  %5872 = vmatprep.subr.mxu0 0.0
  %5873 = vmatpush1.msra.mxu0 0.0
  %5874 = vmatprep.subr.mxu0 0.0
  %5875 = vmatpush1.msra.mxu0 0.0
  %5876 = vmatprep.subr.mxu0 0.0
  %5877 = vmatpush1.msra.mxu0 0.0
  %5878 = vmatprep.mubr.f32.mxu0 %v5812
  %5879 = vmatmul.mubr.f32.gmra.mrb[0].mxu0 %v5210
  %v5880 = vpop.f32.mrb[0].mxu0
  %v5881 = vadd.f32 0.0, %v5880
  %v5882 = vpop.f32.mrb[0].mxu0
  %v5883 = vadd.f32 0.0, %v5882
  %5884 = vdwg.mxu0
  %v5885 = vadd.f32 %v5752, %v5881
  %v5886 = vadd.f32 %v5753, %v5883
  %s5887 = scalar_lea.vmem %s12, 2240
  %v5888 = vld [vmem:[%s5887] sm:$0xff]
  %v5889 = vld [vmem:[%s5887 + $0x8] sm:$0xff]
  %v5890 = vld [vmem:[%s5887 + $0x10] sm:$0xff]
  %v5891 = vld [vmem:[%s5887 + $0x18] sm:$0xff]
  %v5892 = vld [vmem:[%s5887 + $0x20] sm:$0xff]
  %v5893 = vld [vmem:[%s5887 + $0x28] sm:$0xff]
  %v5894 = vld [vmem:[%s5887 + $0x30] sm:$0xff]
  %v5895 = vld [vmem:[%s5887 + $0x38] sm:$0xff]
  %v5896 = vld [vmem:[%s5887 + $0x40] sm:$0xff]
  %v5897 = vld [vmem:[%s5887 + $0x48] sm:$0xff]
  %v5898 = vld [vmem:[%s5887 + $0x50] sm:$0xff]
  %v5899 = vld [vmem:[%s5887 + $0x58] sm:$0xff]
  %v5900 = vld [vmem:[%s5887 + $0x60] sm:$0xff]
  %v5901 = vld [vmem:[%s5887 + $0x68] sm:$0xff]
  %v5902 = vld [vmem:[%s5887 + $0x70] sm:$0xff]
  %v5903 = vld [vmem:[%s5887 + $0x78] sm:$0xff]
  %v5904 = vld [vmem:[%s5887 + $0x80] sm:$0xff]
  %v5905 = vld [vmem:[%s5887 + $0x88] sm:$0xff]
  %v5906 = vld [vmem:[%s5887 + $0x90] sm:$0xff]
  %v5907 = vld [vmem:[%s5887 + $0x98] sm:$0xff]
  %v5908 = vld [vmem:[%s5887 + $0xa0] sm:$0xff]
  %v5909 = vld [vmem:[%s5887 + $0xa8] sm:$0xff]
  %v5910 = vld [vmem:[%s5887 + $0xb0] sm:$0xff]
  %v5911 = vld [vmem:[%s5887 + $0xb8] sm:$0xff]
  %v5912 = vld [vmem:[%s5887 + $0xc0] sm:$0xff]
  %v5913 = vld [vmem:[%s5887 + $0xc8] sm:$0xff]
  %v5914 = vld [vmem:[%s5887 + $0xd0] sm:$0xff]
  %v5915 = vld [vmem:[%s5887 + $0xd8] sm:$0xff]
  %v5916 = vld [vmem:[%s5887 + $0xe0] sm:$0xff]
  %v5917 = vld [vmem:[%s5887 + $0xe8] sm:$0xff]
  %v5918 = vld [vmem:[%s5887 + $0xf0] sm:$0xff]
  %v5919 = vld [vmem:[%s5887 + $0xf8] sm:$0xff]
  %v5920 = vld [vmem:[%s5887 + $0x100] sm:$0xff]
  %v5921 = vld [vmem:[%s5887 + $0x108] sm:$0xff]
  %v5922 = vld [vmem:[%s5887 + $0x110] sm:$0xff]
  %v5923 = vld [vmem:[%s5887 + $0x118] sm:$0xff]
  %v5924 = vld [vmem:[%s5887 + $0x120] sm:$0xff]
  %v5925 = vld [vmem:[%s5887 + $0x128] sm:$0xff]
  %v5926 = vld [vmem:[%s5887 + $0x130] sm:$0xff]
  %v5927 = vld [vmem:[%s5887 + $0x138] sm:$0xff]
  %v5928 = vld [vmem:[%s5887 + $0x140] sm:$0xff]
  %v5929 = vld [vmem:[%s5887 + $0x148] sm:$0xff]
  %v5930 = vld [vmem:[%s5887 + $0x150] sm:$0xff]
  %v5931 = vld [vmem:[%s5887 + $0x158] sm:$0xff]
  %v5932 = vld [vmem:[%s5887 + $0x160] sm:$0xff]
  %v5933 = vld [vmem:[%s5887 + $0x168] sm:$0xff]
  %v5934 = vld [vmem:[%s5887 + $0x170] sm:$0xff]
  %v5935 = vld [vmem:[%s5887 + $0x178] sm:$0xff]
  %v5936 = vld [vmem:[%s5887 + $0x180] sm:$0xff]
  %v5937 = vld [vmem:[%s5887 + $0x188] sm:$0xff]
  %v5938 = vld [vmem:[%s5887 + $0x190] sm:$0xff]
  %v5939 = vld [vmem:[%s5887 + $0x198] sm:$0xff]
  %v5940 = vld [vmem:[%s5887 + $0x1a0] sm:$0xff]
  %v5941 = vld [vmem:[%s5887 + $0x1a8] sm:$0xff]
  %v5942 = vld [vmem:[%s5887 + $0x1b0] sm:$0xff]
  %v5943 = vld [vmem:[%s5887 + $0x1b8] sm:$0xff]
  %v5945 = vsel %vm5339, %v5218, 0
  %5947 = vmatprep.subr.mxu0 %v5889
  %5948 = vmatpush1.msra.mxu0 %v5888
  %5949 = vmatprep.subr.mxu0 %v5891
  %5950 = vmatpush1.msra.mxu0 %v5890
  %5951 = vmatprep.subr.mxu0 %v5893
  %5952 = vmatpush1.msra.mxu0 %v5892
  %5953 = vmatprep.subr.mxu0 %v5895
  %5954 = vmatpush1.msra.mxu0 %v5894
  %5955 = vmatprep.subr.mxu0 %v5897
  %5956 = vmatpush1.msra.mxu0 %v5896
  %5957 = vmatprep.subr.mxu0 %v5899
  %5958 = vmatpush1.msra.mxu0 %v5898
  %5959 = vmatprep.subr.mxu0 %v5901
  %5960 = vmatpush1.msra.mxu0 %v5900
  %5961 = vmatprep.subr.mxu0 %v5903
  %5962 = vmatpush1.msra.mxu0 %v5902
  %5963 = vmatprep.subr.mxu0 %v5905
  %5964 = vmatpush1.msra.mxu0 %v5904
  %5965 = vmatprep.subr.mxu0 %v5907
  %5966 = vmatpush1.msra.mxu0 %v5906
  %5967 = vmatprep.subr.mxu0 %v5909
  %5968 = vmatpush1.msra.mxu0 %v5908
  %5969 = vmatprep.subr.mxu0 %v5911
  %5970 = vmatpush1.msra.mxu0 %v5910
  %5971 = vmatprep.subr.mxu0 %v5913
  %5972 = vmatpush1.msra.mxu0 %v5912
  %5973 = vmatprep.subr.mxu0 %v5915
  %5974 = vmatpush1.msra.mxu0 %v5914
  %5975 = vmatprep.subr.mxu0 %v5917
  %5976 = vmatpush1.msra.mxu0 %v5916
  %5977 = vmatprep.subr.mxu0 %v5919
  %5978 = vmatpush1.msra.mxu0 %v5918
  %5979 = vmatprep.subr.mxu0 %v5921
  %5980 = vmatpush1.msra.mxu0 %v5920
  %5981 = vmatprep.subr.mxu0 %v5923
  %5982 = vmatpush1.msra.mxu0 %v5922
  %5983 = vmatprep.subr.mxu0 %v5925
  %5984 = vmatpush1.msra.mxu0 %v5924
  %5985 = vmatprep.subr.mxu0 %v5927
  %5986 = vmatpush1.msra.mxu0 %v5926
  %5987 = vmatprep.subr.mxu0 %v5929
  %5988 = vmatpush1.msra.mxu0 %v5928
  %5989 = vmatprep.subr.mxu0 %v5931
  %5990 = vmatpush1.msra.mxu0 %v5930
  %5991 = vmatprep.subr.mxu0 %v5933
  %5992 = vmatpush1.msra.mxu0 %v5932
  %5993 = vmatprep.subr.mxu0 %v5935
  %5994 = vmatpush1.msra.mxu0 %v5934
  %5995 = vmatprep.subr.mxu0 %v5937
  %5996 = vmatpush1.msra.mxu0 %v5936
  %5997 = vmatprep.subr.mxu0 %v5939
  %5998 = vmatpush1.msra.mxu0 %v5938
  %5999 = vmatprep.subr.mxu0 %v5941
  %6000 = vmatpush1.msra.mxu0 %v5940
  %6001 = vmatprep.subr.mxu0 %v5943
  %6002 = vmatpush1.msra.mxu0 %v5942
  %6003 = vmatprep.subr.mxu0 0.0
  %6004 = vmatpush1.msra.mxu0 0.0
  %6005 = vmatprep.subr.mxu0 0.0
  %6006 = vmatpush1.msra.mxu0 0.0
  %6007 = vmatprep.subr.mxu0 0.0
  %6008 = vmatpush1.msra.mxu0 0.0
  %6009 = vmatprep.subr.mxu0 0.0
  %6010 = vmatpush1.msra.mxu0 0.0
  %6011 = vmatprep.mubr.f32.mxu0 %v5945
  %6012 = vmatmul.mubr.f32.gmra.mrb[0].mxu0 %v5216
  %v6013 = vpop.f32.mrb[0].mxu0
  %v6014 = vadd.f32 0.0, %v6013
  %v6015 = vpop.f32.mrb[0].mxu0
  %v6016 = vadd.f32 0.0, %v6015
  %6017 = vdwg.mxu0
  %v6018 = vadd.f32 %v5885, %v6014
  %v6019 = vadd.f32 %v5886, %v6016
  %s6020 = scalar_lea.vmem %s12, 2688
  %v6021 = vld [vmem:[%s6020] sm:$0xff]
  %v6022 = vld [vmem:[%s6020 + $0x8] sm:$0xff]
  %v6023 = vld [vmem:[%s6020 + $0x10] sm:$0xff]
  %v6024 = vld [vmem:[%s6020 + $0x18] sm:$0xff]
  %v6025 = vld [vmem:[%s6020 + $0x20] sm:$0xff]
  %v6026 = vld [vmem:[%s6020 + $0x28] sm:$0xff]
  %v6027 = vld [vmem:[%s6020 + $0x30] sm:$0xff]
  %v6028 = vld [vmem:[%s6020 + $0x38] sm:$0xff]
  %v6029 = vld [vmem:[%s6020 + $0x40] sm:$0xff]
  %v6030 = vld [vmem:[%s6020 + $0x48] sm:$0xff]
  %v6031 = vld [vmem:[%s6020 + $0x50] sm:$0xff]
  %v6032 = vld [vmem:[%s6020 + $0x58] sm:$0xff]
  %v6033 = vld [vmem:[%s6020 + $0x60] sm:$0xff]
  %v6034 = vld [vmem:[%s6020 + $0x68] sm:$0xff]
  %v6035 = vld [vmem:[%s6020 + $0x70] sm:$0xff]
  %v6036 = vld [vmem:[%s6020 + $0x78] sm:$0xff]
  %v6037 = vld [vmem:[%s6020 + $0x80] sm:$0xff]
  %v6038 = vld [vmem:[%s6020 + $0x88] sm:$0xff]
  %v6039 = vld [vmem:[%s6020 + $0x90] sm:$0xff]
  %v6040 = vld [vmem:[%s6020 + $0x98] sm:$0xff]
  %v6041 = vld [vmem:[%s6020 + $0xa0] sm:$0xff]
  %v6042 = vld [vmem:[%s6020 + $0xa8] sm:$0xff]
  %v6043 = vld [vmem:[%s6020 + $0xb0] sm:$0xff]
  %v6044 = vld [vmem:[%s6020 + $0xb8] sm:$0xff]
  %v6045 = vld [vmem:[%s6020 + $0xc0] sm:$0xff]
  %v6046 = vld [vmem:[%s6020 + $0xc8] sm:$0xff]
  %v6047 = vld [vmem:[%s6020 + $0xd0] sm:$0xff]
  %v6048 = vld [vmem:[%s6020 + $0xd8] sm:$0xff]
  %v6049 = vld [vmem:[%s6020 + $0xe0] sm:$0xff]
  %v6050 = vld [vmem:[%s6020 + $0xe8] sm:$0xff]
  %v6051 = vld [vmem:[%s6020 + $0xf0] sm:$0xff]
  %v6052 = vld [vmem:[%s6020 + $0xf8] sm:$0xff]
  %v6053 = vld [vmem:[%s6020 + $0x100] sm:$0xff]
  %v6054 = vld [vmem:[%s6020 + $0x108] sm:$0xff]
  %v6055 = vld [vmem:[%s6020 + $0x110] sm:$0xff]
  %v6056 = vld [vmem:[%s6020 + $0x118] sm:$0xff]
  %v6057 = vld [vmem:[%s6020 + $0x120] sm:$0xff]
  %v6058 = vld [vmem:[%s6020 + $0x128] sm:$0xff]
  %v6059 = vld [vmem:[%s6020 + $0x130] sm:$0xff]
  %v6060 = vld [vmem:[%s6020 + $0x138] sm:$0xff]
  %v6061 = vld [vmem:[%s6020 + $0x140] sm:$0xff]
  %v6062 = vld [vmem:[%s6020 + $0x148] sm:$0xff]
  %v6063 = vld [vmem:[%s6020 + $0x150] sm:$0xff]
  %v6064 = vld [vmem:[%s6020 + $0x158] sm:$0xff]
  %v6065 = vld [vmem:[%s6020 + $0x160] sm:$0xff]
  %v6066 = vld [vmem:[%s6020 + $0x168] sm:$0xff]
  %v6067 = vld [vmem:[%s6020 + $0x170] sm:$0xff]
  %v6068 = vld [vmem:[%s6020 + $0x178] sm:$0xff]
  %v6069 = vld [vmem:[%s6020 + $0x180] sm:$0xff]
  %v6070 = vld [vmem:[%s6020 + $0x188] sm:$0xff]
  %v6071 = vld [vmem:[%s6020 + $0x190] sm:$0xff]
  %v6072 = vld [vmem:[%s6020 + $0x198] sm:$0xff]
  %v6073 = vld [vmem:[%s6020 + $0x1a0] sm:$0xff]
  %v6074 = vld [vmem:[%s6020 + $0x1a8] sm:$0xff]
  %v6075 = vld [vmem:[%s6020 + $0x1b0] sm:$0xff]
  %v6076 = vld [vmem:[%s6020 + $0x1b8] sm:$0xff]
  %v6078 = vsel %vm5339, %v5224, 0
  %6080 = vmatprep.subr.mxu0 %v6022
  %6081 = vmatpush1.msra.mxu0 %v6021
  %6082 = vmatprep.subr.mxu0 %v6024
  %6083 = vmatpush1.msra.mxu0 %v6023
  %6084 = vmatprep.subr.mxu0 %v6026
  %6085 = vmatpush1.msra.mxu0 %v6025
  %6086 = vmatprep.subr.mxu0 %v6028
  %6087 = vmatpush1.msra.mxu0 %v6027
  %6088 = vmatprep.subr.mxu0 %v6030
  %6089 = vmatpush1.msra.mxu0 %v6029
  %6090 = vmatprep.subr.mxu0 %v6032
  %6091 = vmatpush1.msra.mxu0 %v6031
  %6092 = vmatprep.subr.mxu0 %v6034
  %6093 = vmatpush1.msra.mxu0 %v6033
  %6094 = vmatprep.subr.mxu0 %v6036
  %6095 = vmatpush1.msra.mxu0 %v6035
  %6096 = vmatprep.subr.mxu0 %v6038
  %6097 = vmatpush1.msra.mxu0 %v6037
  %6098 = vmatprep.subr.mxu0 %v6040
  %6099 = vmatpush1.msra.mxu0 %v6039
  %6100 = vmatprep.subr.mxu0 %v6042
  %6101 = vmatpush1.msra.mxu0 %v6041
  %6102 = vmatprep.subr.mxu0 %v6044
  %6103 = vmatpush1.msra.mxu0 %v6043
  %6104 = vmatprep.subr.mxu0 %v6046
  %6105 = vmatpush1.msra.mxu0 %v6045
  %6106 = vmatprep.subr.mxu0 %v6048
  %6107 = vmatpush1.msra.mxu0 %v6047
  %6108 = vmatprep.subr.mxu0 %v6050
  %6109 = vmatpush1.msra.mxu0 %v6049
  %6110 = vmatprep.subr.mxu0 %v6052
  %6111 = vmatpush1.msra.mxu0 %v6051
  %6112 = vmatprep.subr.mxu0 %v6054
  %6113 = vmatpush1.msra.mxu0 %v6053
  %6114 = vmatprep.subr.mxu0 %v6056
  %6115 = vmatpush1.msra.mxu0 %v6055
  %6116 = vmatprep.subr.mxu0 %v6058
  %6117 = vmatpush1.msra.mxu0 %v6057
  %6118 = vmatprep.subr.mxu0 %v6060
  %6119 = vmatpush1.msra.mxu0 %v6059
  %6120 = vmatprep.subr.mxu0 %v6062
  %6121 = vmatpush1.msra.mxu0 %v6061
  %6122 = vmatprep.subr.mxu0 %v6064
  %6123 = vmatpush1.msra.mxu0 %v6063
  %6124 = vmatprep.subr.mxu0 %v6066
  %6125 = vmatpush1.msra.mxu0 %v6065
  %6126 = vmatprep.subr.mxu0 %v6068
  %6127 = vmatpush1.msra.mxu0 %v6067
  %6128 = vmatprep.subr.mxu0 %v6070
  %6129 = vmatpush1.msra.mxu0 %v6069
  %6130 = vmatprep.subr.mxu0 %v6072
  %6131 = vmatpush1.msra.mxu0 %v6071
  %6132 = vmatprep.subr.mxu0 %v6074
  %6133 = vmatpush1.msra.mxu0 %v6073
  %6134 = vmatprep.subr.mxu0 %v6076
  %6135 = vmatpush1.msra.mxu0 %v6075
  %6136 = vmatprep.subr.mxu0 0.0
  %6137 = vmatpush1.msra.mxu0 0.0
  %6138 = vmatprep.subr.mxu0 0.0
  %6139 = vmatpush1.msra.mxu0 0.0
  %6140 = vmatprep.subr.mxu0 0.0
  %6141 = vmatpush1.msra.mxu0 0.0
  %6142 = vmatprep.subr.mxu0 0.0
  %6143 = vmatpush1.msra.mxu0 0.0
  %6144 = vmatprep.mubr.f32.mxu0 %v6078
  %6145 = vmatmul.mubr.f32.gmra.mrb[0].mxu0 %v5222
  %v6146 = vpop.f32.mrb[0].mxu0
  %v6147 = vadd.f32 0.0, %v6146
  %v6148 = vpop.f32.mrb[0].mxu0
  %v6149 = vadd.f32 0.0, %v6148
  %6150 = vdwg.mxu0
  %v6151 = vadd.f32 %v6018, %v6147
  %v6152 = vadd.f32 %v6019, %v6149
  %v6153 = vld [vmem:[%s13] sm:$0x3]
  %v6155 = vlaneseq
  %v6156 = vshrl.u32 %v6155, 7
  %v6157 = vsub.s32 0, %v6156
  %v6158 = vrot.slane %v6153, %v6157
  %v6159 = vlaneseq
  %v6160 = vshrl.u32 %v6159, 7
  %v6161 = vsub.s32 1, %v6160
  %v6162 = vrot.slane %v6153, %v6161
  %v6165 = vadd.f32 %v6151, %v6158
  %v6166 = vadd.f32 %v6152, %v6162
  %v6167 = vmax.f32 %v6165, 0.0
  %v6168 = vmax.f32 %v6166, 0.0
  %v6169 = vld [vmem:[%s14] sm:$0xff]
  %v6170 = vld [vmem:[%s14 + $0x8] sm:$0xff]
  %v6171 = vld [vmem:[%s14 + $0x10] sm:$0xff]
  %v6172 = vld [vmem:[%s14 + $0x18] sm:$0xff]
  %v6173 = vld [vmem:[%s14 + $0x20] sm:$0xff]
  %v6174 = vld [vmem:[%s14 + $0x28] sm:$0xff]
  %v6175 = vld [vmem:[%s14 + $0x30] sm:$0xff]
  %v6176 = vld [vmem:[%s14 + $0x38] sm:$0xff]
  %v6177 = vld [vmem:[%s14 + $0x40] sm:$0xff]
  %v6178 = vld [vmem:[%s14 + $0x48] sm:$0xff]
  %v6179 = vld [vmem:[%s14 + $0x50] sm:$0xff]
  %v6180 = vld [vmem:[%s14 + $0x58] sm:$0xff]
  %v6181 = vld [vmem:[%s14 + $0x60] sm:$0xff]
  %v6182 = vld [vmem:[%s14 + $0x68] sm:$0xff]
  %v6183 = vld [vmem:[%s14 + $0x70] sm:$0xff]
  %v6184 = vld [vmem:[%s14 + $0x78] sm:$0xff]
  %v6185 = vld [vmem:[%s14 + $0x80] sm:$0xff]
  %v6186 = vld [vmem:[%s14 + $0x88] sm:$0xff]
  %v6187 = vld [vmem:[%s14 + $0x90] sm:$0xff]
  %v6188 = vld [vmem:[%s14 + $0x98] sm:$0xff]
  %v6189 = vld [vmem:[%s14 + $0xa0] sm:$0xff]
  %v6190 = vld [vmem:[%s14 + $0xa8] sm:$0xff]
  %v6191 = vld [vmem:[%s14 + $0xb0] sm:$0xff]
  %v6192 = vld [vmem:[%s14 + $0xb8] sm:$0xff]
  %v6193 = vld [vmem:[%s14 + $0xc0] sm:$0xff]
  %v6194 = vld [vmem:[%s15] sm:$0x1]
  %v6196 = vlaneseq
  %v6197 = vshrl.u32 %v6196, 7
  %v6198 = vsub.s32 0, %v6197
  %v6199 = vrot.slane %v6194, %v6198
  %vm6201 = vcmask 588800
  %v6203 = vsel %vm6201, %v6168, 0
  %6205 = vmatprep.subr.mxu0 0.0
  %6206 = vmatpush1.msra.mxu0 %v6169
  %6207 = vmatprep.subr.mxu0 0.0
  %6208 = vmatpush1.msra.mxu0 %v6170
  %6209 = vmatprep.subr.mxu0 0.0
  %6210 = vmatpush1.msra.mxu0 %v6171
  %6211 = vmatprep.subr.mxu0 0.0
  %6212 = vmatpush1.msra.mxu0 %v6172
  %6213 = vmatprep.subr.mxu0 0.0
  %6214 = vmatpush1.msra.mxu0 %v6173
  %6215 = vmatprep.subr.mxu0 0.0
  %6216 = vmatpush1.msra.mxu0 %v6174
  %6217 = vmatprep.subr.mxu0 0.0
  %6218 = vmatpush1.msra.mxu0 %v6175
  %6219 = vmatprep.subr.mxu0 0.0
  %6220 = vmatpush1.msra.mxu0 %v6176
  %6221 = vmatprep.subr.mxu0 0.0
  %6222 = vmatpush1.msra.mxu0 %v6177
  %6223 = vmatprep.subr.mxu0 0.0
  %6224 = vmatpush1.msra.mxu0 %v6178
  %6225 = vmatprep.subr.mxu0 0.0
  %6226 = vmatpush1.msra.mxu0 %v6179
  %6227 = vmatprep.subr.mxu0 0.0
  %6228 = vmatpush1.msra.mxu0 %v6180
  %6229 = vmatprep.subr.mxu0 0.0
  %6230 = vmatpush1.msra.mxu0 %v6181
  %6231 = vmatprep.subr.mxu0 0.0
  %6232 = vmatpush1.msra.mxu0 %v6182
  %6233 = vmatprep.subr.mxu0 0.0
  %6234 = vmatpush1.msra.mxu0 %v6183
  %6235 = vmatprep.subr.mxu0 0.0
  %6236 = vmatpush1.msra.mxu0 %v6184
  %6237 = vmatprep.subr.mxu0 0.0
  %6238 = vmatpush1.msra.mxu0 %v6185
  %6239 = vmatprep.subr.mxu0 0.0
  %6240 = vmatpush1.msra.mxu0 %v6186
  %6241 = vmatprep.subr.mxu0 0.0
  %6242 = vmatpush1.msra.mxu0 %v6187
  %6243 = vmatprep.subr.mxu0 0.0
  %6244 = vmatpush1.msra.mxu0 %v6188
  %6245 = vmatprep.subr.mxu0 0.0
  %6246 = vmatpush1.msra.mxu0 %v6189
  %6247 = vmatprep.subr.mxu0 0.0
  %6248 = vmatpush1.msra.mxu0 %v6190
  %6249 = vmatprep.subr.mxu0 0.0
  %6250 = vmatpush1.msra.mxu0 %v6191
  %6251 = vmatprep.subr.mxu0 0.0
  %6252 = vmatpush1.msra.mxu0 %v6192
  %6253 = vmatprep.subr.mxu0 0.0
  %6254 = vmatpush1.msra.mxu0 %v6193
  %6255 = vmatprep.subr.mxu0 0.0
  %6256 = vmatpush1.msra.mxu0 0.0
  %6257 = vmatprep.subr.mxu0 0.0
  %6258 = vmatpush1.msra.mxu0 0.0
  %6259 = vmatprep.subr.mxu0 0.0
  %6260 = vmatpush1.msra.mxu0 0.0
  %6261 = vmatprep.subr.mxu0 0.0
  %6262 = vmatpush1.msra.mxu0 0.0
  %6263 = vmatprep.subr.mxu0 0.0
  %6264 = vmatpush1.msra.mxu0 0.0
  %6265 = vmatprep.subr.mxu0 0.0
  %6266 = vmatpush1.msra.mxu0 0.0
  %6267 = vmatprep.subr.mxu0 0.0
  %6268 = vmatpush1.msra.mxu0 0.0
  %6269 = vmatprep.mubr.f32.mxu0 %v6203
  %6270 = vmatmul.mubr.f32.gmra.mrb[0].mxu0 %v6167
  %v6271 = vpop.f32.mrb[0].mxu0
  %v6272 = vadd.f32 %v6199, %v6271
  %v6273 = vpop.f32.mrb[0].mxu0
  %6274 = vdwg.mxu0
  %6275 = vst [vmem:[%s16] sm:$0xff] %v6272
  // Predicated region
  $region66: #{net_forward.1} parent=0 // pred_check
    _
  $region67: #{net_forward.1} parent=0 // pred_check_branch
    %6277 = sbr.rel (0) target = $region69
  $region68: #{net_forward.1} parent=0 // pred_region
    _
  $region69: #{net_forward.1} parent=0 // pred_fallthru
    _
  // Predicated region
  $region70: #{net_forward.1} parent=0 // pred_check
    _
  $region71: #{net_forward.1} parent=0 // pred_check_branch
    %6279 = sbr.rel (0) target = $region73
  $region72: #{net_forward.1} parent=0 // pred_region
    _
  $region73: #{net_forward.1} parent=0 // pred_fallthru
    _

</llo_original>
